<compile_context>
chip_gen: v7x
topology: tpu7x:2x2x1
jax: 0.10.0
libtpu: 0.0.40
codegen_flags: <defaults>
</compile_context>

<pallas_src>
import functools

import jax
import jax.numpy as jnp
from jax.experimental import pallas as pl
from jax.experimental.pallas import tpu as pltpu

EPS = 1e-5
FEATURE_DTYPE = jnp.bfloat16   # inter-block feature-map storage dtype; compute stays f32


def _vmem_limit_bytes():
    # Raise the scoped-VMEM limit (defaults: 16 MiB v5e / 32 MiB v6e,v7x) with ~25% headroom
    # below physical capacity so larger resident tiles remain viable on every chip.
    try:
        cap = int(pltpu.get_tpu_info().vmem_capacity_bytes)
    except Exception:  # conservative fallback, safe on v7x (64 MiB physical)
        cap = 64 * 1024 * 1024
    return min(cap * 3 // 4, 100 * 1024 * 1024)


_VMEM_LIMIT = _vmem_limit_bytes()


# ---------------------------------------------------------------------------
# Pallas kernels
# ---------------------------------------------------------------------------

def _stem_kernel(xp_ref, w_ref, b_ref, o_ref, patch_ref, stage_ref):
    # xp_ref: (1, Hp, Wp, 3) f32 zero-padded input; w_ref: (27, C0) bf16 (BN folded);
    # b_ref: (1, C0) f32; o_ref: (1, Ho, Wo*C0) bf16 lane-dense;
    # patch_ref: VMEM (Ho*Wo, 27) bf16 im2col staging; stage_ref: VMEM (Ho, Wo, C0) f32.
    _, _, _, Ci = xp_ref.shape
    Ho, Wo, C0 = stage_ref.shape

    # Build the 9-tap im2col operand once (strided in-kernel gathers), then ONE K=27 MXU
    # matmul instead of nine latency-bound K=3 matmuls.
    for kh in range(3):
        for kw in range(3):
            tap = xp_ref[:, pl.ds(kh, Ho, stride=2), pl.ds(kw, Wo, stride=2), :]
            t = kh * 3 + kw
            patch_ref[:, t * Ci:(t + 1) * Ci] = (
                tap.reshape(Ho * Wo, Ci).astype(patch_ref.dtype))

    y = jnp.dot(patch_ref[...], w_ref[...], preferred_element_type=jnp.float32)
    y = jnp.maximum(y + b_ref[...], 0.0)                       # fused BN bias + ReLU
    stage_ref[...] = y.reshape(Ho, Wo, C0)

    # Lane-dense store: o_ref's last dim is Wo*C0 (dense VMEM buffer, contiguous HBM DMA).
    for w in range(Wo):
        o_ref[0, :, w * C0:(w + 1) * C0] = stage_ref[:, w, :].astype(o_ref.dtype)


def stem_forward(params, x):
    # x: (N, H, W, 3) f32.  One padded copy of the (tiny, 3-channel) network input in XLA.
    N, H, W, _ = x.shape
    Ho, Wo = (H - 1) // 2 + 1, (W - 1) // 2 + 1
    xp = jnp.pad(x, ((0, 0), (1, 1), (1, 1), (0, 0)))
    Hp, Wp = H + 2, W + 2
    C0 = params["b"].shape[1]
    out = pl.pallas_call(
        _stem_kernel,
        grid=(N,),
        in_specs=[
            pl.BlockSpec((1, Hp, Wp, 3), lambda n: (n, 0, 0, 0)),
            pl.BlockSpec((27, C0), lambda n: (0, 0)),
            pl.BlockSpec((1, C0), lambda n: (0, 0)),
        ],
        out_specs=pl.BlockSpec((1, Ho, Wo * C0), lambda n: (n, 0, 0)),
        out_shape=jax.ShapeDtypeStruct((N, Ho, Wo * C0), FEATURE_DTYPE),
        scratch_shapes=[pltpu.VMEM((Ho * Wo, 27), jnp.bfloat16),
                        pltpu.VMEM((Ho, Wo, C0), jnp.float32)],
        compiler_params=pltpu.CompilerParams(
            dimension_semantics=("parallel",), vmem_limit_bytes=_VMEM_LIMIT),
    )(xp, params["w"], params["b"])
    return out.reshape(N, Ho, Wo, C0)        # free view of the contiguous NHWC bytes


def _block_kernel(x_ref, pwg_w_ref, pwg_b_ref, dw_w_ref, dw_b_ref,
                  o_ref, pad_ref, acc_ref, *, stride):
    # x_ref: (1, H*W, Cin) bf16 view of the NHWC feature map (matmul-ready);
    # pwg_w: (Cin, 2*Cout) bf16 = [pointwise | gate] 1x1 conv, BN + residual folded;
    # pwg_b: (1, 2*Cout) f32; dw_w: (9, Cout) f32 (BN + identity/avg-pool down path folded);
    # dw_b: (1, Cout) f32; o_ref: (1, Ho, Wo*Cout) bf16 lane-dense;
    # pad_ref: VMEM (H+2, W+2, Cout) f32; acc_ref: VMEM (Ho, Wo, Cout) f32 staging.
    Hp2, Wp2, Cout = pad_ref.shape
    H, W = Hp2 - 2, Wp2 - 2
    Ho, Wo, _ = acc_ref.shape

    # Fused pointwise conv + ClaSiLU gate conv: one packed MXU matmul (bf16 in, f32 acc).
    # GAP commutes with the 1x1 conv, so the gate is just the row-mean of the second half.
    x = x_ref[0]                                                        # (H*W, Cin) bf16
    yg = jnp.dot(x, pwg_w_ref[...], preferred_element_type=jnp.float32) + pwg_b_ref[...]
    y = yg[:, :Cout]                         # pointwise conv + folded BN + folded residual
    g = jnp.mean(yg[:, Cout:], axis=0, keepdims=True)                   # (1, Cout) gate
    a = y * jax.nn.sigmoid(y + g)                                       # ClaSiLU (VPU + EUP)

    # Zero only the 1-px halo strips (not the whole buffer); write the interior once.
    zrow = jnp.zeros((1, Wp2, Cout), jnp.float32)
    zcol = jnp.zeros((Hp2, 1, Cout), jnp.float32)
    pad_ref[0:1, :, :] = zrow
    pad_ref[H + 1:H + 2, :, :] = zrow
    pad_ref[:, 0:1, :] = zcol
    pad_ref[:, W + 1:W + 2, :] = zcol
    pad_ref[1:H + 1, 1:W + 1, :] = a.reshape(H, W, Cout)

    # Depthwise 3x3 at the block stride; the identity (s1) / AvgPool2d(3,2,1) (s2) down path
    # is folded into dw_w, so one pass produces conv_dw(a) + down(a).
    acc = jnp.zeros((Ho, Wo, Cout), jnp.float32)
    for kh in range(3):
        for kw in range(3):
            if stride == 1:
                tap = pad_ref[kh:kh + Ho, kw:kw + Wo, :]
            else:
                tap = pad_ref[pl.ds(kh, Ho, stride=2), pl.ds(kw, Wo, stride=2), :]
            acc = acc + tap * dw_w_ref[kh * 3 + kw, :]
    acc_ref[...] = acc + dw_b_ref[...]

    # Lane-dense output: regroup (Ho, Wo, Cout) -> (Ho, Wo*Cout) with small ref copies so the
    # output VMEM buffer is dense and its HBM DMA is a contiguous copy (no masked-lane DMA).
    for w in range(Wo):
        o_ref[0, :, w * Cout:(w + 1) * Cout] = acc_ref[:, w, :].astype(o_ref.dtype)


def block_forward(params, x, stride):
    N, H, W, Cin = x.shape
    Cout = params["dw_b"].shape[1]
    Ho = (H - 1) // stride + 1
    Wo = (W - 1) // stride + 1
    x2 = x.reshape(N, H * W, Cin)            # free view of the contiguous NHWC bytes
    kernel = functools.partial(_block_kernel, stride=stride)
    out = pl.pallas_call(
        kernel,
        grid=(N,),
        in_specs=[
            pl.BlockSpec((1, H * W, Cin), lambda n: (n, 0, 0)),
            pl.BlockSpec((Cin, 2 * Cout), lambda n: (0, 0)),
            pl.BlockSpec((1, 2 * Cout), lambda n: (0, 0)),
            pl.BlockSpec((9, Cout), lambda n: (0, 0)),
            pl.BlockSpec((1, Cout), lambda n: (0, 0)),
        ],
        out_specs=pl.BlockSpec((1, Ho, Wo * Cout), lambda n: (n, 0, 0)),
        out_shape=jax.ShapeDtypeStruct((N, Ho, Wo * Cout), FEATURE_DTYPE),
        scratch_shapes=[pltpu.VMEM((H + 2, W + 2, Cout), jnp.float32),
                        pltpu.VMEM((Ho, Wo, Cout), jnp.float32)],
        compiler_params=pltpu.CompilerParams(
            dimension_semantics=("parallel",), vmem_limit_bytes=_VMEM_LIMIT),
    )(x2, params["pwg_w"], params["pwg_b"], params["dw_w"], params["dw_b"])
    return out.reshape(N, Ho, Wo, Cout)      # free view back to logical NHWC


# ---------------------------------------------------------------------------
# Parameter construction (deterministic, mirrors RepMobile.init_params; BN + residual +
# down-path folded into conv weights at setup time; pointwise + gate weights packed)
# ---------------------------------------------------------------------------

def _bn_affine(c):
    # init_params(): gamma=1, beta=0; fresh running stats: mean=0, var=1 (inference BN).
    gamma = jnp.ones((c,), jnp.float32)
    beta = jnp.zeros((c,), jnp.float32)
    mean = jnp.zeros((c,), jnp.float32)
    var = jnp.ones((c,), jnp.float32)
    a = gamma / jnp.sqrt(var + EPS)
    b = beta - mean * a
    return a, b


def _kaiming(key, shape, fan_out):
    # kaiming_normal_(mode='fan_out'): std = sqrt(2 / fan_out)
    return jax.random.normal(key, shape, jnp.float32) * jnp.sqrt(2.0 / fan_out)


def make_block_params(key, in_dim, out_dim, stride):
    # Fail loudly if the residual fold assumption is violated (review correctness concern).
    if stride == 1:
        assert out_dim == in_dim, "stride-1 Block requires out_dim == in_dim"
    else:
        assert out_dim == 2 * in_dim, "stride-2 Block requires out_dim == 2 * in_dim"

    k_pw, k_dw, k_gate = jax.random.split(key, 3)

    # conv_pw = BN(in) -> Conv1x1(in, out); fold BN affine into weights/bias.
    a_in, b_in = _bn_affine(in_dim)
    w_pw = _kaiming(k_pw, (in_dim, out_dim), fan_out=out_dim)          # (Cin, Cout)
    pw_w = a_in[:, None] * w_pw
    pw_b = b_in @ w_pw                                                 # conv bias init 0
    # Fold the residual add into the pointwise weights:
    #   stride 1: y1 + x            -> + I            (Cout == Cin)
    #   stride 2: y1 + cat(x, x)    -> + [I | I]      (Cout == 2*Cin)
    eye = jnp.eye(in_dim, dtype=jnp.float32)
    res_w = jnp.concatenate([eye, eye], axis=1) if stride == 2 else eye
    pw_w = pw_w + res_w

    # ClaSiLU gate = GAP -> BN(in) -> Conv1x1(in, out); fold BN.  GAP commutes with the conv,
    # so the gate weights are packed next to the pointwise weights for a single MXU matmul.
    w_g = _kaiming(k_gate, (in_dim, out_dim), fan_out=out_dim)
    gate_w = a_in[:, None] * w_g
    gate_b = b_in @ w_g
    pwg_w = jnp.concatenate([pw_w, gate_w], axis=1)                    # (Cin, 2*Cout)
    pwg_b = jnp.concatenate([pw_b, gate_b]).reshape(1, 2 * out_dim)

    # conv_dw = BN(out) -> depthwise Conv3x3(out); fold BN into weights/bias.
    a_o, b_o = _bn_affine(out_dim)
    w_dw = _kaiming(k_dw, (9, out_dim), fan_out=out_dim * 9)           # (kh*kw, C)
    dw_w = w_dw * a_o[None, :]
    dw_b = b_o * jnp.sum(w_dw, axis=0)                                 # conv bias init 0
    # Fold the down path (acting on the ClaSiLU output itself, i.e. the folded-weight input):
    #   stride 1: + Identity(y1)                      -> center tap += 1
    #   stride 2: + AvgPool2d(3,2,1, include_pad)     -> every tap += 1/9
    if stride == 2:
        dw_w = dw_w + 1.0 / 9.0
    else:
        dw_w = dw_w.at[4].add(1.0)

    return dict(
        pwg_w=pwg_w.astype(jnp.bfloat16),
        pwg_b=pwg_b.astype(jnp.float32),
        dw_w=dw_w.astype(jnp.float32),
        dw_b=dw_b.reshape(1, out_dim).astype(jnp.float32),
    )


def make_stem_params(key, c_out):
    # Conv2d(3, c_out, 3, stride=2, pad=1, bias=False) -> BN -> ReLU.  Fold BN.
    w = _kaiming(key, (3, 3, 3, c_out), fan_out=c_out * 9)             # HWIO
    a, b = _bn_affine(c_out)
    w27 = (w * a[None, None, None, :]).reshape(27, c_out)              # (tap*Cin, Cout)
    return dict(w=w27.astype(jnp.bfloat16), b=b.reshape(1, c_out).astype(jnp.float32))


def make_repmobile_params(key, dims, layers):
    n_blocks = sum(layers)
    keys = jax.random.split(key, n_blocks + 1)
    params = {"stem": make_stem_params(keys[0], dims[0] // 2), "layers": []}
    kidx = 1
    in_dim = dims[0] // 2
    for d, nl in zip(dims, layers):
        blocks = []
        for bi in range(nl):
            stride = 2 if bi == 0 else 1
            blocks.append((make_block_params(keys[kidx], in_dim, d, stride), stride))
            kidx += 1
            in_dim = d
        params["layers"].append(blocks)
    return params


# ---------------------------------------------------------------------------
# Forward pass (NHWC inside, NCHW at the interface, one Pallas kernel per stage/block)
# ---------------------------------------------------------------------------

def repmobile_forward(params, x_nchw):
    x = jnp.transpose(x_nchw, (0, 2, 3, 1))                            # NCHW -> NHWC
    out = stem_forward(params["stem"], x)
    outs = []
    for blocks in params["layers"]:
        for bparams, stride in blocks:
            out = block_forward(bparams, out, stride)
        outs.append(jnp.transpose(out, (0, 3, 1, 2)).astype(jnp.float32))  # NCHW, f32 pyramid
    return outs


# TODO(synk): init_weights() checkpoint loading is intentionally skipped (synthetic params).

if __name__ == "__main__":
    dims = [16, 32, 64, 128]
    layers = [1, 1, 2, 1]
    key = jax.random.PRNGKey(0)
    kp, kx = jax.random.split(key)
    params = make_repmobile_params(kp, dims, layers)
    x = jax.random.normal(kx, (2, 3, 32, 32), jnp.float32)             # NCHW, like PyTorch

    fwd = jax.jit(lambda inp: repmobile_forward(params, inp))          # strides stay static
    outs = jax.block_until_ready(fwd(x))

    expected = [(2, 16, 8, 8), (2, 32, 4, 4), (2, 64, 2, 2), (2, 128, 1, 1)]
    got = [tuple(o.shape) for o in outs]
    assert got == expected, f"shape mismatch: {got} vs {expected}"
    assert all(bool(jnp.all(jnp.isfinite(o))) for o in outs)
    print("KERNEL_OK")
</pallas_src>

<mosaic_0001>
module attributes {stable_mosaic.version = 11 : i64} {
  func.func @_stem_kernel(%arg0: i32, %arg1: memref<1x34x34x3xf32, #tpu.memory_space<vmem>>, %arg2: memref<27x8xbf16, #tpu.memory_space<vmem>>, %arg3: memref<1x8xf32, #tpu.memory_space<vmem>>, %arg4: memref<1x16x128xbf16, #tpu.memory_space<vmem>>, %arg5: memref<256x27xbf16, #tpu.memory_space<vmem>>, %arg6: memref<16x16x8xf32, #tpu.memory_space<vmem>>) attributes {dimension_semantics = [#tpu.dimension_semantics<parallel>], iteration_bounds = array<i64: 2>, scalar_prefetch = 0 : i64, scratch_operands = 2 : i64, tpu.core_type = #tpu.core_type<tc>, window_params = [{transform_indices = @transform_0, window_bounds = array<i64: 1, 34, 34, 3>}, {pipeline_mode = #tpu.pipeline_mode<synchronous>, transform_indices = @transform_1, window_bounds = array<i64: 27, 8>}, {pipeline_mode = #tpu.pipeline_mode<synchronous>, transform_indices = @transform_2, window_bounds = array<i64: 1, 8>}, {transform_indices = @transform_3, window_bounds = array<i64: 1, 16, 128>}]} {
    %c0 = arith.constant 0 : index
    %c0_0 = arith.constant 0 : index
    %c0_1 = arith.constant 0 : index
    %c0_2 = arith.constant 0 : index
    %0 = tpu.strided_load %arg1[%c0, %c0_0, %c0_1, %c0_2] {strides = array<i32: 1, 2, 2, 1>} : memref<1x34x34x3xf32, #tpu.memory_space<vmem>>, vector<1x16x16x3xf32>
    %1 = vector.shape_cast %0 : vector<1x16x16x3xf32> to vector<256x3xf32>
    %2 = arith.truncf %1 : vector<256x3xf32> to vector<256x3xbf16>
    %c0_3 = arith.constant 0 : index
    %c0_4 = arith.constant 0 : index
    %3 = vector.load %arg5[%c0_3, %c0_4] : memref<256x27xbf16, #tpu.memory_space<vmem>>, vector<256x3xbf16>
    tpu.vector_store %arg5[%c0_3, %c0_4], %2 {strides = array<i32>} : memref<256x27xbf16, #tpu.memory_space<vmem>>, vector<256x3xbf16>,
    %c0_5 = arith.constant 0 : index
    %c0_6 = arith.constant 0 : index
    %c1 = arith.constant 1 : index
    %c0_7 = arith.constant 0 : index
    %4 = tpu.strided_load %arg1[%c0_5, %c0_6, %c1, %c0_7] {strides = array<i32: 1, 2, 2, 1>} : memref<1x34x34x3xf32, #tpu.memory_space<vmem>>, vector<1x16x16x3xf32>
    %5 = vector.shape_cast %4 : vector<1x16x16x3xf32> to vector<256x3xf32>
    %6 = arith.truncf %5 : vector<256x3xf32> to vector<256x3xbf16>
    %c0_8 = arith.constant 0 : index
    %c3 = arith.constant 3 : index
    %7 = vector.load %arg5[%c0_8, %c3] : memref<256x27xbf16, #tpu.memory_space<vmem>>, vector<256x3xbf16>
    tpu.vector_store %arg5[%c0_8, %c3], %6 {strides = array<i32>} : memref<256x27xbf16, #tpu.memory_space<vmem>>, vector<256x3xbf16>,
    %c0_9 = arith.constant 0 : index
    %c0_10 = arith.constant 0 : index
    %c2 = arith.constant 2 : index
    %c0_11 = arith.constant 0 : index
    %8 = tpu.strided_load %arg1[%c0_9, %c0_10, %c2, %c0_11] {strides = array<i32: 1, 2, 2, 1>} : memref<1x34x34x3xf32, #tpu.memory_space<vmem>>, vector<1x16x16x3xf32>
    %9 = vector.shape_cast %8 : vector<1x16x16x3xf32> to vector<256x3xf32>
    %10 = arith.truncf %9 : vector<256x3xf32> to vector<256x3xbf16>
    %c0_12 = arith.constant 0 : index
    %c6 = arith.constant 6 : index
    %11 = vector.load %arg5[%c0_12, %c6] : memref<256x27xbf16, #tpu.memory_space<vmem>>, vector<256x3xbf16>
    tpu.vector_store %arg5[%c0_12, %c6], %10 {strides = array<i32>} : memref<256x27xbf16, #tpu.memory_space<vmem>>, vector<256x3xbf16>,
    %c0_13 = arith.constant 0 : index
    %c1_14 = arith.constant 1 : index
    %c0_15 = arith.constant 0 : index
    %c0_16 = arith.constant 0 : index
    %12 = tpu.strided_load %arg1[%c0_13, %c1_14, %c0_15, %c0_16] {strides = array<i32: 1, 2, 2, 1>} : memref<1x34x34x3xf32, #tpu.memory_space<vmem>>, vector<1x16x16x3xf32>
    %13 = vector.shape_cast %12 : vector<1x16x16x3xf32> to vector<256x3xf32>
    %14 = arith.truncf %13 : vector<256x3xf32> to vector<256x3xbf16>
    %c0_17 = arith.constant 0 : index
    %c9 = arith.constant 9 : index
    %15 = vector.load %arg5[%c0_17, %c9] : memref<256x27xbf16, #tpu.memory_space<vmem>>, vector<256x3xbf16>
    tpu.vector_store %arg5[%c0_17, %c9], %14 {strides = array<i32>} : memref<256x27xbf16, #tpu.memory_space<vmem>>, vector<256x3xbf16>,
    %c0_18 = arith.constant 0 : index
    %c1_19 = arith.constant 1 : index
    %c1_20 = arith.constant 1 : index
    %c0_21 = arith.constant 0 : index
    %16 = tpu.strided_load %arg1[%c0_18, %c1_19, %c1_20, %c0_21] {strides = array<i32: 1, 2, 2, 1>} : memref<1x34x34x3xf32, #tpu.memory_space<vmem>>, vector<1x16x16x3xf32>
    %17 = vector.shape_cast %16 : vector<1x16x16x3xf32> to vector<256x3xf32>
    %18 = arith.truncf %17 : vector<256x3xf32> to vector<256x3xbf16>
    %c0_22 = arith.constant 0 : index
    %c12 = arith.constant 12 : index
    %19 = vector.load %arg5[%c0_22, %c12] : memref<256x27xbf16, #tpu.memory_space<vmem>>, vector<256x3xbf16>
    tpu.vector_store %arg5[%c0_22, %c12], %18 {strides = array<i32>} : memref<256x27xbf16, #tpu.memory_space<vmem>>, vector<256x3xbf16>,
    %c0_23 = arith.constant 0 : index
    %c1_24 = arith.constant 1 : index
    %c2_25 = arith.constant 2 : index
    %c0_26 = arith.constant 0 : index
    %20 = tpu.strided_load %arg1[%c0_23, %c1_24, %c2_25, %c0_26] {strides = array<i32: 1, 2, 2, 1>} : memref<1x34x34x3xf32, #tpu.memory_space<vmem>>, vector<1x16x16x3xf32>
    %21 = vector.shape_cast %20 : vector<1x16x16x3xf32> to vector<256x3xf32>
    %22 = arith.truncf %21 : vector<256x3xf32> to vector<256x3xbf16>
    %c0_27 = arith.constant 0 : index
    %c15 = arith.constant 15 : index
    %23 = vector.load %arg5[%c0_27, %c15] : memref<256x27xbf16, #tpu.memory_space<vmem>>, vector<256x3xbf16>
    tpu.vector_store %arg5[%c0_27, %c15], %22 {strides = array<i32>} : memref<256x27xbf16, #tpu.memory_space<vmem>>, vector<256x3xbf16>,
    %c0_28 = arith.constant 0 : index
    %c2_29 = arith.constant 2 : index
    %c0_30 = arith.constant 0 : index
    %c0_31 = arith.constant 0 : index
    %24 = tpu.strided_load %arg1[%c0_28, %c2_29, %c0_30, %c0_31] {strides = array<i32: 1, 2, 2, 1>} : memref<1x34x34x3xf32, #tpu.memory_space<vmem>>, vector<1x16x16x3xf32>
    %25 = vector.shape_cast %24 : vector<1x16x16x3xf32> to vector<256x3xf32>
    %26 = arith.truncf %25 : vector<256x3xf32> to vector<256x3xbf16>
    %c0_32 = arith.constant 0 : index
    %c18 = arith.constant 18 : index
    %27 = vector.load %arg5[%c0_32, %c18] : memref<256x27xbf16, #tpu.memory_space<vmem>>, vector<256x3xbf16>
    tpu.vector_store %arg5[%c0_32, %c18], %26 {strides = array<i32>} : memref<256x27xbf16, #tpu.memory_space<vmem>>, vector<256x3xbf16>,
    %c0_33 = arith.constant 0 : index
    %c2_34 = arith.constant 2 : index
    %c1_35 = arith.constant 1 : index
    %c0_36 = arith.constant 0 : index
    %28 = tpu.strided_load %arg1[%c0_33, %c2_34, %c1_35, %c0_36] {strides = array<i32: 1, 2, 2, 1>} : memref<1x34x34x3xf32, #tpu.memory_space<vmem>>, vector<1x16x16x3xf32>
    %29 = vector.shape_cast %28 : vector<1x16x16x3xf32> to vector<256x3xf32>
    %30 = arith.truncf %29 : vector<256x3xf32> to vector<256x3xbf16>
    %c0_37 = arith.constant 0 : index
    %c21 = arith.constant 21 : index
    %31 = vector.load %arg5[%c0_37, %c21] : memref<256x27xbf16, #tpu.memory_space<vmem>>, vector<256x3xbf16>
    tpu.vector_store %arg5[%c0_37, %c21], %30 {strides = array<i32>} : memref<256x27xbf16, #tpu.memory_space<vmem>>, vector<256x3xbf16>,
    %c0_38 = arith.constant 0 : index
    %c2_39 = arith.constant 2 : index
    %c2_40 = arith.constant 2 : index
    %c0_41 = arith.constant 0 : index
    %32 = tpu.strided_load %arg1[%c0_38, %c2_39, %c2_40, %c0_41] {strides = array<i32: 1, 2, 2, 1>} : memref<1x34x34x3xf32, #tpu.memory_space<vmem>>, vector<1x16x16x3xf32>
    %33 = vector.shape_cast %32 : vector<1x16x16x3xf32> to vector<256x3xf32>
    %34 = arith.truncf %33 : vector<256x3xf32> to vector<256x3xbf16>
    %c0_42 = arith.constant 0 : index
    %c24 = arith.constant 24 : index
    %35 = vector.load %arg5[%c0_42, %c24] : memref<256x27xbf16, #tpu.memory_space<vmem>>, vector<256x3xbf16>
    tpu.vector_store %arg5[%c0_42, %c24], %34 {strides = array<i32>} : memref<256x27xbf16, #tpu.memory_space<vmem>>, vector<256x3xbf16>,
    %c0_43 = arith.constant 0 : index
    %c0_44 = arith.constant 0 : index
    %36 = vector.load %arg5[%c0_43, %c0_44] : memref<256x27xbf16, #tpu.memory_space<vmem>>, vector<256x27xbf16>
    %c0_45 = arith.constant 0 : index
    %c0_46 = arith.constant 0 : index
    %37 = vector.load %arg2[%c0_45, %c0_46] : memref<27x8xbf16, #tpu.memory_space<vmem>>, vector<27x8xbf16>
    %cst = arith.constant dense<0.000000e+00> : vector<256x8xf32>
    %38 = tpu.matmul %36, %37, %cst {dimension_numbers = #tpu.dot_dimension_numbers<[1], [0], [0], [1], [0, 0, 1, 1], [], []>} : vector<256x27xbf16>, vector<27x8xbf16>, vector<256x8xf32> -> vector<256x8xf32>
    %c0_47 = arith.constant 0 : index
    %c0_48 = arith.constant 0 : index
    %39 = vector.load %arg3[%c0_47, %c0_48] : memref<1x8xf32, #tpu.memory_space<vmem>>, vector<1x8xf32>
    %40 = vector.broadcast %39 : vector<1x8xf32> to vector<256x8xf32>
    %41 = arith.addf %38, %40 : vector<256x8xf32>
    %cst_49 = arith.constant 0.000000e+00 : f32
    %42 = vector.broadcast %cst_49 : f32 to vector<256x8xf32>
    %43 = arith.maximumf %41, %42 : vector<256x8xf32>
    %44 = vector.shape_cast %43 : vector<256x8xf32> to vector<16x16x8xf32>
    %c0_50 = arith.constant 0 : index
    %c0_51 = arith.constant 0 : index
    %c0_52 = arith.constant 0 : index
    %45 = vector.load %arg6[%c0_50, %c0_51, %c0_52] : memref<16x16x8xf32, #tpu.memory_space<vmem>>, vector<16x16x8xf32>
    tpu.vector_store %arg6[%c0_50, %c0_51, %c0_52], %44 {strides = array<i32>} : memref<16x16x8xf32, #tpu.memory_space<vmem>>, vector<16x16x8xf32>,
    %c0_53 = arith.constant 0 : index
    %c0_54 = arith.constant 0 : index
    %c0_55 = arith.constant 0 : index
    %46 = vector.load %arg6[%c0_53, %c0_54, %c0_55] : memref<16x16x8xf32, #tpu.memory_space<vmem>>, vector<16x1x8xf32>
    %47 = vector.shape_cast %46 : vector<16x1x8xf32> to vector<16x8xf32>
    %48 = arith.truncf %47 : vector<16x8xf32> to vector<16x8xbf16>
    %c0_56 = arith.constant 0 : index
    %c0_57 = arith.constant 0 : index
    %c0_58 = arith.constant 0 : index
    %49 = vector.load %arg4[%c0_56, %c0_57, %c0_58] : memref<1x16x128xbf16, #tpu.memory_space<vmem>>, vector<1x16x8xbf16>
    %50 = vector.shape_cast %49 : vector<1x16x8xbf16> to vector<16x8xbf16>
    %51 = vector.shape_cast %48 : vector<16x8xbf16> to vector<1x16x8xbf16>
    tpu.vector_store %arg4[%c0_56, %c0_57, %c0_58], %51 {strides = array<i32>} : memref<1x16x128xbf16, #tpu.memory_space<vmem>>, vector<1x16x8xbf16>,
    %c0_59 = arith.constant 0 : index
    %c1_60 = arith.constant 1 : index
    %c0_61 = arith.constant 0 : index
    %52 = vector.load %arg6[%c0_59, %c1_60, %c0_61] : memref<16x16x8xf32, #tpu.memory_space<vmem>>, vector<16x1x8xf32>
    %53 = vector.shape_cast %52 : vector<16x1x8xf32> to vector<16x8xf32>
    %54 = arith.truncf %53 : vector<16x8xf32> to vector<16x8xbf16>
    %c0_62 = arith.constant 0 : index
    %c0_63 = arith.constant 0 : index
    %c8 = arith.constant 8 : index
    %55 = vector.load %arg4[%c0_62, %c0_63, %c8] : memref<1x16x128xbf16, #tpu.memory_space<vmem>>, vector<1x16x8xbf16>
    %56 = vector.shape_cast %55 : vector<1x16x8xbf16> to vector<16x8xbf16>
    %57 = vector.shape_cast %54 : vector<16x8xbf16> to vector<1x16x8xbf16>
    tpu.vector_store %arg4[%c0_62, %c0_63, %c8], %57 {strides = array<i32>} : memref<1x16x128xbf16, #tpu.memory_space<vmem>>, vector<1x16x8xbf16>,
    %c0_64 = arith.constant 0 : index
    %c2_65 = arith.constant 2 : index
    %c0_66 = arith.constant 0 : index
    %58 = vector.load %arg6[%c0_64, %c2_65, %c0_66] : memref<16x16x8xf32, #tpu.memory_space<vmem>>, vector<16x1x8xf32>
    %59 = vector.shape_cast %58 : vector<16x1x8xf32> to vector<16x8xf32>
    %60 = arith.truncf %59 : vector<16x8xf32> to vector<16x8xbf16>
    %c0_67 = arith.constant 0 : index
    %c0_68 = arith.constant 0 : index
    %c16 = arith.constant 16 : index
    %61 = vector.load %arg4[%c0_67, %c0_68, %c16] : memref<1x16x128xbf16, #tpu.memory_space<vmem>>, vector<1x16x8xbf16>
    %62 = vector.shape_cast %61 : vector<1x16x8xbf16> to vector<16x8xbf16>
    %63 = vector.shape_cast %60 : vector<16x8xbf16> to vector<1x16x8xbf16>
    tpu.vector_store %arg4[%c0_67, %c0_68, %c16], %63 {strides = array<i32>} : memref<1x16x128xbf16, #tpu.memory_space<vmem>>, vector<1x16x8xbf16>,
    %c0_69 = arith.constant 0 : index
    %c3_70 = arith.constant 3 : index
    %c0_71 = arith.constant 0 : index
    %64 = vector.load %arg6[%c0_69, %c3_70, %c0_71] : memref<16x16x8xf32, #tpu.memory_space<vmem>>, vector<16x1x8xf32>
    %65 = vector.shape_cast %64 : vector<16x1x8xf32> to vector<16x8xf32>
    %66 = arith.truncf %65 : vector<16x8xf32> to vector<16x8xbf16>
    %c0_72 = arith.constant 0 : index
    %c0_73 = arith.constant 0 : index
    %c24_74 = arith.constant 24 : index
    %67 = vector.load %arg4[%c0_72, %c0_73, %c24_74] : memref<1x16x128xbf16, #tpu.memory_space<vmem>>, vector<1x16x8xbf16>
    %68 = vector.shape_cast %67 : vector<1x16x8xbf16> to vector<16x8xbf16>
    %69 = vector.shape_cast %66 : vector<16x8xbf16> to vector<1x16x8xbf16>
    tpu.vector_store %arg4[%c0_72, %c0_73, %c24_74], %69 {strides = array<i32>} : memref<1x16x128xbf16, #tpu.memory_space<vmem>>, vector<1x16x8xbf16>,
    %c0_75 = arith.constant 0 : index
    %c4 = arith.constant 4 : index
    %c0_76 = arith.constant 0 : index
    %70 = vector.load %arg6[%c0_75, %c4, %c0_76] : memref<16x16x8xf32, #tpu.memory_space<vmem>>, vector<16x1x8xf32>
    %71 = vector.shape_cast %70 : vector<16x1x8xf32> to vector<16x8xf32>
    %72 = arith.truncf %71 : vector<16x8xf32> to vector<16x8xbf16>
    %c0_77 = arith.constant 0 : index
    %c0_78 = arith.constant 0 : index
    %c32 = arith.constant 32 : index
    %73 = vector.load %arg4[%c0_77, %c0_78, %c32] : memref<1x16x128xbf16, #tpu.memory_space<vmem>>, vector<1x16x8xbf16>
    %74 = vector.shape_cast %73 : vector<1x16x8xbf16> to vector<16x8xbf16>
    %75 = vector.shape_cast %72 : vector<16x8xbf16> to vector<1x16x8xbf16>
    tpu.vector_store %arg4[%c0_77, %c0_78, %c32], %75 {strides = array<i32>} : memref<1x16x128xbf16, #tpu.memory_space<vmem>>, vector<1x16x8xbf16>,
    %c0_79 = arith.constant 0 : index
    %c5 = arith.constant 5 : index
    %c0_80 = arith.constant 0 : index
    %76 = vector.load %arg6[%c0_79, %c5, %c0_80] : memref<16x16x8xf32, #tpu.memory_space<vmem>>, vector<16x1x8xf32>
    %77 = vector.shape_cast %76 : vector<16x1x8xf32> to vector<16x8xf32>
    %78 = arith.truncf %77 : vector<16x8xf32> to vector<16x8xbf16>
    %c0_81 = arith.constant 0 : index
    %c0_82 = arith.constant 0 : index
    %c40 = arith.constant 40 : index
    %79 = vector.load %arg4[%c0_81, %c0_82, %c40] : memref<1x16x128xbf16, #tpu.memory_space<vmem>>, vector<1x16x8xbf16>
    %80 = vector.shape_cast %79 : vector<1x16x8xbf16> to vector<16x8xbf16>
    %81 = vector.shape_cast %78 : vector<16x8xbf16> to vector<1x16x8xbf16>
    tpu.vector_store %arg4[%c0_81, %c0_82, %c40], %81 {strides = array<i32>} : memref<1x16x128xbf16, #tpu.memory_space<vmem>>, vector<1x16x8xbf16>,
    %c0_83 = arith.constant 0 : index
    %c6_84 = arith.constant 6 : index
    %c0_85 = arith.constant 0 : index
    %82 = vector.load %arg6[%c0_83, %c6_84, %c0_85] : memref<16x16x8xf32, #tpu.memory_space<vmem>>, vector<16x1x8xf32>
    %83 = vector.shape_cast %82 : vector<16x1x8xf32> to vector<16x8xf32>
    %84 = arith.truncf %83 : vector<16x8xf32> to vector<16x8xbf16>
    %c0_86 = arith.constant 0 : index
    %c0_87 = arith.constant 0 : index
    %c48 = arith.constant 48 : index
    %85 = vector.load %arg4[%c0_86, %c0_87, %c48] : memref<1x16x128xbf16, #tpu.memory_space<vmem>>, vector<1x16x8xbf16>
    %86 = vector.shape_cast %85 : vector<1x16x8xbf16> to vector<16x8xbf16>
    %87 = vector.shape_cast %84 : vector<16x8xbf16> to vector<1x16x8xbf16>
    tpu.vector_store %arg4[%c0_86, %c0_87, %c48], %87 {strides = array<i32>} : memref<1x16x128xbf16, #tpu.memory_space<vmem>>, vector<1x16x8xbf16>,
    %c0_88 = arith.constant 0 : index
    %c7 = arith.constant 7 : index
    %c0_89 = arith.constant 0 : index
    %88 = vector.load %arg6[%c0_88, %c7, %c0_89] : memref<16x16x8xf32, #tpu.memory_space<vmem>>, vector<16x1x8xf32>
    %89 = vector.shape_cast %88 : vector<16x1x8xf32> to vector<16x8xf32>
    %90 = arith.truncf %89 : vector<16x8xf32> to vector<16x8xbf16>
    %c0_90 = arith.constant 0 : index
    %c0_91 = arith.constant 0 : index
    %c56 = arith.constant 56 : index
    %91 = vector.load %arg4[%c0_90, %c0_91, %c56] : memref<1x16x128xbf16, #tpu.memory_space<vmem>>, vector<1x16x8xbf16>
    %92 = vector.shape_cast %91 : vector<1x16x8xbf16> to vector<16x8xbf16>
    %93 = vector.shape_cast %90 : vector<16x8xbf16> to vector<1x16x8xbf16>
    tpu.vector_store %arg4[%c0_90, %c0_91, %c56], %93 {strides = array<i32>} : memref<1x16x128xbf16, #tpu.memory_space<vmem>>, vector<1x16x8xbf16>,
    %c0_92 = arith.constant 0 : index
    %c8_93 = arith.constant 8 : index
    %c0_94 = arith.constant 0 : index
    %94 = vector.load %arg6[%c0_92, %c8_93, %c0_94] : memref<16x16x8xf32, #tpu.memory_space<vmem>>, vector<16x1x8xf32>
    %95 = vector.shape_cast %94 : vector<16x1x8xf32> to vector<16x8xf32>
    %96 = arith.truncf %95 : vector<16x8xf32> to vector<16x8xbf16>
    %c0_95 = arith.constant 0 : index
    %c0_96 = arith.constant 0 : index
    %c64 = arith.constant 64 : index
    %97 = vector.load %arg4[%c0_95, %c0_96, %c64] : memref<1x16x128xbf16, #tpu.memory_space<vmem>>, vector<1x16x8xbf16>
    %98 = vector.shape_cast %97 : vector<1x16x8xbf16> to vector<16x8xbf16>
    %99 = vector.shape_cast %96 : vector<16x8xbf16> to vector<1x16x8xbf16>
    tpu.vector_store %arg4[%c0_95, %c0_96, %c64], %99 {strides = array<i32>} : memref<1x16x128xbf16, #tpu.memory_space<vmem>>, vector<1x16x8xbf16>,
    %c0_97 = arith.constant 0 : index
    %c9_98 = arith.constant 9 : index
    %c0_99 = arith.constant 0 : index
    %100 = vector.load %arg6[%c0_97, %c9_98, %c0_99] : memref<16x16x8xf32, #tpu.memory_space<vmem>>, vector<16x1x8xf32>
    %101 = vector.shape_cast %100 : vector<16x1x8xf32> to vector<16x8xf32>
    %102 = arith.truncf %101 : vector<16x8xf32> to vector<16x8xbf16>
    %c0_100 = arith.constant 0 : index
    %c0_101 = arith.constant 0 : index
    %c72 = arith.constant 72 : index
    %103 = vector.load %arg4[%c0_100, %c0_101, %c72] : memref<1x16x128xbf16, #tpu.memory_space<vmem>>, vector<1x16x8xbf16>
    %104 = vector.shape_cast %103 : vector<1x16x8xbf16> to vector<16x8xbf16>
    %105 = vector.shape_cast %102 : vector<16x8xbf16> to vector<1x16x8xbf16>
    tpu.vector_store %arg4[%c0_100, %c0_101, %c72], %105 {strides = array<i32>} : memref<1x16x128xbf16, #tpu.memory_space<vmem>>, vector<1x16x8xbf16>,
    %c0_102 = arith.constant 0 : index
    %c10 = arith.constant 10 : index
    %c0_103 = arith.constant 0 : index
    %106 = vector.load %arg6[%c0_102, %c10, %c0_103] : memref<16x16x8xf32, #tpu.memory_space<vmem>>, vector<16x1x8xf32>
    %107 = vector.shape_cast %106 : vector<16x1x8xf32> to vector<16x8xf32>
    %108 = arith.truncf %107 : vector<16x8xf32> to vector<16x8xbf16>
    %c0_104 = arith.constant 0 : index
    %c0_105 = arith.constant 0 : index
    %c80 = arith.constant 80 : index
    %109 = vector.load %arg4[%c0_104, %c0_105, %c80] : memref<1x16x128xbf16, #tpu.memory_space<vmem>>, vector<1x16x8xbf16>
    %110 = vector.shape_cast %109 : vector<1x16x8xbf16> to vector<16x8xbf16>
    %111 = vector.shape_cast %108 : vector<16x8xbf16> to vector<1x16x8xbf16>
    tpu.vector_store %arg4[%c0_104, %c0_105, %c80], %111 {strides = array<i32>} : memref<1x16x128xbf16, #tpu.memory_space<vmem>>, vector<1x16x8xbf16>,
    %c0_106 = arith.constant 0 : index
    %c11 = arith.constant 11 : index
    %c0_107 = arith.constant 0 : index
    %112 = vector.load %arg6[%c0_106, %c11, %c0_107] : memref<16x16x8xf32, #tpu.memory_space<vmem>>, vector<16x1x8xf32>
    %113 = vector.shape_cast %112 : vector<16x1x8xf32> to vector<16x8xf32>
    %114 = arith.truncf %113 : vector<16x8xf32> to vector<16x8xbf16>
    %c0_108 = arith.constant 0 : index
    %c0_109 = arith.constant 0 : index
    %c88 = arith.constant 88 : index
    %115 = vector.load %arg4[%c0_108, %c0_109, %c88] : memref<1x16x128xbf16, #tpu.memory_space<vmem>>, vector<1x16x8xbf16>
    %116 = vector.shape_cast %115 : vector<1x16x8xbf16> to vector<16x8xbf16>
    %117 = vector.shape_cast %114 : vector<16x8xbf16> to vector<1x16x8xbf16>
    tpu.vector_store %arg4[%c0_108, %c0_109, %c88], %117 {strides = array<i32>} : memref<1x16x128xbf16, #tpu.memory_space<vmem>>, vector<1x16x8xbf16>,
    %c0_110 = arith.constant 0 : index
    %c12_111 = arith.constant 12 : index
    %c0_112 = arith.constant 0 : index
    %118 = vector.load %arg6[%c0_110, %c12_111, %c0_112] : memref<16x16x8xf32, #tpu.memory_space<vmem>>, vector<16x1x8xf32>
    %119 = vector.shape_cast %118 : vector<16x1x8xf32> to vector<16x8xf32>
    %120 = arith.truncf %119 : vector<16x8xf32> to vector<16x8xbf16>
    %c0_113 = arith.constant 0 : index
    %c0_114 = arith.constant 0 : index
    %c96 = arith.constant 96 : index
    %121 = vector.load %arg4[%c0_113, %c0_114, %c96] : memref<1x16x128xbf16, #tpu.memory_space<vmem>>, vector<1x16x8xbf16>
    %122 = vector.shape_cast %121 : vector<1x16x8xbf16> to vector<16x8xbf16>
    %123 = vector.shape_cast %120 : vector<16x8xbf16> to vector<1x16x8xbf16>
    tpu.vector_store %arg4[%c0_113, %c0_114, %c96], %123 {strides = array<i32>} : memref<1x16x128xbf16, #tpu.memory_space<vmem>>, vector<1x16x8xbf16>,
    %c0_115 = arith.constant 0 : index
    %c13 = arith.constant 13 : index
    %c0_116 = arith.constant 0 : index
    %124 = vector.load %arg6[%c0_115, %c13, %c0_116] : memref<16x16x8xf32, #tpu.memory_space<vmem>>, vector<16x1x8xf32>
    %125 = vector.shape_cast %124 : vector<16x1x8xf32> to vector<16x8xf32>
    %126 = arith.truncf %125 : vector<16x8xf32> to vector<16x8xbf16>
    %c0_117 = arith.constant 0 : index
    %c0_118 = arith.constant 0 : index
    %c104 = arith.constant 104 : index
    %127 = vector.load %arg4[%c0_117, %c0_118, %c104] : memref<1x16x128xbf16, #tpu.memory_space<vmem>>, vector<1x16x8xbf16>
    %128 = vector.shape_cast %127 : vector<1x16x8xbf16> to vector<16x8xbf16>
    %129 = vector.shape_cast %126 : vector<16x8xbf16> to vector<1x16x8xbf16>
    tpu.vector_store %arg4[%c0_117, %c0_118, %c104], %129 {strides = array<i32>} : memref<1x16x128xbf16, #tpu.memory_space<vmem>>, vector<1x16x8xbf16>,
    %c0_119 = arith.constant 0 : index
    %c14 = arith.constant 14 : index
    %c0_120 = arith.constant 0 : index
    %130 = vector.load %arg6[%c0_119, %c14, %c0_120] : memref<16x16x8xf32, #tpu.memory_space<vmem>>, vector<16x1x8xf32>
    %131 = vector.shape_cast %130 : vector<16x1x8xf32> to vector<16x8xf32>
    %132 = arith.truncf %131 : vector<16x8xf32> to vector<16x8xbf16>
    %c0_121 = arith.constant 0 : index
    %c0_122 = arith.constant 0 : index
    %c112 = arith.constant 112 : index
    %133 = vector.load %arg4[%c0_121, %c0_122, %c112] : memref<1x16x128xbf16, #tpu.memory_space<vmem>>, vector<1x16x8xbf16>
    %134 = vector.shape_cast %133 : vector<1x16x8xbf16> to vector<16x8xbf16>
    %135 = vector.shape_cast %132 : vector<16x8xbf16> to vector<1x16x8xbf16>
    tpu.vector_store %arg4[%c0_121, %c0_122, %c112], %135 {strides = array<i32>} : memref<1x16x128xbf16, #tpu.memory_space<vmem>>, vector<1x16x8xbf16>,
    %c0_123 = arith.constant 0 : index
    %c15_124 = arith.constant 15 : index
    %c0_125 = arith.constant 0 : index
    %136 = vector.load %arg6[%c0_123, %c15_124, %c0_125] : memref<16x16x8xf32, #tpu.memory_space<vmem>>, vector<16x1x8xf32>
    %137 = vector.shape_cast %136 : vector<16x1x8xf32> to vector<16x8xf32>
    %138 = arith.truncf %137 : vector<16x8xf32> to vector<16x8xbf16>
    %c0_126 = arith.constant 0 : index
    %c0_127 = arith.constant 0 : index
    %c120 = arith.constant 120 : index
    %139 = vector.load %arg4[%c0_126, %c0_127, %c120] : memref<1x16x128xbf16, #tpu.memory_space<vmem>>, vector<1x16x8xbf16>
    %140 = vector.shape_cast %139 : vector<1x16x8xbf16> to vector<16x8xbf16>
    %141 = vector.shape_cast %138 : vector<16x8xbf16> to vector<1x16x8xbf16>
    tpu.vector_store %arg4[%c0_126, %c0_127, %c120], %141 {strides = array<i32>} : memref<1x16x128xbf16, #tpu.memory_space<vmem>>, vector<1x16x8xbf16>,
    return
  }
  func.func @transform_0(%arg0: i32) -> (i32, i32, i32, i32) {
    %c0_i32 = arith.constant 0 : i32
    %c0_i32_0 = arith.constant 0 : i32
    %c0_i32_1 = arith.constant 0 : i32
    %c0_i32_2 = arith.constant 0 : i32
    return %arg0, %c0_i32, %c0_i32_0, %c0_i32_1 : i32, i32, i32, i32
  }
  func.func @transform_1(%arg0: i32) -> (i32, i32) {
    %c0_i32 = arith.constant 0 : i32
    %c0_i32_0 = arith.constant 0 : i32
    %c0_i32_1 = arith.constant 0 : i32
    return %c0_i32, %c0_i32_0 : i32, i32
  }
  func.func @transform_2(%arg0: i32) -> (i32, i32) {
    %c0_i32 = arith.constant 0 : i32
    %c0_i32_0 = arith.constant 0 : i32
    %c0_i32_1 = arith.constant 0 : i32
    return %c0_i32, %c0_i32_0 : i32, i32
  }
  func.func @transform_3(%arg0: i32) -> (i32, i32, i32) {
    %c0_i32 = arith.constant 0 : i32
    %c0_i32_0 = arith.constant 0 : i32
    %c0_i32_1 = arith.constant 0 : i32
    return %arg0, %c0_i32, %c0_i32_0 : i32, i32, i32
  }
}

module attributes {stable_mosaic.version = 11 : i64} {
  func.func @_block_kernel(%arg0: i32, %arg1: memref<1x256x8xbf16, #tpu.memory_space<vmem>>, %arg2: memref<8x32xbf16, #tpu.memory_space<vmem>>, %arg3: memref<1x32xf32, #tpu.memory_space<vmem>>, %arg4: memref<9x16xf32, #tpu.memory_space<vmem>>, %arg5: memref<1x16xf32, #tpu.memory_space<vmem>>, %arg6: memref<1x8x128xbf16, #tpu.memory_space<vmem>>, %arg7: memref<18x18x16xf32, #tpu.memory_space<vmem>>, %arg8: memref<8x8x16xf32, #tpu.memory_space<vmem>>) attributes {dimension_semantics = [#tpu.dimension_semantics<parallel>], iteration_bounds = array<i64: 2>, scalar_prefetch = 0 : i64, scratch_operands = 2 : i64, tpu.core_type = #tpu.core_type<tc>, window_params = [{transform_indices = @transform_0, window_bounds = array<i64: 1, 256, 8>}, {pipeline_mode = #tpu.pipeline_mode<synchronous>, transform_indices = @transform_1, window_bounds = array<i64: 8, 32>}, {pipeline_mode = #tpu.pipeline_mode<synchronous>, transform_indices = @transform_2, window_bounds = array<i64: 1, 32>}, {pipeline_mode = #tpu.pipeline_mode<synchronous>, transform_indices = @transform_3, window_bounds = array<i64: 9, 16>}, {pipeline_mode = #tpu.pipeline_mode<synchronous>, transform_indices = @transform_4, window_bounds = array<i64: 1, 16>}, {transform_indices = @transform_5, window_bounds = array<i64: 1, 8, 128>}]} {
    %c0 = arith.constant 0 : index
    %c0_0 = arith.constant 0 : index
    %c0_1 = arith.constant 0 : index
    %0 = vector.load %arg1[%c0, %c0_0, %c0_1] : memref<1x256x8xbf16, #tpu.memory_space<vmem>>, vector<1x256x8xbf16>
    %1 = vector.shape_cast %0 : vector<1x256x8xbf16> to vector<256x8xbf16>
    %c0_2 = arith.constant 0 : index
    %c0_3 = arith.constant 0 : index
    %2 = vector.load %arg2[%c0_2, %c0_3] : memref<8x32xbf16, #tpu.memory_space<vmem>>, vector<8x32xbf16>
    %cst = arith.constant dense<0.000000e+00> : vector<256x32xf32>
    %3 = tpu.matmul %1, %2, %cst {dimension_numbers = #tpu.dot_dimension_numbers<[1], [0], [0], [1], [0, 0, 1, 1], [], []>} : vector<256x8xbf16>, vector<8x32xbf16>, vector<256x32xf32> -> vector<256x32xf32>
    %c0_4 = arith.constant 0 : index
    %c0_5 = arith.constant 0 : index
    %4 = vector.load %arg3[%c0_4, %c0_5] : memref<1x32xf32, #tpu.memory_space<vmem>>, vector<1x32xf32>
    %5 = vector.broadcast %4 : vector<1x32xf32> to vector<256x32xf32>
    %6 = arith.addf %3, %5 : vector<256x32xf32>
    %7 = vector.extract_strided_slice %6 {offsets = [0, 0], sizes = [256, 16], strides = [1, 1]} : vector<256x32xf32> to vector<256x16xf32>
    %8 = vector.extract_strided_slice %6 {offsets = [0, 16], sizes = [256, 16], strides = [1, 1]} : vector<256x32xf32> to vector<256x16xf32>
    %cst_6 = arith.constant dense<0.000000e+00> : vector<16xf32>
    %9 = vector.multi_reduction <add>, %8, %cst_6 [0] : vector<256x16xf32> to vector<16xf32>
    %10 = vector.shape_cast %9 : vector<16xf32> to vector<1x16xf32>
    %cst_7 = arith.constant 2.560000e+02 : f32
    %11 = vector.broadcast %cst_7 : f32 to vector<1x16xf32>
    %12 = arith.divf %10, %11 : vector<1x16xf32>
    %13 = vector.broadcast %12 : vector<1x16xf32> to vector<256x16xf32>
    %14 = arith.addf %7, %13 : vector<256x16xf32>
    %15 = arith.negf %14 : vector<256x16xf32>
    %16 = math.exp %15 : vector<256x16xf32>
    %cst_8 = arith.constant 1.000000e+00 : f32
    %17 = vector.broadcast %cst_8 : f32 to vector<256x16xf32>
    %18 = arith.addf %17, %16 : vector<256x16xf32>
    %19 = arith.divf %17, %18 : vector<256x16xf32>
    %20 = arith.mulf %7, %19 : vector<256x16xf32>
    %cst_9 = arith.constant 0.000000e+00 : f32
    %21 = vector.broadcast %cst_9 : f32 to vector<1x18x16xf32>
    %cst_10 = arith.constant 0.000000e+00 : f32
    %22 = vector.broadcast %cst_10 : f32 to vector<18x1x16xf32>
    %c0_11 = arith.constant 0 : index
    %c0_12 = arith.constant 0 : index
    %c0_13 = arith.constant 0 : index
    %23 = vector.load %arg7[%c0_11, %c0_12, %c0_13] : memref<18x18x16xf32, #tpu.memory_space<vmem>>, vector<1x18x16xf32>
    tpu.vector_store %arg7[%c0_11, %c0_12, %c0_13], %21 {strides = array<i32>} : memref<18x18x16xf32, #tpu.memory_space<vmem>>, vector<1x18x16xf32>,
    %c17 = arith.constant 17 : index
    %c0_14 = arith.constant 0 : index
    %c0_15 = arith.constant 0 : index
    %24 = vector.load %arg7[%c17, %c0_14, %c0_15] : memref<18x18x16xf32, #tpu.memory_space<vmem>>, vector<1x18x16xf32>
    tpu.vector_store %arg7[%c17, %c0_14, %c0_15], %21 {strides = array<i32>} : memref<18x18x16xf32, #tpu.memory_space<vmem>>, vector<1x18x16xf32>,
    %c0_16 = arith.constant 0 : index
    %c0_17 = arith.constant 0 : index
    %c0_18 = arith.constant 0 : index
    %25 = vector.load %arg7[%c0_16, %c0_17, %c0_18] : memref<18x18x16xf32, #tpu.memory_space<vmem>>, vector<18x1x16xf32>
    tpu.vector_store %arg7[%c0_16, %c0_17, %c0_18], %22 {strides = array<i32>} : memref<18x18x16xf32, #tpu.memory_space<vmem>>, vector<18x1x16xf32>,
    %c0_19 = arith.constant 0 : index
    %c17_20 = arith.constant 17 : index
    %c0_21 = arith.constant 0 : index
    %26 = vector.load %arg7[%c0_19, %c17_20, %c0_21] : memref<18x18x16xf32, #tpu.memory_space<vmem>>, vector<18x1x16xf32>
    tpu.vector_store %arg7[%c0_19, %c17_20, %c0_21], %22 {strides = array<i32>} : memref<18x18x16xf32, #tpu.memory_space<vmem>>, vector<18x1x16xf32>,
    %27 = vector.shape_cast %20 : vector<256x16xf32> to vector<16x16x16xf32>
    %c1 = arith.constant 1 : index
    %c1_22 = arith.constant 1 : index
    %c0_23 = arith.constant 0 : index
    %28 = vector.load %arg7[%c1, %c1_22, %c0_23] : memref<18x18x16xf32, #tpu.memory_space<vmem>>, vector<16x16x16xf32>
    tpu.vector_store %arg7[%c1, %c1_22, %c0_23], %27 {strides = array<i32>} : memref<18x18x16xf32, #tpu.memory_space<vmem>>, vector<16x16x16xf32>,
    %cst_24 = arith.constant 0.000000e+00 : f32
    %29 = vector.broadcast %cst_24 : f32 to vector<8x8x16xf32>
    %c0_25 = arith.constant 0 : index
    %c0_26 = arith.constant 0 : index
    %c0_27 = arith.constant 0 : index
    %30 = tpu.strided_load %arg7[%c0_25, %c0_26, %c0_27] {strides = array<i32: 2, 2, 1>} : memref<18x18x16xf32, #tpu.memory_space<vmem>>, vector<8x8x16xf32>
    %c0_28 = arith.constant 0 : index
    %c0_29 = arith.constant 0 : index
    %31 = vector.load %arg4[%c0_28, %c0_29] : memref<9x16xf32, #tpu.memory_space<vmem>>, vector<1x16xf32>
    %32 = vector.shape_cast %31 : vector<1x16xf32> to vector<16xf32>
    %33 = vector.shape_cast %32 : vector<16xf32> to vector<1x1x16xf32>
    %34 = vector.broadcast %33 : vector<1x1x16xf32> to vector<8x8x16xf32>
    %35 = arith.mulf %30, %34 : vector<8x8x16xf32>
    %36 = arith.addf %29, %35 : vector<8x8x16xf32>
    %c0_30 = arith.constant 0 : index
    %c1_31 = arith.constant 1 : index
    %c0_32 = arith.constant 0 : index
    %37 = tpu.strided_load %arg7[%c0_30, %c1_31, %c0_32] {strides = array<i32: 2, 2, 1>} : memref<18x18x16xf32, #tpu.memory_space<vmem>>, vector<8x8x16xf32>
    %c1_33 = arith.constant 1 : index
    %c0_34 = arith.constant 0 : index
    %38 = vector.load %arg4[%c1_33, %c0_34] : memref<9x16xf32, #tpu.memory_space<vmem>>, vector<1x16xf32>
    %39 = vector.shape_cast %38 : vector<1x16xf32> to vector<16xf32>
    %40 = vector.shape_cast %39 : vector<16xf32> to vector<1x1x16xf32>
    %41 = vector.broadcast %40 : vector<1x1x16xf32> to vector<8x8x16xf32>
    %42 = arith.mulf %37, %41 : vector<8x8x16xf32>
    %43 = arith.addf %36, %42 : vector<8x8x16xf32>
    %c0_35 = arith.constant 0 : index
    %c2 = arith.constant 2 : index
    %c0_36 = arith.constant 0 : index
    %44 = tpu.strided_load %arg7[%c0_35, %c2, %c0_36] {strides = array<i32: 2, 2, 1>} : memref<18x18x16xf32, #tpu.memory_space<vmem>>, vector<8x8x16xf32>
    %c2_37 = arith.constant 2 : index
    %c0_38 = arith.constant 0 : index
    %45 = vector.load %arg4[%c2_37, %c0_38] : memref<9x16xf32, #tpu.memory_space<vmem>>, vector<1x16xf32>
    %46 = vector.shape_cast %45 : vector<1x16xf32> to vector<16xf32>
    %47 = vector.shape_cast %46 : vector<16xf32> to vector<1x1x16xf32>
    %48 = vector.broadcast %47 : vector<1x1x16xf32> to vector<8x8x16xf32>
    %49 = arith.mulf %44, %48 : vector<8x8x16xf32>
    %50 = arith.addf %43, %49 : vector<8x8x16xf32>
    %c1_39 = arith.constant 1 : index
    %c0_40 = arith.constant 0 : index
    %c0_41 = arith.constant 0 : index
    %51 = tpu.strided_load %arg7[%c1_39, %c0_40, %c0_41] {strides = array<i32: 2, 2, 1>} : memref<18x18x16xf32, #tpu.memory_space<vmem>>, vector<8x8x16xf32>
    %c3 = arith.constant 3 : index
    %c0_42 = arith.constant 0 : index
    %52 = vector.load %arg4[%c3, %c0_42] : memref<9x16xf32, #tpu.memory_space<vmem>>, vector<1x16xf32>
    %53 = vector.shape_cast %52 : vector<1x16xf32> to vector<16xf32>
    %54 = vector.shape_cast %53 : vector<16xf32> to vector<1x1x16xf32>
    %55 = vector.broadcast %54 : vector<1x1x16xf32> to vector<8x8x16xf32>
    %56 = arith.mulf %51, %55 : vector<8x8x16xf32>
    %57 = arith.addf %50, %56 : vector<8x8x16xf32>
    %c1_43 = arith.constant 1 : index
    %c1_44 = arith.constant 1 : index
    %c0_45 = arith.constant 0 : index
    %58 = tpu.strided_load %arg7[%c1_43, %c1_44, %c0_45] {strides = array<i32: 2, 2, 1>} : memref<18x18x16xf32, #tpu.memory_space<vmem>>, vector<8x8x16xf32>
    %c4 = arith.constant 4 : index
    %c0_46 = arith.constant 0 : index
    %59 = vector.load %arg4[%c4, %c0_46] : memref<9x16xf32, #tpu.memory_space<vmem>>, vector<1x16xf32>
    %60 = vector.shape_cast %59 : vector<1x16xf32> to vector<16xf32>
    %61 = vector.shape_cast %60 : vector<16xf32> to vector<1x1x16xf32>
    %62 = vector.broadcast %61 : vector<1x1x16xf32> to vector<8x8x16xf32>
    %63 = arith.mulf %58, %62 : vector<8x8x16xf32>
    %64 = arith.addf %57, %63 : vector<8x8x16xf32>
    %c1_47 = arith.constant 1 : index
    %c2_48 = arith.constant 2 : index
    %c0_49 = arith.constant 0 : index
    %65 = tpu.strided_load %arg7[%c1_47, %c2_48, %c0_49] {strides = array<i32: 2, 2, 1>} : memref<18x18x16xf32, #tpu.memory_space<vmem>>, vector<8x8x16xf32>
    %c5 = arith.constant 5 : index
    %c0_50 = arith.constant 0 : index
    %66 = vector.load %arg4[%c5, %c0_50] : memref<9x16xf32, #tpu.memory_space<vmem>>, vector<1x16xf32>
    %67 = vector.shape_cast %66 : vector<1x16xf32> to vector<16xf32>
    %68 = vector.shape_cast %67 : vector<16xf32> to vector<1x1x16xf32>
    %69 = vector.broadcast %68 : vector<1x1x16xf32> to vector<8x8x16xf32>
    %70 = arith.mulf %65, %69 : vector<8x8x16xf32>
    %71 = arith.addf %64, %70 : vector<8x8x16xf32>
    %c2_51 = arith.constant 2 : index
    %c0_52 = arith.constant 0 : index
    %c0_53 = arith.constant 0 : index
    %72 = tpu.strided_load %arg7[%c2_51, %c0_52, %c0_53] {strides = array<i32: 2, 2, 1>} : memref<18x18x16xf32, #tpu.memory_space<vmem>>, vector<8x8x16xf32>
    %c6 = arith.constant 6 : index
    %c0_54 = arith.constant 0 : index
    %73 = vector.load %arg4[%c6, %c0_54] : memref<9x16xf32, #tpu.memory_space<vmem>>, vector<1x16xf32>
    %74 = vector.shape_cast %73 : vector<1x16xf32> to vector<16xf32>
    %75 = vector.shape_cast %74 : vector<16xf32> to vector<1x1x16xf32>
    %76 = vector.broadcast %75 : vector<1x1x16xf32> to vector<8x8x16xf32>
    %77 = arith.mulf %72, %76 : vector<8x8x16xf32>
    %78 = arith.addf %71, %77 : vector<8x8x16xf32>
    %c2_55 = arith.constant 2 : index
    %c1_56 = arith.constant 1 : index
    %c0_57 = arith.constant 0 : index
    %79 = tpu.strided_load %arg7[%c2_55, %c1_56, %c0_57] {strides = array<i32: 2, 2, 1>} : memref<18x18x16xf32, #tpu.memory_space<vmem>>, vector<8x8x16xf32>
    %c7 = arith.constant 7 : index
    %c0_58 = arith.constant 0 : index
    %80 = vector.load %arg4[%c7, %c0_58] : memref<9x16xf32, #tpu.memory_space<vmem>>, vector<1x16xf32>
    %81 = vector.shape_cast %80 : vector<1x16xf32> to vector<16xf32>
    %82 = vector.shape_cast %81 : vector<16xf32> to vector<1x1x16xf32>
    %83 = vector.broadcast %82 : vector<1x1x16xf32> to vector<8x8x16xf32>
    %84 = arith.mulf %79, %83 : vector<8x8x16xf32>
    %85 = arith.addf %78, %84 : vector<8x8x16xf32>
    %c2_59 = arith.constant 2 : index
    %c2_60 = arith.constant 2 : index
    %c0_61 = arith.constant 0 : index
    %86 = tpu.strided_load %arg7[%c2_59, %c2_60, %c0_61] {strides = array<i32: 2, 2, 1>} : memref<18x18x16xf32, #tpu.memory_space<vmem>>, vector<8x8x16xf32>
    %c8 = arith.constant 8 : index
    %c0_62 = arith.constant 0 : index
    %87 = vector.load %arg4[%c8, %c0_62] : memref<9x16xf32, #tpu.memory_space<vmem>>, vector<1x16xf32>
    %88 = vector.shape_cast %87 : vector<1x16xf32> to vector<16xf32>
    %89 = vector.shape_cast %88 : vector<16xf32> to vector<1x1x16xf32>
    %90 = vector.broadcast %89 : vector<1x1x16xf32> to vector<8x8x16xf32>
    %91 = arith.mulf %86, %90 : vector<8x8x16xf32>
    %92 = arith.addf %85, %91 : vector<8x8x16xf32>
    %c0_63 = arith.constant 0 : index
    %c0_64 = arith.constant 0 : index
    %93 = vector.load %arg5[%c0_63, %c0_64] : memref<1x16xf32, #tpu.memory_space<vmem>>, vector<1x16xf32>
    %94 = vector.shape_cast %93 : vector<1x16xf32> to vector<1x1x16xf32>
    %95 = vector.broadcast %94 : vector<1x1x16xf32> to vector<8x8x16xf32>
    %96 = arith.addf %92, %95 : vector<8x8x16xf32>
    %c0_65 = arith.constant 0 : index
    %c0_66 = arith.constant 0 : index
    %c0_67 = arith.constant 0 : index
    %97 = vector.load %arg8[%c0_65, %c0_66, %c0_67] : memref<8x8x16xf32, #tpu.memory_space<vmem>>, vector<8x8x16xf32>
    tpu.vector_store %arg8[%c0_65, %c0_66, %c0_67], %96 {strides = array<i32>} : memref<8x8x16xf32, #tpu.memory_space<vmem>>, vector<8x8x16xf32>,
    %c0_68 = arith.constant 0 : index
    %c0_69 = arith.constant 0 : index
    %c0_70 = arith.constant 0 : index
    %98 = vector.load %arg8[%c0_68, %c0_69, %c0_70] : memref<8x8x16xf32, #tpu.memory_space<vmem>>, vector<8x1x16xf32>
    %99 = vector.shape_cast %98 : vector<8x1x16xf32> to vector<8x16xf32>
    %100 = arith.truncf %99 : vector<8x16xf32> to vector<8x16xbf16>
    %c0_71 = arith.constant 0 : index
    %c0_72 = arith.constant 0 : index
    %c0_73 = arith.constant 0 : index
    %101 = vector.load %arg6[%c0_71, %c0_72, %c0_73] : memref<1x8x128xbf16, #tpu.memory_space<vmem>>, vector<1x8x16xbf16>
    %102 = vector.shape_cast %101 : vector<1x8x16xbf16> to vector<8x16xbf16>
    %103 = vector.shape_cast %100 : vector<8x16xbf16> to vector<1x8x16xbf16>
    tpu.vector_store %arg6[%c0_71, %c0_72, %c0_73], %103 {strides = array<i32>} : memref<1x8x128xbf16, #tpu.memory_space<vmem>>, vector<1x8x16xbf16>,
    %c0_74 = arith.constant 0 : index
    %c1_75 = arith.constant 1 : index
    %c0_76 = arith.constant 0 : index
    %104 = vector.load %arg8[%c0_74, %c1_75, %c0_76] : memref<8x8x16xf32, #tpu.memory_space<vmem>>, vector<8x1x16xf32>
    %105 = vector.shape_cast %104 : vector<8x1x16xf32> to vector<8x16xf32>
    %106 = arith.truncf %105 : vector<8x16xf32> to vector<8x16xbf16>
    %c0_77 = arith.constant 0 : index
    %c0_78 = arith.constant 0 : index
    %c16 = arith.constant 16 : index
    %107 = vector.load %arg6[%c0_77, %c0_78, %c16] : memref<1x8x128xbf16, #tpu.memory_space<vmem>>, vector<1x8x16xbf16>
    %108 = vector.shape_cast %107 : vector<1x8x16xbf16> to vector<8x16xbf16>
    %109 = vector.shape_cast %106 : vector<8x16xbf16> to vector<1x8x16xbf16>
    tpu.vector_store %arg6[%c0_77, %c0_78, %c16], %109 {strides = array<i32>} : memref<1x8x128xbf16, #tpu.memory_space<vmem>>, vector<1x8x16xbf16>,
    %c0_79 = arith.constant 0 : index
    %c2_80 = arith.constant 2 : index
    %c0_81 = arith.constant 0 : index
    %110 = vector.load %arg8[%c0_79, %c2_80, %c0_81] : memref<8x8x16xf32, #tpu.memory_space<vmem>>, vector<8x1x16xf32>
    %111 = vector.shape_cast %110 : vector<8x1x16xf32> to vector<8x16xf32>
    %112 = arith.truncf %111 : vector<8x16xf32> to vector<8x16xbf16>
    %c0_82 = arith.constant 0 : index
    %c0_83 = arith.constant 0 : index
    %c32 = arith.constant 32 : index
    %113 = vector.load %arg6[%c0_82, %c0_83, %c32] : memref<1x8x128xbf16, #tpu.memory_space<vmem>>, vector<1x8x16xbf16>
    %114 = vector.shape_cast %113 : vector<1x8x16xbf16> to vector<8x16xbf16>
    %115 = vector.shape_cast %112 : vector<8x16xbf16> to vector<1x8x16xbf16>
    tpu.vector_store %arg6[%c0_82, %c0_83, %c32], %115 {strides = array<i32>} : memref<1x8x128xbf16, #tpu.memory_space<vmem>>, vector<1x8x16xbf16>,
    %c0_84 = arith.constant 0 : index
    %c3_85 = arith.constant 3 : index
    %c0_86 = arith.constant 0 : index
    %116 = vector.load %arg8[%c0_84, %c3_85, %c0_86] : memref<8x8x16xf32, #tpu.memory_space<vmem>>, vector<8x1x16xf32>
    %117 = vector.shape_cast %116 : vector<8x1x16xf32> to vector<8x16xf32>
    %118 = arith.truncf %117 : vector<8x16xf32> to vector<8x16xbf16>
    %c0_87 = arith.constant 0 : index
    %c0_88 = arith.constant 0 : index
    %c48 = arith.constant 48 : index
    %119 = vector.load %arg6[%c0_87, %c0_88, %c48] : memref<1x8x128xbf16, #tpu.memory_space<vmem>>, vector<1x8x16xbf16>
    %120 = vector.shape_cast %119 : vector<1x8x16xbf16> to vector<8x16xbf16>
    %121 = vector.shape_cast %118 : vector<8x16xbf16> to vector<1x8x16xbf16>
    tpu.vector_store %arg6[%c0_87, %c0_88, %c48], %121 {strides = array<i32>} : memref<1x8x128xbf16, #tpu.memory_space<vmem>>, vector<1x8x16xbf16>,
    %c0_89 = arith.constant 0 : index
    %c4_90 = arith.constant 4 : index
    %c0_91 = arith.constant 0 : index
    %122 = vector.load %arg8[%c0_89, %c4_90, %c0_91] : memref<8x8x16xf32, #tpu.memory_space<vmem>>, vector<8x1x16xf32>
    %123 = vector.shape_cast %122 : vector<8x1x16xf32> to vector<8x16xf32>
    %124 = arith.truncf %123 : vector<8x16xf32> to vector<8x16xbf16>
    %c0_92 = arith.constant 0 : index
    %c0_93 = arith.constant 0 : index
    %c64 = arith.constant 64 : index
    %125 = vector.load %arg6[%c0_92, %c0_93, %c64] : memref<1x8x128xbf16, #tpu.memory_space<vmem>>, vector<1x8x16xbf16>
    %126 = vector.shape_cast %125 : vector<1x8x16xbf16> to vector<8x16xbf16>
    %127 = vector.shape_cast %124 : vector<8x16xbf16> to vector<1x8x16xbf16>
    tpu.vector_store %arg6[%c0_92, %c0_93, %c64], %127 {strides = array<i32>} : memref<1x8x128xbf16, #tpu.memory_space<vmem>>, vector<1x8x16xbf16>,
    %c0_94 = arith.constant 0 : index
    %c5_95 = arith.constant 5 : index
    %c0_96 = arith.constant 0 : index
    %128 = vector.load %arg8[%c0_94, %c5_95, %c0_96] : memref<8x8x16xf32, #tpu.memory_space<vmem>>, vector<8x1x16xf32>
    %129 = vector.shape_cast %128 : vector<8x1x16xf32> to vector<8x16xf32>
    %130 = arith.truncf %129 : vector<8x16xf32> to vector<8x16xbf16>
    %c0_97 = arith.constant 0 : index
    %c0_98 = arith.constant 0 : index
    %c80 = arith.constant 80 : index
    %131 = vector.load %arg6[%c0_97, %c0_98, %c80] : memref<1x8x128xbf16, #tpu.memory_space<vmem>>, vector<1x8x16xbf16>
    %132 = vector.shape_cast %131 : vector<1x8x16xbf16> to vector<8x16xbf16>
    %133 = vector.shape_cast %130 : vector<8x16xbf16> to vector<1x8x16xbf16>
    tpu.vector_store %arg6[%c0_97, %c0_98, %c80], %133 {strides = array<i32>} : memref<1x8x128xbf16, #tpu.memory_space<vmem>>, vector<1x8x16xbf16>,
    %c0_99 = arith.constant 0 : index
    %c6_100 = arith.constant 6 : index
    %c0_101 = arith.constant 0 : index
    %134 = vector.load %arg8[%c0_99, %c6_100, %c0_101] : memref<8x8x16xf32, #tpu.memory_space<vmem>>, vector<8x1x16xf32>
    %135 = vector.shape_cast %134 : vector<8x1x16xf32> to vector<8x16xf32>
    %136 = arith.truncf %135 : vector<8x16xf32> to vector<8x16xbf16>
    %c0_102 = arith.constant 0 : index
    %c0_103 = arith.constant 0 : index
    %c96 = arith.constant 96 : index
    %137 = vector.load %arg6[%c0_102, %c0_103, %c96] : memref<1x8x128xbf16, #tpu.memory_space<vmem>>, vector<1x8x16xbf16>
    %138 = vector.shape_cast %137 : vector<1x8x16xbf16> to vector<8x16xbf16>
    %139 = vector.shape_cast %136 : vector<8x16xbf16> to vector<1x8x16xbf16>
    tpu.vector_store %arg6[%c0_102, %c0_103, %c96], %139 {strides = array<i32>} : memref<1x8x128xbf16, #tpu.memory_space<vmem>>, vector<1x8x16xbf16>,
    %c0_104 = arith.constant 0 : index
    %c7_105 = arith.constant 7 : index
    %c0_106 = arith.constant 0 : index
    %140 = vector.load %arg8[%c0_104, %c7_105, %c0_106] : memref<8x8x16xf32, #tpu.memory_space<vmem>>, vector<8x1x16xf32>
    %141 = vector.shape_cast %140 : vector<8x1x16xf32> to vector<8x16xf32>
    %142 = arith.truncf %141 : vector<8x16xf32> to vector<8x16xbf16>
    %c0_107 = arith.constant 0 : index
    %c0_108 = arith.constant 0 : index
    %c112 = arith.constant 112 : index
    %143 = vector.load %arg6[%c0_107, %c0_108, %c112] : memref<1x8x128xbf16, #tpu.memory_space<vmem>>, vector<1x8x16xbf16>
    %144 = vector.shape_cast %143 : vector<1x8x16xbf16> to vector<8x16xbf16>
    %145 = vector.shape_cast %142 : vector<8x16xbf16> to vector<1x8x16xbf16>
    tpu.vector_store %arg6[%c0_107, %c0_108, %c112], %145 {strides = array<i32>} : memref<1x8x128xbf16, #tpu.memory_space<vmem>>, vector<1x8x16xbf16>,
    return
  }
  func.func @transform_0(%arg0: i32) -> (i32, i32, i32) {
    %c0_i32 = arith.constant 0 : i32
    %c0_i32_0 = arith.constant 0 : i32
    %c0_i32_1 = arith.constant 0 : i32
    return %arg0, %c0_i32, %c0_i32_0 : i32, i32, i32
  }
  func.func @transform_1(%arg0: i32) -> (i32, i32) {
    %c0_i32 = arith.constant 0 : i32
    %c0_i32_0 = arith.constant 0 : i32
    %c0_i32_1 = arith.constant 0 : i32
    return %c0_i32, %c0_i32_0 : i32, i32
  }
  func.func @transform_2(%arg0: i32) -> (i32, i32) {
    %c0_i32 = arith.constant 0 : i32
    %c0_i32_0 = arith.constant 0 : i32
    %c0_i32_1 = arith.constant 0 : i32
    return %c0_i32, %c0_i32_0 : i32, i32
  }
  func.func @transform_3(%arg0: i32) -> (i32, i32) {
    %c0_i32 = arith.constant 0 : i32
    %c0_i32_0 = arith.constant 0 : i32
    %c0_i32_1 = arith.constant 0 : i32
    return %c0_i32, %c0_i32_0 : i32, i32
  }
  func.func @transform_4(%arg0: i32) -> (i32, i32) {
    %c0_i32 = arith.constant 0 : i32
    %c0_i32_0 = arith.constant 0 : i32
    %c0_i32_1 = arith.constant 0 : i32
    return %c0_i32, %c0_i32_0 : i32, i32
  }
  func.func @transform_5(%arg0: i32) -> (i32, i32, i32) {
    %c0_i32 = arith.constant 0 : i32
    %c0_i32_0 = arith.constant 0 : i32
    %c0_i32_1 = arith.constant 0 : i32
    return %arg0, %c0_i32, %c0_i32_0 : i32, i32, i32
  }
}

module attributes {stable_mosaic.version = 11 : i64} {
  func.func @_block_kernel(%arg0: i32, %arg1: memref<1x64x16xbf16, #tpu.memory_space<vmem>>, %arg2: memref<16x64xbf16, #tpu.memory_space<vmem>>, %arg3: memref<1x64xf32, #tpu.memory_space<vmem>>, %arg4: memref<9x32xf32, #tpu.memory_space<vmem>>, %arg5: memref<1x32xf32, #tpu.memory_space<vmem>>, %arg6: memref<1x4x128xbf16, #tpu.memory_space<vmem>>, %arg7: memref<10x10x32xf32, #tpu.memory_space<vmem>>, %arg8: memref<4x4x32xf32, #tpu.memory_space<vmem>>) attributes {dimension_semantics = [#tpu.dimension_semantics<parallel>], iteration_bounds = array<i64: 2>, scalar_prefetch = 0 : i64, scratch_operands = 2 : i64, tpu.core_type = #tpu.core_type<tc>, window_params = [{transform_indices = @transform_0, window_bounds = array<i64: 1, 64, 16>}, {pipeline_mode = #tpu.pipeline_mode<synchronous>, transform_indices = @transform_1, window_bounds = array<i64: 16, 64>}, {pipeline_mode = #tpu.pipeline_mode<synchronous>, transform_indices = @transform_2, window_bounds = array<i64: 1, 64>}, {pipeline_mode = #tpu.pipeline_mode<synchronous>, transform_indices = @transform_3, window_bounds = array<i64: 9, 32>}, {pipeline_mode = #tpu.pipeline_mode<synchronous>, transform_indices = @transform_4, window_bounds = array<i64: 1, 32>}, {transform_indices = @transform_5, window_bounds = array<i64: 1, 4, 128>}]} {
    %c0 = arith.constant 0 : index
    %c0_0 = arith.constant 0 : index
    %c0_1 = arith.constant 0 : index
    %0 = vector.load %arg1[%c0, %c0_0, %c0_1] : memref<1x64x16xbf16, #tpu.memory_space<vmem>>, vector<1x64x16xbf16>
    %1 = vector.shape_cast %0 : vector<1x64x16xbf16> to vector<64x16xbf16>
    %c0_2 = arith.constant 0 : index
    %c0_3 = arith.constant 0 : index
    %2 = vector.load %arg2[%c0_2, %c0_3] : memref<16x64xbf16, #tpu.memory_space<vmem>>, vector<16x64xbf16>
    %cst = arith.constant dense<0.000000e+00> : vector<64x64xf32>
    %3 = tpu.matmul %1, %2, %cst {dimension_numbers = #tpu.dot_dimension_numbers<[1], [0], [0], [1], [0, 0, 1, 1], [], []>} : vector<64x16xbf16>, vector<16x64xbf16>, vector<64x64xf32> -> vector<64x64xf32>
    %c0_4 = arith.constant 0 : index
    %c0_5 = arith.constant 0 : index
    %4 = vector.load %arg3[%c0_4, %c0_5] : memref<1x64xf32, #tpu.memory_space<vmem>>, vector<1x64xf32>
    %5 = vector.broadcast %4 : vector<1x64xf32> to vector<64x64xf32>
    %6 = arith.addf %3, %5 : vector<64x64xf32>
    %7 = vector.extract_strided_slice %6 {offsets = [0, 0], sizes = [64, 32], strides = [1, 1]} : vector<64x64xf32> to vector<64x32xf32>
    %8 = vector.extract_strided_slice %6 {offsets = [0, 32], sizes = [64, 32], strides = [1, 1]} : vector<64x64xf32> to vector<64x32xf32>
    %cst_6 = arith.constant dense<0.000000e+00> : vector<32xf32>
    %9 = vector.multi_reduction <add>, %8, %cst_6 [0] : vector<64x32xf32> to vector<32xf32>
    %10 = vector.shape_cast %9 : vector<32xf32> to vector<1x32xf32>
    %cst_7 = arith.constant 6.400000e+01 : f32
    %11 = vector.broadcast %cst_7 : f32 to vector<1x32xf32>
    %12 = arith.divf %10, %11 : vector<1x32xf32>
    %13 = vector.broadcast %12 : vector<1x32xf32> to vector<64x32xf32>
    %14 = arith.addf %7, %13 : vector<64x32xf32>
    %15 = arith.negf %14 : vector<64x32xf32>
    %16 = math.exp %15 : vector<64x32xf32>
    %cst_8 = arith.constant 1.000000e+00 : f32
    %17 = vector.broadcast %cst_8 : f32 to vector<64x32xf32>
    %18 = arith.addf %17, %16 : vector<64x32xf32>
    %19 = arith.divf %17, %18 : vector<64x32xf32>
    %20 = arith.mulf %7, %19 : vector<64x32xf32>
    %cst_9 = arith.constant 0.000000e+00 : f32
    %21 = vector.broadcast %cst_9 : f32 to vector<1x10x32xf32>
    %cst_10 = arith.constant 0.000000e+00 : f32
    %22 = vector.broadcast %cst_10 : f32 to vector<10x1x32xf32>
    %c0_11 = arith.constant 0 : index
    %c0_12 = arith.constant 0 : index
    %c0_13 = arith.constant 0 : index
    %23 = vector.load %arg7[%c0_11, %c0_12, %c0_13] : memref<10x10x32xf32, #tpu.memory_space<vmem>>, vector<1x10x32xf32>
    tpu.vector_store %arg7[%c0_11, %c0_12, %c0_13], %21 {strides = array<i32>} : memref<10x10x32xf32, #tpu.memory_space<vmem>>, vector<1x10x32xf32>,
    %c9 = arith.constant 9 : index
    %c0_14 = arith.constant 0 : index
    %c0_15 = arith.constant 0 : index
    %24 = vector.load %arg7[%c9, %c0_14, %c0_15] : memref<10x10x32xf32, #tpu.memory_space<vmem>>, vector<1x10x32xf32>
    tpu.vector_store %arg7[%c9, %c0_14, %c0_15], %21 {strides = array<i32>} : memref<10x10x32xf32, #tpu.memory_space<vmem>>, vector<1x10x32xf32>,
    %c0_16 = arith.constant 0 : index
    %c0_17 = arith.constant 0 : index
    %c0_18 = arith.constant 0 : index
    %25 = vector.load %arg7[%c0_16, %c0_17, %c0_18] : memref<10x10x32xf32, #tpu.memory_space<vmem>>, vector<10x1x32xf32>
    tpu.vector_store %arg7[%c0_16, %c0_17, %c0_18], %22 {strides = array<i32>} : memref<10x10x32xf32, #tpu.memory_space<vmem>>, vector<10x1x32xf32>,
    %c0_19 = arith.constant 0 : index
    %c9_20 = arith.constant 9 : index
    %c0_21 = arith.constant 0 : index
    %26 = vector.load %arg7[%c0_19, %c9_20, %c0_21] : memref<10x10x32xf32, #tpu.memory_space<vmem>>, vector<10x1x32xf32>
    tpu.vector_store %arg7[%c0_19, %c9_20, %c0_21], %22 {strides = array<i32>} : memref<10x10x32xf32, #tpu.memory_space<vmem>>, vector<10x1x32xf32>,
    %27 = vector.shape_cast %20 : vector<64x32xf32> to vector<8x8x32xf32>
    %c1 = arith.constant 1 : index
    %c1_22 = arith.constant 1 : index
    %c0_23 = arith.constant 0 : index
    %28 = vector.load %arg7[%c1, %c1_22, %c0_23] : memref<10x10x32xf32, #tpu.memory_space<vmem>>, vector<8x8x32xf32>
    tpu.vector_store %arg7[%c1, %c1_22, %c0_23], %27 {strides = array<i32>} : memref<10x10x32xf32, #tpu.memory_space<vmem>>, vector<8x8x32xf32>,
    %cst_24 = arith.constant 0.000000e+00 : f32
    %29 = vector.broadcast %cst_24 : f32 to vector<4x4x32xf32>
    %c0_25 = arith.constant 0 : index
    %c0_26 = arith.constant 0 : index
    %c0_27 = arith.constant 0 : index
    %30 = tpu.strided_load %arg7[%c0_25, %c0_26, %c0_27] {strides = array<i32: 2, 2, 1>} : memref<10x10x32xf32, #tpu.memory_space<vmem>>, vector<4x4x32xf32>
    %c0_28 = arith.constant 0 : index
    %c0_29 = arith.constant 0 : index
    %31 = vector.load %arg4[%c0_28, %c0_29] : memref<9x32xf32, #tpu.memory_space<vmem>>, vector<1x32xf32>
    %32 = vector.shape_cast %31 : vector<1x32xf32> to vector<32xf32>
    %33 = vector.shape_cast %32 : vector<32xf32> to vector<1x1x32xf32>
    %34 = vector.broadcast %33 : vector<1x1x32xf32> to vector<4x4x32xf32>
    %35 = arith.mulf %30, %34 : vector<4x4x32xf32>
    %36 = arith.addf %29, %35 : vector<4x4x32xf32>
    %c0_30 = arith.constant 0 : index
    %c1_31 = arith.constant 1 : index
    %c0_32 = arith.constant 0 : index
    %37 = tpu.strided_load %arg7[%c0_30, %c1_31, %c0_32] {strides = array<i32: 2, 2, 1>} : memref<10x10x32xf32, #tpu.memory_space<vmem>>, vector<4x4x32xf32>
    %c1_33 = arith.constant 1 : index
    %c0_34 = arith.constant 0 : index
    %38 = vector.load %arg4[%c1_33, %c0_34] : memref<9x32xf32, #tpu.memory_space<vmem>>, vector<1x32xf32>
    %39 = vector.shape_cast %38 : vector<1x32xf32> to vector<32xf32>
    %40 = vector.shape_cast %39 : vector<32xf32> to vector<1x1x32xf32>
    %41 = vector.broadcast %40 : vector<1x1x32xf32> to vector<4x4x32xf32>
    %42 = arith.mulf %37, %41 : vector<4x4x32xf32>
    %43 = arith.addf %36, %42 : vector<4x4x32xf32>
    %c0_35 = arith.constant 0 : index
    %c2 = arith.constant 2 : index
    %c0_36 = arith.constant 0 : index
    %44 = tpu.strided_load %arg7[%c0_35, %c2, %c0_36] {strides = array<i32: 2, 2, 1>} : memref<10x10x32xf32, #tpu.memory_space<vmem>>, vector<4x4x32xf32>
    %c2_37 = arith.constant 2 : index
    %c0_38 = arith.constant 0 : index
    %45 = vector.load %arg4[%c2_37, %c0_38] : memref<9x32xf32, #tpu.memory_space<vmem>>, vector<1x32xf32>
    %46 = vector.shape_cast %45 : vector<1x32xf32> to vector<32xf32>
    %47 = vector.shape_cast %46 : vector<32xf32> to vector<1x1x32xf32>
    %48 = vector.broadcast %47 : vector<1x1x32xf32> to vector<4x4x32xf32>
    %49 = arith.mulf %44, %48 : vector<4x4x32xf32>
    %50 = arith.addf %43, %49 : vector<4x4x32xf32>
    %c1_39 = arith.constant 1 : index
    %c0_40 = arith.constant 0 : index
    %c0_41 = arith.constant 0 : index
    %51 = tpu.strided_load %arg7[%c1_39, %c0_40, %c0_41] {strides = array<i32: 2, 2, 1>} : memref<10x10x32xf32, #tpu.memory_space<vmem>>, vector<4x4x32xf32>
    %c3 = arith.constant 3 : index
    %c0_42 = arith.constant 0 : index
    %52 = vector.load %arg4[%c3, %c0_42] : memref<9x32xf32, #tpu.memory_space<vmem>>, vector<1x32xf32>
    %53 = vector.shape_cast %52 : vector<1x32xf32> to vector<32xf32>
    %54 = vector.shape_cast %53 : vector<32xf32> to vector<1x1x32xf32>
    %55 = vector.broadcast %54 : vector<1x1x32xf32> to vector<4x4x32xf32>
    %56 = arith.mulf %51, %55 : vector<4x4x32xf32>
    %57 = arith.addf %50, %56 : vector<4x4x32xf32>
    %c1_43 = arith.constant 1 : index
    %c1_44 = arith.constant 1 : index
    %c0_45 = arith.constant 0 : index
    %58 = tpu.strided_load %arg7[%c1_43, %c1_44, %c0_45] {strides = array<i32: 2, 2, 1>} : memref<10x10x32xf32, #tpu.memory_space<vmem>>, vector<4x4x32xf32>
    %c4 = arith.constant 4 : index
    %c0_46 = arith.constant 0 : index
    %59 = vector.load %arg4[%c4, %c0_46] : memref<9x32xf32, #tpu.memory_space<vmem>>, vector<1x32xf32>
    %60 = vector.shape_cast %59 : vector<1x32xf32> to vector<32xf32>
    %61 = vector.shape_cast %60 : vector<32xf32> to vector<1x1x32xf32>
    %62 = vector.broadcast %61 : vector<1x1x32xf32> to vector<4x4x32xf32>
    %63 = arith.mulf %58, %62 : vector<4x4x32xf32>
    %64 = arith.addf %57, %63 : vector<4x4x32xf32>
    %c1_47 = arith.constant 1 : index
    %c2_48 = arith.constant 2 : index
    %c0_49 = arith.constant 0 : index
    %65 = tpu.strided_load %arg7[%c1_47, %c2_48, %c0_49] {strides = array<i32: 2, 2, 1>} : memref<10x10x32xf32, #tpu.memory_space<vmem>>, vector<4x4x32xf32>
    %c5 = arith.constant 5 : index
    %c0_50 = arith.constant 0 : index
    %66 = vector.load %arg4[%c5, %c0_50] : memref<9x32xf32, #tpu.memory_space<vmem>>, vector<1x32xf32>
    %67 = vector.shape_cast %66 : vector<1x32xf32> to vector<32xf32>
    %68 = vector.shape_cast %67 : vector<32xf32> to vector<1x1x32xf32>
    %69 = vector.broadcast %68 : vector<1x1x32xf32> to vector<4x4x32xf32>
    %70 = arith.mulf %65, %69 : vector<4x4x32xf32>
    %71 = arith.addf %64, %70 : vector<4x4x32xf32>
    %c2_51 = arith.constant 2 : index
    %c0_52 = arith.constant 0 : index
    %c0_53 = arith.constant 0 : index
    %72 = tpu.strided_load %arg7[%c2_51, %c0_52, %c0_53] {strides = array<i32: 2, 2, 1>} : memref<10x10x32xf32, #tpu.memory_space<vmem>>, vector<4x4x32xf32>
    %c6 = arith.constant 6 : index
    %c0_54 = arith.constant 0 : index
    %73 = vector.load %arg4[%c6, %c0_54] : memref<9x32xf32, #tpu.memory_space<vmem>>, vector<1x32xf32>
    %74 = vector.shape_cast %73 : vector<1x32xf32> to vector<32xf32>
    %75 = vector.shape_cast %74 : vector<32xf32> to vector<1x1x32xf32>
    %76 = vector.broadcast %75 : vector<1x1x32xf32> to vector<4x4x32xf32>
    %77 = arith.mulf %72, %76 : vector<4x4x32xf32>
    %78 = arith.addf %71, %77 : vector<4x4x32xf32>
    %c2_55 = arith.constant 2 : index
    %c1_56 = arith.constant 1 : index
    %c0_57 = arith.constant 0 : index
    %79 = tpu.strided_load %arg7[%c2_55, %c1_56, %c0_57] {strides = array<i32: 2, 2, 1>} : memref<10x10x32xf32, #tpu.memory_space<vmem>>, vector<4x4x32xf32>
    %c7 = arith.constant 7 : index
    %c0_58 = arith.constant 0 : index
    %80 = vector.load %arg4[%c7, %c0_58] : memref<9x32xf32, #tpu.memory_space<vmem>>, vector<1x32xf32>
    %81 = vector.shape_cast %80 : vector<1x32xf32> to vector<32xf32>
    %82 = vector.shape_cast %81 : vector<32xf32> to vector<1x1x32xf32>
    %83 = vector.broadcast %82 : vector<1x1x32xf32> to vector<4x4x32xf32>
    %84 = arith.mulf %79, %83 : vector<4x4x32xf32>
    %85 = arith.addf %78, %84 : vector<4x4x32xf32>
    %c2_59 = arith.constant 2 : index
    %c2_60 = arith.constant 2 : index
    %c0_61 = arith.constant 0 : index
    %86 = tpu.strided_load %arg7[%c2_59, %c2_60, %c0_61] {strides = array<i32: 2, 2, 1>} : memref<10x10x32xf32, #tpu.memory_space<vmem>>, vector<4x4x32xf32>
    %c8 = arith.constant 8 : index
    %c0_62 = arith.constant 0 : index
    %87 = vector.load %arg4[%c8, %c0_62] : memref<9x32xf32, #tpu.memory_space<vmem>>, vector<1x32xf32>
    %88 = vector.shape_cast %87 : vector<1x32xf32> to vector<32xf32>
    %89 = vector.shape_cast %88 : vector<32xf32> to vector<1x1x32xf32>
    %90 = vector.broadcast %89 : vector<1x1x32xf32> to vector<4x4x32xf32>
    %91 = arith.mulf %86, %90 : vector<4x4x32xf32>
    %92 = arith.addf %85, %91 : vector<4x4x32xf32>
    %c0_63 = arith.constant 0 : index
    %c0_64 = arith.constant 0 : index
    %93 = vector.load %arg5[%c0_63, %c0_64] : memref<1x32xf32, #tpu.memory_space<vmem>>, vector<1x32xf32>
    %94 = vector.shape_cast %93 : vector<1x32xf32> to vector<1x1x32xf32>
    %95 = vector.broadcast %94 : vector<1x1x32xf32> to vector<4x4x32xf32>
    %96 = arith.addf %92, %95 : vector<4x4x32xf32>
    %c0_65 = arith.constant 0 : index
    %c0_66 = arith.constant 0 : index
    %c0_67 = arith.constant 0 : index
    %97 = vector.load %arg8[%c0_65, %c0_66, %c0_67] : memref<4x4x32xf32, #tpu.memory_space<vmem>>, vector<4x4x32xf32>
    tpu.vector_store %arg8[%c0_65, %c0_66, %c0_67], %96 {strides = array<i32>} : memref<4x4x32xf32, #tpu.memory_space<vmem>>, vector<4x4x32xf32>,
    %c0_68 = arith.constant 0 : index
    %c0_69 = arith.constant 0 : index
    %c0_70 = arith.constant 0 : index
    %98 = vector.load %arg8[%c0_68, %c0_69, %c0_70] : memref<4x4x32xf32, #tpu.memory_space<vmem>>, vector<4x1x32xf32>
    %99 = vector.shape_cast %98 : vector<4x1x32xf32> to vector<4x32xf32>
    %100 = arith.truncf %99 : vector<4x32xf32> to vector<4x32xbf16>
    %c0_71 = arith.constant 0 : index
    %c0_72 = arith.constant 0 : index
    %c0_73 = arith.constant 0 : index
    %101 = vector.load %arg6[%c0_71, %c0_72, %c0_73] : memref<1x4x128xbf16, #tpu.memory_space<vmem>>, vector<1x4x32xbf16>
    %102 = vector.shape_cast %101 : vector<1x4x32xbf16> to vector<4x32xbf16>
    %103 = vector.shape_cast %100 : vector<4x32xbf16> to vector<1x4x32xbf16>
    tpu.vector_store %arg6[%c0_71, %c0_72, %c0_73], %103 {strides = array<i32>} : memref<1x4x128xbf16, #tpu.memory_space<vmem>>, vector<1x4x32xbf16>,
    %c0_74 = arith.constant 0 : index
    %c1_75 = arith.constant 1 : index
    %c0_76 = arith.constant 0 : index
    %104 = vector.load %arg8[%c0_74, %c1_75, %c0_76] : memref<4x4x32xf32, #tpu.memory_space<vmem>>, vector<4x1x32xf32>
    %105 = vector.shape_cast %104 : vector<4x1x32xf32> to vector<4x32xf32>
    %106 = arith.truncf %105 : vector<4x32xf32> to vector<4x32xbf16>
    %c0_77 = arith.constant 0 : index
    %c0_78 = arith.constant 0 : index
    %c32 = arith.constant 32 : index
    %107 = vector.load %arg6[%c0_77, %c0_78, %c32] : memref<1x4x128xbf16, #tpu.memory_space<vmem>>, vector<1x4x32xbf16>
    %108 = vector.shape_cast %107 : vector<1x4x32xbf16> to vector<4x32xbf16>
    %109 = vector.shape_cast %106 : vector<4x32xbf16> to vector<1x4x32xbf16>
    tpu.vector_store %arg6[%c0_77, %c0_78, %c32], %109 {strides = array<i32>} : memref<1x4x128xbf16, #tpu.memory_space<vmem>>, vector<1x4x32xbf16>,
    %c0_79 = arith.constant 0 : index
    %c2_80 = arith.constant 2 : index
    %c0_81 = arith.constant 0 : index
    %110 = vector.load %arg8[%c0_79, %c2_80, %c0_81] : memref<4x4x32xf32, #tpu.memory_space<vmem>>, vector<4x1x32xf32>
    %111 = vector.shape_cast %110 : vector<4x1x32xf32> to vector<4x32xf32>
    %112 = arith.truncf %111 : vector<4x32xf32> to vector<4x32xbf16>
    %c0_82 = arith.constant 0 : index
    %c0_83 = arith.constant 0 : index
    %c64 = arith.constant 64 : index
    %113 = vector.load %arg6[%c0_82, %c0_83, %c64] : memref<1x4x128xbf16, #tpu.memory_space<vmem>>, vector<1x4x32xbf16>
    %114 = vector.shape_cast %113 : vector<1x4x32xbf16> to vector<4x32xbf16>
    %115 = vector.shape_cast %112 : vector<4x32xbf16> to vector<1x4x32xbf16>
    tpu.vector_store %arg6[%c0_82, %c0_83, %c64], %115 {strides = array<i32>} : memref<1x4x128xbf16, #tpu.memory_space<vmem>>, vector<1x4x32xbf16>,
    %c0_84 = arith.constant 0 : index
    %c3_85 = arith.constant 3 : index
    %c0_86 = arith.constant 0 : index
    %116 = vector.load %arg8[%c0_84, %c3_85, %c0_86] : memref<4x4x32xf32, #tpu.memory_space<vmem>>, vector<4x1x32xf32>
    %117 = vector.shape_cast %116 : vector<4x1x32xf32> to vector<4x32xf32>
    %118 = arith.truncf %117 : vector<4x32xf32> to vector<4x32xbf16>
    %c0_87 = arith.constant 0 : index
    %c0_88 = arith.constant 0 : index
    %c96 = arith.constant 96 : index
    %119 = vector.load %arg6[%c0_87, %c0_88, %c96] : memref<1x4x128xbf16, #tpu.memory_space<vmem>>, vector<1x4x32xbf16>
    %120 = vector.shape_cast %119 : vector<1x4x32xbf16> to vector<4x32xbf16>
    %121 = vector.shape_cast %118 : vector<4x32xbf16> to vector<1x4x32xbf16>
    tpu.vector_store %arg6[%c0_87, %c0_88, %c96], %121 {strides = array<i32>} : memref<1x4x128xbf16, #tpu.memory_space<vmem>>, vector<1x4x32xbf16>,
    return
  }
  func.func @transform_0(%arg0: i32) -> (i32, i32, i32) {
    %c0_i32 = arith.constant 0 : i32
    %c0_i32_0 = arith.constant 0 : i32
    %c0_i32_1 = arith.constant 0 : i32
    return %arg0, %c0_i32, %c0_i32_0 : i32, i32, i32
  }
  func.func @transform_1(%arg0: i32) -> (i32, i32) {
    %c0_i32 = arith.constant 0 : i32
    %c0_i32_0 = arith.constant 0 : i32
    %c0_i32_1 = arith.constant 0 : i32
    return %c0_i32, %c0_i32_0 : i32, i32
  }
  func.func @transform_2(%arg0: i32) -> (i32, i32) {
    %c0_i32 = arith.constant 0 : i32
    %c0_i32_0 = arith.constant 0 : i32
    %c0_i32_1 = arith.constant 0 : i32
    return %c0_i32, %c0_i32_0 : i32, i32
  }
  func.func @transform_3(%arg0: i32) -> (i32, i32) {
    %c0_i32 = arith.constant 0 : i32
    %c0_i32_0 = arith.constant 0 : i32
    %c0_i32_1 = arith.constant 0 : i32
    return %c0_i32, %c0_i32_0 : i32, i32
  }
  func.func @transform_4(%arg0: i32) -> (i32, i32) {
    %c0_i32 = arith.constant 0 : i32
    %c0_i32_0 = arith.constant 0 : i32
    %c0_i32_1 = arith.constant 0 : i32
    return %c0_i32, %c0_i32_0 : i32, i32
  }
  func.func @transform_5(%arg0: i32) -> (i32, i32, i32) {
    %c0_i32 = arith.constant 0 : i32
    %c0_i32_0 = arith.constant 0 : i32
    %c0_i32_1 = arith.constant 0 : i32
    return %arg0, %c0_i32, %c0_i32_0 : i32, i32, i32
  }
}

module attributes {stable_mosaic.version = 11 : i64} {
  func.func @_block_kernel(%arg0: i32, %arg1: memref<1x16x32xbf16, #tpu.memory_space<vmem>>, %arg2: memref<32x128xbf16, #tpu.memory_space<vmem>>, %arg3: memref<1x128xf32, #tpu.memory_space<vmem>>, %arg4: memref<9x64xf32, #tpu.memory_space<vmem>>, %arg5: memref<1x64xf32, #tpu.memory_space<vmem>>, %arg6: memref<1x2x128xbf16, #tpu.memory_space<vmem>>, %arg7: memref<6x6x64xf32, #tpu.memory_space<vmem>>, %arg8: memref<2x2x64xf32, #tpu.memory_space<vmem>>) attributes {dimension_semantics = [#tpu.dimension_semantics<parallel>], iteration_bounds = array<i64: 2>, scalar_prefetch = 0 : i64, scratch_operands = 2 : i64, tpu.core_type = #tpu.core_type<tc>, window_params = [{transform_indices = @transform_0, window_bounds = array<i64: 1, 16, 32>}, {pipeline_mode = #tpu.pipeline_mode<synchronous>, transform_indices = @transform_1, window_bounds = array<i64: 32, 128>}, {pipeline_mode = #tpu.pipeline_mode<synchronous>, transform_indices = @transform_2, window_bounds = array<i64: 1, 128>}, {pipeline_mode = #tpu.pipeline_mode<synchronous>, transform_indices = @transform_3, window_bounds = array<i64: 9, 64>}, {pipeline_mode = #tpu.pipeline_mode<synchronous>, transform_indices = @transform_4, window_bounds = array<i64: 1, 64>}, {transform_indices = @transform_5, window_bounds = array<i64: 1, 2, 128>}]} {
    %c0 = arith.constant 0 : index
    %c0_0 = arith.constant 0 : index
    %c0_1 = arith.constant 0 : index
    %0 = vector.load %arg1[%c0, %c0_0, %c0_1] : memref<1x16x32xbf16, #tpu.memory_space<vmem>>, vector<1x16x32xbf16>
    %1 = vector.shape_cast %0 : vector<1x16x32xbf16> to vector<16x32xbf16>
    %c0_2 = arith.constant 0 : index
    %c0_3 = arith.constant 0 : index
    %2 = vector.load %arg2[%c0_2, %c0_3] : memref<32x128xbf16, #tpu.memory_space<vmem>>, vector<32x128xbf16>
    %cst = arith.constant dense<0.000000e+00> : vector<16x128xf32>
    %3 = tpu.matmul %1, %2, %cst {dimension_numbers = #tpu.dot_dimension_numbers<[1], [0], [0], [1], [0, 0, 1, 1], [], []>} : vector<16x32xbf16>, vector<32x128xbf16>, vector<16x128xf32> -> vector<16x128xf32>
    %c0_4 = arith.constant 0 : index
    %c0_5 = arith.constant 0 : index
    %4 = vector.load %arg3[%c0_4, %c0_5] : memref<1x128xf32, #tpu.memory_space<vmem>>, vector<1x128xf32>
    %5 = vector.broadcast %4 : vector<1x128xf32> to vector<16x128xf32>
    %6 = arith.addf %3, %5 : vector<16x128xf32>
    %7 = vector.extract_strided_slice %6 {offsets = [0, 0], sizes = [16, 64], strides = [1, 1]} : vector<16x128xf32> to vector<16x64xf32>
    %8 = vector.extract_strided_slice %6 {offsets = [0, 64], sizes = [16, 64], strides = [1, 1]} : vector<16x128xf32> to vector<16x64xf32>
    %cst_6 = arith.constant dense<0.000000e+00> : vector<64xf32>
    %9 = vector.multi_reduction <add>, %8, %cst_6 [0] : vector<16x64xf32> to vector<64xf32>
    %10 = vector.shape_cast %9 : vector<64xf32> to vector<1x64xf32>
    %cst_7 = arith.constant 1.600000e+01 : f32
    %11 = vector.broadcast %cst_7 : f32 to vector<1x64xf32>
    %12 = arith.divf %10, %11 : vector<1x64xf32>
    %13 = vector.broadcast %12 : vector<1x64xf32> to vector<16x64xf32>
    %14 = arith.addf %7, %13 : vector<16x64xf32>
    %15 = arith.negf %14 : vector<16x64xf32>
    %16 = math.exp %15 : vector<16x64xf32>
    %cst_8 = arith.constant 1.000000e+00 : f32
    %17 = vector.broadcast %cst_8 : f32 to vector<16x64xf32>
    %18 = arith.addf %17, %16 : vector<16x64xf32>
    %19 = arith.divf %17, %18 : vector<16x64xf32>
    %20 = arith.mulf %7, %19 : vector<16x64xf32>
    %cst_9 = arith.constant 0.000000e+00 : f32
    %21 = vector.broadcast %cst_9 : f32 to vector<1x6x64xf32>
    %cst_10 = arith.constant 0.000000e+00 : f32
    %22 = vector.broadcast %cst_10 : f32 to vector<6x1x64xf32>
    %c0_11 = arith.constant 0 : index
    %c0_12 = arith.constant 0 : index
    %c0_13 = arith.constant 0 : index
    %23 = vector.load %arg7[%c0_11, %c0_12, %c0_13] : memref<6x6x64xf32, #tpu.memory_space<vmem>>, vector<1x6x64xf32>
    tpu.vector_store %arg7[%c0_11, %c0_12, %c0_13], %21 {strides = array<i32>} : memref<6x6x64xf32, #tpu.memory_space<vmem>>, vector<1x6x64xf32>,
    %c5 = arith.constant 5 : index
    %c0_14 = arith.constant 0 : index
    %c0_15 = arith.constant 0 : index
    %24 = vector.load %arg7[%c5, %c0_14, %c0_15] : memref<6x6x64xf32, #tpu.memory_space<vmem>>, vector<1x6x64xf32>
    tpu.vector_store %arg7[%c5, %c0_14, %c0_15], %21 {strides = array<i32>} : memref<6x6x64xf32, #tpu.memory_space<vmem>>, vector<1x6x64xf32>,
    %c0_16 = arith.constant 0 : index
    %c0_17 = arith.constant 0 : index
    %c0_18 = arith.constant 0 : index
    %25 = vector.load %arg7[%c0_16, %c0_17, %c0_18] : memref<6x6x64xf32, #tpu.memory_space<vmem>>, vector<6x1x64xf32>
    tpu.vector_store %arg7[%c0_16, %c0_17, %c0_18], %22 {strides = array<i32>} : memref<6x6x64xf32, #tpu.memory_space<vmem>>, vector<6x1x64xf32>,
    %c0_19 = arith.constant 0 : index
    %c5_20 = arith.constant 5 : index
    %c0_21 = arith.constant 0 : index
    %26 = vector.load %arg7[%c0_19, %c5_20, %c0_21] : memref<6x6x64xf32, #tpu.memory_space<vmem>>, vector<6x1x64xf32>
    tpu.vector_store %arg7[%c0_19, %c5_20, %c0_21], %22 {strides = array<i32>} : memref<6x6x64xf32, #tpu.memory_space<vmem>>, vector<6x1x64xf32>,
    %27 = vector.shape_cast %20 : vector<16x64xf32> to vector<4x4x64xf32>
    %c1 = arith.constant 1 : index
    %c1_22 = arith.constant 1 : index
    %c0_23 = arith.constant 0 : index
    %28 = vector.load %arg7[%c1, %c1_22, %c0_23] : memref<6x6x64xf32, #tpu.memory_space<vmem>>, vector<4x4x64xf32>
    tpu.vector_store %arg7[%c1, %c1_22, %c0_23], %27 {strides = array<i32>} : memref<6x6x64xf32, #tpu.memory_space<vmem>>, vector<4x4x64xf32>,
    %cst_24 = arith.constant 0.000000e+00 : f32
    %29 = vector.broadcast %cst_24 : f32 to vector<2x2x64xf32>
    %c0_25 = arith.constant 0 : index
    %c0_26 = arith.constant 0 : index
    %c0_27 = arith.constant 0 : index
    %30 = tpu.strided_load %arg7[%c0_25, %c0_26, %c0_27] {strides = array<i32: 2, 2, 1>} : memref<6x6x64xf32, #tpu.memory_space<vmem>>, vector<2x2x64xf32>
    %c0_28 = arith.constant 0 : index
    %c0_29 = arith.constant 0 : index
    %31 = vector.load %arg4[%c0_28, %c0_29] : memref<9x64xf32, #tpu.memory_space<vmem>>, vector<1x64xf32>
    %32 = vector.shape_cast %31 : vector<1x64xf32> to vector<64xf32>
    %33 = vector.shape_cast %32 : vector<64xf32> to vector<1x1x64xf32>
    %34 = vector.broadcast %33 : vector<1x1x64xf32> to vector<2x2x64xf32>
    %35 = arith.mulf %30, %34 : vector<2x2x64xf32>
    %36 = arith.addf %29, %35 : vector<2x2x64xf32>
    %c0_30 = arith.constant 0 : index
    %c1_31 = arith.constant 1 : index
    %c0_32 = arith.constant 0 : index
    %37 = tpu.strided_load %arg7[%c0_30, %c1_31, %c0_32] {strides = array<i32: 2, 2, 1>} : memref<6x6x64xf32, #tpu.memory_space<vmem>>, vector<2x2x64xf32>
    %c1_33 = arith.constant 1 : index
    %c0_34 = arith.constant 0 : index
    %38 = vector.load %arg4[%c1_33, %c0_34] : memref<9x64xf32, #tpu.memory_space<vmem>>, vector<1x64xf32>
    %39 = vector.shape_cast %38 : vector<1x64xf32> to vector<64xf32>
    %40 = vector.shape_cast %39 : vector<64xf32> to vector<1x1x64xf32>
    %41 = vector.broadcast %40 : vector<1x1x64xf32> to vector<2x2x64xf32>
    %42 = arith.mulf %37, %41 : vector<2x2x64xf32>
    %43 = arith.addf %36, %42 : vector<2x2x64xf32>
    %c0_35 = arith.constant 0 : index
    %c2 = arith.constant 2 : index
    %c0_36 = arith.constant 0 : index
    %44 = tpu.strided_load %arg7[%c0_35, %c2, %c0_36] {strides = array<i32: 2, 2, 1>} : memref<6x6x64xf32, #tpu.memory_space<vmem>>, vector<2x2x64xf32>
    %c2_37 = arith.constant 2 : index
    %c0_38 = arith.constant 0 : index
    %45 = vector.load %arg4[%c2_37, %c0_38] : memref<9x64xf32, #tpu.memory_space<vmem>>, vector<1x64xf32>
    %46 = vector.shape_cast %45 : vector<1x64xf32> to vector<64xf32>
    %47 = vector.shape_cast %46 : vector<64xf32> to vector<1x1x64xf32>
    %48 = vector.broadcast %47 : vector<1x1x64xf32> to vector<2x2x64xf32>
    %49 = arith.mulf %44, %48 : vector<2x2x64xf32>
    %50 = arith.addf %43, %49 : vector<2x2x64xf32>
    %c1_39 = arith.constant 1 : index
    %c0_40 = arith.constant 0 : index
    %c0_41 = arith.constant 0 : index
    %51 = tpu.strided_load %arg7[%c1_39, %c0_40, %c0_41] {strides = array<i32: 2, 2, 1>} : memref<6x6x64xf32, #tpu.memory_space<vmem>>, vector<2x2x64xf32>
    %c3 = arith.constant 3 : index
    %c0_42 = arith.constant 0 : index
    %52 = vector.load %arg4[%c3, %c0_42] : memref<9x64xf32, #tpu.memory_space<vmem>>, vector<1x64xf32>
    %53 = vector.shape_cast %52 : vector<1x64xf32> to vector<64xf32>
    %54 = vector.shape_cast %53 : vector<64xf32> to vector<1x1x64xf32>
    %55 = vector.broadcast %54 : vector<1x1x64xf32> to vector<2x2x64xf32>
    %56 = arith.mulf %51, %55 : vector<2x2x64xf32>
    %57 = arith.addf %50, %56 : vector<2x2x64xf32>
    %c1_43 = arith.constant 1 : index
    %c1_44 = arith.constant 1 : index
    %c0_45 = arith.constant 0 : index
    %58 = tpu.strided_load %arg7[%c1_43, %c1_44, %c0_45] {strides = array<i32: 2, 2, 1>} : memref<6x6x64xf32, #tpu.memory_space<vmem>>, vector<2x2x64xf32>
    %c4 = arith.constant 4 : index
    %c0_46 = arith.constant 0 : index
    %59 = vector.load %arg4[%c4, %c0_46] : memref<9x64xf32, #tpu.memory_space<vmem>>, vector<1x64xf32>
    %60 = vector.shape_cast %59 : vector<1x64xf32> to vector<64xf32>
    %61 = vector.shape_cast %60 : vector<64xf32> to vector<1x1x64xf32>
    %62 = vector.broadcast %61 : vector<1x1x64xf32> to vector<2x2x64xf32>
    %63 = arith.mulf %58, %62 : vector<2x2x64xf32>
    %64 = arith.addf %57, %63 : vector<2x2x64xf32>
    %c1_47 = arith.constant 1 : index
    %c2_48 = arith.constant 2 : index
    %c0_49 = arith.constant 0 : index
    %65 = tpu.strided_load %arg7[%c1_47, %c2_48, %c0_49] {strides = array<i32: 2, 2, 1>} : memref<6x6x64xf32, #tpu.memory_space<vmem>>, vector<2x2x64xf32>
    %c5_50 = arith.constant 5 : index
    %c0_51 = arith.constant 0 : index
    %66 = vector.load %arg4[%c5_50, %c0_51] : memref<9x64xf32, #tpu.memory_space<vmem>>, vector<1x64xf32>
    %67 = vector.shape_cast %66 : vector<1x64xf32> to vector<64xf32>
    %68 = vector.shape_cast %67 : vector<64xf32> to vector<1x1x64xf32>
    %69 = vector.broadcast %68 : vector<1x1x64xf32> to vector<2x2x64xf32>
    %70 = arith.mulf %65, %69 : vector<2x2x64xf32>
    %71 = arith.addf %64, %70 : vector<2x2x64xf32>
    %c2_52 = arith.constant 2 : index
    %c0_53 = arith.constant 0 : index
    %c0_54 = arith.constant 0 : index
    %72 = tpu.strided_load %arg7[%c2_52, %c0_53, %c0_54] {strides = array<i32: 2, 2, 1>} : memref<6x6x64xf32, #tpu.memory_space<vmem>>, vector<2x2x64xf32>
    %c6 = arith.constant 6 : index
    %c0_55 = arith.constant 0 : index
    %73 = vector.load %arg4[%c6, %c0_55] : memref<9x64xf32, #tpu.memory_space<vmem>>, vector<1x64xf32>
    %74 = vector.shape_cast %73 : vector<1x64xf32> to vector<64xf32>
    %75 = vector.shape_cast %74 : vector<64xf32> to vector<1x1x64xf32>
    %76 = vector.broadcast %75 : vector<1x1x64xf32> to vector<2x2x64xf32>
    %77 = arith.mulf %72, %76 : vector<2x2x64xf32>
    %78 = arith.addf %71, %77 : vector<2x2x64xf32>
    %c2_56 = arith.constant 2 : index
    %c1_57 = arith.constant 1 : index
    %c0_58 = arith.constant 0 : index
    %79 = tpu.strided_load %arg7[%c2_56, %c1_57, %c0_58] {strides = array<i32: 2, 2, 1>} : memref<6x6x64xf32, #tpu.memory_space<vmem>>, vector<2x2x64xf32>
    %c7 = arith.constant 7 : index
    %c0_59 = arith.constant 0 : index
    %80 = vector.load %arg4[%c7, %c0_59] : memref<9x64xf32, #tpu.memory_space<vmem>>, vector<1x64xf32>
    %81 = vector.shape_cast %80 : vector<1x64xf32> to vector<64xf32>
    %82 = vector.shape_cast %81 : vector<64xf32> to vector<1x1x64xf32>
    %83 = vector.broadcast %82 : vector<1x1x64xf32> to vector<2x2x64xf32>
    %84 = arith.mulf %79, %83 : vector<2x2x64xf32>
    %85 = arith.addf %78, %84 : vector<2x2x64xf32>
    %c2_60 = arith.constant 2 : index
    %c2_61 = arith.constant 2 : index
    %c0_62 = arith.constant 0 : index
    %86 = tpu.strided_load %arg7[%c2_60, %c2_61, %c0_62] {strides = array<i32: 2, 2, 1>} : memref<6x6x64xf32, #tpu.memory_space<vmem>>, vector<2x2x64xf32>
    %c8 = arith.constant 8 : index
    %c0_63 = arith.constant 0 : index
    %87 = vector.load %arg4[%c8, %c0_63] : memref<9x64xf32, #tpu.memory_space<vmem>>, vector<1x64xf32>
    %88 = vector.shape_cast %87 : vector<1x64xf32> to vector<64xf32>
    %89 = vector.shape_cast %88 : vector<64xf32> to vector<1x1x64xf32>
    %90 = vector.broadcast %89 : vector<1x1x64xf32> to vector<2x2x64xf32>
    %91 = arith.mulf %86, %90 : vector<2x2x64xf32>
    %92 = arith.addf %85, %91 : vector<2x2x64xf32>
    %c0_64 = arith.constant 0 : index
    %c0_65 = arith.constant 0 : index
    %93 = vector.load %arg5[%c0_64, %c0_65] : memref<1x64xf32, #tpu.memory_space<vmem>>, vector<1x64xf32>
    %94 = vector.shape_cast %93 : vector<1x64xf32> to vector<1x1x64xf32>
    %95 = vector.broadcast %94 : vector<1x1x64xf32> to vector<2x2x64xf32>
    %96 = arith.addf %92, %95 : vector<2x2x64xf32>
    %c0_66 = arith.constant 0 : index
    %c0_67 = arith.constant 0 : index
    %c0_68 = arith.constant 0 : index
    %97 = vector.load %arg8[%c0_66, %c0_67, %c0_68] : memref<2x2x64xf32, #tpu.memory_space<vmem>>, vector<2x2x64xf32>
    tpu.vector_store %arg8[%c0_66, %c0_67, %c0_68], %96 {strides = array<i32>} : memref<2x2x64xf32, #tpu.memory_space<vmem>>, vector<2x2x64xf32>,
    %c0_69 = arith.constant 0 : index
    %c0_70 = arith.constant 0 : index
    %c0_71 = arith.constant 0 : index
    %98 = vector.load %arg8[%c0_69, %c0_70, %c0_71] : memref<2x2x64xf32, #tpu.memory_space<vmem>>, vector<2x1x64xf32>
    %99 = vector.shape_cast %98 : vector<2x1x64xf32> to vector<2x64xf32>
    %100 = arith.truncf %99 : vector<2x64xf32> to vector<2x64xbf16>
    %c0_72 = arith.constant 0 : index
    %c0_73 = arith.constant 0 : index
    %c0_74 = arith.constant 0 : index
    %101 = vector.load %arg6[%c0_72, %c0_73, %c0_74] : memref<1x2x128xbf16, #tpu.memory_space<vmem>>, vector<1x2x64xbf16>
    %102 = vector.shape_cast %101 : vector<1x2x64xbf16> to vector<2x64xbf16>
    %103 = vector.shape_cast %100 : vector<2x64xbf16> to vector<1x2x64xbf16>
    tpu.vector_store %arg6[%c0_72, %c0_73, %c0_74], %103 {strides = array<i32>} : memref<1x2x128xbf16, #tpu.memory_space<vmem>>, vector<1x2x64xbf16>,
    %c0_75 = arith.constant 0 : index
    %c1_76 = arith.constant 1 : index
    %c0_77 = arith.constant 0 : index
    %104 = vector.load %arg8[%c0_75, %c1_76, %c0_77] : memref<2x2x64xf32, #tpu.memory_space<vmem>>, vector<2x1x64xf32>
    %105 = vector.shape_cast %104 : vector<2x1x64xf32> to vector<2x64xf32>
    %106 = arith.truncf %105 : vector<2x64xf32> to vector<2x64xbf16>
    %c0_78 = arith.constant 0 : index
    %c0_79 = arith.constant 0 : index
    %c64 = arith.constant 64 : index
    %107 = vector.load %arg6[%c0_78, %c0_79, %c64] : memref<1x2x128xbf16, #tpu.memory_space<vmem>>, vector<1x2x64xbf16>
    %108 = vector.shape_cast %107 : vector<1x2x64xbf16> to vector<2x64xbf16>
    %109 = vector.shape_cast %106 : vector<2x64xbf16> to vector<1x2x64xbf16>
    tpu.vector_store %arg6[%c0_78, %c0_79, %c64], %109 {strides = array<i32>} : memref<1x2x128xbf16, #tpu.memory_space<vmem>>, vector<1x2x64xbf16>,
    return
  }
  func.func @transform_0(%arg0: i32) -> (i32, i32, i32) {
    %c0_i32 = arith.constant 0 : i32
    %c0_i32_0 = arith.constant 0 : i32
    %c0_i32_1 = arith.constant 0 : i32
    return %arg0, %c0_i32, %c0_i32_0 : i32, i32, i32
  }
  func.func @transform_1(%arg0: i32) -> (i32, i32) {
    %c0_i32 = arith.constant 0 : i32
    %c0_i32_0 = arith.constant 0 : i32
    %c0_i32_1 = arith.constant 0 : i32
    return %c0_i32, %c0_i32_0 : i32, i32
  }
  func.func @transform_2(%arg0: i32) -> (i32, i32) {
    %c0_i32 = arith.constant 0 : i32
    %c0_i32_0 = arith.constant 0 : i32
    %c0_i32_1 = arith.constant 0 : i32
    return %c0_i32, %c0_i32_0 : i32, i32
  }
  func.func @transform_3(%arg0: i32) -> (i32, i32) {
    %c0_i32 = arith.constant 0 : i32
    %c0_i32_0 = arith.constant 0 : i32
    %c0_i32_1 = arith.constant 0 : i32
    return %c0_i32, %c0_i32_0 : i32, i32
  }
  func.func @transform_4(%arg0: i32) -> (i32, i32) {
    %c0_i32 = arith.constant 0 : i32
    %c0_i32_0 = arith.constant 0 : i32
    %c0_i32_1 = arith.constant 0 : i32
    return %c0_i32, %c0_i32_0 : i32, i32
  }
  func.func @transform_5(%arg0: i32) -> (i32, i32, i32) {
    %c0_i32 = arith.constant 0 : i32
    %c0_i32_0 = arith.constant 0 : i32
    %c0_i32_1 = arith.constant 0 : i32
    return %arg0, %c0_i32, %c0_i32_0 : i32, i32, i32
  }
}

module attributes {stable_mosaic.version = 11 : i64} {
  func.func @_block_kernel(%arg0: i32, %arg1: memref<1x4x64xbf16, #tpu.memory_space<vmem>>, %arg2: memref<64x128xbf16, #tpu.memory_space<vmem>>, %arg3: memref<1x128xf32, #tpu.memory_space<vmem>>, %arg4: memref<9x64xf32, #tpu.memory_space<vmem>>, %arg5: memref<1x64xf32, #tpu.memory_space<vmem>>, %arg6: memref<1x2x128xbf16, #tpu.memory_space<vmem>>, %arg7: memref<4x4x64xf32, #tpu.memory_space<vmem>>, %arg8: memref<2x2x64xf32, #tpu.memory_space<vmem>>) attributes {dimension_semantics = [#tpu.dimension_semantics<parallel>], iteration_bounds = array<i64: 2>, scalar_prefetch = 0 : i64, scratch_operands = 2 : i64, tpu.core_type = #tpu.core_type<tc>, window_params = [{transform_indices = @transform_0, window_bounds = array<i64: 1, 4, 64>}, {pipeline_mode = #tpu.pipeline_mode<synchronous>, transform_indices = @transform_1, window_bounds = array<i64: 64, 128>}, {pipeline_mode = #tpu.pipeline_mode<synchronous>, transform_indices = @transform_2, window_bounds = array<i64: 1, 128>}, {pipeline_mode = #tpu.pipeline_mode<synchronous>, transform_indices = @transform_3, window_bounds = array<i64: 9, 64>}, {pipeline_mode = #tpu.pipeline_mode<synchronous>, transform_indices = @transform_4, window_bounds = array<i64: 1, 64>}, {transform_indices = @transform_5, window_bounds = array<i64: 1, 2, 128>}]} {
    %c0 = arith.constant 0 : index
    %c0_0 = arith.constant 0 : index
    %c0_1 = arith.constant 0 : index
    %0 = vector.load %arg1[%c0, %c0_0, %c0_1] : memref<1x4x64xbf16, #tpu.memory_space<vmem>>, vector<1x4x64xbf16>
    %1 = vector.shape_cast %0 : vector<1x4x64xbf16> to vector<4x64xbf16>
    %c0_2 = arith.constant 0 : index
    %c0_3 = arith.constant 0 : index
    %2 = vector.load %arg2[%c0_2, %c0_3] : memref<64x128xbf16, #tpu.memory_space<vmem>>, vector<64x128xbf16>
    %cst = arith.constant dense<0.000000e+00> : vector<4x128xf32>
    %3 = tpu.matmul %1, %2, %cst {dimension_numbers = #tpu.dot_dimension_numbers<[1], [0], [0], [1], [0, 0, 1, 1], [], []>} : vector<4x64xbf16>, vector<64x128xbf16>, vector<4x128xf32> -> vector<4x128xf32>
    %c0_4 = arith.constant 0 : index
    %c0_5 = arith.constant 0 : index
    %4 = vector.load %arg3[%c0_4, %c0_5] : memref<1x128xf32, #tpu.memory_space<vmem>>, vector<1x128xf32>
    %5 = vector.broadcast %4 : vector<1x128xf32> to vector<4x128xf32>
    %6 = arith.addf %3, %5 : vector<4x128xf32>
    %7 = vector.extract_strided_slice %6 {offsets = [0, 0], sizes = [4, 64], strides = [1, 1]} : vector<4x128xf32> to vector<4x64xf32>
    %8 = vector.extract_strided_slice %6 {offsets = [0, 64], sizes = [4, 64], strides = [1, 1]} : vector<4x128xf32> to vector<4x64xf32>
    %cst_6 = arith.constant dense<0.000000e+00> : vector<64xf32>
    %9 = vector.multi_reduction <add>, %8, %cst_6 [0] : vector<4x64xf32> to vector<64xf32>
    %10 = vector.shape_cast %9 : vector<64xf32> to vector<1x64xf32>
    %cst_7 = arith.constant 4.000000e+00 : f32
    %11 = vector.broadcast %cst_7 : f32 to vector<1x64xf32>
    %12 = arith.divf %10, %11 : vector<1x64xf32>
    %13 = vector.broadcast %12 : vector<1x64xf32> to vector<4x64xf32>
    %14 = arith.addf %7, %13 : vector<4x64xf32>
    %15 = arith.negf %14 : vector<4x64xf32>
    %16 = math.exp %15 : vector<4x64xf32>
    %cst_8 = arith.constant 1.000000e+00 : f32
    %17 = vector.broadcast %cst_8 : f32 to vector<4x64xf32>
    %18 = arith.addf %17, %16 : vector<4x64xf32>
    %19 = arith.divf %17, %18 : vector<4x64xf32>
    %20 = arith.mulf %7, %19 : vector<4x64xf32>
    %cst_9 = arith.constant 0.000000e+00 : f32
    %21 = vector.broadcast %cst_9 : f32 to vector<1x4x64xf32>
    %cst_10 = arith.constant 0.000000e+00 : f32
    %22 = vector.broadcast %cst_10 : f32 to vector<4x1x64xf32>
    %c0_11 = arith.constant 0 : index
    %c0_12 = arith.constant 0 : index
    %c0_13 = arith.constant 0 : index
    %23 = vector.load %arg7[%c0_11, %c0_12, %c0_13] : memref<4x4x64xf32, #tpu.memory_space<vmem>>, vector<1x4x64xf32>
    tpu.vector_store %arg7[%c0_11, %c0_12, %c0_13], %21 {strides = array<i32>} : memref<4x4x64xf32, #tpu.memory_space<vmem>>, vector<1x4x64xf32>,
    %c3 = arith.constant 3 : index
    %c0_14 = arith.constant 0 : index
    %c0_15 = arith.constant 0 : index
    %24 = vector.load %arg7[%c3, %c0_14, %c0_15] : memref<4x4x64xf32, #tpu.memory_space<vmem>>, vector<1x4x64xf32>
    tpu.vector_store %arg7[%c3, %c0_14, %c0_15], %21 {strides = array<i32>} : memref<4x4x64xf32, #tpu.memory_space<vmem>>, vector<1x4x64xf32>,
    %c0_16 = arith.constant 0 : index
    %c0_17 = arith.constant 0 : index
    %c0_18 = arith.constant 0 : index
    %25 = vector.load %arg7[%c0_16, %c0_17, %c0_18] : memref<4x4x64xf32, #tpu.memory_space<vmem>>, vector<4x1x64xf32>
    tpu.vector_store %arg7[%c0_16, %c0_17, %c0_18], %22 {strides = array<i32>} : memref<4x4x64xf32, #tpu.memory_space<vmem>>, vector<4x1x64xf32>,
    %c0_19 = arith.constant 0 : index
    %c3_20 = arith.constant 3 : index
    %c0_21 = arith.constant 0 : index
    %26 = vector.load %arg7[%c0_19, %c3_20, %c0_21] : memref<4x4x64xf32, #tpu.memory_space<vmem>>, vector<4x1x64xf32>
    tpu.vector_store %arg7[%c0_19, %c3_20, %c0_21], %22 {strides = array<i32>} : memref<4x4x64xf32, #tpu.memory_space<vmem>>, vector<4x1x64xf32>,
    %27 = vector.shape_cast %20 : vector<4x64xf32> to vector<2x2x64xf32>
    %c1 = arith.constant 1 : index
    %c1_22 = arith.constant 1 : index
    %c0_23 = arith.constant 0 : index
    %28 = vector.load %arg7[%c1, %c1_22, %c0_23] : memref<4x4x64xf32, #tpu.memory_space<vmem>>, vector<2x2x64xf32>
    tpu.vector_store %arg7[%c1, %c1_22, %c0_23], %27 {strides = array<i32>} : memref<4x4x64xf32, #tpu.memory_space<vmem>>, vector<2x2x64xf32>,
    %cst_24 = arith.constant 0.000000e+00 : f32
    %29 = vector.broadcast %cst_24 : f32 to vector<2x2x64xf32>
    %c0_25 = arith.constant 0 : index
    %c0_26 = arith.constant 0 : index
    %c0_27 = arith.constant 0 : index
    %30 = vector.load %arg7[%c0_25, %c0_26, %c0_27] : memref<4x4x64xf32, #tpu.memory_space<vmem>>, vector<2x2x64xf32>
    %c0_28 = arith.constant 0 : index
    %c0_29 = arith.constant 0 : index
    %31 = vector.load %arg4[%c0_28, %c0_29] : memref<9x64xf32, #tpu.memory_space<vmem>>, vector<1x64xf32>
    %32 = vector.shape_cast %31 : vector<1x64xf32> to vector<64xf32>
    %33 = vector.shape_cast %32 : vector<64xf32> to vector<1x1x64xf32>
    %34 = vector.broadcast %33 : vector<1x1x64xf32> to vector<2x2x64xf32>
    %35 = arith.mulf %30, %34 : vector<2x2x64xf32>
    %36 = arith.addf %29, %35 : vector<2x2x64xf32>
    %c0_30 = arith.constant 0 : index
    %c1_31 = arith.constant 1 : index
    %c0_32 = arith.constant 0 : index
    %37 = vector.load %arg7[%c0_30, %c1_31, %c0_32] : memref<4x4x64xf32, #tpu.memory_space<vmem>>, vector<2x2x64xf32>
    %c1_33 = arith.constant 1 : index
    %c0_34 = arith.constant 0 : index
    %38 = vector.load %arg4[%c1_33, %c0_34] : memref<9x64xf32, #tpu.memory_space<vmem>>, vector<1x64xf32>
    %39 = vector.shape_cast %38 : vector<1x64xf32> to vector<64xf32>
    %40 = vector.shape_cast %39 : vector<64xf32> to vector<1x1x64xf32>
    %41 = vector.broadcast %40 : vector<1x1x64xf32> to vector<2x2x64xf32>
    %42 = arith.mulf %37, %41 : vector<2x2x64xf32>
    %43 = arith.addf %36, %42 : vector<2x2x64xf32>
    %c0_35 = arith.constant 0 : index
    %c2 = arith.constant 2 : index
    %c0_36 = arith.constant 0 : index
    %44 = vector.load %arg7[%c0_35, %c2, %c0_36] : memref<4x4x64xf32, #tpu.memory_space<vmem>>, vector<2x2x64xf32>
    %c2_37 = arith.constant 2 : index
    %c0_38 = arith.constant 0 : index
    %45 = vector.load %arg4[%c2_37, %c0_38] : memref<9x64xf32, #tpu.memory_space<vmem>>, vector<1x64xf32>
    %46 = vector.shape_cast %45 : vector<1x64xf32> to vector<64xf32>
    %47 = vector.shape_cast %46 : vector<64xf32> to vector<1x1x64xf32>
    %48 = vector.broadcast %47 : vector<1x1x64xf32> to vector<2x2x64xf32>
    %49 = arith.mulf %44, %48 : vector<2x2x64xf32>
    %50 = arith.addf %43, %49 : vector<2x2x64xf32>
    %c1_39 = arith.constant 1 : index
    %c0_40 = arith.constant 0 : index
    %c0_41 = arith.constant 0 : index
    %51 = vector.load %arg7[%c1_39, %c0_40, %c0_41] : memref<4x4x64xf32, #tpu.memory_space<vmem>>, vector<2x2x64xf32>
    %c3_42 = arith.constant 3 : index
    %c0_43 = arith.constant 0 : index
    %52 = vector.load %arg4[%c3_42, %c0_43] : memref<9x64xf32, #tpu.memory_space<vmem>>, vector<1x64xf32>
    %53 = vector.shape_cast %52 : vector<1x64xf32> to vector<64xf32>
    %54 = vector.shape_cast %53 : vector<64xf32> to vector<1x1x64xf32>
    %55 = vector.broadcast %54 : vector<1x1x64xf32> to vector<2x2x64xf32>
    %56 = arith.mulf %51, %55 : vector<2x2x64xf32>
    %57 = arith.addf %50, %56 : vector<2x2x64xf32>
    %c1_44 = arith.constant 1 : index
    %c1_45 = arith.constant 1 : index
    %c0_46 = arith.constant 0 : index
    %58 = vector.load %arg7[%c1_44, %c1_45, %c0_46] : memref<4x4x64xf32, #tpu.memory_space<vmem>>, vector<2x2x64xf32>
    %c4 = arith.constant 4 : index
    %c0_47 = arith.constant 0 : index
    %59 = vector.load %arg4[%c4, %c0_47] : memref<9x64xf32, #tpu.memory_space<vmem>>, vector<1x64xf32>
    %60 = vector.shape_cast %59 : vector<1x64xf32> to vector<64xf32>
    %61 = vector.shape_cast %60 : vector<64xf32> to vector<1x1x64xf32>
    %62 = vector.broadcast %61 : vector<1x1x64xf32> to vector<2x2x64xf32>
    %63 = arith.mulf %58, %62 : vector<2x2x64xf32>
    %64 = arith.addf %57, %63 : vector<2x2x64xf32>
    %c1_48 = arith.constant 1 : index
    %c2_49 = arith.constant 2 : index
    %c0_50 = arith.constant 0 : index
    %65 = vector.load %arg7[%c1_48, %c2_49, %c0_50] : memref<4x4x64xf32, #tpu.memory_space<vmem>>, vector<2x2x64xf32>
    %c5 = arith.constant 5 : index
    %c0_51 = arith.constant 0 : index
    %66 = vector.load %arg4[%c5, %c0_51] : memref<9x64xf32, #tpu.memory_space<vmem>>, vector<1x64xf32>
    %67 = vector.shape_cast %66 : vector<1x64xf32> to vector<64xf32>
    %68 = vector.shape_cast %67 : vector<64xf32> to vector<1x1x64xf32>
    %69 = vector.broadcast %68 : vector<1x1x64xf32> to vector<2x2x64xf32>
    %70 = arith.mulf %65, %69 : vector<2x2x64xf32>
    %71 = arith.addf %64, %70 : vector<2x2x64xf32>
    %c2_52 = arith.constant 2 : index
    %c0_53 = arith.constant 0 : index
    %c0_54 = arith.constant 0 : index
    %72 = vector.load %arg7[%c2_52, %c0_53, %c0_54] : memref<4x4x64xf32, #tpu.memory_space<vmem>>, vector<2x2x64xf32>
    %c6 = arith.constant 6 : index
    %c0_55 = arith.constant 0 : index
    %73 = vector.load %arg4[%c6, %c0_55] : memref<9x64xf32, #tpu.memory_space<vmem>>, vector<1x64xf32>
    %74 = vector.shape_cast %73 : vector<1x64xf32> to vector<64xf32>
    %75 = vector.shape_cast %74 : vector<64xf32> to vector<1x1x64xf32>
    %76 = vector.broadcast %75 : vector<1x1x64xf32> to vector<2x2x64xf32>
    %77 = arith.mulf %72, %76 : vector<2x2x64xf32>
    %78 = arith.addf %71, %77 : vector<2x2x64xf32>
    %c2_56 = arith.constant 2 : index
    %c1_57 = arith.constant 1 : index
    %c0_58 = arith.constant 0 : index
    %79 = vector.load %arg7[%c2_56, %c1_57, %c0_58] : memref<4x4x64xf32, #tpu.memory_space<vmem>>, vector<2x2x64xf32>
    %c7 = arith.constant 7 : index
    %c0_59 = arith.constant 0 : index
    %80 = vector.load %arg4[%c7, %c0_59] : memref<9x64xf32, #tpu.memory_space<vmem>>, vector<1x64xf32>
    %81 = vector.shape_cast %80 : vector<1x64xf32> to vector<64xf32>
    %82 = vector.shape_cast %81 : vector<64xf32> to vector<1x1x64xf32>
    %83 = vector.broadcast %82 : vector<1x1x64xf32> to vector<2x2x64xf32>
    %84 = arith.mulf %79, %83 : vector<2x2x64xf32>
    %85 = arith.addf %78, %84 : vector<2x2x64xf32>
    %c2_60 = arith.constant 2 : index
    %c2_61 = arith.constant 2 : index
    %c0_62 = arith.constant 0 : index
    %86 = vector.load %arg7[%c2_60, %c2_61, %c0_62] : memref<4x4x64xf32, #tpu.memory_space<vmem>>, vector<2x2x64xf32>
    %c8 = arith.constant 8 : index
    %c0_63 = arith.constant 0 : index
    %87 = vector.load %arg4[%c8, %c0_63] : memref<9x64xf32, #tpu.memory_space<vmem>>, vector<1x64xf32>
    %88 = vector.shape_cast %87 : vector<1x64xf32> to vector<64xf32>
    %89 = vector.shape_cast %88 : vector<64xf32> to vector<1x1x64xf32>
    %90 = vector.broadcast %89 : vector<1x1x64xf32> to vector<2x2x64xf32>
    %91 = arith.mulf %86, %90 : vector<2x2x64xf32>
    %92 = arith.addf %85, %91 : vector<2x2x64xf32>
    %c0_64 = arith.constant 0 : index
    %c0_65 = arith.constant 0 : index
    %93 = vector.load %arg5[%c0_64, %c0_65] : memref<1x64xf32, #tpu.memory_space<vmem>>, vector<1x64xf32>
    %94 = vector.shape_cast %93 : vector<1x64xf32> to vector<1x1x64xf32>
    %95 = vector.broadcast %94 : vector<1x1x64xf32> to vector<2x2x64xf32>
    %96 = arith.addf %92, %95 : vector<2x2x64xf32>
    %c0_66 = arith.constant 0 : index
    %c0_67 = arith.constant 0 : index
    %c0_68 = arith.constant 0 : index
    %97 = vector.load %arg8[%c0_66, %c0_67, %c0_68] : memref<2x2x64xf32, #tpu.memory_space<vmem>>, vector<2x2x64xf32>
    tpu.vector_store %arg8[%c0_66, %c0_67, %c0_68], %96 {strides = array<i32>} : memref<2x2x64xf32, #tpu.memory_space<vmem>>, vector<2x2x64xf32>,
    %c0_69 = arith.constant 0 : index
    %c0_70 = arith.constant 0 : index
    %c0_71 = arith.constant 0 : index
    %98 = vector.load %arg8[%c0_69, %c0_70, %c0_71] : memref<2x2x64xf32, #tpu.memory_space<vmem>>, vector<2x1x64xf32>
    %99 = vector.shape_cast %98 : vector<2x1x64xf32> to vector<2x64xf32>
    %100 = arith.truncf %99 : vector<2x64xf32> to vector<2x64xbf16>
    %c0_72 = arith.constant 0 : index
    %c0_73 = arith.constant 0 : index
    %c0_74 = arith.constant 0 : index
    %101 = vector.load %arg6[%c0_72, %c0_73, %c0_74] : memref<1x2x128xbf16, #tpu.memory_space<vmem>>, vector<1x2x64xbf16>
    %102 = vector.shape_cast %101 : vector<1x2x64xbf16> to vector<2x64xbf16>
    %103 = vector.shape_cast %100 : vector<2x64xbf16> to vector<1x2x64xbf16>
    tpu.vector_store %arg6[%c0_72, %c0_73, %c0_74], %103 {strides = array<i32>} : memref<1x2x128xbf16, #tpu.memory_space<vmem>>, vector<1x2x64xbf16>,
    %c0_75 = arith.constant 0 : index
    %c1_76 = arith.constant 1 : index
    %c0_77 = arith.constant 0 : index
    %104 = vector.load %arg8[%c0_75, %c1_76, %c0_77] : memref<2x2x64xf32, #tpu.memory_space<vmem>>, vector<2x1x64xf32>
    %105 = vector.shape_cast %104 : vector<2x1x64xf32> to vector<2x64xf32>
    %106 = arith.truncf %105 : vector<2x64xf32> to vector<2x64xbf16>
    %c0_78 = arith.constant 0 : index
    %c0_79 = arith.constant 0 : index
    %c64 = arith.constant 64 : index
    %107 = vector.load %arg6[%c0_78, %c0_79, %c64] : memref<1x2x128xbf16, #tpu.memory_space<vmem>>, vector<1x2x64xbf16>
    %108 = vector.shape_cast %107 : vector<1x2x64xbf16> to vector<2x64xbf16>
    %109 = vector.shape_cast %106 : vector<2x64xbf16> to vector<1x2x64xbf16>
    tpu.vector_store %arg6[%c0_78, %c0_79, %c64], %109 {strides = array<i32>} : memref<1x2x128xbf16, #tpu.memory_space<vmem>>, vector<1x2x64xbf16>,
    return
  }
  func.func @transform_0(%arg0: i32) -> (i32, i32, i32) {
    %c0_i32 = arith.constant 0 : i32
    %c0_i32_0 = arith.constant 0 : i32
    %c0_i32_1 = arith.constant 0 : i32
    return %arg0, %c0_i32, %c0_i32_0 : i32, i32, i32
  }
  func.func @transform_1(%arg0: i32) -> (i32, i32) {
    %c0_i32 = arith.constant 0 : i32
    %c0_i32_0 = arith.constant 0 : i32
    %c0_i32_1 = arith.constant 0 : i32
    return %c0_i32, %c0_i32_0 : i32, i32
  }
  func.func @transform_2(%arg0: i32) -> (i32, i32) {
    %c0_i32 = arith.constant 0 : i32
    %c0_i32_0 = arith.constant 0 : i32
    %c0_i32_1 = arith.constant 0 : i32
    return %c0_i32, %c0_i32_0 : i32, i32
  }
  func.func @transform_3(%arg0: i32) -> (i32, i32) {
    %c0_i32 = arith.constant 0 : i32
    %c0_i32_0 = arith.constant 0 : i32
    %c0_i32_1 = arith.constant 0 : i32
    return %c0_i32, %c0_i32_0 : i32, i32
  }
  func.func @transform_4(%arg0: i32) -> (i32, i32) {
    %c0_i32 = arith.constant 0 : i32
    %c0_i32_0 = arith.constant 0 : i32
    %c0_i32_1 = arith.constant 0 : i32
    return %c0_i32, %c0_i32_0 : i32, i32
  }
  func.func @transform_5(%arg0: i32) -> (i32, i32, i32) {
    %c0_i32 = arith.constant 0 : i32
    %c0_i32_0 = arith.constant 0 : i32
    %c0_i32_1 = arith.constant 0 : i32
    return %arg0, %c0_i32, %c0_i32_0 : i32, i32, i32
  }
}

module attributes {stable_mosaic.version = 11 : i64} {
  func.func @_block_kernel(%arg0: i32, %arg1: memref<1x4x64xbf16, #tpu.memory_space<vmem>>, %arg2: memref<64x256xbf16, #tpu.memory_space<vmem>>, %arg3: memref<1x256xf32, #tpu.memory_space<vmem>>, %arg4: memref<9x128xf32, #tpu.memory_space<vmem>>, %arg5: memref<1x128xf32, #tpu.memory_space<vmem>>, %arg6: memref<1x1x128xbf16, #tpu.memory_space<vmem>>, %arg7: memref<4x4x128xf32, #tpu.memory_space<vmem>>, %arg8: memref<1x1x128xf32, #tpu.memory_space<vmem>>) attributes {dimension_semantics = [#tpu.dimension_semantics<parallel>], iteration_bounds = array<i64: 2>, scalar_prefetch = 0 : i64, scratch_operands = 2 : i64, tpu.core_type = #tpu.core_type<tc>, window_params = [{transform_indices = @transform_0, window_bounds = array<i64: 1, 4, 64>}, {pipeline_mode = #tpu.pipeline_mode<synchronous>, transform_indices = @transform_1, window_bounds = array<i64: 64, 256>}, {pipeline_mode = #tpu.pipeline_mode<synchronous>, transform_indices = @transform_2, window_bounds = array<i64: 1, 256>}, {pipeline_mode = #tpu.pipeline_mode<synchronous>, transform_indices = @transform_3, window_bounds = array<i64: 9, 128>}, {pipeline_mode = #tpu.pipeline_mode<synchronous>, transform_indices = @transform_4, window_bounds = array<i64: 1, 128>}, {transform_indices = @transform_5, window_bounds = array<i64: 1, 1, 128>}]} {
    %c0 = arith.constant 0 : index
    %c0_0 = arith.constant 0 : index
    %c0_1 = arith.constant 0 : index
    %0 = vector.load %arg1[%c0, %c0_0, %c0_1] : memref<1x4x64xbf16, #tpu.memory_space<vmem>>, vector<1x4x64xbf16>
    %1 = vector.shape_cast %0 : vector<1x4x64xbf16> to vector<4x64xbf16>
    %c0_2 = arith.constant 0 : index
    %c0_3 = arith.constant 0 : index
    %2 = vector.load %arg2[%c0_2, %c0_3] : memref<64x256xbf16, #tpu.memory_space<vmem>>, vector<64x256xbf16>
    %cst = arith.constant dense<0.000000e+00> : vector<4x256xf32>
    %3 = tpu.matmul %1, %2, %cst {dimension_numbers = #tpu.dot_dimension_numbers<[1], [0], [0], [1], [0, 0, 1, 1], [], []>} : vector<4x64xbf16>, vector<64x256xbf16>, vector<4x256xf32> -> vector<4x256xf32>
    %c0_4 = arith.constant 0 : index
    %c0_5 = arith.constant 0 : index
    %4 = vector.load %arg3[%c0_4, %c0_5] : memref<1x256xf32, #tpu.memory_space<vmem>>, vector<1x256xf32>
    %5 = vector.broadcast %4 : vector<1x256xf32> to vector<4x256xf32>
    %6 = arith.addf %3, %5 : vector<4x256xf32>
    %7 = vector.extract_strided_slice %6 {offsets = [0, 0], sizes = [4, 128], strides = [1, 1]} : vector<4x256xf32> to vector<4x128xf32>
    %8 = vector.extract_strided_slice %6 {offsets = [0, 128], sizes = [4, 128], strides = [1, 1]} : vector<4x256xf32> to vector<4x128xf32>
    %cst_6 = arith.constant dense<0.000000e+00> : vector<128xf32>
    %9 = vector.multi_reduction <add>, %8, %cst_6 [0] : vector<4x128xf32> to vector<128xf32>
    %10 = vector.shape_cast %9 : vector<128xf32> to vector<1x128xf32>
    %cst_7 = arith.constant 4.000000e+00 : f32
    %11 = vector.broadcast %cst_7 : f32 to vector<1x128xf32>
    %12 = arith.divf %10, %11 : vector<1x128xf32>
    %13 = vector.broadcast %12 : vector<1x128xf32> to vector<4x128xf32>
    %14 = arith.addf %7, %13 : vector<4x128xf32>
    %15 = arith.negf %14 : vector<4x128xf32>
    %16 = math.exp %15 : vector<4x128xf32>
    %cst_8 = arith.constant 1.000000e+00 : f32
    %17 = vector.broadcast %cst_8 : f32 to vector<4x128xf32>
    %18 = arith.addf %17, %16 : vector<4x128xf32>
    %19 = arith.divf %17, %18 : vector<4x128xf32>
    %20 = arith.mulf %7, %19 : vector<4x128xf32>
    %cst_9 = arith.constant 0.000000e+00 : f32
    %21 = vector.broadcast %cst_9 : f32 to vector<1x4x128xf32>
    %cst_10 = arith.constant 0.000000e+00 : f32
    %22 = vector.broadcast %cst_10 : f32 to vector<4x1x128xf32>
    %c0_11 = arith.constant 0 : index
    %c0_12 = arith.constant 0 : index
    %c0_13 = arith.constant 0 : index
    %23 = vector.load %arg7[%c0_11, %c0_12, %c0_13] : memref<4x4x128xf32, #tpu.memory_space<vmem>>, vector<1x4x128xf32>
    tpu.vector_store %arg7[%c0_11, %c0_12, %c0_13], %21 {strides = array<i32>} : memref<4x4x128xf32, #tpu.memory_space<vmem>>, vector<1x4x128xf32>,
    %c3 = arith.constant 3 : index
    %c0_14 = arith.constant 0 : index
    %c0_15 = arith.constant 0 : index
    %24 = vector.load %arg7[%c3, %c0_14, %c0_15] : memref<4x4x128xf32, #tpu.memory_space<vmem>>, vector<1x4x128xf32>
    tpu.vector_store %arg7[%c3, %c0_14, %c0_15], %21 {strides = array<i32>} : memref<4x4x128xf32, #tpu.memory_space<vmem>>, vector<1x4x128xf32>,
    %c0_16 = arith.constant 0 : index
    %c0_17 = arith.constant 0 : index
    %c0_18 = arith.constant 0 : index
    %25 = vector.load %arg7[%c0_16, %c0_17, %c0_18] : memref<4x4x128xf32, #tpu.memory_space<vmem>>, vector<4x1x128xf32>
    tpu.vector_store %arg7[%c0_16, %c0_17, %c0_18], %22 {strides = array<i32>} : memref<4x4x128xf32, #tpu.memory_space<vmem>>, vector<4x1x128xf32>,
    %c0_19 = arith.constant 0 : index
    %c3_20 = arith.constant 3 : index
    %c0_21 = arith.constant 0 : index
    %26 = vector.load %arg7[%c0_19, %c3_20, %c0_21] : memref<4x4x128xf32, #tpu.memory_space<vmem>>, vector<4x1x128xf32>
    tpu.vector_store %arg7[%c0_19, %c3_20, %c0_21], %22 {strides = array<i32>} : memref<4x4x128xf32, #tpu.memory_space<vmem>>, vector<4x1x128xf32>,
    %27 = vector.shape_cast %20 : vector<4x128xf32> to vector<2x2x128xf32>
    %c1 = arith.constant 1 : index
    %c1_22 = arith.constant 1 : index
    %c0_23 = arith.constant 0 : index
    %28 = vector.load %arg7[%c1, %c1_22, %c0_23] : memref<4x4x128xf32, #tpu.memory_space<vmem>>, vector<2x2x128xf32>
    tpu.vector_store %arg7[%c1, %c1_22, %c0_23], %27 {strides = array<i32>} : memref<4x4x128xf32, #tpu.memory_space<vmem>>, vector<2x2x128xf32>,
    %cst_24 = arith.constant 0.000000e+00 : f32
    %29 = vector.broadcast %cst_24 : f32 to vector<1x1x128xf32>
    %c0_25 = arith.constant 0 : index
    %c0_26 = arith.constant 0 : index
    %c0_27 = arith.constant 0 : index
    %30 = tpu.strided_load %arg7[%c0_25, %c0_26, %c0_27] {strides = array<i32: 2, 2, 1>} : memref<4x4x128xf32, #tpu.memory_space<vmem>>, vector<1x1x128xf32>
    %c0_28 = arith.constant 0 : index
    %c0_29 = arith.constant 0 : index
    %31 = vector.load %arg4[%c0_28, %c0_29] : memref<9x128xf32, #tpu.memory_space<vmem>>, vector<1x128xf32>
    %32 = vector.shape_cast %31 : vector<1x128xf32> to vector<128xf32>
    %33 = vector.shape_cast %32 : vector<128xf32> to vector<1x1x128xf32>
    %34 = arith.mulf %30, %33 : vector<1x1x128xf32>
    %35 = arith.addf %29, %34 : vector<1x1x128xf32>
    %c0_30 = arith.constant 0 : index
    %c1_31 = arith.constant 1 : index
    %c0_32 = arith.constant 0 : index
    %36 = tpu.strided_load %arg7[%c0_30, %c1_31, %c0_32] {strides = array<i32: 2, 2, 1>} : memref<4x4x128xf32, #tpu.memory_space<vmem>>, vector<1x1x128xf32>
    %c1_33 = arith.constant 1 : index
    %c0_34 = arith.constant 0 : index
    %37 = vector.load %arg4[%c1_33, %c0_34] : memref<9x128xf32, #tpu.memory_space<vmem>>, vector<1x128xf32>
    %38 = vector.shape_cast %37 : vector<1x128xf32> to vector<128xf32>
    %39 = vector.shape_cast %38 : vector<128xf32> to vector<1x1x128xf32>
    %40 = arith.mulf %36, %39 : vector<1x1x128xf32>
    %41 = arith.addf %35, %40 : vector<1x1x128xf32>
    %c0_35 = arith.constant 0 : index
    %c2 = arith.constant 2 : index
    %c0_36 = arith.constant 0 : index
    %42 = tpu.strided_load %arg7[%c0_35, %c2, %c0_36] {strides = array<i32: 2, 2, 1>} : memref<4x4x128xf32, #tpu.memory_space<vmem>>, vector<1x1x128xf32>
    %c2_37 = arith.constant 2 : index
    %c0_38 = arith.constant 0 : index
    %43 = vector.load %arg4[%c2_37, %c0_38] : memref<9x128xf32, #tpu.memory_space<vmem>>, vector<1x128xf32>
    %44 = vector.shape_cast %43 : vector<1x128xf32> to vector<128xf32>
    %45 = vector.shape_cast %44 : vector<128xf32> to vector<1x1x128xf32>
    %46 = arith.mulf %42, %45 : vector<1x1x128xf32>
    %47 = arith.addf %41, %46 : vector<1x1x128xf32>
    %c1_39 = arith.constant 1 : index
    %c0_40 = arith.constant 0 : index
    %c0_41 = arith.constant 0 : index
    %48 = tpu.strided_load %arg7[%c1_39, %c0_40, %c0_41] {strides = array<i32: 2, 2, 1>} : memref<4x4x128xf32, #tpu.memory_space<vmem>>, vector<1x1x128xf32>
    %c3_42 = arith.constant 3 : index
    %c0_43 = arith.constant 0 : index
    %49 = vector.load %arg4[%c3_42, %c0_43] : memref<9x128xf32, #tpu.memory_space<vmem>>, vector<1x128xf32>
    %50 = vector.shape_cast %49 : vector<1x128xf32> to vector<128xf32>
    %51 = vector.shape_cast %50 : vector<128xf32> to vector<1x1x128xf32>
    %52 = arith.mulf %48, %51 : vector<1x1x128xf32>
    %53 = arith.addf %47, %52 : vector<1x1x128xf32>
    %c1_44 = arith.constant 1 : index
    %c1_45 = arith.constant 1 : index
    %c0_46 = arith.constant 0 : index
    %54 = tpu.strided_load %arg7[%c1_44, %c1_45, %c0_46] {strides = array<i32: 2, 2, 1>} : memref<4x4x128xf32, #tpu.memory_space<vmem>>, vector<1x1x128xf32>
    %c4 = arith.constant 4 : index
    %c0_47 = arith.constant 0 : index
    %55 = vector.load %arg4[%c4, %c0_47] : memref<9x128xf32, #tpu.memory_space<vmem>>, vector<1x128xf32>
    %56 = vector.shape_cast %55 : vector<1x128xf32> to vector<128xf32>
    %57 = vector.shape_cast %56 : vector<128xf32> to vector<1x1x128xf32>
    %58 = arith.mulf %54, %57 : vector<1x1x128xf32>
    %59 = arith.addf %53, %58 : vector<1x1x128xf32>
    %c1_48 = arith.constant 1 : index
    %c2_49 = arith.constant 2 : index
    %c0_50 = arith.constant 0 : index
    %60 = tpu.strided_load %arg7[%c1_48, %c2_49, %c0_50] {strides = array<i32: 2, 2, 1>} : memref<4x4x128xf32, #tpu.memory_space<vmem>>, vector<1x1x128xf32>
    %c5 = arith.constant 5 : index
    %c0_51 = arith.constant 0 : index
    %61 = vector.load %arg4[%c5, %c0_51] : memref<9x128xf32, #tpu.memory_space<vmem>>, vector<1x128xf32>
    %62 = vector.shape_cast %61 : vector<1x128xf32> to vector<128xf32>
    %63 = vector.shape_cast %62 : vector<128xf32> to vector<1x1x128xf32>
    %64 = arith.mulf %60, %63 : vector<1x1x128xf32>
    %65 = arith.addf %59, %64 : vector<1x1x128xf32>
    %c2_52 = arith.constant 2 : index
    %c0_53 = arith.constant 0 : index
    %c0_54 = arith.constant 0 : index
    %66 = tpu.strided_load %arg7[%c2_52, %c0_53, %c0_54] {strides = array<i32: 2, 2, 1>} : memref<4x4x128xf32, #tpu.memory_space<vmem>>, vector<1x1x128xf32>
    %c6 = arith.constant 6 : index
    %c0_55 = arith.constant 0 : index
    %67 = vector.load %arg4[%c6, %c0_55] : memref<9x128xf32, #tpu.memory_space<vmem>>, vector<1x128xf32>
    %68 = vector.shape_cast %67 : vector<1x128xf32> to vector<128xf32>
    %69 = vector.shape_cast %68 : vector<128xf32> to vector<1x1x128xf32>
    %70 = arith.mulf %66, %69 : vector<1x1x128xf32>
    %71 = arith.addf %65, %70 : vector<1x1x128xf32>
    %c2_56 = arith.constant 2 : index
    %c1_57 = arith.constant 1 : index
    %c0_58 = arith.constant 0 : index
    %72 = tpu.strided_load %arg7[%c2_56, %c1_57, %c0_58] {strides = array<i32: 2, 2, 1>} : memref<4x4x128xf32, #tpu.memory_space<vmem>>, vector<1x1x128xf32>
    %c7 = arith.constant 7 : index
    %c0_59 = arith.constant 0 : index
    %73 = vector.load %arg4[%c7, %c0_59] : memref<9x128xf32, #tpu.memory_space<vmem>>, vector<1x128xf32>
    %74 = vector.shape_cast %73 : vector<1x128xf32> to vector<128xf32>
    %75 = vector.shape_cast %74 : vector<128xf32> to vector<1x1x128xf32>
    %76 = arith.mulf %72, %75 : vector<1x1x128xf32>
    %77 = arith.addf %71, %76 : vector<1x1x128xf32>
    %c2_60 = arith.constant 2 : index
    %c2_61 = arith.constant 2 : index
    %c0_62 = arith.constant 0 : index
    %78 = tpu.strided_load %arg7[%c2_60, %c2_61, %c0_62] {strides = array<i32: 2, 2, 1>} : memref<4x4x128xf32, #tpu.memory_space<vmem>>, vector<1x1x128xf32>
    %c8 = arith.constant 8 : index
    %c0_63 = arith.constant 0 : index
    %79 = vector.load %arg4[%c8, %c0_63] : memref<9x128xf32, #tpu.memory_space<vmem>>, vector<1x128xf32>
    %80 = vector.shape_cast %79 : vector<1x128xf32> to vector<128xf32>
    %81 = vector.shape_cast %80 : vector<128xf32> to vector<1x1x128xf32>
    %82 = arith.mulf %78, %81 : vector<1x1x128xf32>
    %83 = arith.addf %77, %82 : vector<1x1x128xf32>
    %c0_64 = arith.constant 0 : index
    %c0_65 = arith.constant 0 : index
    %84 = vector.load %arg5[%c0_64, %c0_65] : memref<1x128xf32, #tpu.memory_space<vmem>>, vector<1x128xf32>
    %85 = vector.shape_cast %84 : vector<1x128xf32> to vector<1x1x128xf32>
    %86 = arith.addf %83, %85 : vector<1x1x128xf32>
    %c0_66 = arith.constant 0 : index
    %c0_67 = arith.constant 0 : index
    %c0_68 = arith.constant 0 : index
    %87 = vector.load %arg8[%c0_66, %c0_67, %c0_68] : memref<1x1x128xf32, #tpu.memory_space<vmem>>, vector<1x1x128xf32>
    tpu.vector_store %arg8[%c0_66, %c0_67, %c0_68], %86 {strides = array<i32>} : memref<1x1x128xf32, #tpu.memory_space<vmem>>, vector<1x1x128xf32>,
    %c0_69 = arith.constant 0 : index
    %c0_70 = arith.constant 0 : index
    %c0_71 = arith.constant 0 : index
    %88 = vector.load %arg8[%c0_69, %c0_70, %c0_71] : memref<1x1x128xf32, #tpu.memory_space<vmem>>, vector<1x1x128xf32>
    %89 = vector.shape_cast %88 : vector<1x1x128xf32> to vector<1x128xf32>
    %90 = arith.truncf %89 : vector<1x128xf32> to vector<1x128xbf16>
    %c0_72 = arith.constant 0 : index
    %c0_73 = arith.constant 0 : index
    %c0_74 = arith.constant 0 : index
    %91 = vector.load %arg6[%c0_72, %c0_73, %c0_74] : memref<1x1x128xbf16, #tpu.memory_space<vmem>>, vector<1x1x128xbf16>
    %92 = vector.shape_cast %91 : vector<1x1x128xbf16> to vector<1x128xbf16>
    %93 = vector.shape_cast %90 : vector<1x128xbf16> to vector<1x1x128xbf16>
    tpu.vector_store %arg6[%c0_72, %c0_73, %c0_74], %93 {strides = array<i32>} : memref<1x1x128xbf16, #tpu.memory_space<vmem>>, vector<1x1x128xbf16>,
    return
  }
  func.func @transform_0(%arg0: i32) -> (i32, i32, i32) {
    %c0_i32 = arith.constant 0 : i32
    %c0_i32_0 = arith.constant 0 : i32
    %c0_i32_1 = arith.constant 0 : i32
    return %arg0, %c0_i32, %c0_i32_0 : i32, i32, i32
  }
  func.func @transform_1(%arg0: i32) -> (i32, i32) {
    %c0_i32 = arith.constant 0 : i32
    %c0_i32_0 = arith.constant 0 : i32
    %c0_i32_1 = arith.constant 0 : i32
    return %c0_i32, %c0_i32_0 : i32, i32
  }
  func.func @transform_2(%arg0: i32) -> (i32, i32) {
    %c0_i32 = arith.constant 0 : i32
    %c0_i32_0 = arith.constant 0 : i32
    %c0_i32_1 = arith.constant 0 : i32
    return %c0_i32, %c0_i32_0 : i32, i32
  }
  func.func @transform_3(%arg0: i32) -> (i32, i32) {
    %c0_i32 = arith.constant 0 : i32
    %c0_i32_0 = arith.constant 0 : i32
    %c0_i32_1 = arith.constant 0 : i32
    return %c0_i32, %c0_i32_0 : i32, i32
  }
  func.func @transform_4(%arg0: i32) -> (i32, i32) {
    %c0_i32 = arith.constant 0 : i32
    %c0_i32_0 = arith.constant 0 : i32
    %c0_i32_1 = arith.constant 0 : i32
    return %c0_i32, %c0_i32_0 : i32, i32
  }
  func.func @transform_5(%arg0: i32) -> (i32, i32, i32) {
    %c0_i32 = arith.constant 0 : i32
    %c0_i32_0 = arith.constant 0 : i32
    %c0_i32_1 = arith.constant 0 : i32
    return %arg0, %c0_i32, %c0_i32_0 : i32, i32, i32
  }
}

</mosaic_0001>

<llo_original>
// kernel: _lambda_.9
$region0: #{_lambda_.9}
  #allocation0 [shape = 'u32[]', space=smem, size = 0x4, offset = 0x4, fixed_abs, tag = 'smem constant byte address 0x4 - core index']
  #allocation1 [shape = 'u32[144,128]{1,0:T(1,128)}', space=vmem, size = 0x12000, scoped, tag = 'internal scratch']
  #allocation2 [shape = 'f32[6,6,64]{2,1,0:T(8,128)}', space=vmem, size = 0x6000, scoped, tag = 'scratch operand']
  #allocation3 [shape = 'f32[2,2,64]{2,1,0:T(2,128)}', space=vmem, size = 0x800, scoped, tag = 'scratch operand']
  %s0 = inlined_call_operand.vmem [shape: bf16[2,16,32], index: 0, kind: input, shape index: {}]
  %s1 = inlined_call_operand.vmem [shape: bf16[32,128], index: 1, kind: input, shape index: {}]
  %s2 = inlined_call_operand.vmem [shape: f32[1,128], index: 2, kind: input, shape index: {}]
  %s3 = inlined_call_operand.vmem [shape: f32[9,64], index: 3, kind: input, shape index: {}]
  %s4 = inlined_call_operand.vmem [shape: f32[1,64], index: 4, kind: input, shape index: {}]
  %s5 = inlined_call_operand.vmem [shape: bf16[2,2,128], index: 5, kind: output, shape index: {}]
  %s6 = sld [smem:[#allocation0]]
  $region53: #{_lambda_.9} parent=0
    _
  %s8 = ssub.s32 1, %s6
  %s9 = scalar_select 0, %s8, %s6
  loop: start=0, step=1, limit=4
  $region2: #{_lambda_.9} parent=0 // loop_pre_header
    _
  $region3: #{_lambda_.9} parent=0 // loop_header
    %s11 = sphi 0, %s15
    %p12 = scmp.ge.s32.totalorder %s11, 4
    %s21 = sphi 0, %s23
    %s24 = sphi 0, %s21
    %s25 = sphi 0, %s24
    %s41 = sphi 0, %s25
    %s45 = sphi 0, %s45
    %s47 = sphi 0, %s45
    %s48 = sphi 0, %s47
    %s62 = sphi 0, %s48
    %s66 = sphi 0, %s66
    %s68 = sphi 0, %s66
    %s69 = sphi 0, %s68
    %s83 = sphi 0, %s69
    %s87 = sphi 0, %s87
    %s89 = sphi 0, %s87
    %s90 = sphi 0, %s89
    %s104 = sphi 0, %s90
    %s108 = sphi 0, %s108
    %s110 = sphi 0, %s108
    %s111 = sphi 0, %s110
    %s125 = sphi 0, %s111
    %s131 = sphi 0, %s133
    %s134 = sphi 0, %s131
    %s135 = sphi 0, %s134
    %s151 = sphi 0, %s135
  $region4: #{_lambda_.9} parent=0 // loop_header_branch
    %14 = sbr.rel (%p12) target = $region8
  $region5: #{_lambda_.9} parent=0 // loop_body
    %s16 = ssub.s32 %s11, 1
    %s17 = ssub.s32 %s11, 2
    %s18 = sadd.s32 %s11, 1
    %s19 = ssub.s32 %s11, %s18
    %p20 = scmp.eq.s32.totalorder %s19, 0
    %s22 = sadd.s32 %s21, 1
    %s23 = scalar_select %p20, %s21, %s22
    %p26 = pneg %p20
    %p27 = scmp.eq.s32.totalorder %s11, 1
    %p28 = por %p26, %p27
    %p29 = scmp.ne.s32.totalorder %s21, %s24
    %p30 = scmp.eq.s32.totalorder %s11, 0
    %p31 = por %p29, %p30
    %p32 = scmp.ne.s32.totalorder %s21, %s24
    %p33 = scmp.eq.s32.totalorder %s16, 1
    %p34 = por %p32, %p33
    %p35 = scmp.ne.s32.totalorder %s24, %s25
    %p36 = scmp.eq.s32.totalorder %s16, 0
    %p37 = por %p35, %p36
    %p38 = scmp.ne.s32.totalorder %s24, %s25
    %p39 = scmp.eq.s32.totalorder %s17, 1
    %p40 = por %p38, %p39
    %p42 = scmp.ne.s32.totalorder %s25, %s41
    %p43 = scmp.eq.s32.totalorder %s17, 0
    %p44 = por %p42, %p43
    %s46 = sadd.s32 %s45, 1
    %p49 = scmp.eq.s32.totalorder %s11, 1
    %p50 = scmp.ne.s32.totalorder %s45, %s47
    %p51 = scmp.eq.s32.totalorder %s11, 0
    %p52 = por %p50, %p51
    %p53 = scmp.ne.s32.totalorder %s45, %s47
    %p54 = scmp.eq.s32.totalorder %s16, 1
    %p55 = por %p53, %p54
    %p56 = scmp.ne.s32.totalorder %s47, %s48
    %p57 = scmp.eq.s32.totalorder %s16, 0
    %p58 = por %p56, %p57
    %p59 = scmp.ne.s32.totalorder %s47, %s48
    %p60 = scmp.eq.s32.totalorder %s17, 1
    %p61 = por %p59, %p60
    %p63 = scmp.ne.s32.totalorder %s48, %s62
    %p64 = scmp.eq.s32.totalorder %s17, 0
    %p65 = por %p63, %p64
    %s67 = sadd.s32 %s66, 1
    %p70 = scmp.eq.s32.totalorder %s11, 1
    %p71 = scmp.ne.s32.totalorder %s66, %s68
    %p72 = scmp.eq.s32.totalorder %s11, 0
    %p73 = por %p71, %p72
    %p74 = scmp.ne.s32.totalorder %s66, %s68
    %p75 = scmp.eq.s32.totalorder %s16, 1
    %p76 = por %p74, %p75
    %p77 = scmp.ne.s32.totalorder %s68, %s69
    %p78 = scmp.eq.s32.totalorder %s16, 0
    %p79 = por %p77, %p78
    %p80 = scmp.ne.s32.totalorder %s68, %s69
    %p81 = scmp.eq.s32.totalorder %s17, 1
    %p82 = por %p80, %p81
    %p84 = scmp.ne.s32.totalorder %s69, %s83
    %p85 = scmp.eq.s32.totalorder %s17, 0
    %p86 = por %p84, %p85
    %s88 = sadd.s32 %s87, 1
    %p91 = scmp.eq.s32.totalorder %s11, 1
    %p92 = scmp.ne.s32.totalorder %s87, %s89
    %p93 = scmp.eq.s32.totalorder %s11, 0
    %p94 = por %p92, %p93
    %p95 = scmp.ne.s32.totalorder %s87, %s89
    %p96 = scmp.eq.s32.totalorder %s16, 1
    %p97 = por %p95, %p96
    %p98 = scmp.ne.s32.totalorder %s89, %s90
    %p99 = scmp.eq.s32.totalorder %s16, 0
    %p100 = por %p98, %p99
    %p101 = scmp.ne.s32.totalorder %s89, %s90
    %p102 = scmp.eq.s32.totalorder %s17, 1
    %p103 = por %p101, %p102
    %p105 = scmp.ne.s32.totalorder %s90, %s104
    %p106 = scmp.eq.s32.totalorder %s17, 0
    %p107 = por %p105, %p106
    %s109 = sadd.s32 %s108, 1
    %p112 = scmp.eq.s32.totalorder %s11, 1
    %p113 = scmp.ne.s32.totalorder %s108, %s110
    %p114 = scmp.eq.s32.totalorder %s11, 0
    %p115 = por %p113, %p114
    %p116 = scmp.ne.s32.totalorder %s108, %s110
    %p117 = scmp.eq.s32.totalorder %s16, 1
    %p118 = por %p116, %p117
    %p119 = scmp.ne.s32.totalorder %s110, %s111
    %p120 = scmp.eq.s32.totalorder %s16, 0
    %p121 = por %p119, %p120
    %p122 = scmp.ne.s32.totalorder %s110, %s111
    %p123 = scmp.eq.s32.totalorder %s17, 1
    %p124 = por %p122, %p123
    %p126 = scmp.ne.s32.totalorder %s111, %s125
    %p127 = scmp.eq.s32.totalorder %s17, 0
    %p128 = por %p126, %p127
    %s129 = ssub.s32 %s11, %s18
    %p130 = scmp.eq.s32.totalorder %s129, 0
    %s132 = sadd.s32 %s131, 1
    %s133 = scalar_select %p130, %s131, %s132
    %p136 = pneg %p130
    %p137 = scmp.eq.s32.totalorder %s11, 1
    %p138 = por %p136, %p137
    %p139 = scmp.ne.s32.totalorder %s131, %s134
    %p140 = scmp.eq.s32.totalorder %s11, 0
    %p141 = por %p139, %p140
    %p142 = scmp.ne.s32.totalorder %s131, %s134
    %p143 = scmp.eq.s32.totalorder %s16, 1
    %p144 = por %p142, %p143
    %p145 = scmp.ne.s32.totalorder %s134, %s135
    %p146 = scmp.eq.s32.totalorder %s16, 0
    %p147 = por %p145, %p146
    %p148 = scmp.ne.s32.totalorder %s134, %s135
    %p149 = scmp.eq.s32.totalorder %s17, 1
    %p150 = por %p148, %p149
    %p152 = scmp.ne.s32.totalorder %s135, %s151
    %p153 = scmp.eq.s32.totalorder %s17, 0
    %p154 = por %p152, %p153
    %p155 = scmp.le.s32.totalorder 1, %s11
    %p156 = scmp.lt.s32.totalorder %s11, 3
    %p157 = pnand %p155, %p156
    %p158 = pneg %p157
    // Predicated region
    $region9: #{_lambda_.9} parent=5 // pred_check
      _
    $region10: #{_lambda_.9} parent=5 // pred_check_branch
      %160 = sbr.rel (%p157) target = $region12
    $region11: #{_lambda_.9} parent=5 // pred_region
      %s161 = ssub.s32 %s11, 1
      // Predicated region
      $region13: #{_lambda_.9} parent=11 // pred_check
        %p162 = pneg %p58
      $region14: #{_lambda_.9} parent=11 // pred_check_branch
        %164 = sbr.rel (%p162) target = $region16
      $region15: #{_lambda_.9} parent=11 // pred_region
        _
      $region16: #{_lambda_.9} parent=11 // pred_fallthru
        _
      // Predicated region
      $region17: #{_lambda_.9} parent=11 // pred_check
        %p165 = pneg %p79
      $region18: #{_lambda_.9} parent=11 // pred_check_branch
        %167 = sbr.rel (%p165) target = $region20
      $region19: #{_lambda_.9} parent=11 // pred_region
        _
      $region20: #{_lambda_.9} parent=11 // pred_fallthru
        _
      // Predicated region
      $region21: #{_lambda_.9} parent=11 // pred_check
        %p168 = pneg %p100
      $region22: #{_lambda_.9} parent=11 // pred_check_branch
        %170 = sbr.rel (%p168) target = $region24
      $region23: #{_lambda_.9} parent=11 // pred_region
        _
      $region24: #{_lambda_.9} parent=11 // pred_fallthru
        _
      // Predicated region
      $region25: #{_lambda_.9} parent=11 // pred_check
        %p171 = pneg %p121
      $region26: #{_lambda_.9} parent=11 // pred_check_branch
        %173 = sbr.rel (%p171) target = $region28
      $region27: #{_lambda_.9} parent=11 // pred_region
        _
      $region28: #{_lambda_.9} parent=11 // pred_fallthru
        _
    $region12: #{_lambda_.9} parent=5 // pred_fallthru
      _
    %p174 = scmp.lt.s32.totalorder %s11, 2
    // Predicated region
    $region29: #{_lambda_.9} parent=5 // pred_check
      %p175 = pneg %p174
    $region30: #{_lambda_.9} parent=5 // pred_check_branch
      %177 = sbr.rel (%p175) target = $region32
    $region31: #{_lambda_.9} parent=5 // pred_region
      // Predicated region
      $region33: #{_lambda_.9} parent=31 // pred_check
        %p178 = pneg %p31
      $region34: #{_lambda_.9} parent=31 // pred_check_branch
        %180 = sbr.rel (%p178) target = $region36
      $region35: #{_lambda_.9} parent=31 // pred_region
        %p181 = scmp.lt.s32.totalorder %s11, 1
        %s182 = scalar_select %p181, %s11, 1
        %s183 = smul.addr %s182, 2
        %s184 = smul.addr %s183, 4
        %s185 = scalar_lea.vmem %s0, %s184
      $region36: #{_lambda_.9} parent=31 // pred_fallthru
        _
    $region32: #{_lambda_.9} parent=5 // pred_fallthru
      _
    %p186 = scmp.le.s32.totalorder 1, %s11
    %p187 = scmp.lt.s32.totalorder %s11, 3
    %p188 = pnand %p186, %p187
    %p189 = pneg %p188
    // Predicated region
    $region37: #{_lambda_.9} parent=5 // pred_check
      _
    $region38: #{_lambda_.9} parent=5 // pred_check_branch
      %191 = sbr.rel (%p188) target = $region40
    $region39: #{_lambda_.9} parent=5 // pred_region
      %s192 = ssub.s32 %s11, 1
      %p193 = scmp.lt.s32.totalorder %s16, 1
      %s194 = scalar_select %p193, %s16, 1
      %s195 = smul.addr %s194, 2
      %s196 = smul.addr %s195, 4
      %s197 = scalar_lea.vmem %s0, %s196
      %p198 = pneg %p37
      %p199 = pneg %p34
      %p200 = pneg %p58
      %p201 = pneg %p55
      %p202 = pneg %p79
      %p203 = pneg %p76
      %p204 = pneg %p100
      %p205 = pneg %p97
      %p206 = pneg %p121
      %p207 = pneg %p118
      %p208 = pneg %p147
      %p209 = pneg %p144
      %p210 = scmp.lt.s32.totalorder %s16, 1
      %s211 = scalar_select %p210, %s16, 1
      %s212 = scalar_lea.vmem %s5, %s211
      %p213 = scmp.lt.s32.totalorder %s16, 1
      %s214 = scalar_select %p213, %s16, 1
      %s215 = smul.addr %s214, 2
      %s216 = smul.addr %s215, 4
      %s217 = scalar_lea.vmem %s0, %s216
      %p218 = scmp.lt.s32.totalorder %s16, 1
      %s219 = scalar_select %p218, %s16, 1
      %s220 = scalar_lea.vmem %s5, %s219
      %v222 = vld [vmem:[%s217] sm:$0xf]
      %v223 = vld [vmem:[%s217 + $0x4] sm:$0xf]
      %v224 = vld [vmem:[%s1] sm:$0xf]
      %v225 = vld [vmem:[%s1 + $0x4] sm:$0xf]
      %v226 = vld [vmem:[%s1 + $0x8] sm:$0xf]
      %v227 = vld [vmem:[%s1 + $0xc] sm:$0xf]
      %v228 = vld [vmem:[%s2] sm:$0x1]
      %v230 = vlaneseq
      %v231 = vshrl.u32 %v230, 7
      %v232 = vsub.s32 0, %v231
      %v233 = vrot.slane %v228, %v232
      %v237 = vunpack.c.l.b16 %v222
      %v238 = vunpack.c.l.b16 %v223
      %v239 = vpack.c.b16 %v238, %v237
      %v244 = vunpack.c.l.b16 %v224
      %v245 = vunpack.c.l.b16 %v225
      %v246 = vunpack.c.l.b16 %v226
      %v247 = vunpack.c.l.b16 %v227
      %v248 = vpack.c.b16 %v245, %v244
      %v249 = vpack.c.b16 %v247, %v246
      %vm252 = vcmask 261120
      %v254 = vsel %vm252, %v239, 0
      %256 = vmatprep.subr.bf16.mxu0 0
      %257 = vmatpush1.bf16.msra.mxu0 %v248
      %258 = vmatprep.subr.bf16.mxu0 0
      %259 = vmatpush1.bf16.msra.mxu0 %v249
      %260 = vmatprep.subr.bf16.mxu0 0
      %261 = vmatpush1.bf16.msra.mxu0 0
      %262 = vmatprep.subr.bf16.mxu0 0
      %263 = vmatpush1.bf16.msra.mxu0 0
      %264 = vmatprep.subr.bf16.mxu0 0
      %265 = vmatpush1.bf16.msra.mxu0 0
      %266 = vmatprep.subr.bf16.mxu0 0
      %267 = vmatpush1.bf16.msra.mxu0 0
      %268 = vmatprep.subr.bf16.mxu0 0
      %269 = vmatpush1.bf16.msra.mxu0 0
      %270 = vmatprep.subr.bf16.mxu0 0
      %271 = vmatpush1.bf16.msra.mxu0 0
      %272 = vmatprep.subr.bf16.mxu0 0
      %273 = vmatpush1.bf16.msra.mxu0 0
      %274 = vmatprep.subr.bf16.mxu0 0
      %275 = vmatpush1.bf16.msra.mxu0 0
      %276 = vmatprep.subr.bf16.mxu0 0
      %277 = vmatpush1.bf16.msra.mxu0 0
      %278 = vmatprep.subr.bf16.mxu0 0
      %279 = vmatpush1.bf16.msra.mxu0 0
      %280 = vmatprep.subr.bf16.mxu0 0
      %281 = vmatpush1.bf16.msra.mxu0 0
      %282 = vmatprep.subr.bf16.mxu0 0
      %283 = vmatpush1.bf16.msra.mxu0 0
      %284 = vmatprep.subr.bf16.mxu0 0
      %285 = vmatpush1.bf16.msra.mxu0 0
      %286 = vmatprep.subr.bf16.mxu0 0
      %287 = vmatpush1.bf16.msra.mxu0 0
      %288 = vmatprep.mubr.bf16.mxu0 0
      %289 = vmatmul.mubr.bf16.gmra.mrb[0].mxu0 %v254
      %v290 = vpop.f32.mrb[0].mxu0
      %v291 = vadd.f32 %v233, %v290
      %v292 = vpop.f32.mrb[0].mxu0
      %v293 = vpop.f32.mrb[0].mxu0
      %v294 = vadd.f32 %v233, %v293
      %v295 = vpop.f32.mrb[0].mxu0
      %296 = vdwg.mxu0
      %vm297 = vcmask 1048064
      %v298 = vsel %vm297, %v291, 0.0
      %v299 = vsel %vm297, %v294, 0.0
      %v300 = vadd.f32 %v298, %v299
      %v301 = vrot.slane %v300, 4
      %v302 = vadd.f32 %v300, %v301
      %v303 = vrot.slane %v302, 2
      %v304 = vadd.f32 %v302, %v303
      %v305 = vrot.slane %v304, 1
      %v306 = vadd.f32 %v304, %v305
      %v307 = vrcp.pop 16.0
      %v308 = vmul.f32 %v306, %v307
      %310 = vrot.lane.b32.xlu0 %v308, 64
      %v311 = vpop.permute.xlu0 %310
      %v313 = vadd.f32 %v291, %v311
      %v314 = vadd.f32 %v294, %v311
      %v315 = vxor.u32 %v313, 2147483648
      %v316 = vxor.u32 %v314, 2147483648
      %v317 = vmul.f32 %v315, 1.442695
      %v318 = vpow.pop %v317
      %v319 = vmul.f32 %v316, 1.442695
      %v320 = vpow.pop %v319
      %v321 = vadd.f32 %v318, 1.0
      %v322 = vadd.f32 %v320, 1.0
      %v323 = vrcp.pop %v321
      %v324 = vmul.f32 1.0, %v323
      %v325 = vrcp.pop %v322
      %v326 = vmul.f32 1.0, %v325
      %v327 = vmul.f32 %v291, %v324
      %v328 = vmul.f32 %v294, %v326
      %vm329 = vcmask 521216
      %330 = vst.msk [vmem:[#allocation2] sm:$0x3f] %vm329, 0.0
      %s331 = scalar_lea.vmem [#allocation2], 40
      %332 = vst.msk [vmem:[%s331] sm:$0x3f] %vm329, 0.0
      %vm333 = vcmask 516096
      %334 = vst.msk [vmem:[#allocation2] sm:$0x1] %vm333, 0.0
      %335 = vst.msk [vmem:[#allocation2 + $0x8] sm:$0x1] %vm333, 0.0
      %336 = vst.msk [vmem:[#allocation2 + $0x10] sm:$0x1] %vm333, 0.0
      %337 = vst.msk [vmem:[#allocation2 + $0x18] sm:$0x1] %vm333, 0.0
      %338 = vst.msk [vmem:[#allocation2 + $0x20] sm:$0x1] %vm333, 0.0
      %339 = vst.msk [vmem:[#allocation2 + $0x28] sm:$0x1] %vm333, 0.0
      %340 = vst.msk [vmem:[#allocation2 + $0x5] sm:$0x1] %vm333, 0.0
      %341 = vst.msk [vmem:[#allocation2 + $0xd] sm:$0x1] %vm333, 0.0
      %342 = vst.msk [vmem:[#allocation2 + $0x15] sm:$0x1] %vm333, 0.0
      %343 = vst.msk [vmem:[#allocation2 + $0x1d] sm:$0x1] %vm333, 0.0
      %344 = vst.msk [vmem:[#allocation2 + $0x25] sm:$0x1] %vm333, 0.0
      %345 = vst.msk [vmem:[#allocation2 + $0x2d] sm:$0x1] %vm333, 0.0
      %v348 = vcombine.high %v327, %v327
      %v349 = vcombine.high %v328, %v328
      %s352 = scalar_lea.vmem [#allocation2], 8
      %vm353 = vcmask 519168
      %354 = vst.msk [vmem:[%s352 + $0x1] sm:$0xf] %vm353, %v327
      %355 = vst.msk [vmem:[%s352 + $0x9] sm:$0xf] %vm353, %v348
      %356 = vst.msk [vmem:[%s352 + $0x11] sm:$0xf] %vm353, %v328
      %357 = vst.msk [vmem:[%s352 + $0x19] sm:$0xf] %vm353, %v349
      %v358 = vld [vmem:[#allocation2] ss:$2 sm:$0x3]
      %s359 = scalar_lea.vmem [#allocation2], 16
      %v360 = vld [vmem:[%s359] ss:$2 sm:$0x3]
      %v361 = vld [vmem:[%s3] sm:$0x1]
      %v362 = vlaneseq
      %v363 = vshrl.u32 %v362, 7
      %v364 = vsub.s32 0, %v363
      %v365 = vrot.slane %v361, %v364
      %v366 = vmul.f32 %v358, %v365
      %v367 = vmul.f32 %v360, %v365
      %v368 = vadd.f32 %v366, 0.0
      %v369 = vadd.f32 %v367, 0.0
      %s370 = scalar_lea.vmem [#allocation2], 1
      %v371 = vld [vmem:[%s370] ss:$2 sm:$0x3]
      %s372 = scalar_lea.vmem [#allocation2], 17
      %v373 = vld [vmem:[%s372] ss:$2 sm:$0x3]
      %v374 = vld [vmem:[%s3 + $0x1] sm:$0x1]
      %v375 = vlaneseq
      %v376 = vshrl.u32 %v375, 7
      %v377 = vsub.s32 0, %v376
      %v378 = vrot.slane %v374, %v377
      %v379 = vmul.f32 %v371, %v378
      %v380 = vmul.f32 %v373, %v378
      %v381 = vadd.f32 %v368, %v379
      %v382 = vadd.f32 %v369, %v380
      %s383 = scalar_lea.vmem [#allocation2], 2
      %v384 = vld [vmem:[%s383] ss:$2 sm:$0x3]
      %s385 = scalar_lea.vmem [#allocation2], 18
      %v386 = vld [vmem:[%s385] ss:$2 sm:$0x3]
      %v387 = vld [vmem:[%s3 + $0x2] sm:$0x1]
      %v388 = vlaneseq
      %v389 = vshrl.u32 %v388, 7
      %v390 = vsub.s32 0, %v389
      %v391 = vrot.slane %v387, %v390
      %v392 = vmul.f32 %v384, %v391
      %v393 = vmul.f32 %v386, %v391
      %v394 = vadd.f32 %v381, %v392
      %v395 = vadd.f32 %v382, %v393
      %v396 = vld [vmem:[%s352] ss:$2 sm:$0x3]
      %s397 = scalar_lea.vmem %s352, 16 [#allocation2]
      %v398 = vld [vmem:[%s397] ss:$2 sm:$0x3]
      %v399 = vld [vmem:[%s3 + $0x3] sm:$0x1]
      %v400 = vlaneseq
      %v401 = vshrl.u32 %v400, 7
      %v402 = vsub.s32 0, %v401
      %v403 = vrot.slane %v399, %v402
      %v404 = vmul.f32 %v396, %v403
      %v405 = vmul.f32 %v398, %v403
      %v406 = vadd.f32 %v394, %v404
      %v407 = vadd.f32 %v395, %v405
      %s408 = scalar_lea.vmem %s352, 1 [#allocation2]
      %v409 = vld [vmem:[%s408] ss:$2 sm:$0x3]
      %s410 = scalar_lea.vmem %s352, 17 [#allocation2]
      %v411 = vld [vmem:[%s410] ss:$2 sm:$0x3]
      %v412 = vld [vmem:[%s3 + $0x4] sm:$0x1]
      %v413 = vlaneseq
      %v414 = vshrl.u32 %v413, 7
      %v415 = vsub.s32 0, %v414
      %v416 = vrot.slane %v412, %v415
      %v417 = vmul.f32 %v409, %v416
      %v418 = vmul.f32 %v411, %v416
      %v419 = vadd.f32 %v406, %v417
      %v420 = vadd.f32 %v407, %v418
      %s421 = scalar_lea.vmem %s352, 2 [#allocation2]
      %v422 = vld [vmem:[%s421] ss:$2 sm:$0x3]
      %s423 = scalar_lea.vmem %s352, 18 [#allocation2]
      %v424 = vld [vmem:[%s423] ss:$2 sm:$0x3]
      %v425 = vld [vmem:[%s3 + $0x5] sm:$0x1]
      %v426 = vlaneseq
      %v427 = vshrl.u32 %v426, 7
      %v428 = vsub.s32 0, %v427
      %v429 = vrot.slane %v425, %v428
      %v430 = vmul.f32 %v422, %v429
      %v431 = vmul.f32 %v424, %v429
      %v432 = vadd.f32 %v419, %v430
      %v433 = vadd.f32 %v420, %v431
      %s434 = scalar_lea.vmem [#allocation2], 16
      %v435 = vld [vmem:[%s434] ss:$2 sm:$0x3]
      %s436 = scalar_lea.vmem %s434, 16 [#allocation2]
      %v437 = vld [vmem:[%s436] ss:$2 sm:$0x3]
      %v438 = vld [vmem:[%s3 + $0x6] sm:$0x1]
      %v439 = vlaneseq
      %v440 = vshrl.u32 %v439, 7
      %v441 = vsub.s32 0, %v440
      %v442 = vrot.slane %v438, %v441
      %v443 = vmul.f32 %v435, %v442
      %v444 = vmul.f32 %v437, %v442
      %v445 = vadd.f32 %v432, %v443
      %v446 = vadd.f32 %v433, %v444
      %s447 = scalar_lea.vmem %s434, 1 [#allocation2]
      %v448 = vld [vmem:[%s447] ss:$2 sm:$0x3]
      %s449 = scalar_lea.vmem %s434, 17 [#allocation2]
      %v450 = vld [vmem:[%s449] ss:$2 sm:$0x3]
      %v451 = vld [vmem:[%s3 + $0x7] sm:$0x1]
      %v452 = vlaneseq
      %v453 = vshrl.u32 %v452, 7
      %v454 = vsub.s32 0, %v453
      %v455 = vrot.slane %v451, %v454
      %v456 = vmul.f32 %v448, %v455
      %v457 = vmul.f32 %v450, %v455
      %v458 = vadd.f32 %v445, %v456
      %v459 = vadd.f32 %v446, %v457
      %s460 = scalar_lea.vmem %s434, 2 [#allocation2]
      %v461 = vld [vmem:[%s460] ss:$2 sm:$0x3]
      %s462 = scalar_lea.vmem %s434, 18 [#allocation2]
      %v463 = vld [vmem:[%s462] ss:$2 sm:$0x3]
      %v464 = vld [vmem:[%s3 + $0x8] sm:$0x1]
      %v465 = vlaneseq
      %v466 = vshrl.u32 %v465, 7
      %v467 = vsub.s32 0, %v466
      %v468 = vrot.slane %v464, %v467
      %v469 = vmul.f32 %v461, %v468
      %v470 = vmul.f32 %v463, %v468
      %v471 = vadd.f32 %v458, %v469
      %v472 = vadd.f32 %v459, %v470
      %v473 = vld [vmem:[%s4] sm:$0x1]
      %v475 = vlaneseq
      %v476 = vshrl.u32 %v475, 7
      %v477 = vsub.s32 0, %v476
      %v478 = vrot.slane %v473, %v477
      %v480 = vadd.f32 %v471, %v478
      %v481 = vadd.f32 %v472, %v478
      %vm482 = vcmask 517120
      %483 = vst.msk [vmem:[#allocation3] sm:$0x3] %vm482, %v480
      %484 = vst.msk [vmem:[#allocation3 + $0x2] sm:$0x3] %vm482, %v481
      %v485 = vld [vmem:[#allocation3] sm:$0x1]
      %v486 = vld [vmem:[#allocation3 + $0x2] sm:$0x1]
      %v487 = vpack.c.bf16 %v485, %v485
      %v488 = vpack.c.bf16 %v486, %v486
      %v492 = vunpack.c.l.s4 1966171168
      %v493 = vunpack.c.0.s8 %v492
      %v494 = vlaneseq
      %v495 = vshrl.u32 %v494, 7
      %v496 = vsub.s32 %v493, %v495
      %v497 = vrot.slane %v487, %v496
      %v499 = vunpack.c.l.s4 1966171168
      %v500 = vunpack.c.0.s8 %v499
      %v501 = vlaneseq
      %v502 = vshrl.u32 %v501, 7
      %v503 = vsub.s32 %v500, %v502
      %v504 = vrot.slane %v497, %v503
      %v506 = vunpack.c.l.s4 1966171168
      %v507 = vunpack.c.0.s8 %v506
      %v508 = vlaneseq
      %v509 = vshrl.u32 %v508, 7
      %v510 = vsub.s32 %v507, %v509
      %v511 = vrot.slane %v488, %v510
      %v513 = vunpack.c.l.s4 1966171168
      %v514 = vunpack.c.0.s8 %v513
      %v515 = vlaneseq
      %v516 = vshrl.u32 %v515, 7
      %v517 = vsub.s32 %v514, %v516
      %v518 = vrot.slane %v511, %v517
      %v520 = vunpack.c.l.s4 1935823168
      %v521 = vunpack.c.0.s8 %v520
      %v522 = vlaneseq
      %v523 = vshrl.u32 %v522, 7
      %v524 = vsub.s32 %v521, %v523
      %v525 = vrot.slane %v504, %v524
      %v527 = vunpack.c.l.s4 1935823168
      %v528 = vunpack.c.0.s8 %v527
      %v529 = vlaneseq
      %v530 = vshrl.u32 %v529, 7
      %v531 = vsub.s32 %v528, %v530
      %v532 = vrot.slane %v525, %v531
      %v534 = vunpack.c.l.s4 1935823168
      %v535 = vunpack.c.0.s8 %v534
      %v536 = vlaneseq
      %v537 = vshrl.u32 %v536, 7
      %v538 = vsub.s32 %v535, %v537
      %v539 = vrot.slane %v518, %v538
      %v541 = vunpack.c.l.s4 1935823168
      %v542 = vunpack.c.0.s8 %v541
      %v543 = vlaneseq
      %v544 = vshrl.u32 %v543, 7
      %v545 = vsub.s32 %v542, %v544
      %v546 = vrot.slane %v539, %v545
      %v547 = vunpack.c.l.b16 %v532
      %v548 = vunpack.c.l.b16 %v546
      %v549 = vrot.slane %v548, 7
      %vm550 = vcmask 1041409
      %v551 = vsel %vm550, %v549, %v547
      %v552 = vpack.c.b16 %v551, %v551
      %v554 = vunpack.c.l.s4 1966171168
      %v555 = vunpack.c.0.s8 %v554
      %v556 = vlaneseq
      %v557 = vshrl.u32 %v556, 7
      %v558 = vsub.s32 %v555, %v557
      %v559 = vrot.slane %v552, %v558
      %v561 = vunpack.c.l.s4 1966171168
      %v562 = vunpack.c.0.s8 %v561
      %v563 = vlaneseq
      %v564 = vshrl.u32 %v563, 7
      %v565 = vsub.s32 %v562, %v564
      %v566 = vrot.slane %v559, %v565
      %568 = vst.msk [vmem:[%s220] sm:$0x1] %vm333, %v566
      %v569 = vld [vmem:[#allocation3 + $0x1] sm:$0x1]
      %v570 = vld [vmem:[#allocation3 + $0x3] sm:$0x1]
      %v571 = vpack.c.bf16 %v569, %v569
      %v572 = vpack.c.bf16 %v570, %v570
      %v576 = vunpack.c.l.s4 1966171168
      %v577 = vunpack.c.0.s8 %v576
      %v578 = vlaneseq
      %v579 = vshrl.u32 %v578, 7
      %v580 = vsub.s32 %v577, %v579
      %v581 = vrot.slane %v571, %v580
      %v583 = vunpack.c.l.s4 1966171168
      %v584 = vunpack.c.0.s8 %v583
      %v585 = vlaneseq
      %v586 = vshrl.u32 %v585, 7
      %v587 = vsub.s32 %v584, %v586
      %v588 = vrot.slane %v581, %v587
      %v590 = vunpack.c.l.s4 1966171168
      %v591 = vunpack.c.0.s8 %v590
      %v592 = vlaneseq
      %v593 = vshrl.u32 %v592, 7
      %v594 = vsub.s32 %v591, %v593
      %v595 = vrot.slane %v572, %v594
      %v597 = vunpack.c.l.s4 1966171168
      %v598 = vunpack.c.0.s8 %v597
      %v599 = vlaneseq
      %v600 = vshrl.u32 %v599, 7
      %v601 = vsub.s32 %v598, %v600
      %v602 = vrot.slane %v595, %v601
      %v604 = vunpack.c.l.s4 1935823168
      %v605 = vunpack.c.0.s8 %v604
      %v606 = vlaneseq
      %v607 = vshrl.u32 %v606, 7
      %v608 = vsub.s32 %v605, %v607
      %v609 = vrot.slane %v588, %v608
      %v611 = vunpack.c.l.s4 1935823168
      %v612 = vunpack.c.0.s8 %v611
      %v613 = vlaneseq
      %v614 = vshrl.u32 %v613, 7
      %v615 = vsub.s32 %v612, %v614
      %v616 = vrot.slane %v609, %v615
      %v618 = vunpack.c.l.s4 1935823168
      %v619 = vunpack.c.0.s8 %v618
      %v620 = vlaneseq
      %v621 = vshrl.u32 %v620, 7
      %v622 = vsub.s32 %v619, %v621
      %v623 = vrot.slane %v602, %v622
      %v625 = vunpack.c.l.s4 1935823168
      %v626 = vunpack.c.0.s8 %v625
      %v627 = vlaneseq
      %v628 = vshrl.u32 %v627, 7
      %v629 = vsub.s32 %v626, %v628
      %v630 = vrot.slane %v623, %v629
      %v631 = vunpack.c.l.b16 %v616
      %v632 = vunpack.c.l.b16 %v630
      %v633 = vrot.slane %v632, 7
      %v634 = vsel %vm550, %v633, %v631
      %v635 = vpack.c.b16 %v634, %v634
      %v637 = vunpack.c.l.s4 1966171168
      %v638 = vunpack.c.0.s8 %v637
      %v639 = vlaneseq
      %v640 = vshrl.u32 %v639, 7
      %v641 = vsub.s32 %v638, %v640
      %v642 = vrot.slane %v635, %v641
      %v644 = vunpack.c.l.s4 1966171168
      %v645 = vunpack.c.0.s8 %v644
      %v646 = vlaneseq
      %v647 = vshrl.u32 %v646, 7
      %v648 = vsub.s32 %v645, %v647
      %v649 = vrot.slane %v642, %v648
      %650 = vrot.lane.b32.xlu0 %v649, 64
      %v651 = vpop.permute.xlu0 %650
      %vm653 = vcmask 1040896
      %654 = vst.msk [vmem:[%s220] sm:$0x1] %vm653, %v651
      %p655 = scmp.lt.s32.totalorder %s16, 1
      %s656 = scalar_select %p655, %s16, 1
      %s657 = scalar_lea.vmem %s5, %s656
      // Predicated region
      $region41: #{_lambda_.9} parent=39 // pred_check
        %p658 = pneg %p144
      $region42: #{_lambda_.9} parent=39 // pred_check_branch
        %660 = sbr.rel (%p658) target = $region44
      $region43: #{_lambda_.9} parent=39 // pred_region
        _
      $region44: #{_lambda_.9} parent=39 // pred_fallthru
        _
    $region40: #{_lambda_.9} parent=5 // pred_fallthru
      _
    %p661 = scmp.le.s32.totalorder 2, %s11
    // Predicated region
    $region45: #{_lambda_.9} parent=5 // pred_check
      %p662 = pneg %p661
    $region46: #{_lambda_.9} parent=5 // pred_check_branch
      %664 = sbr.rel (%p662) target = $region48
    $region47: #{_lambda_.9} parent=5 // pred_region
      %s665 = ssub.s32 %s11, 2
      // Predicated region
      $region49: #{_lambda_.9} parent=47 // pred_check
        %p666 = pneg %p150
      $region50: #{_lambda_.9} parent=47 // pred_check_branch
        %668 = sbr.rel (%p666) target = $region52
      $region51: #{_lambda_.9} parent=47 // pred_region
        %p669 = scmp.lt.s32.totalorder %s17, 1
        %s670 = scalar_select %p669, %s17, 1
        %s671 = scalar_lea.vmem %s5, %s670
      $region52: #{_lambda_.9} parent=47 // pred_fallthru
        _
    $region48: #{_lambda_.9} parent=5 // pred_fallthru
      _
  $region6: #{_lambda_.9} parent=0 // loop_footer
    %s15 = sadd.s32 1, %s11
  $region7: #{_lambda_.9} parent=0 // loop_footer_branch
    %10 = sbr.rel target = $region3
  $region8: #{_lambda_.9} parent=0 // loop_exit
    _

// kernel: _lambda_.7
$region0: #{_lambda_.7}
  #allocation0 [shape = 'u32[]', space=smem, size = 0x4, offset = 0x4, fixed_abs, tag = 'smem constant byte address 0x4 - core index']
  #allocation1 [shape = 'u32[144,128]{1,0:T(1,128)}', space=vmem, size = 0x12000, scoped, tag = 'internal scratch']
  #allocation2 [shape = 'f32[18,18,16]{2,1,0:T(8,128)}', space=vmem, size = 0x36000, scoped, tag = 'scratch operand']
  #allocation3 [shape = 'f32[8,8,16]{2,1,0:T(8,128)}', space=vmem, size = 0x8000, scoped, tag = 'scratch operand']
  %s0 = inlined_call_operand.vmem [shape: bf16[2,256,8], index: 0, kind: input, shape index: {}]
  %s1 = inlined_call_operand.vmem [shape: bf16[8,32], index: 1, kind: input, shape index: {}]
  %s2 = inlined_call_operand.vmem [shape: f32[1,32], index: 2, kind: input, shape index: {}]
  %s3 = inlined_call_operand.vmem [shape: f32[9,16], index: 3, kind: input, shape index: {}]
  %s4 = inlined_call_operand.vmem [shape: f32[1,16], index: 4, kind: input, shape index: {}]
  %s5 = inlined_call_operand.vmem [shape: bf16[2,8,128], index: 5, kind: output, shape index: {}]
  %s6 = sld [smem:[#allocation0]]
  $region53: #{_lambda_.7} parent=0
    _
  %s8 = ssub.s32 1, %s6
  %s9 = scalar_select 0, %s8, %s6
  loop: start=0, step=1, limit=4
  $region2: #{_lambda_.7} parent=0 // loop_pre_header
    _
  $region3: #{_lambda_.7} parent=0 // loop_header
    %s11 = sphi 0, %s15
    %p12 = scmp.ge.s32.totalorder %s11, 4
    %s21 = sphi 0, %s23
    %s24 = sphi 0, %s21
    %s25 = sphi 0, %s24
    %s41 = sphi 0, %s25
    %s45 = sphi 0, %s45
    %s47 = sphi 0, %s45
    %s48 = sphi 0, %s47
    %s62 = sphi 0, %s48
    %s66 = sphi 0, %s66
    %s68 = sphi 0, %s66
    %s69 = sphi 0, %s68
    %s83 = sphi 0, %s69
    %s87 = sphi 0, %s87
    %s89 = sphi 0, %s87
    %s90 = sphi 0, %s89
    %s104 = sphi 0, %s90
    %s108 = sphi 0, %s108
    %s110 = sphi 0, %s108
    %s111 = sphi 0, %s110
    %s125 = sphi 0, %s111
    %s131 = sphi 0, %s133
    %s134 = sphi 0, %s131
    %s135 = sphi 0, %s134
    %s151 = sphi 0, %s135
  $region4: #{_lambda_.7} parent=0 // loop_header_branch
    %14 = sbr.rel (%p12) target = $region8
  $region5: #{_lambda_.7} parent=0 // loop_body
    %s16 = ssub.s32 %s11, 1
    %s17 = ssub.s32 %s11, 2
    %s18 = sadd.s32 %s11, 1
    %s19 = ssub.s32 %s11, %s18
    %p20 = scmp.eq.s32.totalorder %s19, 0
    %s22 = sadd.s32 %s21, 1
    %s23 = scalar_select %p20, %s21, %s22
    %p26 = pneg %p20
    %p27 = scmp.eq.s32.totalorder %s11, 1
    %p28 = por %p26, %p27
    %p29 = scmp.ne.s32.totalorder %s21, %s24
    %p30 = scmp.eq.s32.totalorder %s11, 0
    %p31 = por %p29, %p30
    %p32 = scmp.ne.s32.totalorder %s21, %s24
    %p33 = scmp.eq.s32.totalorder %s16, 1
    %p34 = por %p32, %p33
    %p35 = scmp.ne.s32.totalorder %s24, %s25
    %p36 = scmp.eq.s32.totalorder %s16, 0
    %p37 = por %p35, %p36
    %p38 = scmp.ne.s32.totalorder %s24, %s25
    %p39 = scmp.eq.s32.totalorder %s17, 1
    %p40 = por %p38, %p39
    %p42 = scmp.ne.s32.totalorder %s25, %s41
    %p43 = scmp.eq.s32.totalorder %s17, 0
    %p44 = por %p42, %p43
    %s46 = sadd.s32 %s45, 1
    %p49 = scmp.eq.s32.totalorder %s11, 1
    %p50 = scmp.ne.s32.totalorder %s45, %s47
    %p51 = scmp.eq.s32.totalorder %s11, 0
    %p52 = por %p50, %p51
    %p53 = scmp.ne.s32.totalorder %s45, %s47
    %p54 = scmp.eq.s32.totalorder %s16, 1
    %p55 = por %p53, %p54
    %p56 = scmp.ne.s32.totalorder %s47, %s48
    %p57 = scmp.eq.s32.totalorder %s16, 0
    %p58 = por %p56, %p57
    %p59 = scmp.ne.s32.totalorder %s47, %s48
    %p60 = scmp.eq.s32.totalorder %s17, 1
    %p61 = por %p59, %p60
    %p63 = scmp.ne.s32.totalorder %s48, %s62
    %p64 = scmp.eq.s32.totalorder %s17, 0
    %p65 = por %p63, %p64
    %s67 = sadd.s32 %s66, 1
    %p70 = scmp.eq.s32.totalorder %s11, 1
    %p71 = scmp.ne.s32.totalorder %s66, %s68
    %p72 = scmp.eq.s32.totalorder %s11, 0
    %p73 = por %p71, %p72
    %p74 = scmp.ne.s32.totalorder %s66, %s68
    %p75 = scmp.eq.s32.totalorder %s16, 1
    %p76 = por %p74, %p75
    %p77 = scmp.ne.s32.totalorder %s68, %s69
    %p78 = scmp.eq.s32.totalorder %s16, 0
    %p79 = por %p77, %p78
    %p80 = scmp.ne.s32.totalorder %s68, %s69
    %p81 = scmp.eq.s32.totalorder %s17, 1
    %p82 = por %p80, %p81
    %p84 = scmp.ne.s32.totalorder %s69, %s83
    %p85 = scmp.eq.s32.totalorder %s17, 0
    %p86 = por %p84, %p85
    %s88 = sadd.s32 %s87, 1
    %p91 = scmp.eq.s32.totalorder %s11, 1
    %p92 = scmp.ne.s32.totalorder %s87, %s89
    %p93 = scmp.eq.s32.totalorder %s11, 0
    %p94 = por %p92, %p93
    %p95 = scmp.ne.s32.totalorder %s87, %s89
    %p96 = scmp.eq.s32.totalorder %s16, 1
    %p97 = por %p95, %p96
    %p98 = scmp.ne.s32.totalorder %s89, %s90
    %p99 = scmp.eq.s32.totalorder %s16, 0
    %p100 = por %p98, %p99
    %p101 = scmp.ne.s32.totalorder %s89, %s90
    %p102 = scmp.eq.s32.totalorder %s17, 1
    %p103 = por %p101, %p102
    %p105 = scmp.ne.s32.totalorder %s90, %s104
    %p106 = scmp.eq.s32.totalorder %s17, 0
    %p107 = por %p105, %p106
    %s109 = sadd.s32 %s108, 1
    %p112 = scmp.eq.s32.totalorder %s11, 1
    %p113 = scmp.ne.s32.totalorder %s108, %s110
    %p114 = scmp.eq.s32.totalorder %s11, 0
    %p115 = por %p113, %p114
    %p116 = scmp.ne.s32.totalorder %s108, %s110
    %p117 = scmp.eq.s32.totalorder %s16, 1
    %p118 = por %p116, %p117
    %p119 = scmp.ne.s32.totalorder %s110, %s111
    %p120 = scmp.eq.s32.totalorder %s16, 0
    %p121 = por %p119, %p120
    %p122 = scmp.ne.s32.totalorder %s110, %s111
    %p123 = scmp.eq.s32.totalorder %s17, 1
    %p124 = por %p122, %p123
    %p126 = scmp.ne.s32.totalorder %s111, %s125
    %p127 = scmp.eq.s32.totalorder %s17, 0
    %p128 = por %p126, %p127
    %s129 = ssub.s32 %s11, %s18
    %p130 = scmp.eq.s32.totalorder %s129, 0
    %s132 = sadd.s32 %s131, 1
    %s133 = scalar_select %p130, %s131, %s132
    %p136 = pneg %p130
    %p137 = scmp.eq.s32.totalorder %s11, 1
    %p138 = por %p136, %p137
    %p139 = scmp.ne.s32.totalorder %s131, %s134
    %p140 = scmp.eq.s32.totalorder %s11, 0
    %p141 = por %p139, %p140
    %p142 = scmp.ne.s32.totalorder %s131, %s134
    %p143 = scmp.eq.s32.totalorder %s16, 1
    %p144 = por %p142, %p143
    %p145 = scmp.ne.s32.totalorder %s134, %s135
    %p146 = scmp.eq.s32.totalorder %s16, 0
    %p147 = por %p145, %p146
    %p148 = scmp.ne.s32.totalorder %s134, %s135
    %p149 = scmp.eq.s32.totalorder %s17, 1
    %p150 = por %p148, %p149
    %p152 = scmp.ne.s32.totalorder %s135, %s151
    %p153 = scmp.eq.s32.totalorder %s17, 0
    %p154 = por %p152, %p153
    %p155 = scmp.le.s32.totalorder 1, %s11
    %p156 = scmp.lt.s32.totalorder %s11, 3
    %p157 = pnand %p155, %p156
    %p158 = pneg %p157
    // Predicated region
    $region9: #{_lambda_.7} parent=5 // pred_check
      _
    $region10: #{_lambda_.7} parent=5 // pred_check_branch
      %160 = sbr.rel (%p157) target = $region12
    $region11: #{_lambda_.7} parent=5 // pred_region
      %s161 = ssub.s32 %s11, 1
      // Predicated region
      $region13: #{_lambda_.7} parent=11 // pred_check
        %p162 = pneg %p58
      $region14: #{_lambda_.7} parent=11 // pred_check_branch
        %164 = sbr.rel (%p162) target = $region16
      $region15: #{_lambda_.7} parent=11 // pred_region
        _
      $region16: #{_lambda_.7} parent=11 // pred_fallthru
        _
      // Predicated region
      $region17: #{_lambda_.7} parent=11 // pred_check
        %p165 = pneg %p79
      $region18: #{_lambda_.7} parent=11 // pred_check_branch
        %167 = sbr.rel (%p165) target = $region20
      $region19: #{_lambda_.7} parent=11 // pred_region
        _
      $region20: #{_lambda_.7} parent=11 // pred_fallthru
        _
      // Predicated region
      $region21: #{_lambda_.7} parent=11 // pred_check
        %p168 = pneg %p100
      $region22: #{_lambda_.7} parent=11 // pred_check_branch
        %170 = sbr.rel (%p168) target = $region24
      $region23: #{_lambda_.7} parent=11 // pred_region
        _
      $region24: #{_lambda_.7} parent=11 // pred_fallthru
        _
      // Predicated region
      $region25: #{_lambda_.7} parent=11 // pred_check
        %p171 = pneg %p121
      $region26: #{_lambda_.7} parent=11 // pred_check_branch
        %173 = sbr.rel (%p171) target = $region28
      $region27: #{_lambda_.7} parent=11 // pred_region
        _
      $region28: #{_lambda_.7} parent=11 // pred_fallthru
        _
    $region12: #{_lambda_.7} parent=5 // pred_fallthru
      _
    %p174 = scmp.lt.s32.totalorder %s11, 2
    // Predicated region
    $region29: #{_lambda_.7} parent=5 // pred_check
      %p175 = pneg %p174
    $region30: #{_lambda_.7} parent=5 // pred_check_branch
      %177 = sbr.rel (%p175) target = $region32
    $region31: #{_lambda_.7} parent=5 // pred_region
      // Predicated region
      $region33: #{_lambda_.7} parent=31 // pred_check
        %p178 = pneg %p31
      $region34: #{_lambda_.7} parent=31 // pred_check_branch
        %180 = sbr.rel (%p178) target = $region36
      $region35: #{_lambda_.7} parent=31 // pred_region
        %p181 = scmp.lt.s32.totalorder %s11, 1
        %s182 = scalar_select %p181, %s11, 1
        %s183 = smul.addr %s182, 32
        %s184 = smul.addr %s183, 4
        %s185 = scalar_lea.vmem %s0, %s184
      $region36: #{_lambda_.7} parent=31 // pred_fallthru
        _
    $region32: #{_lambda_.7} parent=5 // pred_fallthru
      _
    %p186 = scmp.le.s32.totalorder 1, %s11
    %p187 = scmp.lt.s32.totalorder %s11, 3
    %p188 = pnand %p186, %p187
    %p189 = pneg %p188
    // Predicated region
    $region37: #{_lambda_.7} parent=5 // pred_check
      _
    $region38: #{_lambda_.7} parent=5 // pred_check_branch
      %191 = sbr.rel (%p188) target = $region40
    $region39: #{_lambda_.7} parent=5 // pred_region
      %s192 = ssub.s32 %s11, 1
      %p193 = scmp.lt.s32.totalorder %s16, 1
      %s194 = scalar_select %p193, %s16, 1
      %s195 = smul.addr %s194, 32
      %s196 = smul.addr %s195, 4
      %s197 = scalar_lea.vmem %s0, %s196
      %p198 = pneg %p37
      %p199 = pneg %p34
      %p200 = pneg %p58
      %p201 = pneg %p55
      %p202 = pneg %p79
      %p203 = pneg %p76
      %p204 = pneg %p100
      %p205 = pneg %p97
      %p206 = pneg %p121
      %p207 = pneg %p118
      %p208 = pneg %p147
      %p209 = pneg %p144
      %p210 = scmp.lt.s32.totalorder %s16, 1
      %s211 = scalar_select %p210, %s16, 1
      %s212 = smul.addr %s211, 4
      %s213 = scalar_lea.vmem %s5, %s212
      %p214 = scmp.lt.s32.totalorder %s16, 1
      %s215 = scalar_select %p214, %s16, 1
      %s216 = smul.addr %s215, 32
      %s217 = smul.addr %s216, 4
      %s218 = scalar_lea.vmem %s0, %s217
      %p219 = scmp.lt.s32.totalorder %s16, 1
      %s220 = scalar_select %p219, %s16, 1
      %s221 = smul.addr %s220, 4
      %s222 = scalar_lea.vmem %s5, %s221
      %v224 = vld [vmem:[%s218] sm:$0xf]
      %v225 = vld [vmem:[%s218 + $0x4] sm:$0xf]
      %v226 = vld [vmem:[%s218 + $0x8] sm:$0xf]
      %v227 = vld [vmem:[%s218 + $0xc] sm:$0xf]
      %v228 = vld [vmem:[%s218 + $0x10] sm:$0xf]
      %v229 = vld [vmem:[%s218 + $0x14] sm:$0xf]
      %v230 = vld [vmem:[%s218 + $0x18] sm:$0xf]
      %v231 = vld [vmem:[%s218 + $0x1c] sm:$0xf]
      %v232 = vld [vmem:[%s218 + $0x20] sm:$0xf]
      %v233 = vld [vmem:[%s218 + $0x24] sm:$0xf]
      %v234 = vld [vmem:[%s218 + $0x28] sm:$0xf]
      %v235 = vld [vmem:[%s218 + $0x2c] sm:$0xf]
      %v236 = vld [vmem:[%s218 + $0x30] sm:$0xf]
      %v237 = vld [vmem:[%s218 + $0x34] sm:$0xf]
      %v238 = vld [vmem:[%s218 + $0x38] sm:$0xf]
      %v239 = vld [vmem:[%s218 + $0x3c] sm:$0xf]
      %v240 = vld [vmem:[%s218 + $0x40] sm:$0xf]
      %v241 = vld [vmem:[%s218 + $0x44] sm:$0xf]
      %v242 = vld [vmem:[%s218 + $0x48] sm:$0xf]
      %v243 = vld [vmem:[%s218 + $0x4c] sm:$0xf]
      %v244 = vld [vmem:[%s218 + $0x50] sm:$0xf]
      %v245 = vld [vmem:[%s218 + $0x54] sm:$0xf]
      %v246 = vld [vmem:[%s218 + $0x58] sm:$0xf]
      %v247 = vld [vmem:[%s218 + $0x5c] sm:$0xf]
      %v248 = vld [vmem:[%s218 + $0x60] sm:$0xf]
      %v249 = vld [vmem:[%s218 + $0x64] sm:$0xf]
      %v250 = vld [vmem:[%s218 + $0x68] sm:$0xf]
      %v251 = vld [vmem:[%s218 + $0x6c] sm:$0xf]
      %v252 = vld [vmem:[%s218 + $0x70] sm:$0xf]
      %v253 = vld [vmem:[%s218 + $0x74] sm:$0xf]
      %v254 = vld [vmem:[%s218 + $0x78] sm:$0xf]
      %v255 = vld [vmem:[%s218 + $0x7c] sm:$0xf]
      %v256 = vld [vmem:[%s1] sm:$0xf]
      %v257 = vld [vmem:[%s2] sm:$0x1]
      %v259 = vlaneseq
      %v260 = vshrl.u32 %v259, 7
      %v261 = vsub.s32 0, %v260
      %v262 = vrot.slane %v257, %v261
      %v296 = vunpack.c.l.b16 %v224
      %v297 = vunpack.c.l.b16 %v225
      %v298 = vunpack.c.l.b16 %v226
      %v299 = vunpack.c.l.b16 %v227
      %v300 = vunpack.c.l.b16 %v228
      %v301 = vunpack.c.l.b16 %v229
      %v302 = vunpack.c.l.b16 %v230
      %v303 = vunpack.c.l.b16 %v231
      %v304 = vunpack.c.l.b16 %v232
      %v305 = vunpack.c.l.b16 %v233
      %v306 = vunpack.c.l.b16 %v234
      %v307 = vunpack.c.l.b16 %v235
      %v308 = vunpack.c.l.b16 %v236
      %v309 = vunpack.c.l.b16 %v237
      %v310 = vunpack.c.l.b16 %v238
      %v311 = vunpack.c.l.b16 %v239
      %v312 = vunpack.c.l.b16 %v240
      %v313 = vunpack.c.l.b16 %v241
      %v314 = vunpack.c.l.b16 %v242
      %v315 = vunpack.c.l.b16 %v243
      %v316 = vunpack.c.l.b16 %v244
      %v317 = vunpack.c.l.b16 %v245
      %v318 = vunpack.c.l.b16 %v246
      %v319 = vunpack.c.l.b16 %v247
      %v320 = vunpack.c.l.b16 %v248
      %v321 = vunpack.c.l.b16 %v249
      %v322 = vunpack.c.l.b16 %v250
      %v323 = vunpack.c.l.b16 %v251
      %v324 = vunpack.c.l.b16 %v252
      %v325 = vunpack.c.l.b16 %v253
      %v326 = vunpack.c.l.b16 %v254
      %v327 = vunpack.c.l.b16 %v255
      %v328 = vpack.c.b16 %v297, %v296
      %v329 = vpack.c.b16 %v299, %v298
      %v330 = vpack.c.b16 %v301, %v300
      %v331 = vpack.c.b16 %v303, %v302
      %v332 = vpack.c.b16 %v305, %v304
      %v333 = vpack.c.b16 %v307, %v306
      %v334 = vpack.c.b16 %v309, %v308
      %v335 = vpack.c.b16 %v311, %v310
      %v336 = vpack.c.b16 %v313, %v312
      %v337 = vpack.c.b16 %v315, %v314
      %v338 = vpack.c.b16 %v317, %v316
      %v339 = vpack.c.b16 %v319, %v318
      %v340 = vpack.c.b16 %v321, %v320
      %v341 = vpack.c.b16 %v323, %v322
      %v342 = vpack.c.b16 %v325, %v324
      %v343 = vpack.c.b16 %v327, %v326
      %vm344 = vcmask 64512
      %v346 = vsel %vm344, %v328, 0
      %v349 = vsel %vm344, %v329, 0
      %v352 = vsel %vm344, %v330, 0
      %v355 = vsel %vm344, %v331, 0
      %v358 = vsel %vm344, %v332, 0
      %v361 = vsel %vm344, %v333, 0
      %v364 = vsel %vm344, %v334, 0
      %v367 = vsel %vm344, %v335, 0
      %v370 = vsel %vm344, %v336, 0
      %v373 = vsel %vm344, %v337, 0
      %v376 = vsel %vm344, %v338, 0
      %v379 = vsel %vm344, %v339, 0
      %v382 = vsel %vm344, %v340, 0
      %v385 = vsel %vm344, %v341, 0
      %v388 = vsel %vm344, %v342, 0
      %v391 = vsel %vm344, %v343, 0
      %vm393 = vcmask 1043456
      %v395 = vsel %vm393, %v256, 0
      %397 = vmatprep.subr.bf16.mxu0 0
      %398 = vmatpush1.bf16.msra.mxu0 %v395
      %399 = vmatprep.subr.bf16.mxu0 0
      %400 = vmatpush1.bf16.msra.mxu0 0
      %401 = vmatprep.subr.bf16.mxu0 0
      %402 = vmatpush1.bf16.msra.mxu0 0
      %403 = vmatprep.subr.bf16.mxu0 0
      %404 = vmatpush1.bf16.msra.mxu0 0
      %405 = vmatprep.subr.bf16.mxu0 0
      %406 = vmatpush1.bf16.msra.mxu0 0
      %407 = vmatprep.subr.bf16.mxu0 0
      %408 = vmatpush1.bf16.msra.mxu0 0
      %409 = vmatprep.subr.bf16.mxu0 0
      %410 = vmatpush1.bf16.msra.mxu0 0
      %411 = vmatprep.subr.bf16.mxu0 0
      %412 = vmatpush1.bf16.msra.mxu0 0
      %413 = vmatprep.subr.bf16.mxu0 0
      %414 = vmatpush1.bf16.msra.mxu0 0
      %415 = vmatprep.subr.bf16.mxu0 0
      %416 = vmatpush1.bf16.msra.mxu0 0
      %417 = vmatprep.subr.bf16.mxu0 0
      %418 = vmatpush1.bf16.msra.mxu0 0
      %419 = vmatprep.subr.bf16.mxu0 0
      %420 = vmatpush1.bf16.msra.mxu0 0
      %421 = vmatprep.subr.bf16.mxu0 0
      %422 = vmatpush1.bf16.msra.mxu0 0
      %423 = vmatprep.subr.bf16.mxu0 0
      %424 = vmatpush1.bf16.msra.mxu0 0
      %425 = vmatprep.subr.bf16.mxu0 0
      %426 = vmatpush1.bf16.msra.mxu0 0
      %427 = vmatprep.subr.bf16.mxu0 0
      %428 = vmatpush1.bf16.msra.mxu0 0
      %429 = vmatprep.mubr.bf16.mxu0 0
      %430 = vmatmul.mubr.bf16.gmra.mrb[0].mxu0 %v346
      %v431 = vpop.f32.mrb[0].mxu0
      %v432 = vadd.f32 %v262, %v431
      %v433 = vpop.f32.mrb[0].mxu0
      %v434 = vpop.f32.mrb[0].mxu0
      %v435 = vadd.f32 %v262, %v434
      %v436 = vpop.f32.mrb[0].mxu0
      %437 = vmatprep.mubr.bf16.mxu0 0
      %438 = vmatmul.mubr.bf16.gmra.mrb[0].mxu0 %v349
      %v439 = vpop.f32.mrb[0].mxu0
      %v440 = vadd.f32 %v262, %v439
      %v441 = vpop.f32.mrb[0].mxu0
      %v442 = vpop.f32.mrb[0].mxu0
      %v443 = vadd.f32 %v262, %v442
      %v444 = vpop.f32.mrb[0].mxu0
      %445 = vmatprep.mubr.bf16.mxu0 0
      %446 = vmatmul.mubr.bf16.gmra.mrb[0].mxu0 %v352
      %v447 = vpop.f32.mrb[0].mxu0
      %v448 = vadd.f32 %v262, %v447
      %v449 = vpop.f32.mrb[0].mxu0
      %v450 = vpop.f32.mrb[0].mxu0
      %v451 = vadd.f32 %v262, %v450
      %v452 = vpop.f32.mrb[0].mxu0
      %453 = vmatprep.mubr.bf16.mxu0 0
      %454 = vmatmul.mubr.bf16.gmra.mrb[0].mxu0 %v355
      %v455 = vpop.f32.mrb[0].mxu0
      %v456 = vadd.f32 %v262, %v455
      %v457 = vpop.f32.mrb[0].mxu0
      %v458 = vpop.f32.mrb[0].mxu0
      %v459 = vadd.f32 %v262, %v458
      %v460 = vpop.f32.mrb[0].mxu0
      %461 = vmatprep.mubr.bf16.mxu0 0
      %462 = vmatmul.mubr.bf16.gmra.mrb[0].mxu0 %v358
      %v463 = vpop.f32.mrb[0].mxu0
      %v464 = vadd.f32 %v262, %v463
      %v465 = vpop.f32.mrb[0].mxu0
      %v466 = vpop.f32.mrb[0].mxu0
      %v467 = vadd.f32 %v262, %v466
      %v468 = vpop.f32.mrb[0].mxu0
      %469 = vmatprep.mubr.bf16.mxu0 0
      %470 = vmatmul.mubr.bf16.gmra.mrb[0].mxu0 %v361
      %v471 = vpop.f32.mrb[0].mxu0
      %v472 = vadd.f32 %v262, %v471
      %v473 = vpop.f32.mrb[0].mxu0
      %v474 = vpop.f32.mrb[0].mxu0
      %v475 = vadd.f32 %v262, %v474
      %v476 = vpop.f32.mrb[0].mxu0
      %477 = vmatprep.mubr.bf16.mxu0 0
      %478 = vmatmul.mubr.bf16.gmra.mrb[0].mxu0 %v364
      %v479 = vpop.f32.mrb[0].mxu0
      %v480 = vadd.f32 %v262, %v479
      %v481 = vpop.f32.mrb[0].mxu0
      %v482 = vpop.f32.mrb[0].mxu0
      %v483 = vadd.f32 %v262, %v482
      %v484 = vpop.f32.mrb[0].mxu0
      %485 = vmatprep.mubr.bf16.mxu0 0
      %486 = vmatmul.mubr.bf16.gmra.mrb[0].mxu0 %v367
      %v487 = vpop.f32.mrb[0].mxu0
      %v488 = vadd.f32 %v262, %v487
      %v489 = vpop.f32.mrb[0].mxu0
      %v490 = vpop.f32.mrb[0].mxu0
      %v491 = vadd.f32 %v262, %v490
      %v492 = vpop.f32.mrb[0].mxu0
      %493 = vmatprep.mubr.bf16.mxu0 0
      %494 = vmatmul.mubr.bf16.gmra.mrb[0].mxu0 %v370
      %v495 = vpop.f32.mrb[0].mxu0
      %v496 = vadd.f32 %v262, %v495
      %v497 = vpop.f32.mrb[0].mxu0
      %v498 = vpop.f32.mrb[0].mxu0
      %v499 = vadd.f32 %v262, %v498
      %v500 = vpop.f32.mrb[0].mxu0
      %501 = vmatprep.mubr.bf16.mxu0 0
      %502 = vmatmul.mubr.bf16.gmra.mrb[0].mxu0 %v373
      %v503 = vpop.f32.mrb[0].mxu0
      %v504 = vadd.f32 %v262, %v503
      %v505 = vpop.f32.mrb[0].mxu0
      %v506 = vpop.f32.mrb[0].mxu0
      %v507 = vadd.f32 %v262, %v506
      %v508 = vpop.f32.mrb[0].mxu0
      %509 = vmatprep.mubr.bf16.mxu0 0
      %510 = vmatmul.mubr.bf16.gmra.mrb[0].mxu0 %v376
      %v511 = vpop.f32.mrb[0].mxu0
      %v512 = vadd.f32 %v262, %v511
      %v513 = vpop.f32.mrb[0].mxu0
      %v514 = vpop.f32.mrb[0].mxu0
      %v515 = vadd.f32 %v262, %v514
      %v516 = vpop.f32.mrb[0].mxu0
      %517 = vmatprep.mubr.bf16.mxu0 0
      %518 = vmatmul.mubr.bf16.gmra.mrb[0].mxu0 %v379
      %v519 = vpop.f32.mrb[0].mxu0
      %v520 = vadd.f32 %v262, %v519
      %v521 = vpop.f32.mrb[0].mxu0
      %v522 = vpop.f32.mrb[0].mxu0
      %v523 = vadd.f32 %v262, %v522
      %v524 = vpop.f32.mrb[0].mxu0
      %525 = vmatprep.mubr.bf16.mxu0 0
      %526 = vmatmul.mubr.bf16.gmra.mrb[0].mxu0 %v382
      %v527 = vpop.f32.mrb[0].mxu0
      %v528 = vadd.f32 %v262, %v527
      %v529 = vpop.f32.mrb[0].mxu0
      %v530 = vpop.f32.mrb[0].mxu0
      %v531 = vadd.f32 %v262, %v530
      %v532 = vpop.f32.mrb[0].mxu0
      %533 = vmatprep.mubr.bf16.mxu0 0
      %534 = vmatmul.mubr.bf16.gmra.mrb[0].mxu0 %v385
      %v535 = vpop.f32.mrb[0].mxu0
      %v536 = vadd.f32 %v262, %v535
      %v537 = vpop.f32.mrb[0].mxu0
      %v538 = vpop.f32.mrb[0].mxu0
      %v539 = vadd.f32 %v262, %v538
      %v540 = vpop.f32.mrb[0].mxu0
      %541 = vmatprep.mubr.bf16.mxu0 0
      %542 = vmatmul.mubr.bf16.gmra.mrb[0].mxu0 %v388
      %v543 = vpop.f32.mrb[0].mxu0
      %v544 = vadd.f32 %v262, %v543
      %v545 = vpop.f32.mrb[0].mxu0
      %v546 = vpop.f32.mrb[0].mxu0
      %v547 = vadd.f32 %v262, %v546
      %v548 = vpop.f32.mrb[0].mxu0
      %549 = vmatprep.mubr.bf16.mxu0 0
      %550 = vmatmul.mubr.bf16.gmra.mrb[0].mxu0 %v391
      %v551 = vpop.f32.mrb[0].mxu0
      %v552 = vadd.f32 %v262, %v551
      %v553 = vpop.f32.mrb[0].mxu0
      %v554 = vpop.f32.mrb[0].mxu0
      %v555 = vadd.f32 %v262, %v554
      %v556 = vpop.f32.mrb[0].mxu0
      %557 = vdwg.mxu0
      %vm558 = vcmask 261248
      %v559 = vsel %vm558, %v432, 0.0
      %v560 = vsel %vm558, %v435, 0.0
      %v561 = vadd.f32 %v559, %v560
      %v562 = vsel %vm558, %v440, 0.0
      %v563 = vadd.f32 %v561, %v562
      %v564 = vsel %vm558, %v443, 0.0
      %v565 = vadd.f32 %v563, %v564
      %v566 = vsel %vm558, %v448, 0.0
      %v567 = vadd.f32 %v565, %v566
      %v568 = vsel %vm558, %v451, 0.0
      %v569 = vadd.f32 %v567, %v568
      %v570 = vsel %vm558, %v456, 0.0
      %v571 = vadd.f32 %v569, %v570
      %v572 = vsel %vm558, %v459, 0.0
      %v573 = vadd.f32 %v571, %v572
      %v574 = vsel %vm558, %v464, 0.0
      %v575 = vadd.f32 %v573, %v574
      %v576 = vsel %vm558, %v467, 0.0
      %v577 = vadd.f32 %v575, %v576
      %v578 = vsel %vm558, %v472, 0.0
      %v579 = vadd.f32 %v577, %v578
      %v580 = vsel %vm558, %v475, 0.0
      %v581 = vadd.f32 %v579, %v580
      %v582 = vsel %vm558, %v480, 0.0
      %v583 = vadd.f32 %v581, %v582
      %v584 = vsel %vm558, %v483, 0.0
      %v585 = vadd.f32 %v583, %v584
      %v586 = vsel %vm558, %v488, 0.0
      %v587 = vadd.f32 %v585, %v586
      %v588 = vsel %vm558, %v491, 0.0
      %v589 = vadd.f32 %v587, %v588
      %v590 = vsel %vm558, %v496, 0.0
      %v591 = vadd.f32 %v589, %v590
      %v592 = vsel %vm558, %v499, 0.0
      %v593 = vadd.f32 %v591, %v592
      %v594 = vsel %vm558, %v504, 0.0
      %v595 = vadd.f32 %v593, %v594
      %v596 = vsel %vm558, %v507, 0.0
      %v597 = vadd.f32 %v595, %v596
      %v598 = vsel %vm558, %v512, 0.0
      %v599 = vadd.f32 %v597, %v598
      %v600 = vsel %vm558, %v515, 0.0
      %v601 = vadd.f32 %v599, %v600
      %v602 = vsel %vm558, %v520, 0.0
      %v603 = vadd.f32 %v601, %v602
      %v604 = vsel %vm558, %v523, 0.0
      %v605 = vadd.f32 %v603, %v604
      %v606 = vsel %vm558, %v528, 0.0
      %v607 = vadd.f32 %v605, %v606
      %v608 = vsel %vm558, %v531, 0.0
      %v609 = vadd.f32 %v607, %v608
      %v610 = vsel %vm558, %v536, 0.0
      %v611 = vadd.f32 %v609, %v610
      %v612 = vsel %vm558, %v539, 0.0
      %v613 = vadd.f32 %v611, %v612
      %v614 = vsel %vm558, %v544, 0.0
      %v615 = vadd.f32 %v613, %v614
      %v616 = vsel %vm558, %v547, 0.0
      %v617 = vadd.f32 %v615, %v616
      %v618 = vsel %vm558, %v552, 0.0
      %v619 = vadd.f32 %v617, %v618
      %v620 = vsel %vm558, %v555, 0.0
      %v621 = vadd.f32 %v619, %v620
      %v622 = vrot.slane %v621, 4
      %v623 = vadd.f32 %v621, %v622
      %v624 = vrot.slane %v623, 2
      %v625 = vadd.f32 %v623, %v624
      %v626 = vrot.slane %v625, 1
      %v627 = vadd.f32 %v625, %v626
      %v628 = vrcp.pop 256.0
      %v629 = vmul.f32 %v627, %v628
      %631 = vrot.lane.b32.xlu0 %v629, 112
      %v632 = vpop.permute.xlu0 %631
      %v634 = vadd.f32 %v432, %v632
      %v635 = vadd.f32 %v435, %v632
      %v636 = vadd.f32 %v440, %v632
      %v637 = vadd.f32 %v443, %v632
      %v638 = vadd.f32 %v448, %v632
      %v639 = vadd.f32 %v451, %v632
      %v640 = vadd.f32 %v456, %v632
      %v641 = vadd.f32 %v459, %v632
      %v642 = vadd.f32 %v464, %v632
      %v643 = vadd.f32 %v467, %v632
      %v644 = vadd.f32 %v472, %v632
      %v645 = vadd.f32 %v475, %v632
      %v646 = vadd.f32 %v480, %v632
      %v647 = vadd.f32 %v483, %v632
      %v648 = vadd.f32 %v488, %v632
      %v649 = vadd.f32 %v491, %v632
      %v650 = vadd.f32 %v496, %v632
      %v651 = vadd.f32 %v499, %v632
      %v652 = vadd.f32 %v504, %v632
      %v653 = vadd.f32 %v507, %v632
      %v654 = vadd.f32 %v512, %v632
      %v655 = vadd.f32 %v515, %v632
      %v656 = vadd.f32 %v520, %v632
      %v657 = vadd.f32 %v523, %v632
      %v658 = vadd.f32 %v528, %v632
      %v659 = vadd.f32 %v531, %v632
      %v660 = vadd.f32 %v536, %v632
      %v661 = vadd.f32 %v539, %v632
      %v662 = vadd.f32 %v544, %v632
      %v663 = vadd.f32 %v547, %v632
      %v664 = vadd.f32 %v552, %v632
      %v665 = vadd.f32 %v555, %v632
      %v666 = vxor.u32 %v634, 2147483648
      %v667 = vxor.u32 %v635, 2147483648
      %v668 = vxor.u32 %v636, 2147483648
      %v669 = vxor.u32 %v637, 2147483648
      %v670 = vxor.u32 %v638, 2147483648
      %v671 = vxor.u32 %v639, 2147483648
      %v672 = vxor.u32 %v640, 2147483648
      %v673 = vxor.u32 %v641, 2147483648
      %v674 = vxor.u32 %v642, 2147483648
      %v675 = vxor.u32 %v643, 2147483648
      %v676 = vxor.u32 %v644, 2147483648
      %v677 = vxor.u32 %v645, 2147483648
      %v678 = vxor.u32 %v646, 2147483648
      %v679 = vxor.u32 %v647, 2147483648
      %v680 = vxor.u32 %v648, 2147483648
      %v681 = vxor.u32 %v649, 2147483648
      %v682 = vxor.u32 %v650, 2147483648
      %v683 = vxor.u32 %v651, 2147483648
      %v684 = vxor.u32 %v652, 2147483648
      %v685 = vxor.u32 %v653, 2147483648
      %v686 = vxor.u32 %v654, 2147483648
      %v687 = vxor.u32 %v655, 2147483648
      %v688 = vxor.u32 %v656, 2147483648
      %v689 = vxor.u32 %v657, 2147483648
      %v690 = vxor.u32 %v658, 2147483648
      %v691 = vxor.u32 %v659, 2147483648
      %v692 = vxor.u32 %v660, 2147483648
      %v693 = vxor.u32 %v661, 2147483648
      %v694 = vxor.u32 %v662, 2147483648
      %v695 = vxor.u32 %v663, 2147483648
      %v696 = vxor.u32 %v664, 2147483648
      %v697 = vxor.u32 %v665, 2147483648
      %v698 = vmul.f32 %v666, 1.442695
      %v699 = vpow.pop %v698
      %v700 = vmul.f32 %v667, 1.442695
      %v701 = vpow.pop %v700
      %v702 = vmul.f32 %v668, 1.442695
      %v703 = vpow.pop %v702
      %v704 = vmul.f32 %v669, 1.442695
      %v705 = vpow.pop %v704
      %v706 = vmul.f32 %v670, 1.442695
      %v707 = vpow.pop %v706
      %v708 = vmul.f32 %v671, 1.442695
      %v709 = vpow.pop %v708
      %v710 = vmul.f32 %v672, 1.442695
      %v711 = vpow.pop %v710
      %v712 = vmul.f32 %v673, 1.442695
      %v713 = vpow.pop %v712
      %v714 = vmul.f32 %v674, 1.442695
      %v715 = vpow.pop %v714
      %v716 = vmul.f32 %v675, 1.442695
      %v717 = vpow.pop %v716
      %v718 = vmul.f32 %v676, 1.442695
      %v719 = vpow.pop %v718
      %v720 = vmul.f32 %v677, 1.442695
      %v721 = vpow.pop %v720
      %v722 = vmul.f32 %v678, 1.442695
      %v723 = vpow.pop %v722
      %v724 = vmul.f32 %v679, 1.442695
      %v725 = vpow.pop %v724
      %v726 = vmul.f32 %v680, 1.442695
      %v727 = vpow.pop %v726
      %v728 = vmul.f32 %v681, 1.442695
      %v729 = vpow.pop %v728
      %v730 = vmul.f32 %v682, 1.442695
      %v731 = vpow.pop %v730
      %v732 = vmul.f32 %v683, 1.442695
      %v733 = vpow.pop %v732
      %v734 = vmul.f32 %v684, 1.442695
      %v735 = vpow.pop %v734
      %v736 = vmul.f32 %v685, 1.442695
      %v737 = vpow.pop %v736
      %v738 = vmul.f32 %v686, 1.442695
      %v739 = vpow.pop %v738
      %v740 = vmul.f32 %v687, 1.442695
      %v741 = vpow.pop %v740
      %v742 = vmul.f32 %v688, 1.442695
      %v743 = vpow.pop %v742
      %v744 = vmul.f32 %v689, 1.442695
      %v745 = vpow.pop %v744
      %v746 = vmul.f32 %v690, 1.442695
      %v747 = vpow.pop %v746
      %v748 = vmul.f32 %v691, 1.442695
      %v749 = vpow.pop %v748
      %v750 = vmul.f32 %v692, 1.442695
      %v751 = vpow.pop %v750
      %v752 = vmul.f32 %v693, 1.442695
      %v753 = vpow.pop %v752
      %v754 = vmul.f32 %v694, 1.442695
      %v755 = vpow.pop %v754
      %v756 = vmul.f32 %v695, 1.442695
      %v757 = vpow.pop %v756
      %v758 = vmul.f32 %v696, 1.442695
      %v759 = vpow.pop %v758
      %v760 = vmul.f32 %v697, 1.442695
      %v761 = vpow.pop %v760
      %v762 = vadd.f32 %v699, 1.0
      %v763 = vadd.f32 %v701, 1.0
      %v764 = vadd.f32 %v703, 1.0
      %v765 = vadd.f32 %v705, 1.0
      %v766 = vadd.f32 %v707, 1.0
      %v767 = vadd.f32 %v709, 1.0
      %v768 = vadd.f32 %v711, 1.0
      %v769 = vadd.f32 %v713, 1.0
      %v770 = vadd.f32 %v715, 1.0
      %v771 = vadd.f32 %v717, 1.0
      %v772 = vadd.f32 %v719, 1.0
      %v773 = vadd.f32 %v721, 1.0
      %v774 = vadd.f32 %v723, 1.0
      %v775 = vadd.f32 %v725, 1.0
      %v776 = vadd.f32 %v727, 1.0
      %v777 = vadd.f32 %v729, 1.0
      %v778 = vadd.f32 %v731, 1.0
      %v779 = vadd.f32 %v733, 1.0
      %v780 = vadd.f32 %v735, 1.0
      %v781 = vadd.f32 %v737, 1.0
      %v782 = vadd.f32 %v739, 1.0
      %v783 = vadd.f32 %v741, 1.0
      %v784 = vadd.f32 %v743, 1.0
      %v785 = vadd.f32 %v745, 1.0
      %v786 = vadd.f32 %v747, 1.0
      %v787 = vadd.f32 %v749, 1.0
      %v788 = vadd.f32 %v751, 1.0
      %v789 = vadd.f32 %v753, 1.0
      %v790 = vadd.f32 %v755, 1.0
      %v791 = vadd.f32 %v757, 1.0
      %v792 = vadd.f32 %v759, 1.0
      %v793 = vadd.f32 %v761, 1.0
      %v794 = vrcp.pop %v762
      %v795 = vmul.f32 1.0, %v794
      %v796 = vrcp.pop %v763
      %v797 = vmul.f32 1.0, %v796
      %v798 = vrcp.pop %v764
      %v799 = vmul.f32 1.0, %v798
      %v800 = vrcp.pop %v765
      %v801 = vmul.f32 1.0, %v800
      %v802 = vrcp.pop %v766
      %v803 = vmul.f32 1.0, %v802
      %v804 = vrcp.pop %v767
      %v805 = vmul.f32 1.0, %v804
      %v806 = vrcp.pop %v768
      %v807 = vmul.f32 1.0, %v806
      %v808 = vrcp.pop %v769
      %v809 = vmul.f32 1.0, %v808
      %v810 = vrcp.pop %v770
      %v811 = vmul.f32 1.0, %v810
      %v812 = vrcp.pop %v771
      %v813 = vmul.f32 1.0, %v812
      %v814 = vrcp.pop %v772
      %v815 = vmul.f32 1.0, %v814
      %v816 = vrcp.pop %v773
      %v817 = vmul.f32 1.0, %v816
      %v818 = vrcp.pop %v774
      %v819 = vmul.f32 1.0, %v818
      %v820 = vrcp.pop %v775
      %v821 = vmul.f32 1.0, %v820
      %v822 = vrcp.pop %v776
      %v823 = vmul.f32 1.0, %v822
      %v824 = vrcp.pop %v777
      %v825 = vmul.f32 1.0, %v824
      %v826 = vrcp.pop %v778
      %v827 = vmul.f32 1.0, %v826
      %v828 = vrcp.pop %v779
      %v829 = vmul.f32 1.0, %v828
      %v830 = vrcp.pop %v780
      %v831 = vmul.f32 1.0, %v830
      %v832 = vrcp.pop %v781
      %v833 = vmul.f32 1.0, %v832
      %v834 = vrcp.pop %v782
      %v835 = vmul.f32 1.0, %v834
      %v836 = vrcp.pop %v783
      %v837 = vmul.f32 1.0, %v836
      %v838 = vrcp.pop %v784
      %v839 = vmul.f32 1.0, %v838
      %v840 = vrcp.pop %v785
      %v841 = vmul.f32 1.0, %v840
      %v842 = vrcp.pop %v786
      %v843 = vmul.f32 1.0, %v842
      %v844 = vrcp.pop %v787
      %v845 = vmul.f32 1.0, %v844
      %v846 = vrcp.pop %v788
      %v847 = vmul.f32 1.0, %v846
      %v848 = vrcp.pop %v789
      %v849 = vmul.f32 1.0, %v848
      %v850 = vrcp.pop %v790
      %v851 = vmul.f32 1.0, %v850
      %v852 = vrcp.pop %v791
      %v853 = vmul.f32 1.0, %v852
      %v854 = vrcp.pop %v792
      %v855 = vmul.f32 1.0, %v854
      %v856 = vrcp.pop %v793
      %v857 = vmul.f32 1.0, %v856
      %v858 = vmul.f32 %v432, %v795
      %v859 = vmul.f32 %v435, %v797
      %v860 = vmul.f32 %v440, %v799
      %v861 = vmul.f32 %v443, %v801
      %v862 = vmul.f32 %v448, %v803
      %v863 = vmul.f32 %v451, %v805
      %v864 = vmul.f32 %v456, %v807
      %v865 = vmul.f32 %v459, %v809
      %v866 = vmul.f32 %v464, %v811
      %v867 = vmul.f32 %v467, %v813
      %v868 = vmul.f32 %v472, %v815
      %v869 = vmul.f32 %v475, %v817
      %v870 = vmul.f32 %v480, %v819
      %v871 = vmul.f32 %v483, %v821
      %v872 = vmul.f32 %v488, %v823
      %v873 = vmul.f32 %v491, %v825
      %v874 = vmul.f32 %v496, %v827
      %v875 = vmul.f32 %v499, %v829
      %v876 = vmul.f32 %v504, %v831
      %v877 = vmul.f32 %v507, %v833
      %v878 = vmul.f32 %v512, %v835
      %v879 = vmul.f32 %v515, %v837
      %v880 = vmul.f32 %v520, %v839
      %v881 = vmul.f32 %v523, %v841
      %v882 = vmul.f32 %v528, %v843
      %v883 = vmul.f32 %v531, %v845
      %v884 = vmul.f32 %v536, %v847
      %v885 = vmul.f32 %v539, %v849
      %v886 = vmul.f32 %v544, %v851
      %v887 = vmul.f32 %v547, %v853
      %v888 = vmul.f32 %v552, %v855
      %v889 = vmul.f32 %v555, %v857
      %vm890 = vcmask 130048
      %891 = vst.msk [vmem:[#allocation2] sm:$0xff] %vm890, 0.0
      %892 = vst.msk [vmem:[#allocation2 + $0x8] sm:$0xff] %vm890, 0.0
      %vm893 = vcmask 123904
      %894 = vst.msk [vmem:[#allocation2 + $0x10] sm:$0x3] %vm893, 0.0
      %s895 = scalar_lea.vmem [#allocation2], 408
      %896 = vst.msk [vmem:[%s895] sm:$0xff] %vm890, 0.0
      %897 = vst.msk [vmem:[%s895 + $0x8] sm:$0xff] %vm890, 0.0
      %898 = vst.msk [vmem:[%s895 + $0x10] sm:$0x3] %vm893, 0.0
      %vm899 = vcmask 122880
      %900 = vst.msk [vmem:[#allocation2] sm:$0x1] %vm899, 0.0
      %901 = vst.msk [vmem:[#allocation2 + $0x18] sm:$0x1] %vm899, 0.0
      %902 = vst.msk [vmem:[#allocation2 + $0x30] sm:$0x1] %vm899, 0.0
      %903 = vst.msk [vmem:[#allocation2 + $0x48] sm:$0x1] %vm899, 0.0
      %904 = vst.msk [vmem:[#allocation2 + $0x60] sm:$0x1] %vm899, 0.0
      %905 = vst.msk [vmem:[#allocation2 + $0x78] sm:$0x1] %vm899, 0.0
      %906 = vst.msk [vmem:[#allocation2 + $0x90] sm:$0x1] %vm899, 0.0
      %907 = vst.msk [vmem:[#allocation2 + $0xa8] sm:$0x1] %vm899, 0.0
      %908 = vst.msk [vmem:[#allocation2 + $0xc0] sm:$0x1] %vm899, 0.0
      %909 = vst.msk [vmem:[#allocation2 + $0xd8] sm:$0x1] %vm899, 0.0
      %910 = vst.msk [vmem:[#allocation2 + $0xf0] sm:$0x1] %vm899, 0.0
      %911 = vst.msk [vmem:[#allocation2 + $0x108] sm:$0x1] %vm899, 0.0
      %912 = vst.msk [vmem:[#allocation2 + $0x120] sm:$0x1] %vm899, 0.0
      %913 = vst.msk [vmem:[#allocation2 + $0x138] sm:$0x1] %vm899, 0.0
      %914 = vst.msk [vmem:[#allocation2 + $0x150] sm:$0x1] %vm899, 0.0
      %915 = vst.msk [vmem:[#allocation2 + $0x168] sm:$0x1] %vm899, 0.0
      %916 = vst.msk [vmem:[#allocation2 + $0x180] sm:$0x1] %vm899, 0.0
      %917 = vst.msk [vmem:[#allocation2 + $0x198] sm:$0x1] %vm899, 0.0
      %918 = vst.msk [vmem:[#allocation2 + $0x11] sm:$0x1] %vm899, 0.0
      %919 = vst.msk [vmem:[#allocation2 + $0x29] sm:$0x1] %vm899, 0.0
      %920 = vst.msk [vmem:[#allocation2 + $0x41] sm:$0x1] %vm899, 0.0
      %921 = vst.msk [vmem:[#allocation2 + $0x59] sm:$0x1] %vm899, 0.0
      %922 = vst.msk [vmem:[#allocation2 + $0x71] sm:$0x1] %vm899, 0.0
      %923 = vst.msk [vmem:[#allocation2 + $0x89] sm:$0x1] %vm899, 0.0
      %924 = vst.msk [vmem:[#allocation2 + $0xa1] sm:$0x1] %vm899, 0.0
      %925 = vst.msk [vmem:[#allocation2 + $0xb9] sm:$0x1] %vm899, 0.0
      %926 = vst.msk [vmem:[#allocation2 + $0xd1] sm:$0x1] %vm899, 0.0
      %927 = vst.msk [vmem:[#allocation2 + $0xe9] sm:$0x1] %vm899, 0.0
      %928 = vst.msk [vmem:[#allocation2 + $0x101] sm:$0x1] %vm899, 0.0
      %929 = vst.msk [vmem:[#allocation2 + $0x119] sm:$0x1] %vm899, 0.0
      %930 = vst.msk [vmem:[#allocation2 + $0x131] sm:$0x1] %vm899, 0.0
      %931 = vst.msk [vmem:[#allocation2 + $0x149] sm:$0x1] %vm899, 0.0
      %932 = vst.msk [vmem:[#allocation2 + $0x161] sm:$0x1] %vm899, 0.0
      %933 = vst.msk [vmem:[#allocation2 + $0x179] sm:$0x1] %vm899, 0.0
      %934 = vst.msk [vmem:[#allocation2 + $0x191] sm:$0x1] %vm899, 0.0
      %935 = vst.msk [vmem:[#allocation2 + $0x1a9] sm:$0x1] %vm899, 0.0
      %s936 = scalar_lea.vmem [#allocation2], 24
      %937 = vst.msk [vmem:[%s936 + $0x1] sm:$0xff] %vm890, %v858
      %938 = vst.msk [vmem:[%s936 + $0x9] sm:$0xff] %vm890, %v859
      %939 = vst.msk [vmem:[%s936 + $0x19] sm:$0xff] %vm890, %v860
      %940 = vst.msk [vmem:[%s936 + $0x21] sm:$0xff] %vm890, %v861
      %941 = vst.msk [vmem:[%s936 + $0x31] sm:$0xff] %vm890, %v862
      %942 = vst.msk [vmem:[%s936 + $0x39] sm:$0xff] %vm890, %v863
      %943 = vst.msk [vmem:[%s936 + $0x49] sm:$0xff] %vm890, %v864
      %944 = vst.msk [vmem:[%s936 + $0x51] sm:$0xff] %vm890, %v865
      %945 = vst.msk [vmem:[%s936 + $0x61] sm:$0xff] %vm890, %v866
      %946 = vst.msk [vmem:[%s936 + $0x69] sm:$0xff] %vm890, %v867
      %947 = vst.msk [vmem:[%s936 + $0x79] sm:$0xff] %vm890, %v868
      %948 = vst.msk [vmem:[%s936 + $0x81] sm:$0xff] %vm890, %v869
      %949 = vst.msk [vmem:[%s936 + $0x91] sm:$0xff] %vm890, %v870
      %950 = vst.msk [vmem:[%s936 + $0x99] sm:$0xff] %vm890, %v871
      %951 = vst.msk [vmem:[%s936 + $0xa9] sm:$0xff] %vm890, %v872
      %952 = vst.msk [vmem:[%s936 + $0xb1] sm:$0xff] %vm890, %v873
      %953 = vst.msk [vmem:[%s936 + $0xc1] sm:$0xff] %vm890, %v874
      %954 = vst.msk [vmem:[%s936 + $0xc9] sm:$0xff] %vm890, %v875
      %955 = vst.msk [vmem:[%s936 + $0xd9] sm:$0xff] %vm890, %v876
      %956 = vst.msk [vmem:[%s936 + $0xe1] sm:$0xff] %vm890, %v877
      %957 = vst.msk [vmem:[%s936 + $0xf1] sm:$0xff] %vm890, %v878
      %958 = vst.msk [vmem:[%s936 + $0xf9] sm:$0xff] %vm890, %v879
      %959 = vst.msk [vmem:[%s936 + $0x109] sm:$0xff] %vm890, %v880
      %960 = vst.msk [vmem:[%s936 + $0x111] sm:$0xff] %vm890, %v881
      %961 = vst.msk [vmem:[%s936 + $0x121] sm:$0xff] %vm890, %v882
      %962 = vst.msk [vmem:[%s936 + $0x129] sm:$0xff] %vm890, %v883
      %963 = vst.msk [vmem:[%s936 + $0x139] sm:$0xff] %vm890, %v884
      %964 = vst.msk [vmem:[%s936 + $0x141] sm:$0xff] %vm890, %v885
      %965 = vst.msk [vmem:[%s936 + $0x151] sm:$0xff] %vm890, %v886
      %966 = vst.msk [vmem:[%s936 + $0x159] sm:$0xff] %vm890, %v887
      %967 = vst.msk [vmem:[%s936 + $0x169] sm:$0xff] %vm890, %v888
      %968 = vst.msk [vmem:[%s936 + $0x171] sm:$0xff] %vm890, %v889
      %v969 = vld [vmem:[#allocation2] ss:$2 sm:$0xff]
      %s970 = scalar_lea.vmem [#allocation2], 48
      %v971 = vld [vmem:[%s970] ss:$2 sm:$0xff]
      %s972 = scalar_lea.vmem [#allocation2], 96
      %v973 = vld [vmem:[%s972] ss:$2 sm:$0xff]
      %s974 = scalar_lea.vmem [#allocation2], 144
      %v975 = vld [vmem:[%s974] ss:$2 sm:$0xff]
      %s976 = scalar_lea.vmem [#allocation2], 192
      %v977 = vld [vmem:[%s976] ss:$2 sm:$0xff]
      %s978 = scalar_lea.vmem [#allocation2], 240
      %v979 = vld [vmem:[%s978] ss:$2 sm:$0xff]
      %s980 = scalar_lea.vmem [#allocation2], 288
      %v981 = vld [vmem:[%s980] ss:$2 sm:$0xff]
      %s982 = scalar_lea.vmem [#allocation2], 336
      %v983 = vld [vmem:[%s982] ss:$2 sm:$0xff]
      %v984 = vld [vmem:[%s3] sm:$0x1]
      %v985 = vlaneseq
      %v986 = vshrl.u32 %v985, 7
      %v987 = vsub.s32 0, %v986
      %v988 = vrot.slane %v984, %v987
      %v989 = vmul.f32 %v969, %v988
      %v990 = vmul.f32 %v971, %v988
      %v991 = vmul.f32 %v973, %v988
      %v992 = vmul.f32 %v975, %v988
      %v993 = vmul.f32 %v977, %v988
      %v994 = vmul.f32 %v979, %v988
      %v995 = vmul.f32 %v981, %v988
      %v996 = vmul.f32 %v983, %v988
      %v997 = vadd.f32 %v989, 0.0
      %v998 = vadd.f32 %v990, 0.0
      %v999 = vadd.f32 %v991, 0.0
      %v1000 = vadd.f32 %v992, 0.0
      %v1001 = vadd.f32 %v993, 0.0
      %v1002 = vadd.f32 %v994, 0.0
      %v1003 = vadd.f32 %v995, 0.0
      %v1004 = vadd.f32 %v996, 0.0
      %s1005 = scalar_lea.vmem [#allocation2], 1
      %v1006 = vld [vmem:[%s1005] ss:$2 sm:$0xff]
      %s1007 = scalar_lea.vmem [#allocation2], 49
      %v1008 = vld [vmem:[%s1007] ss:$2 sm:$0xff]
      %s1009 = scalar_lea.vmem [#allocation2], 97
      %v1010 = vld [vmem:[%s1009] ss:$2 sm:$0xff]
      %s1011 = scalar_lea.vmem [#allocation2], 145
      %v1012 = vld [vmem:[%s1011] ss:$2 sm:$0xff]
      %s1013 = scalar_lea.vmem [#allocation2], 193
      %v1014 = vld [vmem:[%s1013] ss:$2 sm:$0xff]
      %s1015 = scalar_lea.vmem [#allocation2], 241
      %v1016 = vld [vmem:[%s1015] ss:$2 sm:$0xff]
      %s1017 = scalar_lea.vmem [#allocation2], 289
      %v1018 = vld [vmem:[%s1017] ss:$2 sm:$0xff]
      %s1019 = scalar_lea.vmem [#allocation2], 337
      %v1020 = vld [vmem:[%s1019] ss:$2 sm:$0xff]
      %v1021 = vld [vmem:[%s3 + $0x1] sm:$0x1]
      %v1022 = vlaneseq
      %v1023 = vshrl.u32 %v1022, 7
      %v1024 = vsub.s32 0, %v1023
      %v1025 = vrot.slane %v1021, %v1024
      %v1026 = vmul.f32 %v1006, %v1025
      %v1027 = vmul.f32 %v1008, %v1025
      %v1028 = vmul.f32 %v1010, %v1025
      %v1029 = vmul.f32 %v1012, %v1025
      %v1030 = vmul.f32 %v1014, %v1025
      %v1031 = vmul.f32 %v1016, %v1025
      %v1032 = vmul.f32 %v1018, %v1025
      %v1033 = vmul.f32 %v1020, %v1025
      %v1034 = vadd.f32 %v997, %v1026
      %v1035 = vadd.f32 %v998, %v1027
      %v1036 = vadd.f32 %v999, %v1028
      %v1037 = vadd.f32 %v1000, %v1029
      %v1038 = vadd.f32 %v1001, %v1030
      %v1039 = vadd.f32 %v1002, %v1031
      %v1040 = vadd.f32 %v1003, %v1032
      %v1041 = vadd.f32 %v1004, %v1033
      %s1042 = scalar_lea.vmem [#allocation2], 2
      %v1043 = vld [vmem:[%s1042] ss:$2 sm:$0xff]
      %s1044 = scalar_lea.vmem [#allocation2], 50
      %v1045 = vld [vmem:[%s1044] ss:$2 sm:$0xff]
      %s1046 = scalar_lea.vmem [#allocation2], 98
      %v1047 = vld [vmem:[%s1046] ss:$2 sm:$0xff]
      %s1048 = scalar_lea.vmem [#allocation2], 146
      %v1049 = vld [vmem:[%s1048] ss:$2 sm:$0xff]
      %s1050 = scalar_lea.vmem [#allocation2], 194
      %v1051 = vld [vmem:[%s1050] ss:$2 sm:$0xff]
      %s1052 = scalar_lea.vmem [#allocation2], 242
      %v1053 = vld [vmem:[%s1052] ss:$2 sm:$0xff]
      %s1054 = scalar_lea.vmem [#allocation2], 290
      %v1055 = vld [vmem:[%s1054] ss:$2 sm:$0xff]
      %s1056 = scalar_lea.vmem [#allocation2], 338
      %v1057 = vld [vmem:[%s1056] ss:$2 sm:$0xff]
      %v1058 = vld [vmem:[%s3 + $0x2] sm:$0x1]
      %v1059 = vlaneseq
      %v1060 = vshrl.u32 %v1059, 7
      %v1061 = vsub.s32 0, %v1060
      %v1062 = vrot.slane %v1058, %v1061
      %v1063 = vmul.f32 %v1043, %v1062
      %v1064 = vmul.f32 %v1045, %v1062
      %v1065 = vmul.f32 %v1047, %v1062
      %v1066 = vmul.f32 %v1049, %v1062
      %v1067 = vmul.f32 %v1051, %v1062
      %v1068 = vmul.f32 %v1053, %v1062
      %v1069 = vmul.f32 %v1055, %v1062
      %v1070 = vmul.f32 %v1057, %v1062
      %v1071 = vadd.f32 %v1034, %v1063
      %v1072 = vadd.f32 %v1035, %v1064
      %v1073 = vadd.f32 %v1036, %v1065
      %v1074 = vadd.f32 %v1037, %v1066
      %v1075 = vadd.f32 %v1038, %v1067
      %v1076 = vadd.f32 %v1039, %v1068
      %v1077 = vadd.f32 %v1040, %v1069
      %v1078 = vadd.f32 %v1041, %v1070
      %v1079 = vld [vmem:[%s936] ss:$2 sm:$0xff]
      %s1080 = scalar_lea.vmem %s936, 48 [#allocation2]
      %v1081 = vld [vmem:[%s1080] ss:$2 sm:$0xff]
      %s1082 = scalar_lea.vmem %s936, 96 [#allocation2]
      %v1083 = vld [vmem:[%s1082] ss:$2 sm:$0xff]
      %s1084 = scalar_lea.vmem %s936, 144 [#allocation2]
      %v1085 = vld [vmem:[%s1084] ss:$2 sm:$0xff]
      %s1086 = scalar_lea.vmem %s936, 192 [#allocation2]
      %v1087 = vld [vmem:[%s1086] ss:$2 sm:$0xff]
      %s1088 = scalar_lea.vmem %s936, 240 [#allocation2]
      %v1089 = vld [vmem:[%s1088] ss:$2 sm:$0xff]
      %s1090 = scalar_lea.vmem %s936, 288 [#allocation2]
      %v1091 = vld [vmem:[%s1090] ss:$2 sm:$0xff]
      %s1092 = scalar_lea.vmem %s936, 336 [#allocation2]
      %v1093 = vld [vmem:[%s1092] ss:$2 sm:$0xff]
      %v1094 = vld [vmem:[%s3 + $0x3] sm:$0x1]
      %v1095 = vlaneseq
      %v1096 = vshrl.u32 %v1095, 7
      %v1097 = vsub.s32 0, %v1096
      %v1098 = vrot.slane %v1094, %v1097
      %v1099 = vmul.f32 %v1079, %v1098
      %v1100 = vmul.f32 %v1081, %v1098
      %v1101 = vmul.f32 %v1083, %v1098
      %v1102 = vmul.f32 %v1085, %v1098
      %v1103 = vmul.f32 %v1087, %v1098
      %v1104 = vmul.f32 %v1089, %v1098
      %v1105 = vmul.f32 %v1091, %v1098
      %v1106 = vmul.f32 %v1093, %v1098
      %v1107 = vadd.f32 %v1071, %v1099
      %v1108 = vadd.f32 %v1072, %v1100
      %v1109 = vadd.f32 %v1073, %v1101
      %v1110 = vadd.f32 %v1074, %v1102
      %v1111 = vadd.f32 %v1075, %v1103
      %v1112 = vadd.f32 %v1076, %v1104
      %v1113 = vadd.f32 %v1077, %v1105
      %v1114 = vadd.f32 %v1078, %v1106
      %s1115 = scalar_lea.vmem %s936, 1 [#allocation2]
      %v1116 = vld [vmem:[%s1115] ss:$2 sm:$0xff]
      %s1117 = scalar_lea.vmem %s936, 49 [#allocation2]
      %v1118 = vld [vmem:[%s1117] ss:$2 sm:$0xff]
      %s1119 = scalar_lea.vmem %s936, 97 [#allocation2]
      %v1120 = vld [vmem:[%s1119] ss:$2 sm:$0xff]
      %s1121 = scalar_lea.vmem %s936, 145 [#allocation2]
      %v1122 = vld [vmem:[%s1121] ss:$2 sm:$0xff]
      %s1123 = scalar_lea.vmem %s936, 193 [#allocation2]
      %v1124 = vld [vmem:[%s1123] ss:$2 sm:$0xff]
      %s1125 = scalar_lea.vmem %s936, 241 [#allocation2]
      %v1126 = vld [vmem:[%s1125] ss:$2 sm:$0xff]
      %s1127 = scalar_lea.vmem %s936, 289 [#allocation2]
      %v1128 = vld [vmem:[%s1127] ss:$2 sm:$0xff]
      %s1129 = scalar_lea.vmem %s936, 337 [#allocation2]
      %v1130 = vld [vmem:[%s1129] ss:$2 sm:$0xff]
      %v1131 = vld [vmem:[%s3 + $0x4] sm:$0x1]
      %v1132 = vlaneseq
      %v1133 = vshrl.u32 %v1132, 7
      %v1134 = vsub.s32 0, %v1133
      %v1135 = vrot.slane %v1131, %v1134
      %v1136 = vmul.f32 %v1116, %v1135
      %v1137 = vmul.f32 %v1118, %v1135
      %v1138 = vmul.f32 %v1120, %v1135
      %v1139 = vmul.f32 %v1122, %v1135
      %v1140 = vmul.f32 %v1124, %v1135
      %v1141 = vmul.f32 %v1126, %v1135
      %v1142 = vmul.f32 %v1128, %v1135
      %v1143 = vmul.f32 %v1130, %v1135
      %v1144 = vadd.f32 %v1107, %v1136
      %v1145 = vadd.f32 %v1108, %v1137
      %v1146 = vadd.f32 %v1109, %v1138
      %v1147 = vadd.f32 %v1110, %v1139
      %v1148 = vadd.f32 %v1111, %v1140
      %v1149 = vadd.f32 %v1112, %v1141
      %v1150 = vadd.f32 %v1113, %v1142
      %v1151 = vadd.f32 %v1114, %v1143
      %s1152 = scalar_lea.vmem %s936, 2 [#allocation2]
      %v1153 = vld [vmem:[%s1152] ss:$2 sm:$0xff]
      %s1154 = scalar_lea.vmem %s936, 50 [#allocation2]
      %v1155 = vld [vmem:[%s1154] ss:$2 sm:$0xff]
      %s1156 = scalar_lea.vmem %s936, 98 [#allocation2]
      %v1157 = vld [vmem:[%s1156] ss:$2 sm:$0xff]
      %s1158 = scalar_lea.vmem %s936, 146 [#allocation2]
      %v1159 = vld [vmem:[%s1158] ss:$2 sm:$0xff]
      %s1160 = scalar_lea.vmem %s936, 194 [#allocation2]
      %v1161 = vld [vmem:[%s1160] ss:$2 sm:$0xff]
      %s1162 = scalar_lea.vmem %s936, 242 [#allocation2]
      %v1163 = vld [vmem:[%s1162] ss:$2 sm:$0xff]
      %s1164 = scalar_lea.vmem %s936, 290 [#allocation2]
      %v1165 = vld [vmem:[%s1164] ss:$2 sm:$0xff]
      %s1166 = scalar_lea.vmem %s936, 338 [#allocation2]
      %v1167 = vld [vmem:[%s1166] ss:$2 sm:$0xff]
      %v1168 = vld [vmem:[%s3 + $0x5] sm:$0x1]
      %v1169 = vlaneseq
      %v1170 = vshrl.u32 %v1169, 7
      %v1171 = vsub.s32 0, %v1170
      %v1172 = vrot.slane %v1168, %v1171
      %v1173 = vmul.f32 %v1153, %v1172
      %v1174 = vmul.f32 %v1155, %v1172
      %v1175 = vmul.f32 %v1157, %v1172
      %v1176 = vmul.f32 %v1159, %v1172
      %v1177 = vmul.f32 %v1161, %v1172
      %v1178 = vmul.f32 %v1163, %v1172
      %v1179 = vmul.f32 %v1165, %v1172
      %v1180 = vmul.f32 %v1167, %v1172
      %v1181 = vadd.f32 %v1144, %v1173
      %v1182 = vadd.f32 %v1145, %v1174
      %v1183 = vadd.f32 %v1146, %v1175
      %v1184 = vadd.f32 %v1147, %v1176
      %v1185 = vadd.f32 %v1148, %v1177
      %v1186 = vadd.f32 %v1149, %v1178
      %v1187 = vadd.f32 %v1150, %v1179
      %v1188 = vadd.f32 %v1151, %v1180
      %s1189 = scalar_lea.vmem [#allocation2], 48
      %v1190 = vld [vmem:[%s1189] ss:$2 sm:$0xff]
      %s1191 = scalar_lea.vmem %s1189, 48 [#allocation2]
      %v1192 = vld [vmem:[%s1191] ss:$2 sm:$0xff]
      %s1193 = scalar_lea.vmem %s1189, 96 [#allocation2]
      %v1194 = vld [vmem:[%s1193] ss:$2 sm:$0xff]
      %s1195 = scalar_lea.vmem %s1189, 144 [#allocation2]
      %v1196 = vld [vmem:[%s1195] ss:$2 sm:$0xff]
      %s1197 = scalar_lea.vmem %s1189, 192 [#allocation2]
      %v1198 = vld [vmem:[%s1197] ss:$2 sm:$0xff]
      %s1199 = scalar_lea.vmem %s1189, 240 [#allocation2]
      %v1200 = vld [vmem:[%s1199] ss:$2 sm:$0xff]
      %s1201 = scalar_lea.vmem %s1189, 288 [#allocation2]
      %v1202 = vld [vmem:[%s1201] ss:$2 sm:$0xff]
      %s1203 = scalar_lea.vmem %s1189, 336 [#allocation2]
      %v1204 = vld [vmem:[%s1203] ss:$2 sm:$0xff]
      %v1205 = vld [vmem:[%s3 + $0x6] sm:$0x1]
      %v1206 = vlaneseq
      %v1207 = vshrl.u32 %v1206, 7
      %v1208 = vsub.s32 0, %v1207
      %v1209 = vrot.slane %v1205, %v1208
      %v1210 = vmul.f32 %v1190, %v1209
      %v1211 = vmul.f32 %v1192, %v1209
      %v1212 = vmul.f32 %v1194, %v1209
      %v1213 = vmul.f32 %v1196, %v1209
      %v1214 = vmul.f32 %v1198, %v1209
      %v1215 = vmul.f32 %v1200, %v1209
      %v1216 = vmul.f32 %v1202, %v1209
      %v1217 = vmul.f32 %v1204, %v1209
      %v1218 = vadd.f32 %v1181, %v1210
      %v1219 = vadd.f32 %v1182, %v1211
      %v1220 = vadd.f32 %v1183, %v1212
      %v1221 = vadd.f32 %v1184, %v1213
      %v1222 = vadd.f32 %v1185, %v1214
      %v1223 = vadd.f32 %v1186, %v1215
      %v1224 = vadd.f32 %v1187, %v1216
      %v1225 = vadd.f32 %v1188, %v1217
      %s1226 = scalar_lea.vmem %s1189, 1 [#allocation2]
      %v1227 = vld [vmem:[%s1226] ss:$2 sm:$0xff]
      %s1228 = scalar_lea.vmem %s1189, 49 [#allocation2]
      %v1229 = vld [vmem:[%s1228] ss:$2 sm:$0xff]
      %s1230 = scalar_lea.vmem %s1189, 97 [#allocation2]
      %v1231 = vld [vmem:[%s1230] ss:$2 sm:$0xff]
      %s1232 = scalar_lea.vmem %s1189, 145 [#allocation2]
      %v1233 = vld [vmem:[%s1232] ss:$2 sm:$0xff]
      %s1234 = scalar_lea.vmem %s1189, 193 [#allocation2]
      %v1235 = vld [vmem:[%s1234] ss:$2 sm:$0xff]
      %s1236 = scalar_lea.vmem %s1189, 241 [#allocation2]
      %v1237 = vld [vmem:[%s1236] ss:$2 sm:$0xff]
      %s1238 = scalar_lea.vmem %s1189, 289 [#allocation2]
      %v1239 = vld [vmem:[%s1238] ss:$2 sm:$0xff]
      %s1240 = scalar_lea.vmem %s1189, 337 [#allocation2]
      %v1241 = vld [vmem:[%s1240] ss:$2 sm:$0xff]
      %v1242 = vld [vmem:[%s3 + $0x7] sm:$0x1]
      %v1243 = vlaneseq
      %v1244 = vshrl.u32 %v1243, 7
      %v1245 = vsub.s32 0, %v1244
      %v1246 = vrot.slane %v1242, %v1245
      %v1247 = vmul.f32 %v1227, %v1246
      %v1248 = vmul.f32 %v1229, %v1246
      %v1249 = vmul.f32 %v1231, %v1246
      %v1250 = vmul.f32 %v1233, %v1246
      %v1251 = vmul.f32 %v1235, %v1246
      %v1252 = vmul.f32 %v1237, %v1246
      %v1253 = vmul.f32 %v1239, %v1246
      %v1254 = vmul.f32 %v1241, %v1246
      %v1255 = vadd.f32 %v1218, %v1247
      %v1256 = vadd.f32 %v1219, %v1248
      %v1257 = vadd.f32 %v1220, %v1249
      %v1258 = vadd.f32 %v1221, %v1250
      %v1259 = vadd.f32 %v1222, %v1251
      %v1260 = vadd.f32 %v1223, %v1252
      %v1261 = vadd.f32 %v1224, %v1253
      %v1262 = vadd.f32 %v1225, %v1254
      %s1263 = scalar_lea.vmem %s1189, 2 [#allocation2]
      %v1264 = vld [vmem:[%s1263] ss:$2 sm:$0xff]
      %s1265 = scalar_lea.vmem %s1189, 50 [#allocation2]
      %v1266 = vld [vmem:[%s1265] ss:$2 sm:$0xff]
      %s1267 = scalar_lea.vmem %s1189, 98 [#allocation2]
      %v1268 = vld [vmem:[%s1267] ss:$2 sm:$0xff]
      %s1269 = scalar_lea.vmem %s1189, 146 [#allocation2]
      %v1270 = vld [vmem:[%s1269] ss:$2 sm:$0xff]
      %s1271 = scalar_lea.vmem %s1189, 194 [#allocation2]
      %v1272 = vld [vmem:[%s1271] ss:$2 sm:$0xff]
      %s1273 = scalar_lea.vmem %s1189, 242 [#allocation2]
      %v1274 = vld [vmem:[%s1273] ss:$2 sm:$0xff]
      %s1275 = scalar_lea.vmem %s1189, 290 [#allocation2]
      %v1276 = vld [vmem:[%s1275] ss:$2 sm:$0xff]
      %s1277 = scalar_lea.vmem %s1189, 338 [#allocation2]
      %v1278 = vld [vmem:[%s1277] ss:$2 sm:$0xff]
      %v1279 = vld [vmem:[%s3 + $0x8] sm:$0x1]
      %v1280 = vlaneseq
      %v1281 = vshrl.u32 %v1280, 7
      %v1282 = vsub.s32 0, %v1281
      %v1283 = vrot.slane %v1279, %v1282
      %v1284 = vmul.f32 %v1264, %v1283
      %v1285 = vmul.f32 %v1266, %v1283
      %v1286 = vmul.f32 %v1268, %v1283
      %v1287 = vmul.f32 %v1270, %v1283
      %v1288 = vmul.f32 %v1272, %v1283
      %v1289 = vmul.f32 %v1274, %v1283
      %v1290 = vmul.f32 %v1276, %v1283
      %v1291 = vmul.f32 %v1278, %v1283
      %v1292 = vadd.f32 %v1255, %v1284
      %v1293 = vadd.f32 %v1256, %v1285
      %v1294 = vadd.f32 %v1257, %v1286
      %v1295 = vadd.f32 %v1258, %v1287
      %v1296 = vadd.f32 %v1259, %v1288
      %v1297 = vadd.f32 %v1260, %v1289
      %v1298 = vadd.f32 %v1261, %v1290
      %v1299 = vadd.f32 %v1262, %v1291
      %v1300 = vld [vmem:[%s4] sm:$0x1]
      %v1302 = vlaneseq
      %v1303 = vshrl.u32 %v1302, 7
      %v1304 = vsub.s32 0, %v1303
      %v1305 = vrot.slane %v1300, %v1304
      %v1307 = vadd.f32 %v1292, %v1305
      %v1308 = vadd.f32 %v1293, %v1305
      %v1309 = vadd.f32 %v1294, %v1305
      %v1310 = vadd.f32 %v1295, %v1305
      %v1311 = vadd.f32 %v1296, %v1305
      %v1312 = vadd.f32 %v1297, %v1305
      %v1313 = vadd.f32 %v1298, %v1305
      %v1314 = vadd.f32 %v1299, %v1305
      %1315 = vst.msk [vmem:[#allocation3] sm:$0xff] %vm890, %v1307
      %1316 = vst.msk [vmem:[#allocation3 + $0x8] sm:$0xff] %vm890, %v1308
      %1317 = vst.msk [vmem:[#allocation3 + $0x10] sm:$0xff] %vm890, %v1309
      %1318 = vst.msk [vmem:[#allocation3 + $0x18] sm:$0xff] %vm890, %v1310
      %1319 = vst.msk [vmem:[#allocation3 + $0x20] sm:$0xff] %vm890, %v1311
      %1320 = vst.msk [vmem:[#allocation3 + $0x28] sm:$0xff] %vm890, %v1312
      %1321 = vst.msk [vmem:[#allocation3 + $0x30] sm:$0xff] %vm890, %v1313
      %1322 = vst.msk [vmem:[#allocation3 + $0x38] sm:$0xff] %vm890, %v1314
      %v1323 = vld [vmem:[#allocation3] sm:$0x1]
      %v1324 = vld [vmem:[#allocation3 + $0x8] sm:$0x1]
      %v1325 = vld [vmem:[#allocation3 + $0x10] sm:$0x1]
      %v1326 = vld [vmem:[#allocation3 + $0x18] sm:$0x1]
      %v1327 = vld [vmem:[#allocation3 + $0x20] sm:$0x1]
      %v1328 = vld [vmem:[#allocation3 + $0x28] sm:$0x1]
      %v1329 = vld [vmem:[#allocation3 + $0x30] sm:$0x1]
      %v1330 = vld [vmem:[#allocation3 + $0x38] sm:$0x1]
      %v1331 = vpack.c.bf16 %v1323, %v1323
      %v1332 = vpack.c.bf16 %v1324, %v1324
      %v1333 = vpack.c.bf16 %v1325, %v1325
      %v1334 = vpack.c.bf16 %v1326, %v1326
      %v1335 = vpack.c.bf16 %v1327, %v1327
      %v1336 = vpack.c.bf16 %v1328, %v1328
      %v1337 = vpack.c.bf16 %v1329, %v1329
      %v1338 = vpack.c.bf16 %v1330, %v1330
      %v1347 = vunpack.c.l.b16 %v1331
      %v1348 = vunpack.c.l.b16 %v1332
      %v1349 = vunpack.c.l.b16 %v1333
      %v1350 = vunpack.c.l.b16 %v1334
      %v1351 = vunpack.c.l.b16 %v1335
      %v1352 = vunpack.c.l.b16 %v1336
      %v1353 = vunpack.c.l.b16 %v1337
      %v1354 = vunpack.c.l.b16 %v1338
      %v1355 = vpack.c.b16 %v1347, %v1347
      %v1356 = vpack.c.b16 %v1348, %v1348
      %v1357 = vpack.c.b16 %v1349, %v1349
      %v1358 = vpack.c.b16 %v1350, %v1350
      %v1359 = vpack.c.b16 %v1351, %v1351
      %v1360 = vpack.c.b16 %v1352, %v1352
      %v1361 = vpack.c.b16 %v1353, %v1353
      %v1362 = vpack.c.b16 %v1354, %v1354
      %v1363 = vunpack.c.l.b16 %v1355
      %v1364 = vunpack.c.l.b16 %v1356
      %v1365 = vunpack.c.l.b16 %v1357
      %v1366 = vunpack.c.l.b16 %v1358
      %v1367 = vunpack.c.l.b16 %v1359
      %v1368 = vunpack.c.l.b16 %v1360
      %v1369 = vunpack.c.l.b16 %v1361
      %v1370 = vunpack.c.l.b16 %v1362
      %v1371 = vrot.slane %v1364, 7
      %vm1372 = vcmask 1041409
      %v1373 = vsel %vm1372, %v1371, %v1363
      %v1374 = vrot.slane %v1365, 6
      %vm1375 = vcmask 1042434
      %v1376 = vsel %vm1375, %v1374, %v1373
      %v1377 = vrot.slane %v1366, 5
      %vm1378 = vcmask 1043459
      %v1379 = vsel %vm1378, %v1377, %v1376
      %v1380 = vrot.slane %v1367, 4
      %vm1381 = vcmask 1044484
      %v1382 = vsel %vm1381, %v1380, %v1379
      %v1383 = vrot.slane %v1368, 3
      %vm1384 = vcmask 1045509
      %v1385 = vsel %vm1384, %v1383, %v1382
      %v1386 = vrot.slane %v1369, 2
      %vm1387 = vcmask 1046534
      %v1388 = vsel %vm1387, %v1386, %v1385
      %v1389 = vrot.slane %v1370, 1
      %vm1390 = vcmask 1047559
      %v1391 = vsel %vm1390, %v1389, %v1388
      %v1392 = vpack.c.b16 %v1391, %v1391
      %vm1394 = vcmask 125952
      %1395 = vst.msk [vmem:[%s222] sm:$0xf] %vm1394, %v1392
      %v1396 = vld [vmem:[#allocation3 + $0x1] sm:$0x1]
      %v1397 = vld [vmem:[#allocation3 + $0x9] sm:$0x1]
      %v1398 = vld [vmem:[#allocation3 + $0x11] sm:$0x1]
      %v1399 = vld [vmem:[#allocation3 + $0x19] sm:$0x1]
      %v1400 = vld [vmem:[#allocation3 + $0x21] sm:$0x1]
      %v1401 = vld [vmem:[#allocation3 + $0x29] sm:$0x1]
      %v1402 = vld [vmem:[#allocation3 + $0x31] sm:$0x1]
      %v1403 = vld [vmem:[#allocation3 + $0x39] sm:$0x1]
      %v1404 = vpack.c.bf16 %v1396, %v1396
      %v1405 = vpack.c.bf16 %v1397, %v1397
      %v1406 = vpack.c.bf16 %v1398, %v1398
      %v1407 = vpack.c.bf16 %v1399, %v1399
      %v1408 = vpack.c.bf16 %v1400, %v1400
      %v1409 = vpack.c.bf16 %v1401, %v1401
      %v1410 = vpack.c.bf16 %v1402, %v1402
      %v1411 = vpack.c.bf16 %v1403, %v1403
      %v1420 = vunpack.c.l.b16 %v1404
      %v1421 = vunpack.c.l.b16 %v1405
      %v1422 = vunpack.c.l.b16 %v1406
      %v1423 = vunpack.c.l.b16 %v1407
      %v1424 = vunpack.c.l.b16 %v1408
      %v1425 = vunpack.c.l.b16 %v1409
      %v1426 = vunpack.c.l.b16 %v1410
      %v1427 = vunpack.c.l.b16 %v1411
      %v1428 = vpack.c.b16 %v1420, %v1420
      %v1429 = vpack.c.b16 %v1421, %v1421
      %v1430 = vpack.c.b16 %v1422, %v1422
      %v1431 = vpack.c.b16 %v1423, %v1423
      %v1432 = vpack.c.b16 %v1424, %v1424
      %v1433 = vpack.c.b16 %v1425, %v1425
      %v1434 = vpack.c.b16 %v1426, %v1426
      %v1435 = vpack.c.b16 %v1427, %v1427
      %v1436 = vunpack.c.l.b16 %v1428
      %v1437 = vunpack.c.l.b16 %v1429
      %v1438 = vunpack.c.l.b16 %v1430
      %v1439 = vunpack.c.l.b16 %v1431
      %v1440 = vunpack.c.l.b16 %v1432
      %v1441 = vunpack.c.l.b16 %v1433
      %v1442 = vunpack.c.l.b16 %v1434
      %v1443 = vunpack.c.l.b16 %v1435
      %v1444 = vrot.slane %v1437, 7
      %v1445 = vsel %vm1372, %v1444, %v1436
      %v1446 = vrot.slane %v1438, 6
      %v1447 = vsel %vm1375, %v1446, %v1445
      %v1448 = vrot.slane %v1439, 5
      %v1449 = vsel %vm1378, %v1448, %v1447
      %v1450 = vrot.slane %v1440, 4
      %v1451 = vsel %vm1381, %v1450, %v1449
      %v1452 = vrot.slane %v1441, 3
      %v1453 = vsel %vm1384, %v1452, %v1451
      %v1454 = vrot.slane %v1442, 2
      %v1455 = vsel %vm1387, %v1454, %v1453
      %v1456 = vrot.slane %v1443, 1
      %v1457 = vsel %vm1390, %v1456, %v1455
      %v1458 = vpack.c.b16 %v1457, %v1457
      %1459 = vrot.lane.b32.xlu0 %v1458, 16
      %v1460 = vpop.permute.xlu0 %1459
      %vm1462 = vcmask 257152
      %1463 = vst.msk [vmem:[%s222] sm:$0xf] %vm1462, %v1460
      %v1464 = vld [vmem:[#allocation3 + $0x2] sm:$0x1]
      %v1465 = vld [vmem:[#allocation3 + $0xa] sm:$0x1]
      %v1466 = vld [vmem:[#allocation3 + $0x12] sm:$0x1]
      %v1467 = vld [vmem:[#allocation3 + $0x1a] sm:$0x1]
      %v1468 = vld [vmem:[#allocation3 + $0x22] sm:$0x1]
      %v1469 = vld [vmem:[#allocation3 + $0x2a] sm:$0x1]
      %v1470 = vld [vmem:[#allocation3 + $0x32] sm:$0x1]
      %v1471 = vld [vmem:[#allocation3 + $0x3a] sm:$0x1]
      %v1472 = vpack.c.bf16 %v1464, %v1464
      %v1473 = vpack.c.bf16 %v1465, %v1465
      %v1474 = vpack.c.bf16 %v1466, %v1466
      %v1475 = vpack.c.bf16 %v1467, %v1467
      %v1476 = vpack.c.bf16 %v1468, %v1468
      %v1477 = vpack.c.bf16 %v1469, %v1469
      %v1478 = vpack.c.bf16 %v1470, %v1470
      %v1479 = vpack.c.bf16 %v1471, %v1471
      %v1488 = vunpack.c.l.b16 %v1472
      %v1489 = vunpack.c.l.b16 %v1473
      %v1490 = vunpack.c.l.b16 %v1474
      %v1491 = vunpack.c.l.b16 %v1475
      %v1492 = vunpack.c.l.b16 %v1476
      %v1493 = vunpack.c.l.b16 %v1477
      %v1494 = vunpack.c.l.b16 %v1478
      %v1495 = vunpack.c.l.b16 %v1479
      %v1496 = vpack.c.b16 %v1488, %v1488
      %v1497 = vpack.c.b16 %v1489, %v1489
      %v1498 = vpack.c.b16 %v1490, %v1490
      %v1499 = vpack.c.b16 %v1491, %v1491
      %v1500 = vpack.c.b16 %v1492, %v1492
      %v1501 = vpack.c.b16 %v1493, %v1493
      %v1502 = vpack.c.b16 %v1494, %v1494
      %v1503 = vpack.c.b16 %v1495, %v1495
      %v1504 = vunpack.c.l.b16 %v1496
      %v1505 = vunpack.c.l.b16 %v1497
      %v1506 = vunpack.c.l.b16 %v1498
      %v1507 = vunpack.c.l.b16 %v1499
      %v1508 = vunpack.c.l.b16 %v1500
      %v1509 = vunpack.c.l.b16 %v1501
      %v1510 = vunpack.c.l.b16 %v1502
      %v1511 = vunpack.c.l.b16 %v1503
      %v1512 = vrot.slane %v1505, 7
      %v1513 = vsel %vm1372, %v1512, %v1504
      %v1514 = vrot.slane %v1506, 6
      %v1515 = vsel %vm1375, %v1514, %v1513
      %v1516 = vrot.slane %v1507, 5
      %v1517 = vsel %vm1378, %v1516, %v1515
      %v1518 = vrot.slane %v1508, 4
      %v1519 = vsel %vm1381, %v1518, %v1517
      %v1520 = vrot.slane %v1509, 3
      %v1521 = vsel %vm1384, %v1520, %v1519
      %v1522 = vrot.slane %v1510, 2
      %v1523 = vsel %vm1387, %v1522, %v1521
      %v1524 = vrot.slane %v1511, 1
      %v1525 = vsel %vm1390, %v1524, %v1523
      %v1526 = vpack.c.b16 %v1525, %v1525
      %1527 = vrot.lane.b32.xlu0 %v1526, 32
      %v1528 = vpop.permute.xlu0 %1527
      %vm1530 = vcmask 388352
      %1531 = vst.msk [vmem:[%s222] sm:$0xf] %vm1530, %v1528
      %v1532 = vld [vmem:[#allocation3 + $0x3] sm:$0x1]
      %v1533 = vld [vmem:[#allocation3 + $0xb] sm:$0x1]
      %v1534 = vld [vmem:[#allocation3 + $0x13] sm:$0x1]
      %v1535 = vld [vmem:[#allocation3 + $0x1b] sm:$0x1]
      %v1536 = vld [vmem:[#allocation3 + $0x23] sm:$0x1]
      %v1537 = vld [vmem:[#allocation3 + $0x2b] sm:$0x1]
      %v1538 = vld [vmem:[#allocation3 + $0x33] sm:$0x1]
      %v1539 = vld [vmem:[#allocation3 + $0x3b] sm:$0x1]
      %v1540 = vpack.c.bf16 %v1532, %v1532
      %v1541 = vpack.c.bf16 %v1533, %v1533
      %v1542 = vpack.c.bf16 %v1534, %v1534
      %v1543 = vpack.c.bf16 %v1535, %v1535
      %v1544 = vpack.c.bf16 %v1536, %v1536
      %v1545 = vpack.c.bf16 %v1537, %v1537
      %v1546 = vpack.c.bf16 %v1538, %v1538
      %v1547 = vpack.c.bf16 %v1539, %v1539
      %v1556 = vunpack.c.l.b16 %v1540
      %v1557 = vunpack.c.l.b16 %v1541
      %v1558 = vunpack.c.l.b16 %v1542
      %v1559 = vunpack.c.l.b16 %v1543
      %v1560 = vunpack.c.l.b16 %v1544
      %v1561 = vunpack.c.l.b16 %v1545
      %v1562 = vunpack.c.l.b16 %v1546
      %v1563 = vunpack.c.l.b16 %v1547
      %v1564 = vpack.c.b16 %v1556, %v1556
      %v1565 = vpack.c.b16 %v1557, %v1557
      %v1566 = vpack.c.b16 %v1558, %v1558
      %v1567 = vpack.c.b16 %v1559, %v1559
      %v1568 = vpack.c.b16 %v1560, %v1560
      %v1569 = vpack.c.b16 %v1561, %v1561
      %v1570 = vpack.c.b16 %v1562, %v1562
      %v1571 = vpack.c.b16 %v1563, %v1563
      %v1572 = vunpack.c.l.b16 %v1564
      %v1573 = vunpack.c.l.b16 %v1565
      %v1574 = vunpack.c.l.b16 %v1566
      %v1575 = vunpack.c.l.b16 %v1567
      %v1576 = vunpack.c.l.b16 %v1568
      %v1577 = vunpack.c.l.b16 %v1569
      %v1578 = vunpack.c.l.b16 %v1570
      %v1579 = vunpack.c.l.b16 %v1571
      %v1580 = vrot.slane %v1573, 7
      %v1581 = vsel %vm1372, %v1580, %v1572
      %v1582 = vrot.slane %v1574, 6
      %v1583 = vsel %vm1375, %v1582, %v1581
      %v1584 = vrot.slane %v1575, 5
      %v1585 = vsel %vm1378, %v1584, %v1583
      %v1586 = vrot.slane %v1576, 4
      %v1587 = vsel %vm1381, %v1586, %v1585
      %v1588 = vrot.slane %v1577, 3
      %v1589 = vsel %vm1384, %v1588, %v1587
      %v1590 = vrot.slane %v1578, 2
      %v1591 = vsel %vm1387, %v1590, %v1589
      %v1592 = vrot.slane %v1579, 1
      %v1593 = vsel %vm1390, %v1592, %v1591
      %v1594 = vpack.c.b16 %v1593, %v1593
      %1595 = vrot.lane.b32.xlu0 %v1594, 48
      %v1596 = vpop.permute.xlu0 %1595
      %vm1598 = vcmask 519552
      %1599 = vst.msk [vmem:[%s222] sm:$0xf] %vm1598, %v1596
      %v1600 = vld [vmem:[#allocation3 + $0x4] sm:$0x1]
      %v1601 = vld [vmem:[#allocation3 + $0xc] sm:$0x1]
      %v1602 = vld [vmem:[#allocation3 + $0x14] sm:$0x1]
      %v1603 = vld [vmem:[#allocation3 + $0x1c] sm:$0x1]
      %v1604 = vld [vmem:[#allocation3 + $0x24] sm:$0x1]
      %v1605 = vld [vmem:[#allocation3 + $0x2c] sm:$0x1]
      %v1606 = vld [vmem:[#allocation3 + $0x34] sm:$0x1]
      %v1607 = vld [vmem:[#allocation3 + $0x3c] sm:$0x1]
      %v1608 = vpack.c.bf16 %v1600, %v1600
      %v1609 = vpack.c.bf16 %v1601, %v1601
      %v1610 = vpack.c.bf16 %v1602, %v1602
      %v1611 = vpack.c.bf16 %v1603, %v1603
      %v1612 = vpack.c.bf16 %v1604, %v1604
      %v1613 = vpack.c.bf16 %v1605, %v1605
      %v1614 = vpack.c.bf16 %v1606, %v1606
      %v1615 = vpack.c.bf16 %v1607, %v1607
      %v1624 = vunpack.c.l.b16 %v1608
      %v1625 = vunpack.c.l.b16 %v1609
      %v1626 = vunpack.c.l.b16 %v1610
      %v1627 = vunpack.c.l.b16 %v1611
      %v1628 = vunpack.c.l.b16 %v1612
      %v1629 = vunpack.c.l.b16 %v1613
      %v1630 = vunpack.c.l.b16 %v1614
      %v1631 = vunpack.c.l.b16 %v1615
      %v1632 = vpack.c.b16 %v1624, %v1624
      %v1633 = vpack.c.b16 %v1625, %v1625
      %v1634 = vpack.c.b16 %v1626, %v1626
      %v1635 = vpack.c.b16 %v1627, %v1627
      %v1636 = vpack.c.b16 %v1628, %v1628
      %v1637 = vpack.c.b16 %v1629, %v1629
      %v1638 = vpack.c.b16 %v1630, %v1630
      %v1639 = vpack.c.b16 %v1631, %v1631
      %v1640 = vunpack.c.l.b16 %v1632
      %v1641 = vunpack.c.l.b16 %v1633
      %v1642 = vunpack.c.l.b16 %v1634
      %v1643 = vunpack.c.l.b16 %v1635
      %v1644 = vunpack.c.l.b16 %v1636
      %v1645 = vunpack.c.l.b16 %v1637
      %v1646 = vunpack.c.l.b16 %v1638
      %v1647 = vunpack.c.l.b16 %v1639
      %v1648 = vrot.slane %v1641, 7
      %v1649 = vsel %vm1372, %v1648, %v1640
      %v1650 = vrot.slane %v1642, 6
      %v1651 = vsel %vm1375, %v1650, %v1649
      %v1652 = vrot.slane %v1643, 5
      %v1653 = vsel %vm1378, %v1652, %v1651
      %v1654 = vrot.slane %v1644, 4
      %v1655 = vsel %vm1381, %v1654, %v1653
      %v1656 = vrot.slane %v1645, 3
      %v1657 = vsel %vm1384, %v1656, %v1655
      %v1658 = vrot.slane %v1646, 2
      %v1659 = vsel %vm1387, %v1658, %v1657
      %v1660 = vrot.slane %v1647, 1
      %v1661 = vsel %vm1390, %v1660, %v1659
      %v1662 = vpack.c.b16 %v1661, %v1661
      %1663 = vrot.lane.b32.xlu0 %v1662, 64
      %v1664 = vpop.permute.xlu0 %1663
      %vm1666 = vcmask 650752
      %1667 = vst.msk [vmem:[%s222] sm:$0xf] %vm1666, %v1664
      %v1668 = vld [vmem:[#allocation3 + $0x5] sm:$0x1]
      %v1669 = vld [vmem:[#allocation3 + $0xd] sm:$0x1]
      %v1670 = vld [vmem:[#allocation3 + $0x15] sm:$0x1]
      %v1671 = vld [vmem:[#allocation3 + $0x1d] sm:$0x1]
      %v1672 = vld [vmem:[#allocation3 + $0x25] sm:$0x1]
      %v1673 = vld [vmem:[#allocation3 + $0x2d] sm:$0x1]
      %v1674 = vld [vmem:[#allocation3 + $0x35] sm:$0x1]
      %v1675 = vld [vmem:[#allocation3 + $0x3d] sm:$0x1]
      %v1676 = vpack.c.bf16 %v1668, %v1668
      %v1677 = vpack.c.bf16 %v1669, %v1669
      %v1678 = vpack.c.bf16 %v1670, %v1670
      %v1679 = vpack.c.bf16 %v1671, %v1671
      %v1680 = vpack.c.bf16 %v1672, %v1672
      %v1681 = vpack.c.bf16 %v1673, %v1673
      %v1682 = vpack.c.bf16 %v1674, %v1674
      %v1683 = vpack.c.bf16 %v1675, %v1675
      %v1692 = vunpack.c.l.b16 %v1676
      %v1693 = vunpack.c.l.b16 %v1677
      %v1694 = vunpack.c.l.b16 %v1678
      %v1695 = vunpack.c.l.b16 %v1679
      %v1696 = vunpack.c.l.b16 %v1680
      %v1697 = vunpack.c.l.b16 %v1681
      %v1698 = vunpack.c.l.b16 %v1682
      %v1699 = vunpack.c.l.b16 %v1683
      %v1700 = vpack.c.b16 %v1692, %v1692
      %v1701 = vpack.c.b16 %v1693, %v1693
      %v1702 = vpack.c.b16 %v1694, %v1694
      %v1703 = vpack.c.b16 %v1695, %v1695
      %v1704 = vpack.c.b16 %v1696, %v1696
      %v1705 = vpack.c.b16 %v1697, %v1697
      %v1706 = vpack.c.b16 %v1698, %v1698
      %v1707 = vpack.c.b16 %v1699, %v1699
      %v1708 = vunpack.c.l.b16 %v1700
      %v1709 = vunpack.c.l.b16 %v1701
      %v1710 = vunpack.c.l.b16 %v1702
      %v1711 = vunpack.c.l.b16 %v1703
      %v1712 = vunpack.c.l.b16 %v1704
      %v1713 = vunpack.c.l.b16 %v1705
      %v1714 = vunpack.c.l.b16 %v1706
      %v1715 = vunpack.c.l.b16 %v1707
      %v1716 = vrot.slane %v1709, 7
      %v1717 = vsel %vm1372, %v1716, %v1708
      %v1718 = vrot.slane %v1710, 6
      %v1719 = vsel %vm1375, %v1718, %v1717
      %v1720 = vrot.slane %v1711, 5
      %v1721 = vsel %vm1378, %v1720, %v1719
      %v1722 = vrot.slane %v1712, 4
      %v1723 = vsel %vm1381, %v1722, %v1721
      %v1724 = vrot.slane %v1713, 3
      %v1725 = vsel %vm1384, %v1724, %v1723
      %v1726 = vrot.slane %v1714, 2
      %v1727 = vsel %vm1387, %v1726, %v1725
      %v1728 = vrot.slane %v1715, 1
      %v1729 = vsel %vm1390, %v1728, %v1727
      %v1730 = vpack.c.b16 %v1729, %v1729
      %1731 = vrot.lane.b32.xlu0 %v1730, 80
      %v1732 = vpop.permute.xlu0 %1731
      %vm1734 = vcmask 781952
      %1735 = vst.msk [vmem:[%s222] sm:$0xf] %vm1734, %v1732
      %v1736 = vld [vmem:[#allocation3 + $0x6] sm:$0x1]
      %v1737 = vld [vmem:[#allocation3 + $0xe] sm:$0x1]
      %v1738 = vld [vmem:[#allocation3 + $0x16] sm:$0x1]
      %v1739 = vld [vmem:[#allocation3 + $0x1e] sm:$0x1]
      %v1740 = vld [vmem:[#allocation3 + $0x26] sm:$0x1]
      %v1741 = vld [vmem:[#allocation3 + $0x2e] sm:$0x1]
      %v1742 = vld [vmem:[#allocation3 + $0x36] sm:$0x1]
      %v1743 = vld [vmem:[#allocation3 + $0x3e] sm:$0x1]
      %v1744 = vpack.c.bf16 %v1736, %v1736
      %v1745 = vpack.c.bf16 %v1737, %v1737
      %v1746 = vpack.c.bf16 %v1738, %v1738
      %v1747 = vpack.c.bf16 %v1739, %v1739
      %v1748 = vpack.c.bf16 %v1740, %v1740
      %v1749 = vpack.c.bf16 %v1741, %v1741
      %v1750 = vpack.c.bf16 %v1742, %v1742
      %v1751 = vpack.c.bf16 %v1743, %v1743
      %v1760 = vunpack.c.l.b16 %v1744
      %v1761 = vunpack.c.l.b16 %v1745
      %v1762 = vunpack.c.l.b16 %v1746
      %v1763 = vunpack.c.l.b16 %v1747
      %v1764 = vunpack.c.l.b16 %v1748
      %v1765 = vunpack.c.l.b16 %v1749
      %v1766 = vunpack.c.l.b16 %v1750
      %v1767 = vunpack.c.l.b16 %v1751
      %v1768 = vpack.c.b16 %v1760, %v1760
      %v1769 = vpack.c.b16 %v1761, %v1761
      %v1770 = vpack.c.b16 %v1762, %v1762
      %v1771 = vpack.c.b16 %v1763, %v1763
      %v1772 = vpack.c.b16 %v1764, %v1764
      %v1773 = vpack.c.b16 %v1765, %v1765
      %v1774 = vpack.c.b16 %v1766, %v1766
      %v1775 = vpack.c.b16 %v1767, %v1767
      %v1776 = vunpack.c.l.b16 %v1768
      %v1777 = vunpack.c.l.b16 %v1769
      %v1778 = vunpack.c.l.b16 %v1770
      %v1779 = vunpack.c.l.b16 %v1771
      %v1780 = vunpack.c.l.b16 %v1772
      %v1781 = vunpack.c.l.b16 %v1773
      %v1782 = vunpack.c.l.b16 %v1774
      %v1783 = vunpack.c.l.b16 %v1775
      %v1784 = vrot.slane %v1777, 7
      %v1785 = vsel %vm1372, %v1784, %v1776
      %v1786 = vrot.slane %v1778, 6
      %v1787 = vsel %vm1375, %v1786, %v1785
      %v1788 = vrot.slane %v1779, 5
      %v1789 = vsel %vm1378, %v1788, %v1787
      %v1790 = vrot.slane %v1780, 4
      %v1791 = vsel %vm1381, %v1790, %v1789
      %v1792 = vrot.slane %v1781, 3
      %v1793 = vsel %vm1384, %v1792, %v1791
      %v1794 = vrot.slane %v1782, 2
      %v1795 = vsel %vm1387, %v1794, %v1793
      %v1796 = vrot.slane %v1783, 1
      %v1797 = vsel %vm1390, %v1796, %v1795
      %v1798 = vpack.c.b16 %v1797, %v1797
      %1799 = vrot.lane.b32.xlu0 %v1798, 96
      %v1800 = vpop.permute.xlu0 %1799
      %vm1802 = vcmask 913152
      %1803 = vst.msk [vmem:[%s222] sm:$0xf] %vm1802, %v1800
      %v1804 = vld [vmem:[#allocation3 + $0x7] sm:$0x1]
      %v1805 = vld [vmem:[#allocation3 + $0xf] sm:$0x1]
      %v1806 = vld [vmem:[#allocation3 + $0x17] sm:$0x1]
      %v1807 = vld [vmem:[#allocation3 + $0x1f] sm:$0x1]
      %v1808 = vld [vmem:[#allocation3 + $0x27] sm:$0x1]
      %v1809 = vld [vmem:[#allocation3 + $0x2f] sm:$0x1]
      %v1810 = vld [vmem:[#allocation3 + $0x37] sm:$0x1]
      %v1811 = vld [vmem:[#allocation3 + $0x3f] sm:$0x1]
      %v1812 = vpack.c.bf16 %v1804, %v1804
      %v1813 = vpack.c.bf16 %v1805, %v1805
      %v1814 = vpack.c.bf16 %v1806, %v1806
      %v1815 = vpack.c.bf16 %v1807, %v1807
      %v1816 = vpack.c.bf16 %v1808, %v1808
      %v1817 = vpack.c.bf16 %v1809, %v1809
      %v1818 = vpack.c.bf16 %v1810, %v1810
      %v1819 = vpack.c.bf16 %v1811, %v1811
      %v1828 = vunpack.c.l.b16 %v1812
      %v1829 = vunpack.c.l.b16 %v1813
      %v1830 = vunpack.c.l.b16 %v1814
      %v1831 = vunpack.c.l.b16 %v1815
      %v1832 = vunpack.c.l.b16 %v1816
      %v1833 = vunpack.c.l.b16 %v1817
      %v1834 = vunpack.c.l.b16 %v1818
      %v1835 = vunpack.c.l.b16 %v1819
      %v1836 = vpack.c.b16 %v1828, %v1828
      %v1837 = vpack.c.b16 %v1829, %v1829
      %v1838 = vpack.c.b16 %v1830, %v1830
      %v1839 = vpack.c.b16 %v1831, %v1831
      %v1840 = vpack.c.b16 %v1832, %v1832
      %v1841 = vpack.c.b16 %v1833, %v1833
      %v1842 = vpack.c.b16 %v1834, %v1834
      %v1843 = vpack.c.b16 %v1835, %v1835
      %v1844 = vunpack.c.l.b16 %v1836
      %v1845 = vunpack.c.l.b16 %v1837
      %v1846 = vunpack.c.l.b16 %v1838
      %v1847 = vunpack.c.l.b16 %v1839
      %v1848 = vunpack.c.l.b16 %v1840
      %v1849 = vunpack.c.l.b16 %v1841
      %v1850 = vunpack.c.l.b16 %v1842
      %v1851 = vunpack.c.l.b16 %v1843
      %v1852 = vrot.slane %v1845, 7
      %v1853 = vsel %vm1372, %v1852, %v1844
      %v1854 = vrot.slane %v1846, 6
      %v1855 = vsel %vm1375, %v1854, %v1853
      %v1856 = vrot.slane %v1847, 5
      %v1857 = vsel %vm1378, %v1856, %v1855
      %v1858 = vrot.slane %v1848, 4
      %v1859 = vsel %vm1381, %v1858, %v1857
      %v1860 = vrot.slane %v1849, 3
      %v1861 = vsel %vm1384, %v1860, %v1859
      %v1862 = vrot.slane %v1850, 2
      %v1863 = vsel %vm1387, %v1862, %v1861
      %v1864 = vrot.slane %v1851, 1
      %v1865 = vsel %vm1390, %v1864, %v1863
      %v1866 = vpack.c.b16 %v1865, %v1865
      %1867 = vrot.lane.b32.xlu0 %v1866, 112
      %v1868 = vpop.permute.xlu0 %1867
      %vm1870 = vcmask 1044352
      %1871 = vst.msk [vmem:[%s222] sm:$0xf] %vm1870, %v1868
      %p1872 = scmp.lt.s32.totalorder %s16, 1
      %s1873 = scalar_select %p1872, %s16, 1
      %s1874 = smul.addr %s1873, 4
      %s1875 = scalar_lea.vmem %s5, %s1874
      // Predicated region
      $region41: #{_lambda_.7} parent=39 // pred_check
        %p1876 = pneg %p144
      $region42: #{_lambda_.7} parent=39 // pred_check_branch
        %1878 = sbr.rel (%p1876) target = $region44
      $region43: #{_lambda_.7} parent=39 // pred_region
        _
      $region44: #{_lambda_.7} parent=39 // pred_fallthru
        _
    $region40: #{_lambda_.7} parent=5 // pred_fallthru
      _
    %p1879 = scmp.le.s32.totalorder 2, %s11
    // Predicated region
    $region45: #{_lambda_.7} parent=5 // pred_check
      %p1880 = pneg %p1879
    $region46: #{_lambda_.7} parent=5 // pred_check_branch
      %1882 = sbr.rel (%p1880) target = $region48
    $region47: #{_lambda_.7} parent=5 // pred_region
      %s1883 = ssub.s32 %s11, 2
      // Predicated region
      $region49: #{_lambda_.7} parent=47 // pred_check
        %p1884 = pneg %p150
      $region50: #{_lambda_.7} parent=47 // pred_check_branch
        %1886 = sbr.rel (%p1884) target = $region52
      $region51: #{_lambda_.7} parent=47 // pred_region
        %p1887 = scmp.lt.s32.totalorder %s17, 1
        %s1888 = scalar_select %p1887, %s17, 1
        %s1889 = smul.addr %s1888, 4
        %s1890 = scalar_lea.vmem %s5, %s1889
      $region52: #{_lambda_.7} parent=47 // pred_fallthru
        _
    $region48: #{_lambda_.7} parent=5 // pred_fallthru
      _
  $region6: #{_lambda_.7} parent=0 // loop_footer
    %s15 = sadd.s32 1, %s11
  $region7: #{_lambda_.7} parent=0 // loop_footer_branch
    %10 = sbr.rel target = $region3
  $region8: #{_lambda_.7} parent=0 // loop_exit
    _

// kernel: _lambda_.8
$region0: #{_lambda_.8}
  #allocation0 [shape = 'u32[]', space=smem, size = 0x4, offset = 0x4, fixed_abs, tag = 'smem constant byte address 0x4 - core index']
  #allocation1 [shape = 'u32[144,128]{1,0:T(1,128)}', space=vmem, size = 0x12000, scoped, tag = 'internal scratch']
  #allocation2 [shape = 'f32[10,10,32]{2,1,0:T(8,128)}', space=vmem, size = 0x14000, scoped, tag = 'scratch operand']
  #allocation3 [shape = 'f32[4,4,32]{2,1,0:T(4,128)}', space=vmem, size = 0x2000, scoped, tag = 'scratch operand']
  %s0 = inlined_call_operand.vmem [shape: bf16[2,64,16], index: 0, kind: input, shape index: {}]
  %s1 = inlined_call_operand.vmem [shape: bf16[16,64], index: 1, kind: input, shape index: {}]
  %s2 = inlined_call_operand.vmem [shape: f32[1,64], index: 2, kind: input, shape index: {}]
  %s3 = inlined_call_operand.vmem [shape: f32[9,32], index: 3, kind: input, shape index: {}]
  %s4 = inlined_call_operand.vmem [shape: f32[1,32], index: 4, kind: input, shape index: {}]
  %s5 = inlined_call_operand.vmem [shape: bf16[2,4,128], index: 5, kind: output, shape index: {}]
  %s6 = sld [smem:[#allocation0]]
  $region53: #{_lambda_.8} parent=0
    _
  %s8 = ssub.s32 1, %s6
  %s9 = scalar_select 0, %s8, %s6
  loop: start=0, step=1, limit=4
  $region2: #{_lambda_.8} parent=0 // loop_pre_header
    _
  $region3: #{_lambda_.8} parent=0 // loop_header
    %s11 = sphi 0, %s15
    %p12 = scmp.ge.s32.totalorder %s11, 4
    %s21 = sphi 0, %s23
    %s24 = sphi 0, %s21
    %s25 = sphi 0, %s24
    %s41 = sphi 0, %s25
    %s45 = sphi 0, %s45
    %s47 = sphi 0, %s45
    %s48 = sphi 0, %s47
    %s62 = sphi 0, %s48
    %s66 = sphi 0, %s66
    %s68 = sphi 0, %s66
    %s69 = sphi 0, %s68
    %s83 = sphi 0, %s69
    %s87 = sphi 0, %s87
    %s89 = sphi 0, %s87
    %s90 = sphi 0, %s89
    %s104 = sphi 0, %s90
    %s108 = sphi 0, %s108
    %s110 = sphi 0, %s108
    %s111 = sphi 0, %s110
    %s125 = sphi 0, %s111
    %s131 = sphi 0, %s133
    %s134 = sphi 0, %s131
    %s135 = sphi 0, %s134
    %s151 = sphi 0, %s135
  $region4: #{_lambda_.8} parent=0 // loop_header_branch
    %14 = sbr.rel (%p12) target = $region8
  $region5: #{_lambda_.8} parent=0 // loop_body
    %s16 = ssub.s32 %s11, 1
    %s17 = ssub.s32 %s11, 2
    %s18 = sadd.s32 %s11, 1
    %s19 = ssub.s32 %s11, %s18
    %p20 = scmp.eq.s32.totalorder %s19, 0
    %s22 = sadd.s32 %s21, 1
    %s23 = scalar_select %p20, %s21, %s22
    %p26 = pneg %p20
    %p27 = scmp.eq.s32.totalorder %s11, 1
    %p28 = por %p26, %p27
    %p29 = scmp.ne.s32.totalorder %s21, %s24
    %p30 = scmp.eq.s32.totalorder %s11, 0
    %p31 = por %p29, %p30
    %p32 = scmp.ne.s32.totalorder %s21, %s24
    %p33 = scmp.eq.s32.totalorder %s16, 1
    %p34 = por %p32, %p33
    %p35 = scmp.ne.s32.totalorder %s24, %s25
    %p36 = scmp.eq.s32.totalorder %s16, 0
    %p37 = por %p35, %p36
    %p38 = scmp.ne.s32.totalorder %s24, %s25
    %p39 = scmp.eq.s32.totalorder %s17, 1
    %p40 = por %p38, %p39
    %p42 = scmp.ne.s32.totalorder %s25, %s41
    %p43 = scmp.eq.s32.totalorder %s17, 0
    %p44 = por %p42, %p43
    %s46 = sadd.s32 %s45, 1
    %p49 = scmp.eq.s32.totalorder %s11, 1
    %p50 = scmp.ne.s32.totalorder %s45, %s47
    %p51 = scmp.eq.s32.totalorder %s11, 0
    %p52 = por %p50, %p51
    %p53 = scmp.ne.s32.totalorder %s45, %s47
    %p54 = scmp.eq.s32.totalorder %s16, 1
    %p55 = por %p53, %p54
    %p56 = scmp.ne.s32.totalorder %s47, %s48
    %p57 = scmp.eq.s32.totalorder %s16, 0
    %p58 = por %p56, %p57
    %p59 = scmp.ne.s32.totalorder %s47, %s48
    %p60 = scmp.eq.s32.totalorder %s17, 1
    %p61 = por %p59, %p60
    %p63 = scmp.ne.s32.totalorder %s48, %s62
    %p64 = scmp.eq.s32.totalorder %s17, 0
    %p65 = por %p63, %p64
    %s67 = sadd.s32 %s66, 1
    %p70 = scmp.eq.s32.totalorder %s11, 1
    %p71 = scmp.ne.s32.totalorder %s66, %s68
    %p72 = scmp.eq.s32.totalorder %s11, 0
    %p73 = por %p71, %p72
    %p74 = scmp.ne.s32.totalorder %s66, %s68
    %p75 = scmp.eq.s32.totalorder %s16, 1
    %p76 = por %p74, %p75
    %p77 = scmp.ne.s32.totalorder %s68, %s69
    %p78 = scmp.eq.s32.totalorder %s16, 0
    %p79 = por %p77, %p78
    %p80 = scmp.ne.s32.totalorder %s68, %s69
    %p81 = scmp.eq.s32.totalorder %s17, 1
    %p82 = por %p80, %p81
    %p84 = scmp.ne.s32.totalorder %s69, %s83
    %p85 = scmp.eq.s32.totalorder %s17, 0
    %p86 = por %p84, %p85
    %s88 = sadd.s32 %s87, 1
    %p91 = scmp.eq.s32.totalorder %s11, 1
    %p92 = scmp.ne.s32.totalorder %s87, %s89
    %p93 = scmp.eq.s32.totalorder %s11, 0
    %p94 = por %p92, %p93
    %p95 = scmp.ne.s32.totalorder %s87, %s89
    %p96 = scmp.eq.s32.totalorder %s16, 1
    %p97 = por %p95, %p96
    %p98 = scmp.ne.s32.totalorder %s89, %s90
    %p99 = scmp.eq.s32.totalorder %s16, 0
    %p100 = por %p98, %p99
    %p101 = scmp.ne.s32.totalorder %s89, %s90
    %p102 = scmp.eq.s32.totalorder %s17, 1
    %p103 = por %p101, %p102
    %p105 = scmp.ne.s32.totalorder %s90, %s104
    %p106 = scmp.eq.s32.totalorder %s17, 0
    %p107 = por %p105, %p106
    %s109 = sadd.s32 %s108, 1
    %p112 = scmp.eq.s32.totalorder %s11, 1
    %p113 = scmp.ne.s32.totalorder %s108, %s110
    %p114 = scmp.eq.s32.totalorder %s11, 0
    %p115 = por %p113, %p114
    %p116 = scmp.ne.s32.totalorder %s108, %s110
    %p117 = scmp.eq.s32.totalorder %s16, 1
    %p118 = por %p116, %p117
    %p119 = scmp.ne.s32.totalorder %s110, %s111
    %p120 = scmp.eq.s32.totalorder %s16, 0
    %p121 = por %p119, %p120
    %p122 = scmp.ne.s32.totalorder %s110, %s111
    %p123 = scmp.eq.s32.totalorder %s17, 1
    %p124 = por %p122, %p123
    %p126 = scmp.ne.s32.totalorder %s111, %s125
    %p127 = scmp.eq.s32.totalorder %s17, 0
    %p128 = por %p126, %p127
    %s129 = ssub.s32 %s11, %s18
    %p130 = scmp.eq.s32.totalorder %s129, 0
    %s132 = sadd.s32 %s131, 1
    %s133 = scalar_select %p130, %s131, %s132
    %p136 = pneg %p130
    %p137 = scmp.eq.s32.totalorder %s11, 1
    %p138 = por %p136, %p137
    %p139 = scmp.ne.s32.totalorder %s131, %s134
    %p140 = scmp.eq.s32.totalorder %s11, 0
    %p141 = por %p139, %p140
    %p142 = scmp.ne.s32.totalorder %s131, %s134
    %p143 = scmp.eq.s32.totalorder %s16, 1
    %p144 = por %p142, %p143
    %p145 = scmp.ne.s32.totalorder %s134, %s135
    %p146 = scmp.eq.s32.totalorder %s16, 0
    %p147 = por %p145, %p146
    %p148 = scmp.ne.s32.totalorder %s134, %s135
    %p149 = scmp.eq.s32.totalorder %s17, 1
    %p150 = por %p148, %p149
    %p152 = scmp.ne.s32.totalorder %s135, %s151
    %p153 = scmp.eq.s32.totalorder %s17, 0
    %p154 = por %p152, %p153
    %p155 = scmp.le.s32.totalorder 1, %s11
    %p156 = scmp.lt.s32.totalorder %s11, 3
    %p157 = pnand %p155, %p156
    %p158 = pneg %p157
    // Predicated region
    $region9: #{_lambda_.8} parent=5 // pred_check
      _
    $region10: #{_lambda_.8} parent=5 // pred_check_branch
      %160 = sbr.rel (%p157) target = $region12
    $region11: #{_lambda_.8} parent=5 // pred_region
      %s161 = ssub.s32 %s11, 1
      // Predicated region
      $region13: #{_lambda_.8} parent=11 // pred_check
        %p162 = pneg %p58
      $region14: #{_lambda_.8} parent=11 // pred_check_branch
        %164 = sbr.rel (%p162) target = $region16
      $region15: #{_lambda_.8} parent=11 // pred_region
        _
      $region16: #{_lambda_.8} parent=11 // pred_fallthru
        _
      // Predicated region
      $region17: #{_lambda_.8} parent=11 // pred_check
        %p165 = pneg %p79
      $region18: #{_lambda_.8} parent=11 // pred_check_branch
        %167 = sbr.rel (%p165) target = $region20
      $region19: #{_lambda_.8} parent=11 // pred_region
        _
      $region20: #{_lambda_.8} parent=11 // pred_fallthru
        _
      // Predicated region
      $region21: #{_lambda_.8} parent=11 // pred_check
        %p168 = pneg %p100
      $region22: #{_lambda_.8} parent=11 // pred_check_branch
        %170 = sbr.rel (%p168) target = $region24
      $region23: #{_lambda_.8} parent=11 // pred_region
        _
      $region24: #{_lambda_.8} parent=11 // pred_fallthru
        _
      // Predicated region
      $region25: #{_lambda_.8} parent=11 // pred_check
        %p171 = pneg %p121
      $region26: #{_lambda_.8} parent=11 // pred_check_branch
        %173 = sbr.rel (%p171) target = $region28
      $region27: #{_lambda_.8} parent=11 // pred_region
        _
      $region28: #{_lambda_.8} parent=11 // pred_fallthru
        _
    $region12: #{_lambda_.8} parent=5 // pred_fallthru
      _
    %p174 = scmp.lt.s32.totalorder %s11, 2
    // Predicated region
    $region29: #{_lambda_.8} parent=5 // pred_check
      %p175 = pneg %p174
    $region30: #{_lambda_.8} parent=5 // pred_check_branch
      %177 = sbr.rel (%p175) target = $region32
    $region31: #{_lambda_.8} parent=5 // pred_region
      // Predicated region
      $region33: #{_lambda_.8} parent=31 // pred_check
        %p178 = pneg %p31
      $region34: #{_lambda_.8} parent=31 // pred_check_branch
        %180 = sbr.rel (%p178) target = $region36
      $region35: #{_lambda_.8} parent=31 // pred_region
        %p181 = scmp.lt.s32.totalorder %s11, 1
        %s182 = scalar_select %p181, %s11, 1
        %s183 = smul.addr %s182, 8
        %s184 = smul.addr %s183, 4
        %s185 = scalar_lea.vmem %s0, %s184
      $region36: #{_lambda_.8} parent=31 // pred_fallthru
        _
    $region32: #{_lambda_.8} parent=5 // pred_fallthru
      _
    %p186 = scmp.le.s32.totalorder 1, %s11
    %p187 = scmp.lt.s32.totalorder %s11, 3
    %p188 = pnand %p186, %p187
    %p189 = pneg %p188
    // Predicated region
    $region37: #{_lambda_.8} parent=5 // pred_check
      _
    $region38: #{_lambda_.8} parent=5 // pred_check_branch
      %191 = sbr.rel (%p188) target = $region40
    $region39: #{_lambda_.8} parent=5 // pred_region
      %s192 = ssub.s32 %s11, 1
      %p193 = scmp.lt.s32.totalorder %s16, 1
      %s194 = scalar_select %p193, %s16, 1
      %s195 = smul.addr %s194, 8
      %s196 = smul.addr %s195, 4
      %s197 = scalar_lea.vmem %s0, %s196
      %p198 = pneg %p37
      %p199 = pneg %p34
      %p200 = pneg %p58
      %p201 = pneg %p55
      %p202 = pneg %p79
      %p203 = pneg %p76
      %p204 = pneg %p100
      %p205 = pneg %p97
      %p206 = pneg %p121
      %p207 = pneg %p118
      %p208 = pneg %p147
      %p209 = pneg %p144
      %p210 = scmp.lt.s32.totalorder %s16, 1
      %s211 = scalar_select %p210, %s16, 1
      %s212 = smul.addr %s211, 2
      %s213 = scalar_lea.vmem %s5, %s212
      %p214 = scmp.lt.s32.totalorder %s16, 1
      %s215 = scalar_select %p214, %s16, 1
      %s216 = smul.addr %s215, 8
      %s217 = smul.addr %s216, 4
      %s218 = scalar_lea.vmem %s0, %s217
      %p219 = scmp.lt.s32.totalorder %s16, 1
      %s220 = scalar_select %p219, %s16, 1
      %s221 = smul.addr %s220, 2
      %s222 = scalar_lea.vmem %s5, %s221
      %v224 = vld [vmem:[%s218] sm:$0xf]
      %v225 = vld [vmem:[%s218 + $0x4] sm:$0xf]
      %v226 = vld [vmem:[%s218 + $0x8] sm:$0xf]
      %v227 = vld [vmem:[%s218 + $0xc] sm:$0xf]
      %v228 = vld [vmem:[%s218 + $0x10] sm:$0xf]
      %v229 = vld [vmem:[%s218 + $0x14] sm:$0xf]
      %v230 = vld [vmem:[%s218 + $0x18] sm:$0xf]
      %v231 = vld [vmem:[%s218 + $0x1c] sm:$0xf]
      %v232 = vld [vmem:[%s1] sm:$0xf]
      %v233 = vld [vmem:[%s1 + $0x4] sm:$0xf]
      %v234 = vld [vmem:[%s2] sm:$0x1]
      %v236 = vlaneseq
      %v237 = vshrl.u32 %v236, 7
      %v238 = vsub.s32 0, %v237
      %v239 = vrot.slane %v234, %v238
      %v249 = vunpack.c.l.b16 %v224
      %v250 = vunpack.c.l.b16 %v225
      %v251 = vunpack.c.l.b16 %v226
      %v252 = vunpack.c.l.b16 %v227
      %v253 = vunpack.c.l.b16 %v228
      %v254 = vunpack.c.l.b16 %v229
      %v255 = vunpack.c.l.b16 %v230
      %v256 = vunpack.c.l.b16 %v231
      %v257 = vpack.c.b16 %v250, %v249
      %v258 = vpack.c.b16 %v252, %v251
      %v259 = vpack.c.b16 %v254, %v253
      %v260 = vpack.c.b16 %v256, %v255
      %v263 = vunpack.c.l.b16 %v232
      %v264 = vunpack.c.l.b16 %v233
      %v265 = vpack.c.b16 %v264, %v263
      %vm267 = vcmask 130048
      %v269 = vsel %vm267, %v257, 0
      %v272 = vsel %vm267, %v258, 0
      %v275 = vsel %vm267, %v259, 0
      %v278 = vsel %vm267, %v260, 0
      %280 = vmatprep.subr.bf16.mxu0 0
      %281 = vmatpush1.bf16.msra.mxu0 %v265
      %282 = vmatprep.subr.bf16.mxu0 0
      %283 = vmatpush1.bf16.msra.mxu0 0
      %284 = vmatprep.subr.bf16.mxu0 0
      %285 = vmatpush1.bf16.msra.mxu0 0
      %286 = vmatprep.subr.bf16.mxu0 0
      %287 = vmatpush1.bf16.msra.mxu0 0
      %288 = vmatprep.subr.bf16.mxu0 0
      %289 = vmatpush1.bf16.msra.mxu0 0
      %290 = vmatprep.subr.bf16.mxu0 0
      %291 = vmatpush1.bf16.msra.mxu0 0
      %292 = vmatprep.subr.bf16.mxu0 0
      %293 = vmatpush1.bf16.msra.mxu0 0
      %294 = vmatprep.subr.bf16.mxu0 0
      %295 = vmatpush1.bf16.msra.mxu0 0
      %296 = vmatprep.subr.bf16.mxu0 0
      %297 = vmatpush1.bf16.msra.mxu0 0
      %298 = vmatprep.subr.bf16.mxu0 0
      %299 = vmatpush1.bf16.msra.mxu0 0
      %300 = vmatprep.subr.bf16.mxu0 0
      %301 = vmatpush1.bf16.msra.mxu0 0
      %302 = vmatprep.subr.bf16.mxu0 0
      %303 = vmatpush1.bf16.msra.mxu0 0
      %304 = vmatprep.subr.bf16.mxu0 0
      %305 = vmatpush1.bf16.msra.mxu0 0
      %306 = vmatprep.subr.bf16.mxu0 0
      %307 = vmatpush1.bf16.msra.mxu0 0
      %308 = vmatprep.subr.bf16.mxu0 0
      %309 = vmatpush1.bf16.msra.mxu0 0
      %310 = vmatprep.subr.bf16.mxu0 0
      %311 = vmatpush1.bf16.msra.mxu0 0
      %312 = vmatprep.mubr.bf16.mxu0 0
      %313 = vmatmul.mubr.bf16.gmra.mrb[0].mxu0 %v269
      %v314 = vpop.f32.mrb[0].mxu0
      %v315 = vadd.f32 %v239, %v314
      %v316 = vpop.f32.mrb[0].mxu0
      %v317 = vpop.f32.mrb[0].mxu0
      %v318 = vadd.f32 %v239, %v317
      %v319 = vpop.f32.mrb[0].mxu0
      %320 = vmatprep.mubr.bf16.mxu0 0
      %321 = vmatmul.mubr.bf16.gmra.mrb[0].mxu0 %v272
      %v322 = vpop.f32.mrb[0].mxu0
      %v323 = vadd.f32 %v239, %v322
      %v324 = vpop.f32.mrb[0].mxu0
      %v325 = vpop.f32.mrb[0].mxu0
      %v326 = vadd.f32 %v239, %v325
      %v327 = vpop.f32.mrb[0].mxu0
      %328 = vmatprep.mubr.bf16.mxu0 0
      %329 = vmatmul.mubr.bf16.gmra.mrb[0].mxu0 %v275
      %v330 = vpop.f32.mrb[0].mxu0
      %v331 = vadd.f32 %v239, %v330
      %v332 = vpop.f32.mrb[0].mxu0
      %v333 = vpop.f32.mrb[0].mxu0
      %v334 = vadd.f32 %v239, %v333
      %v335 = vpop.f32.mrb[0].mxu0
      %336 = vmatprep.mubr.bf16.mxu0 0
      %337 = vmatmul.mubr.bf16.gmra.mrb[0].mxu0 %v278
      %v338 = vpop.f32.mrb[0].mxu0
      %v339 = vadd.f32 %v239, %v338
      %v340 = vpop.f32.mrb[0].mxu0
      %v341 = vpop.f32.mrb[0].mxu0
      %v342 = vadd.f32 %v239, %v341
      %v343 = vpop.f32.mrb[0].mxu0
      %344 = vdwg.mxu0
      %vm345 = vcmask 523520
      %v346 = vsel %vm345, %v315, 0.0
      %v347 = vsel %vm345, %v318, 0.0
      %v348 = vadd.f32 %v346, %v347
      %v349 = vsel %vm345, %v323, 0.0
      %v350 = vadd.f32 %v348, %v349
      %v351 = vsel %vm345, %v326, 0.0
      %v352 = vadd.f32 %v350, %v351
      %v353 = vsel %vm345, %v331, 0.0
      %v354 = vadd.f32 %v352, %v353
      %v355 = vsel %vm345, %v334, 0.0
      %v356 = vadd.f32 %v354, %v355
      %v357 = vsel %vm345, %v339, 0.0
      %v358 = vadd.f32 %v356, %v357
      %v359 = vsel %vm345, %v342, 0.0
      %v360 = vadd.f32 %v358, %v359
      %v361 = vrot.slane %v360, 4
      %v362 = vadd.f32 %v360, %v361
      %v363 = vrot.slane %v362, 2
      %v364 = vadd.f32 %v362, %v363
      %v365 = vrot.slane %v364, 1
      %v366 = vadd.f32 %v364, %v365
      %v367 = vrcp.pop 64.0
      %v368 = vmul.f32 %v366, %v367
      %370 = vrot.lane.b32.xlu0 %v368, 96
      %v371 = vpop.permute.xlu0 %370
      %v373 = vadd.f32 %v315, %v371
      %v374 = vadd.f32 %v318, %v371
      %v375 = vadd.f32 %v323, %v371
      %v376 = vadd.f32 %v326, %v371
      %v377 = vadd.f32 %v331, %v371
      %v378 = vadd.f32 %v334, %v371
      %v379 = vadd.f32 %v339, %v371
      %v380 = vadd.f32 %v342, %v371
      %v381 = vxor.u32 %v373, 2147483648
      %v382 = vxor.u32 %v374, 2147483648
      %v383 = vxor.u32 %v375, 2147483648
      %v384 = vxor.u32 %v376, 2147483648
      %v385 = vxor.u32 %v377, 2147483648
      %v386 = vxor.u32 %v378, 2147483648
      %v387 = vxor.u32 %v379, 2147483648
      %v388 = vxor.u32 %v380, 2147483648
      %v389 = vmul.f32 %v381, 1.442695
      %v390 = vpow.pop %v389
      %v391 = vmul.f32 %v382, 1.442695
      %v392 = vpow.pop %v391
      %v393 = vmul.f32 %v383, 1.442695
      %v394 = vpow.pop %v393
      %v395 = vmul.f32 %v384, 1.442695
      %v396 = vpow.pop %v395
      %v397 = vmul.f32 %v385, 1.442695
      %v398 = vpow.pop %v397
      %v399 = vmul.f32 %v386, 1.442695
      %v400 = vpow.pop %v399
      %v401 = vmul.f32 %v387, 1.442695
      %v402 = vpow.pop %v401
      %v403 = vmul.f32 %v388, 1.442695
      %v404 = vpow.pop %v403
      %v405 = vadd.f32 %v390, 1.0
      %v406 = vadd.f32 %v392, 1.0
      %v407 = vadd.f32 %v394, 1.0
      %v408 = vadd.f32 %v396, 1.0
      %v409 = vadd.f32 %v398, 1.0
      %v410 = vadd.f32 %v400, 1.0
      %v411 = vadd.f32 %v402, 1.0
      %v412 = vadd.f32 %v404, 1.0
      %v413 = vrcp.pop %v405
      %v414 = vmul.f32 1.0, %v413
      %v415 = vrcp.pop %v406
      %v416 = vmul.f32 1.0, %v415
      %v417 = vrcp.pop %v407
      %v418 = vmul.f32 1.0, %v417
      %v419 = vrcp.pop %v408
      %v420 = vmul.f32 1.0, %v419
      %v421 = vrcp.pop %v409
      %v422 = vmul.f32 1.0, %v421
      %v423 = vrcp.pop %v410
      %v424 = vmul.f32 1.0, %v423
      %v425 = vrcp.pop %v411
      %v426 = vmul.f32 1.0, %v425
      %v427 = vrcp.pop %v412
      %v428 = vmul.f32 1.0, %v427
      %v429 = vmul.f32 %v315, %v414
      %v430 = vmul.f32 %v318, %v416
      %v431 = vmul.f32 %v323, %v418
      %v432 = vmul.f32 %v326, %v420
      %v433 = vmul.f32 %v331, %v422
      %v434 = vmul.f32 %v334, %v424
      %v435 = vmul.f32 %v339, %v426
      %v436 = vmul.f32 %v342, %v428
      %vm437 = vcmask 261120
      %438 = vst.msk [vmem:[#allocation2] sm:$0xff] %vm437, 0.0
      %vm439 = vcmask 254976
      %440 = vst.msk [vmem:[#allocation2 + $0x8] sm:$0x3] %vm439, 0.0
      %s441 = scalar_lea.vmem [#allocation2], 144
      %442 = vst.msk [vmem:[%s441] sm:$0xff] %vm437, 0.0
      %443 = vst.msk [vmem:[%s441 + $0x8] sm:$0x3] %vm439, 0.0
      %vm444 = vcmask 253952
      %445 = vst.msk [vmem:[#allocation2] sm:$0x1] %vm444, 0.0
      %446 = vst.msk [vmem:[#allocation2 + $0x10] sm:$0x1] %vm444, 0.0
      %447 = vst.msk [vmem:[#allocation2 + $0x20] sm:$0x1] %vm444, 0.0
      %448 = vst.msk [vmem:[#allocation2 + $0x30] sm:$0x1] %vm444, 0.0
      %449 = vst.msk [vmem:[#allocation2 + $0x40] sm:$0x1] %vm444, 0.0
      %450 = vst.msk [vmem:[#allocation2 + $0x50] sm:$0x1] %vm444, 0.0
      %451 = vst.msk [vmem:[#allocation2 + $0x60] sm:$0x1] %vm444, 0.0
      %452 = vst.msk [vmem:[#allocation2 + $0x70] sm:$0x1] %vm444, 0.0
      %453 = vst.msk [vmem:[#allocation2 + $0x80] sm:$0x1] %vm444, 0.0
      %454 = vst.msk [vmem:[#allocation2 + $0x90] sm:$0x1] %vm444, 0.0
      %455 = vst.msk [vmem:[#allocation2 + $0x9] sm:$0x1] %vm444, 0.0
      %456 = vst.msk [vmem:[#allocation2 + $0x19] sm:$0x1] %vm444, 0.0
      %457 = vst.msk [vmem:[#allocation2 + $0x29] sm:$0x1] %vm444, 0.0
      %458 = vst.msk [vmem:[#allocation2 + $0x39] sm:$0x1] %vm444, 0.0
      %459 = vst.msk [vmem:[#allocation2 + $0x49] sm:$0x1] %vm444, 0.0
      %460 = vst.msk [vmem:[#allocation2 + $0x59] sm:$0x1] %vm444, 0.0
      %461 = vst.msk [vmem:[#allocation2 + $0x69] sm:$0x1] %vm444, 0.0
      %462 = vst.msk [vmem:[#allocation2 + $0x79] sm:$0x1] %vm444, 0.0
      %463 = vst.msk [vmem:[#allocation2 + $0x89] sm:$0x1] %vm444, 0.0
      %464 = vst.msk [vmem:[#allocation2 + $0x99] sm:$0x1] %vm444, 0.0
      %s465 = scalar_lea.vmem [#allocation2], 16
      %466 = vst.msk [vmem:[%s465 + $0x1] sm:$0xff] %vm437, %v429
      %467 = vst.msk [vmem:[%s465 + $0x11] sm:$0xff] %vm437, %v430
      %468 = vst.msk [vmem:[%s465 + $0x21] sm:$0xff] %vm437, %v431
      %469 = vst.msk [vmem:[%s465 + $0x31] sm:$0xff] %vm437, %v432
      %470 = vst.msk [vmem:[%s465 + $0x41] sm:$0xff] %vm437, %v433
      %471 = vst.msk [vmem:[%s465 + $0x51] sm:$0xff] %vm437, %v434
      %472 = vst.msk [vmem:[%s465 + $0x61] sm:$0xff] %vm437, %v435
      %473 = vst.msk [vmem:[%s465 + $0x71] sm:$0xff] %vm437, %v436
      %v474 = vld [vmem:[#allocation2] ss:$2 sm:$0xf]
      %s475 = scalar_lea.vmem [#allocation2], 32
      %v476 = vld [vmem:[%s475] ss:$2 sm:$0xf]
      %s477 = scalar_lea.vmem [#allocation2], 64
      %v478 = vld [vmem:[%s477] ss:$2 sm:$0xf]
      %s479 = scalar_lea.vmem [#allocation2], 96
      %v480 = vld [vmem:[%s479] ss:$2 sm:$0xf]
      %v481 = vld [vmem:[%s3] sm:$0x1]
      %v482 = vlaneseq
      %v483 = vshrl.u32 %v482, 7
      %v484 = vsub.s32 0, %v483
      %v485 = vrot.slane %v481, %v484
      %v486 = vmul.f32 %v474, %v485
      %v487 = vmul.f32 %v476, %v485
      %v488 = vmul.f32 %v478, %v485
      %v489 = vmul.f32 %v480, %v485
      %v490 = vadd.f32 %v486, 0.0
      %v491 = vadd.f32 %v487, 0.0
      %v492 = vadd.f32 %v488, 0.0
      %v493 = vadd.f32 %v489, 0.0
      %s494 = scalar_lea.vmem [#allocation2], 1
      %v495 = vld [vmem:[%s494] ss:$2 sm:$0xf]
      %s496 = scalar_lea.vmem [#allocation2], 33
      %v497 = vld [vmem:[%s496] ss:$2 sm:$0xf]
      %s498 = scalar_lea.vmem [#allocation2], 65
      %v499 = vld [vmem:[%s498] ss:$2 sm:$0xf]
      %s500 = scalar_lea.vmem [#allocation2], 97
      %v501 = vld [vmem:[%s500] ss:$2 sm:$0xf]
      %v502 = vld [vmem:[%s3 + $0x1] sm:$0x1]
      %v503 = vlaneseq
      %v504 = vshrl.u32 %v503, 7
      %v505 = vsub.s32 0, %v504
      %v506 = vrot.slane %v502, %v505
      %v507 = vmul.f32 %v495, %v506
      %v508 = vmul.f32 %v497, %v506
      %v509 = vmul.f32 %v499, %v506
      %v510 = vmul.f32 %v501, %v506
      %v511 = vadd.f32 %v490, %v507
      %v512 = vadd.f32 %v491, %v508
      %v513 = vadd.f32 %v492, %v509
      %v514 = vadd.f32 %v493, %v510
      %s515 = scalar_lea.vmem [#allocation2], 2
      %v516 = vld [vmem:[%s515] ss:$2 sm:$0xf]
      %s517 = scalar_lea.vmem [#allocation2], 34
      %v518 = vld [vmem:[%s517] ss:$2 sm:$0xf]
      %s519 = scalar_lea.vmem [#allocation2], 66
      %v520 = vld [vmem:[%s519] ss:$2 sm:$0xf]
      %s521 = scalar_lea.vmem [#allocation2], 98
      %v522 = vld [vmem:[%s521] ss:$2 sm:$0xf]
      %v523 = vld [vmem:[%s3 + $0x2] sm:$0x1]
      %v524 = vlaneseq
      %v525 = vshrl.u32 %v524, 7
      %v526 = vsub.s32 0, %v525
      %v527 = vrot.slane %v523, %v526
      %v528 = vmul.f32 %v516, %v527
      %v529 = vmul.f32 %v518, %v527
      %v530 = vmul.f32 %v520, %v527
      %v531 = vmul.f32 %v522, %v527
      %v532 = vadd.f32 %v511, %v528
      %v533 = vadd.f32 %v512, %v529
      %v534 = vadd.f32 %v513, %v530
      %v535 = vadd.f32 %v514, %v531
      %v536 = vld [vmem:[%s465] ss:$2 sm:$0xf]
      %s537 = scalar_lea.vmem %s465, 32 [#allocation2]
      %v538 = vld [vmem:[%s537] ss:$2 sm:$0xf]
      %s539 = scalar_lea.vmem %s465, 64 [#allocation2]
      %v540 = vld [vmem:[%s539] ss:$2 sm:$0xf]
      %s541 = scalar_lea.vmem %s465, 96 [#allocation2]
      %v542 = vld [vmem:[%s541] ss:$2 sm:$0xf]
      %v543 = vld [vmem:[%s3 + $0x3] sm:$0x1]
      %v544 = vlaneseq
      %v545 = vshrl.u32 %v544, 7
      %v546 = vsub.s32 0, %v545
      %v547 = vrot.slane %v543, %v546
      %v548 = vmul.f32 %v536, %v547
      %v549 = vmul.f32 %v538, %v547
      %v550 = vmul.f32 %v540, %v547
      %v551 = vmul.f32 %v542, %v547
      %v552 = vadd.f32 %v532, %v548
      %v553 = vadd.f32 %v533, %v549
      %v554 = vadd.f32 %v534, %v550
      %v555 = vadd.f32 %v535, %v551
      %s556 = scalar_lea.vmem %s465, 1 [#allocation2]
      %v557 = vld [vmem:[%s556] ss:$2 sm:$0xf]
      %s558 = scalar_lea.vmem %s465, 33 [#allocation2]
      %v559 = vld [vmem:[%s558] ss:$2 sm:$0xf]
      %s560 = scalar_lea.vmem %s465, 65 [#allocation2]
      %v561 = vld [vmem:[%s560] ss:$2 sm:$0xf]
      %s562 = scalar_lea.vmem %s465, 97 [#allocation2]
      %v563 = vld [vmem:[%s562] ss:$2 sm:$0xf]
      %v564 = vld [vmem:[%s3 + $0x4] sm:$0x1]
      %v565 = vlaneseq
      %v566 = vshrl.u32 %v565, 7
      %v567 = vsub.s32 0, %v566
      %v568 = vrot.slane %v564, %v567
      %v569 = vmul.f32 %v557, %v568
      %v570 = vmul.f32 %v559, %v568
      %v571 = vmul.f32 %v561, %v568
      %v572 = vmul.f32 %v563, %v568
      %v573 = vadd.f32 %v552, %v569
      %v574 = vadd.f32 %v553, %v570
      %v575 = vadd.f32 %v554, %v571
      %v576 = vadd.f32 %v555, %v572
      %s577 = scalar_lea.vmem %s465, 2 [#allocation2]
      %v578 = vld [vmem:[%s577] ss:$2 sm:$0xf]
      %s579 = scalar_lea.vmem %s465, 34 [#allocation2]
      %v580 = vld [vmem:[%s579] ss:$2 sm:$0xf]
      %s581 = scalar_lea.vmem %s465, 66 [#allocation2]
      %v582 = vld [vmem:[%s581] ss:$2 sm:$0xf]
      %s583 = scalar_lea.vmem %s465, 98 [#allocation2]
      %v584 = vld [vmem:[%s583] ss:$2 sm:$0xf]
      %v585 = vld [vmem:[%s3 + $0x5] sm:$0x1]
      %v586 = vlaneseq
      %v587 = vshrl.u32 %v586, 7
      %v588 = vsub.s32 0, %v587
      %v589 = vrot.slane %v585, %v588
      %v590 = vmul.f32 %v578, %v589
      %v591 = vmul.f32 %v580, %v589
      %v592 = vmul.f32 %v582, %v589
      %v593 = vmul.f32 %v584, %v589
      %v594 = vadd.f32 %v573, %v590
      %v595 = vadd.f32 %v574, %v591
      %v596 = vadd.f32 %v575, %v592
      %v597 = vadd.f32 %v576, %v593
      %s598 = scalar_lea.vmem [#allocation2], 32
      %v599 = vld [vmem:[%s598] ss:$2 sm:$0xf]
      %s600 = scalar_lea.vmem %s598, 32 [#allocation2]
      %v601 = vld [vmem:[%s600] ss:$2 sm:$0xf]
      %s602 = scalar_lea.vmem %s598, 64 [#allocation2]
      %v603 = vld [vmem:[%s602] ss:$2 sm:$0xf]
      %s604 = scalar_lea.vmem %s598, 96 [#allocation2]
      %v605 = vld [vmem:[%s604] ss:$2 sm:$0xf]
      %v606 = vld [vmem:[%s3 + $0x6] sm:$0x1]
      %v607 = vlaneseq
      %v608 = vshrl.u32 %v607, 7
      %v609 = vsub.s32 0, %v608
      %v610 = vrot.slane %v606, %v609
      %v611 = vmul.f32 %v599, %v610
      %v612 = vmul.f32 %v601, %v610
      %v613 = vmul.f32 %v603, %v610
      %v614 = vmul.f32 %v605, %v610
      %v615 = vadd.f32 %v594, %v611
      %v616 = vadd.f32 %v595, %v612
      %v617 = vadd.f32 %v596, %v613
      %v618 = vadd.f32 %v597, %v614
      %s619 = scalar_lea.vmem %s598, 1 [#allocation2]
      %v620 = vld [vmem:[%s619] ss:$2 sm:$0xf]
      %s621 = scalar_lea.vmem %s598, 33 [#allocation2]
      %v622 = vld [vmem:[%s621] ss:$2 sm:$0xf]
      %s623 = scalar_lea.vmem %s598, 65 [#allocation2]
      %v624 = vld [vmem:[%s623] ss:$2 sm:$0xf]
      %s625 = scalar_lea.vmem %s598, 97 [#allocation2]
      %v626 = vld [vmem:[%s625] ss:$2 sm:$0xf]
      %v627 = vld [vmem:[%s3 + $0x7] sm:$0x1]
      %v628 = vlaneseq
      %v629 = vshrl.u32 %v628, 7
      %v630 = vsub.s32 0, %v629
      %v631 = vrot.slane %v627, %v630
      %v632 = vmul.f32 %v620, %v631
      %v633 = vmul.f32 %v622, %v631
      %v634 = vmul.f32 %v624, %v631
      %v635 = vmul.f32 %v626, %v631
      %v636 = vadd.f32 %v615, %v632
      %v637 = vadd.f32 %v616, %v633
      %v638 = vadd.f32 %v617, %v634
      %v639 = vadd.f32 %v618, %v635
      %s640 = scalar_lea.vmem %s598, 2 [#allocation2]
      %v641 = vld [vmem:[%s640] ss:$2 sm:$0xf]
      %s642 = scalar_lea.vmem %s598, 34 [#allocation2]
      %v643 = vld [vmem:[%s642] ss:$2 sm:$0xf]
      %s644 = scalar_lea.vmem %s598, 66 [#allocation2]
      %v645 = vld [vmem:[%s644] ss:$2 sm:$0xf]
      %s646 = scalar_lea.vmem %s598, 98 [#allocation2]
      %v647 = vld [vmem:[%s646] ss:$2 sm:$0xf]
      %v648 = vld [vmem:[%s3 + $0x8] sm:$0x1]
      %v649 = vlaneseq
      %v650 = vshrl.u32 %v649, 7
      %v651 = vsub.s32 0, %v650
      %v652 = vrot.slane %v648, %v651
      %v653 = vmul.f32 %v641, %v652
      %v654 = vmul.f32 %v643, %v652
      %v655 = vmul.f32 %v645, %v652
      %v656 = vmul.f32 %v647, %v652
      %v657 = vadd.f32 %v636, %v653
      %v658 = vadd.f32 %v637, %v654
      %v659 = vadd.f32 %v638, %v655
      %v660 = vadd.f32 %v639, %v656
      %v661 = vld [vmem:[%s4] sm:$0x1]
      %v663 = vlaneseq
      %v664 = vshrl.u32 %v663, 7
      %v665 = vsub.s32 0, %v664
      %v666 = vrot.slane %v661, %v665
      %v668 = vadd.f32 %v657, %v666
      %v669 = vadd.f32 %v658, %v666
      %v670 = vadd.f32 %v659, %v666
      %v671 = vadd.f32 %v660, %v666
      %vm672 = vcmask 257024
      %673 = vst.msk [vmem:[#allocation3] sm:$0xf] %vm672, %v668
      %674 = vst.msk [vmem:[#allocation3 + $0x4] sm:$0xf] %vm672, %v669
      %675 = vst.msk [vmem:[#allocation3 + $0x8] sm:$0xf] %vm672, %v670
      %676 = vst.msk [vmem:[#allocation3 + $0xc] sm:$0xf] %vm672, %v671
      %v677 = vld [vmem:[#allocation3] sm:$0x1]
      %v678 = vld [vmem:[#allocation3 + $0x4] sm:$0x1]
      %v679 = vld [vmem:[#allocation3 + $0x8] sm:$0x1]
      %v680 = vld [vmem:[#allocation3 + $0xc] sm:$0x1]
      %v681 = vpack.c.bf16 %v677, %v677
      %v682 = vpack.c.bf16 %v678, %v678
      %v683 = vpack.c.bf16 %v679, %v679
      %v684 = vpack.c.bf16 %v680, %v680
      %v690 = vunpack.c.l.s4 1983009808
      %v691 = vunpack.c.0.s8 %v690
      %v692 = vlaneseq
      %v693 = vshrl.u32 %v692, 7
      %v694 = vsub.s32 %v691, %v693
      %v695 = vrot.slane %v681, %v694
      %v697 = vunpack.c.l.s4 1983009808
      %v698 = vunpack.c.0.s8 %v697
      %v699 = vlaneseq
      %v700 = vshrl.u32 %v699, 7
      %v701 = vsub.s32 %v698, %v700
      %v702 = vrot.slane %v682, %v701
      %v704 = vunpack.c.l.s4 1983009808
      %v705 = vunpack.c.0.s8 %v704
      %v706 = vlaneseq
      %v707 = vshrl.u32 %v706, 7
      %v708 = vsub.s32 %v705, %v707
      %v709 = vrot.slane %v683, %v708
      %v711 = vunpack.c.l.s4 1983009808
      %v712 = vunpack.c.0.s8 %v711
      %v713 = vlaneseq
      %v714 = vshrl.u32 %v713, 7
      %v715 = vsub.s32 %v712, %v714
      %v716 = vrot.slane %v684, %v715
      %v718 = vunpack.c.l.s4 1983009808
      %v719 = vunpack.c.0.s8 %v718
      %v720 = vlaneseq
      %v721 = vshrl.u32 %v720, 7
      %v722 = vsub.s32 %v719, %v721
      %v723 = vrot.slane %v695, %v722
      %v725 = vunpack.c.l.s4 1983009808
      %v726 = vunpack.c.0.s8 %v725
      %v727 = vlaneseq
      %v728 = vshrl.u32 %v727, 7
      %v729 = vsub.s32 %v726, %v728
      %v730 = vrot.slane %v702, %v729
      %v732 = vunpack.c.l.s4 1983009808
      %v733 = vunpack.c.0.s8 %v732
      %v734 = vlaneseq
      %v735 = vshrl.u32 %v734, 7
      %v736 = vsub.s32 %v733, %v735
      %v737 = vrot.slane %v709, %v736
      %v739 = vunpack.c.l.s4 1983009808
      %v740 = vunpack.c.0.s8 %v739
      %v741 = vlaneseq
      %v742 = vshrl.u32 %v741, 7
      %v743 = vsub.s32 %v740, %v742
      %v744 = vrot.slane %v716, %v743
      %v745 = vunpack.c.l.b16 %v723
      %v746 = vunpack.c.l.b16 %v730
      %v747 = vunpack.c.l.b16 %v737
      %v748 = vunpack.c.l.b16 %v744
      %v749 = vrot.slane %v746, 7
      %vm750 = vcmask 1041409
      %v751 = vsel %vm750, %v749, %v745
      %v752 = vrot.slane %v747, 6
      %vm753 = vcmask 1042434
      %v754 = vsel %vm753, %v752, %v751
      %v755 = vrot.slane %v748, 5
      %vm756 = vcmask 1043459
      %v757 = vsel %vm756, %v755, %v754
      %v758 = vpack.c.b16 %v757, %v757
      %v760 = vunpack.c.l.s4 1983009808
      %v761 = vunpack.c.0.s8 %v760
      %v762 = vlaneseq
      %v763 = vshrl.u32 %v762, 7
      %v764 = vsub.s32 %v761, %v763
      %v765 = vrot.slane %v758, %v764
      %767 = vst.msk [vmem:[%s222] sm:$0x3] %vm439, %v765
      %v768 = vld [vmem:[#allocation3 + $0x1] sm:$0x1]
      %v769 = vld [vmem:[#allocation3 + $0x5] sm:$0x1]
      %v770 = vld [vmem:[#allocation3 + $0x9] sm:$0x1]
      %v771 = vld [vmem:[#allocation3 + $0xd] sm:$0x1]
      %v772 = vpack.c.bf16 %v768, %v768
      %v773 = vpack.c.bf16 %v769, %v769
      %v774 = vpack.c.bf16 %v770, %v770
      %v775 = vpack.c.bf16 %v771, %v771
      %v781 = vunpack.c.l.s4 1983009808
      %v782 = vunpack.c.0.s8 %v781
      %v783 = vlaneseq
      %v784 = vshrl.u32 %v783, 7
      %v785 = vsub.s32 %v782, %v784
      %v786 = vrot.slane %v772, %v785
      %v788 = vunpack.c.l.s4 1983009808
      %v789 = vunpack.c.0.s8 %v788
      %v790 = vlaneseq
      %v791 = vshrl.u32 %v790, 7
      %v792 = vsub.s32 %v789, %v791
      %v793 = vrot.slane %v773, %v792
      %v795 = vunpack.c.l.s4 1983009808
      %v796 = vunpack.c.0.s8 %v795
      %v797 = vlaneseq
      %v798 = vshrl.u32 %v797, 7
      %v799 = vsub.s32 %v796, %v798
      %v800 = vrot.slane %v774, %v799
      %v802 = vunpack.c.l.s4 1983009808
      %v803 = vunpack.c.0.s8 %v802
      %v804 = vlaneseq
      %v805 = vshrl.u32 %v804, 7
      %v806 = vsub.s32 %v803, %v805
      %v807 = vrot.slane %v775, %v806
      %v809 = vunpack.c.l.s4 1983009808
      %v810 = vunpack.c.0.s8 %v809
      %v811 = vlaneseq
      %v812 = vshrl.u32 %v811, 7
      %v813 = vsub.s32 %v810, %v812
      %v814 = vrot.slane %v786, %v813
      %v816 = vunpack.c.l.s4 1983009808
      %v817 = vunpack.c.0.s8 %v816
      %v818 = vlaneseq
      %v819 = vshrl.u32 %v818, 7
      %v820 = vsub.s32 %v817, %v819
      %v821 = vrot.slane %v793, %v820
      %v823 = vunpack.c.l.s4 1983009808
      %v824 = vunpack.c.0.s8 %v823
      %v825 = vlaneseq
      %v826 = vshrl.u32 %v825, 7
      %v827 = vsub.s32 %v824, %v826
      %v828 = vrot.slane %v800, %v827
      %v830 = vunpack.c.l.s4 1983009808
      %v831 = vunpack.c.0.s8 %v830
      %v832 = vlaneseq
      %v833 = vshrl.u32 %v832, 7
      %v834 = vsub.s32 %v831, %v833
      %v835 = vrot.slane %v807, %v834
      %v836 = vunpack.c.l.b16 %v814
      %v837 = vunpack.c.l.b16 %v821
      %v838 = vunpack.c.l.b16 %v828
      %v839 = vunpack.c.l.b16 %v835
      %v840 = vrot.slane %v837, 7
      %v841 = vsel %vm750, %v840, %v836
      %v842 = vrot.slane %v838, 6
      %v843 = vsel %vm753, %v842, %v841
      %v844 = vrot.slane %v839, 5
      %v845 = vsel %vm756, %v844, %v843
      %v846 = vpack.c.b16 %v845, %v845
      %v848 = vunpack.c.l.s4 1983009808
      %v849 = vunpack.c.0.s8 %v848
      %v850 = vlaneseq
      %v851 = vshrl.u32 %v850, 7
      %v852 = vsub.s32 %v849, %v851
      %v853 = vrot.slane %v846, %v852
      %854 = vrot.lane.b32.xlu0 %v853, 32
      %v855 = vpop.permute.xlu0 %854
      %vm857 = vcmask 517376
      %858 = vst.msk [vmem:[%s222] sm:$0x3] %vm857, %v855
      %v859 = vld [vmem:[#allocation3 + $0x2] sm:$0x1]
      %v860 = vld [vmem:[#allocation3 + $0x6] sm:$0x1]
      %v861 = vld [vmem:[#allocation3 + $0xa] sm:$0x1]
      %v862 = vld [vmem:[#allocation3 + $0xe] sm:$0x1]
      %v863 = vpack.c.bf16 %v859, %v859
      %v864 = vpack.c.bf16 %v860, %v860
      %v865 = vpack.c.bf16 %v861, %v861
      %v866 = vpack.c.bf16 %v862, %v862
      %v872 = vunpack.c.l.s4 1983009808
      %v873 = vunpack.c.0.s8 %v872
      %v874 = vlaneseq
      %v875 = vshrl.u32 %v874, 7
      %v876 = vsub.s32 %v873, %v875
      %v877 = vrot.slane %v863, %v876
      %v879 = vunpack.c.l.s4 1983009808
      %v880 = vunpack.c.0.s8 %v879
      %v881 = vlaneseq
      %v882 = vshrl.u32 %v881, 7
      %v883 = vsub.s32 %v880, %v882
      %v884 = vrot.slane %v864, %v883
      %v886 = vunpack.c.l.s4 1983009808
      %v887 = vunpack.c.0.s8 %v886
      %v888 = vlaneseq
      %v889 = vshrl.u32 %v888, 7
      %v890 = vsub.s32 %v887, %v889
      %v891 = vrot.slane %v865, %v890
      %v893 = vunpack.c.l.s4 1983009808
      %v894 = vunpack.c.0.s8 %v893
      %v895 = vlaneseq
      %v896 = vshrl.u32 %v895, 7
      %v897 = vsub.s32 %v894, %v896
      %v898 = vrot.slane %v866, %v897
      %v900 = vunpack.c.l.s4 1983009808
      %v901 = vunpack.c.0.s8 %v900
      %v902 = vlaneseq
      %v903 = vshrl.u32 %v902, 7
      %v904 = vsub.s32 %v901, %v903
      %v905 = vrot.slane %v877, %v904
      %v907 = vunpack.c.l.s4 1983009808
      %v908 = vunpack.c.0.s8 %v907
      %v909 = vlaneseq
      %v910 = vshrl.u32 %v909, 7
      %v911 = vsub.s32 %v908, %v910
      %v912 = vrot.slane %v884, %v911
      %v914 = vunpack.c.l.s4 1983009808
      %v915 = vunpack.c.0.s8 %v914
      %v916 = vlaneseq
      %v917 = vshrl.u32 %v916, 7
      %v918 = vsub.s32 %v915, %v917
      %v919 = vrot.slane %v891, %v918
      %v921 = vunpack.c.l.s4 1983009808
      %v922 = vunpack.c.0.s8 %v921
      %v923 = vlaneseq
      %v924 = vshrl.u32 %v923, 7
      %v925 = vsub.s32 %v922, %v924
      %v926 = vrot.slane %v898, %v925
      %v927 = vunpack.c.l.b16 %v905
      %v928 = vunpack.c.l.b16 %v912
      %v929 = vunpack.c.l.b16 %v919
      %v930 = vunpack.c.l.b16 %v926
      %v931 = vrot.slane %v928, 7
      %v932 = vsel %vm750, %v931, %v927
      %v933 = vrot.slane %v929, 6
      %v934 = vsel %vm753, %v933, %v932
      %v935 = vrot.slane %v930, 5
      %v936 = vsel %vm756, %v935, %v934
      %v937 = vpack.c.b16 %v936, %v936
      %v939 = vunpack.c.l.s4 1983009808
      %v940 = vunpack.c.0.s8 %v939
      %v941 = vlaneseq
      %v942 = vshrl.u32 %v941, 7
      %v943 = vsub.s32 %v940, %v942
      %v944 = vrot.slane %v937, %v943
      %945 = vrot.lane.b32.xlu0 %v944, 64
      %v946 = vpop.permute.xlu0 %945
      %vm948 = vcmask 779776
      %949 = vst.msk [vmem:[%s222] sm:$0x3] %vm948, %v946
      %v950 = vld [vmem:[#allocation3 + $0x3] sm:$0x1]
      %v951 = vld [vmem:[#allocation3 + $0x7] sm:$0x1]
      %v952 = vld [vmem:[#allocation3 + $0xb] sm:$0x1]
      %v953 = vld [vmem:[#allocation3 + $0xf] sm:$0x1]
      %v954 = vpack.c.bf16 %v950, %v950
      %v955 = vpack.c.bf16 %v951, %v951
      %v956 = vpack.c.bf16 %v952, %v952
      %v957 = vpack.c.bf16 %v953, %v953
      %v963 = vunpack.c.l.s4 1983009808
      %v964 = vunpack.c.0.s8 %v963
      %v965 = vlaneseq
      %v966 = vshrl.u32 %v965, 7
      %v967 = vsub.s32 %v964, %v966
      %v968 = vrot.slane %v954, %v967
      %v970 = vunpack.c.l.s4 1983009808
      %v971 = vunpack.c.0.s8 %v970
      %v972 = vlaneseq
      %v973 = vshrl.u32 %v972, 7
      %v974 = vsub.s32 %v971, %v973
      %v975 = vrot.slane %v955, %v974
      %v977 = vunpack.c.l.s4 1983009808
      %v978 = vunpack.c.0.s8 %v977
      %v979 = vlaneseq
      %v980 = vshrl.u32 %v979, 7
      %v981 = vsub.s32 %v978, %v980
      %v982 = vrot.slane %v956, %v981
      %v984 = vunpack.c.l.s4 1983009808
      %v985 = vunpack.c.0.s8 %v984
      %v986 = vlaneseq
      %v987 = vshrl.u32 %v986, 7
      %v988 = vsub.s32 %v985, %v987
      %v989 = vrot.slane %v957, %v988
      %v991 = vunpack.c.l.s4 1983009808
      %v992 = vunpack.c.0.s8 %v991
      %v993 = vlaneseq
      %v994 = vshrl.u32 %v993, 7
      %v995 = vsub.s32 %v992, %v994
      %v996 = vrot.slane %v968, %v995
      %v998 = vunpack.c.l.s4 1983009808
      %v999 = vunpack.c.0.s8 %v998
      %v1000 = vlaneseq
      %v1001 = vshrl.u32 %v1000, 7
      %v1002 = vsub.s32 %v999, %v1001
      %v1003 = vrot.slane %v975, %v1002
      %v1005 = vunpack.c.l.s4 1983009808
      %v1006 = vunpack.c.0.s8 %v1005
      %v1007 = vlaneseq
      %v1008 = vshrl.u32 %v1007, 7
      %v1009 = vsub.s32 %v1006, %v1008
      %v1010 = vrot.slane %v982, %v1009
      %v1012 = vunpack.c.l.s4 1983009808
      %v1013 = vunpack.c.0.s8 %v1012
      %v1014 = vlaneseq
      %v1015 = vshrl.u32 %v1014, 7
      %v1016 = vsub.s32 %v1013, %v1015
      %v1017 = vrot.slane %v989, %v1016
      %v1018 = vunpack.c.l.b16 %v996
      %v1019 = vunpack.c.l.b16 %v1003
      %v1020 = vunpack.c.l.b16 %v1010
      %v1021 = vunpack.c.l.b16 %v1017
      %v1022 = vrot.slane %v1019, 7
      %v1023 = vsel %vm750, %v1022, %v1018
      %v1024 = vrot.slane %v1020, 6
      %v1025 = vsel %vm753, %v1024, %v1023
      %v1026 = vrot.slane %v1021, 5
      %v1027 = vsel %vm756, %v1026, %v1025
      %v1028 = vpack.c.b16 %v1027, %v1027
      %v1030 = vunpack.c.l.s4 1983009808
      %v1031 = vunpack.c.0.s8 %v1030
      %v1032 = vlaneseq
      %v1033 = vshrl.u32 %v1032, 7
      %v1034 = vsub.s32 %v1031, %v1033
      %v1035 = vrot.slane %v1028, %v1034
      %1036 = vrot.lane.b32.xlu0 %v1035, 96
      %v1037 = vpop.permute.xlu0 %1036
      %vm1039 = vcmask 1042176
      %1040 = vst.msk [vmem:[%s222] sm:$0x3] %vm1039, %v1037
      %p1041 = scmp.lt.s32.totalorder %s16, 1
      %s1042 = scalar_select %p1041, %s16, 1
      %s1043 = smul.addr %s1042, 2
      %s1044 = scalar_lea.vmem %s5, %s1043
      // Predicated region
      $region41: #{_lambda_.8} parent=39 // pred_check
        %p1045 = pneg %p144
      $region42: #{_lambda_.8} parent=39 // pred_check_branch
        %1047 = sbr.rel (%p1045) target = $region44
      $region43: #{_lambda_.8} parent=39 // pred_region
        _
      $region44: #{_lambda_.8} parent=39 // pred_fallthru
        _
    $region40: #{_lambda_.8} parent=5 // pred_fallthru
      _
    %p1048 = scmp.le.s32.totalorder 2, %s11
    // Predicated region
    $region45: #{_lambda_.8} parent=5 // pred_check
      %p1049 = pneg %p1048
    $region46: #{_lambda_.8} parent=5 // pred_check_branch
      %1051 = sbr.rel (%p1049) target = $region48
    $region47: #{_lambda_.8} parent=5 // pred_region
      %s1052 = ssub.s32 %s11, 2
      // Predicated region
      $region49: #{_lambda_.8} parent=47 // pred_check
        %p1053 = pneg %p150
      $region50: #{_lambda_.8} parent=47 // pred_check_branch
        %1055 = sbr.rel (%p1053) target = $region52
      $region51: #{_lambda_.8} parent=47 // pred_region
        %p1056 = scmp.lt.s32.totalorder %s17, 1
        %s1057 = scalar_select %p1056, %s17, 1
        %s1058 = smul.addr %s1057, 2
        %s1059 = scalar_lea.vmem %s5, %s1058
      $region52: #{_lambda_.8} parent=47 // pred_fallthru
        _
    $region48: #{_lambda_.8} parent=5 // pred_fallthru
      _
  $region6: #{_lambda_.8} parent=0 // loop_footer
    %s15 = sadd.s32 1, %s11
  $region7: #{_lambda_.8} parent=0 // loop_footer_branch
    %10 = sbr.rel target = $region3
  $region8: #{_lambda_.8} parent=0 // loop_exit
    _

// kernel: _lambda_.11
$region0: #{_lambda_.11}
  #allocation0 [shape = 'u32[]', space=smem, size = 0x4, offset = 0x4, fixed_abs, tag = 'smem constant byte address 0x4 - core index']
  #allocation1 [shape = 'u32[144,128]{1,0:T(1,128)}', space=vmem, size = 0x12000, scoped, tag = 'internal scratch']
  #allocation2 [shape = 'f32[4,4,128]{2,1,0:T(4,128)}', space=vmem, size = 0x2000, scoped, tag = 'scratch operand']
  #allocation3 [shape = 'f32[1,1,128]{2,1,0:T(1,128)}', space=vmem, size = 0x200, scoped, tag = 'scratch operand']
  %s0 = inlined_call_operand.vmem [shape: bf16[2,4,64], index: 0, kind: input, shape index: {}]
  %s1 = inlined_call_operand.vmem [shape: bf16[64,256], index: 1, kind: input, shape index: {}]
  %s2 = inlined_call_operand.vmem [shape: f32[1,256], index: 2, kind: input, shape index: {}]
  %s3 = inlined_call_operand.vmem [shape: f32[9,128], index: 3, kind: input, shape index: {}]
  %s4 = inlined_call_operand.vmem [shape: f32[1,128], index: 4, kind: input, shape index: {}]
  %s5 = inlined_call_operand.vmem [shape: bf16[2,1,128], index: 5, kind: output, shape index: {}]
  %s6 = sld [smem:[#allocation0]]
  $region53: #{_lambda_.11} parent=0
    _
  %s8 = ssub.s32 1, %s6
  %s9 = scalar_select 0, %s8, %s6
  loop: start=0, step=1, limit=4
  $region2: #{_lambda_.11} parent=0 // loop_pre_header
    _
  $region3: #{_lambda_.11} parent=0 // loop_header
    %s11 = sphi 0, %s15
    %p12 = scmp.ge.s32.totalorder %s11, 4
    %s21 = sphi 0, %s23
    %s24 = sphi 0, %s21
    %s25 = sphi 0, %s24
    %s41 = sphi 0, %s25
    %s45 = sphi 0, %s45
    %s47 = sphi 0, %s45
    %s48 = sphi 0, %s47
    %s62 = sphi 0, %s48
    %s66 = sphi 0, %s66
    %s68 = sphi 0, %s66
    %s69 = sphi 0, %s68
    %s83 = sphi 0, %s69
    %s87 = sphi 0, %s87
    %s89 = sphi 0, %s87
    %s90 = sphi 0, %s89
    %s104 = sphi 0, %s90
    %s108 = sphi 0, %s108
    %s110 = sphi 0, %s108
    %s111 = sphi 0, %s110
    %s125 = sphi 0, %s111
    %s131 = sphi 0, %s133
    %s134 = sphi 0, %s131
    %s135 = sphi 0, %s134
    %s151 = sphi 0, %s135
  $region4: #{_lambda_.11} parent=0 // loop_header_branch
    %14 = sbr.rel (%p12) target = $region8
  $region5: #{_lambda_.11} parent=0 // loop_body
    %s16 = ssub.s32 %s11, 1
    %s17 = ssub.s32 %s11, 2
    %s18 = sadd.s32 %s11, 1
    %s19 = ssub.s32 %s11, %s18
    %p20 = scmp.eq.s32.totalorder %s19, 0
    %s22 = sadd.s32 %s21, 1
    %s23 = scalar_select %p20, %s21, %s22
    %p26 = pneg %p20
    %p27 = scmp.eq.s32.totalorder %s11, 1
    %p28 = por %p26, %p27
    %p29 = scmp.ne.s32.totalorder %s21, %s24
    %p30 = scmp.eq.s32.totalorder %s11, 0
    %p31 = por %p29, %p30
    %p32 = scmp.ne.s32.totalorder %s21, %s24
    %p33 = scmp.eq.s32.totalorder %s16, 1
    %p34 = por %p32, %p33
    %p35 = scmp.ne.s32.totalorder %s24, %s25
    %p36 = scmp.eq.s32.totalorder %s16, 0
    %p37 = por %p35, %p36
    %p38 = scmp.ne.s32.totalorder %s24, %s25
    %p39 = scmp.eq.s32.totalorder %s17, 1
    %p40 = por %p38, %p39
    %p42 = scmp.ne.s32.totalorder %s25, %s41
    %p43 = scmp.eq.s32.totalorder %s17, 0
    %p44 = por %p42, %p43
    %s46 = sadd.s32 %s45, 1
    %p49 = scmp.eq.s32.totalorder %s11, 1
    %p50 = scmp.ne.s32.totalorder %s45, %s47
    %p51 = scmp.eq.s32.totalorder %s11, 0
    %p52 = por %p50, %p51
    %p53 = scmp.ne.s32.totalorder %s45, %s47
    %p54 = scmp.eq.s32.totalorder %s16, 1
    %p55 = por %p53, %p54
    %p56 = scmp.ne.s32.totalorder %s47, %s48
    %p57 = scmp.eq.s32.totalorder %s16, 0
    %p58 = por %p56, %p57
    %p59 = scmp.ne.s32.totalorder %s47, %s48
    %p60 = scmp.eq.s32.totalorder %s17, 1
    %p61 = por %p59, %p60
    %p63 = scmp.ne.s32.totalorder %s48, %s62
    %p64 = scmp.eq.s32.totalorder %s17, 0
    %p65 = por %p63, %p64
    %s67 = sadd.s32 %s66, 1
    %p70 = scmp.eq.s32.totalorder %s11, 1
    %p71 = scmp.ne.s32.totalorder %s66, %s68
    %p72 = scmp.eq.s32.totalorder %s11, 0
    %p73 = por %p71, %p72
    %p74 = scmp.ne.s32.totalorder %s66, %s68
    %p75 = scmp.eq.s32.totalorder %s16, 1
    %p76 = por %p74, %p75
    %p77 = scmp.ne.s32.totalorder %s68, %s69
    %p78 = scmp.eq.s32.totalorder %s16, 0
    %p79 = por %p77, %p78
    %p80 = scmp.ne.s32.totalorder %s68, %s69
    %p81 = scmp.eq.s32.totalorder %s17, 1
    %p82 = por %p80, %p81
    %p84 = scmp.ne.s32.totalorder %s69, %s83
    %p85 = scmp.eq.s32.totalorder %s17, 0
    %p86 = por %p84, %p85
    %s88 = sadd.s32 %s87, 1
    %p91 = scmp.eq.s32.totalorder %s11, 1
    %p92 = scmp.ne.s32.totalorder %s87, %s89
    %p93 = scmp.eq.s32.totalorder %s11, 0
    %p94 = por %p92, %p93
    %p95 = scmp.ne.s32.totalorder %s87, %s89
    %p96 = scmp.eq.s32.totalorder %s16, 1
    %p97 = por %p95, %p96
    %p98 = scmp.ne.s32.totalorder %s89, %s90
    %p99 = scmp.eq.s32.totalorder %s16, 0
    %p100 = por %p98, %p99
    %p101 = scmp.ne.s32.totalorder %s89, %s90
    %p102 = scmp.eq.s32.totalorder %s17, 1
    %p103 = por %p101, %p102
    %p105 = scmp.ne.s32.totalorder %s90, %s104
    %p106 = scmp.eq.s32.totalorder %s17, 0
    %p107 = por %p105, %p106
    %s109 = sadd.s32 %s108, 1
    %p112 = scmp.eq.s32.totalorder %s11, 1
    %p113 = scmp.ne.s32.totalorder %s108, %s110
    %p114 = scmp.eq.s32.totalorder %s11, 0
    %p115 = por %p113, %p114
    %p116 = scmp.ne.s32.totalorder %s108, %s110
    %p117 = scmp.eq.s32.totalorder %s16, 1
    %p118 = por %p116, %p117
    %p119 = scmp.ne.s32.totalorder %s110, %s111
    %p120 = scmp.eq.s32.totalorder %s16, 0
    %p121 = por %p119, %p120
    %p122 = scmp.ne.s32.totalorder %s110, %s111
    %p123 = scmp.eq.s32.totalorder %s17, 1
    %p124 = por %p122, %p123
    %p126 = scmp.ne.s32.totalorder %s111, %s125
    %p127 = scmp.eq.s32.totalorder %s17, 0
    %p128 = por %p126, %p127
    %s129 = ssub.s32 %s11, %s18
    %p130 = scmp.eq.s32.totalorder %s129, 0
    %s132 = sadd.s32 %s131, 1
    %s133 = scalar_select %p130, %s131, %s132
    %p136 = pneg %p130
    %p137 = scmp.eq.s32.totalorder %s11, 1
    %p138 = por %p136, %p137
    %p139 = scmp.ne.s32.totalorder %s131, %s134
    %p140 = scmp.eq.s32.totalorder %s11, 0
    %p141 = por %p139, %p140
    %p142 = scmp.ne.s32.totalorder %s131, %s134
    %p143 = scmp.eq.s32.totalorder %s16, 1
    %p144 = por %p142, %p143
    %p145 = scmp.ne.s32.totalorder %s134, %s135
    %p146 = scmp.eq.s32.totalorder %s16, 0
    %p147 = por %p145, %p146
    %p148 = scmp.ne.s32.totalorder %s134, %s135
    %p149 = scmp.eq.s32.totalorder %s17, 1
    %p150 = por %p148, %p149
    %p152 = scmp.ne.s32.totalorder %s135, %s151
    %p153 = scmp.eq.s32.totalorder %s17, 0
    %p154 = por %p152, %p153
    %p155 = scmp.le.s32.totalorder 1, %s11
    %p156 = scmp.lt.s32.totalorder %s11, 3
    %p157 = pnand %p155, %p156
    %p158 = pneg %p157
    // Predicated region
    $region9: #{_lambda_.11} parent=5 // pred_check
      _
    $region10: #{_lambda_.11} parent=5 // pred_check_branch
      %160 = sbr.rel (%p157) target = $region12
    $region11: #{_lambda_.11} parent=5 // pred_region
      %s161 = ssub.s32 %s11, 1
      // Predicated region
      $region13: #{_lambda_.11} parent=11 // pred_check
        %p162 = pneg %p58
      $region14: #{_lambda_.11} parent=11 // pred_check_branch
        %164 = sbr.rel (%p162) target = $region16
      $region15: #{_lambda_.11} parent=11 // pred_region
        _
      $region16: #{_lambda_.11} parent=11 // pred_fallthru
        _
      // Predicated region
      $region17: #{_lambda_.11} parent=11 // pred_check
        %p165 = pneg %p79
      $region18: #{_lambda_.11} parent=11 // pred_check_branch
        %167 = sbr.rel (%p165) target = $region20
      $region19: #{_lambda_.11} parent=11 // pred_region
        _
      $region20: #{_lambda_.11} parent=11 // pred_fallthru
        _
      // Predicated region
      $region21: #{_lambda_.11} parent=11 // pred_check
        %p168 = pneg %p100
      $region22: #{_lambda_.11} parent=11 // pred_check_branch
        %170 = sbr.rel (%p168) target = $region24
      $region23: #{_lambda_.11} parent=11 // pred_region
        _
      $region24: #{_lambda_.11} parent=11 // pred_fallthru
        _
      // Predicated region
      $region25: #{_lambda_.11} parent=11 // pred_check
        %p171 = pneg %p121
      $region26: #{_lambda_.11} parent=11 // pred_check_branch
        %173 = sbr.rel (%p171) target = $region28
      $region27: #{_lambda_.11} parent=11 // pred_region
        _
      $region28: #{_lambda_.11} parent=11 // pred_fallthru
        _
    $region12: #{_lambda_.11} parent=5 // pred_fallthru
      _
    %p174 = scmp.lt.s32.totalorder %s11, 2
    // Predicated region
    $region29: #{_lambda_.11} parent=5 // pred_check
      %p175 = pneg %p174
    $region30: #{_lambda_.11} parent=5 // pred_check_branch
      %177 = sbr.rel (%p175) target = $region32
    $region31: #{_lambda_.11} parent=5 // pred_region
      // Predicated region
      $region33: #{_lambda_.11} parent=31 // pred_check
        %p178 = pneg %p31
      $region34: #{_lambda_.11} parent=31 // pred_check_branch
        %180 = sbr.rel (%p178) target = $region36
      $region35: #{_lambda_.11} parent=31 // pred_region
        %p181 = scmp.lt.s32.totalorder %s11, 1
        %s182 = scalar_select %p181, %s11, 1
        %s183 = smul.addr %s182, 2
        %s184 = scalar_lea.vmem %s0, %s183
      $region36: #{_lambda_.11} parent=31 // pred_fallthru
        _
    $region32: #{_lambda_.11} parent=5 // pred_fallthru
      _
    %p185 = scmp.le.s32.totalorder 1, %s11
    %p186 = scmp.lt.s32.totalorder %s11, 3
    %p187 = pnand %p185, %p186
    %p188 = pneg %p187
    // Predicated region
    $region37: #{_lambda_.11} parent=5 // pred_check
      _
    $region38: #{_lambda_.11} parent=5 // pred_check_branch
      %190 = sbr.rel (%p187) target = $region40
    $region39: #{_lambda_.11} parent=5 // pred_region
      %s191 = ssub.s32 %s11, 1
      %p192 = scmp.lt.s32.totalorder %s16, 1
      %s193 = scalar_select %p192, %s16, 1
      %s194 = smul.addr %s193, 2
      %s195 = scalar_lea.vmem %s0, %s194
      %p196 = pneg %p37
      %p197 = pneg %p34
      %p198 = pneg %p58
      %p199 = pneg %p55
      %p200 = pneg %p79
      %p201 = pneg %p76
      %p202 = pneg %p100
      %p203 = pneg %p97
      %p204 = pneg %p121
      %p205 = pneg %p118
      %p206 = pneg %p147
      %p207 = pneg %p144
      %p208 = scmp.lt.s32.totalorder %s16, 1
      %s209 = scalar_select %p208, %s16, 1
      %s210 = scalar_lea.vmem %s5, %s209
      %p211 = scmp.lt.s32.totalorder %s16, 1
      %s212 = scalar_select %p211, %s16, 1
      %s213 = smul.addr %s212, 2
      %s214 = scalar_lea.vmem %s0, %s213
      %p215 = scmp.lt.s32.totalorder %s16, 1
      %s216 = scalar_select %p215, %s16, 1
      %s217 = scalar_lea.vmem %s5, %s216
      %v219 = vld [vmem:[%s214] sm:$0x3]
      %v220 = vld [vmem:[%s1] sm:$0xff]
      %v221 = vld [vmem:[%s1 + $0x8] sm:$0xff]
      %v222 = vld [vmem:[%s1 + $0x10] sm:$0xff]
      %v223 = vld [vmem:[%s1 + $0x18] sm:$0xff]
      %v224 = vld [vmem:[%s1 + $0x20] sm:$0xff]
      %v225 = vld [vmem:[%s1 + $0x28] sm:$0xff]
      %v226 = vld [vmem:[%s1 + $0x30] sm:$0xff]
      %v227 = vld [vmem:[%s1 + $0x38] sm:$0xff]
      %v228 = vld [vmem:[%s2] sm:$0x3]
      %v230 = vlaneseq
      %v231 = vshrl.u32 %v230, 7
      %v232 = vsub.s32 0, %v231
      %v233 = vrot.slane %v228, %v232
      %v234 = vlaneseq
      %v235 = vshrl.u32 %v234, 7
      %v236 = vsub.s32 1, %v235
      %v237 = vrot.slane %v228, %v236
      %v248 = vunpack.c.l.b16 %v220
      %v249 = vunpack.c.h.b16 %v220
      %v250 = vunpack.c.l.b16 %v221
      %v251 = vunpack.c.h.b16 %v221
      %v252 = vunpack.c.l.b16 %v222
      %v253 = vunpack.c.h.b16 %v222
      %v254 = vunpack.c.l.b16 %v223
      %v255 = vunpack.c.h.b16 %v223
      %v256 = vunpack.c.l.b16 %v224
      %v257 = vunpack.c.h.b16 %v224
      %v258 = vunpack.c.l.b16 %v225
      %v259 = vunpack.c.h.b16 %v225
      %v260 = vunpack.c.l.b16 %v226
      %v261 = vunpack.c.h.b16 %v226
      %v262 = vunpack.c.l.b16 %v227
      %v263 = vunpack.c.h.b16 %v227
      %v264 = vpack.c.b16 %v250, %v248
      %v265 = vpack.c.b16 %v251, %v249
      %v266 = vpack.c.b16 %v254, %v252
      %v267 = vpack.c.b16 %v255, %v253
      %v268 = vpack.c.b16 %v258, %v256
      %v269 = vpack.c.b16 %v259, %v257
      %v270 = vpack.c.b16 %v262, %v260
      %v271 = vpack.c.b16 %v263, %v261
      %vm280 = vcmask 523264
      %v282 = vsel %vm280, %v219, 0
      %284 = vmatprep.subr.bf16.mxu0 %v265
      %285 = vmatpush1.bf16.msra.mxu0 %v264
      %286 = vmatprep.subr.bf16.mxu0 %v267
      %287 = vmatpush1.bf16.msra.mxu0 %v266
      %288 = vmatprep.subr.bf16.mxu0 %v269
      %289 = vmatpush1.bf16.msra.mxu0 %v268
      %290 = vmatprep.subr.bf16.mxu0 %v271
      %291 = vmatpush1.bf16.msra.mxu0 %v270
      %292 = vmatprep.subr.bf16.mxu0 0
      %293 = vmatpush1.bf16.msra.mxu0 0
      %294 = vmatprep.subr.bf16.mxu0 0
      %295 = vmatpush1.bf16.msra.mxu0 0
      %296 = vmatprep.subr.bf16.mxu0 0
      %297 = vmatpush1.bf16.msra.mxu0 0
      %298 = vmatprep.subr.bf16.mxu0 0
      %299 = vmatpush1.bf16.msra.mxu0 0
      %300 = vmatprep.subr.bf16.mxu0 0
      %301 = vmatpush1.bf16.msra.mxu0 0
      %302 = vmatprep.subr.bf16.mxu0 0
      %303 = vmatpush1.bf16.msra.mxu0 0
      %304 = vmatprep.subr.bf16.mxu0 0
      %305 = vmatpush1.bf16.msra.mxu0 0
      %306 = vmatprep.subr.bf16.mxu0 0
      %307 = vmatpush1.bf16.msra.mxu0 0
      %308 = vmatprep.subr.bf16.mxu0 0
      %309 = vmatpush1.bf16.msra.mxu0 0
      %310 = vmatprep.subr.bf16.mxu0 0
      %311 = vmatpush1.bf16.msra.mxu0 0
      %312 = vmatprep.subr.bf16.mxu0 0
      %313 = vmatpush1.bf16.msra.mxu0 0
      %314 = vmatprep.subr.bf16.mxu0 0
      %315 = vmatpush1.bf16.msra.mxu0 0
      %316 = vmatprep.mubr.bf16.mxu0 0
      %317 = vmatmul.mubr.bf16.gmra.mrb[0].mxu0 %v282
      %v318 = vpop.f32.mrb[0].mxu0
      %v319 = vadd.f32 %v233, %v318
      %v320 = vpop.f32.mrb[0].mxu0
      %v321 = vadd.f32 %v237, %v320
      %v322 = vpop.f32.mrb[0].mxu0
      %v323 = vpop.f32.mrb[0].mxu0
      %324 = vdwg.mxu0
      %vm325 = vcmask 1043456
      %v326 = vsel %vm325, %v321, 0.0
      %v327 = vrot.slane %v326, 4
      %v328 = vadd.f32 %v326, %v327
      %v329 = vrot.slane %v328, 2
      %v330 = vadd.f32 %v328, %v329
      %v331 = vrot.slane %v330, 1
      %v332 = vadd.f32 %v330, %v331
      %v333 = vrcp.pop 4.0
      %v334 = vmul.f32 %v332, %v333
      %v335 = vadd.f32 %v319, %v334
      %v336 = vxor.u32 %v335, 2147483648
      %v337 = vmul.f32 %v336, 1.442695
      %v338 = vpow.pop %v337
      %v339 = vadd.f32 %v338, 1.0
      %v340 = vrcp.pop %v339
      %v341 = vmul.f32 1.0, %v340
      %v342 = vmul.f32 %v319, %v341
      %343 = vst [vmem:[#allocation2] sm:$0xf] 0.0
      %s344 = scalar_lea.vmem [#allocation2], 12
      %345 = vst [vmem:[%s344] sm:$0xf] 0.0
      %346 = vst [vmem:[#allocation2] sm:$0x1] 0.0
      %347 = vst [vmem:[#allocation2 + $0x4] sm:$0x1] 0.0
      %348 = vst [vmem:[#allocation2 + $0x8] sm:$0x1] 0.0
      %349 = vst [vmem:[#allocation2 + $0xc] sm:$0x1] 0.0
      %350 = vst [vmem:[#allocation2 + $0x3] sm:$0x1] 0.0
      %351 = vst [vmem:[#allocation2 + $0x7] sm:$0x1] 0.0
      %352 = vst [vmem:[#allocation2 + $0xb] sm:$0x1] 0.0
      %353 = vst [vmem:[#allocation2 + $0xf] sm:$0x1] 0.0
      %v356 = vunpack.c.l.s4 1983009808
      %v357 = vunpack.c.0.s8 %v356
      %v358 = vlaneseq
      %v359 = vshrl.u32 %v358, 7
      %v360 = vsub.s32 %v357, %v359
      %v361 = vrot.slane %v342, %v360
      %v362 = vcombine.high %v361, %v361
      %s365 = scalar_lea.vmem [#allocation2], 4
      %366 = vst [vmem:[%s365 + $0x1] sm:$0x3] %v361
      %367 = vst [vmem:[%s365 + $0x5] sm:$0x3] %v362
      %v368 = vld [vmem:[#allocation2] ss:$2 sm:$0x1]
      %v369 = vld [vmem:[%s3] sm:$0x1]
      %v370 = vmul.f32 %v368, %v369
      %v371 = vadd.f32 %v370, 0.0
      %s372 = scalar_lea.vmem [#allocation2], 1
      %v373 = vld [vmem:[%s372] ss:$2 sm:$0x1]
      %v374 = vld [vmem:[%s3 + $0x1] sm:$0x1]
      %v375 = vmul.f32 %v373, %v374
      %v376 = vadd.f32 %v371, %v375
      %s377 = scalar_lea.vmem [#allocation2], 2
      %v378 = vld [vmem:[%s377] ss:$2 sm:$0x1]
      %v379 = vld [vmem:[%s3 + $0x2] sm:$0x1]
      %v380 = vmul.f32 %v378, %v379
      %v381 = vadd.f32 %v376, %v380
      %v382 = vld [vmem:[%s365] ss:$2 sm:$0x1]
      %v383 = vld [vmem:[%s3 + $0x3] sm:$0x1]
      %v384 = vmul.f32 %v382, %v383
      %v385 = vadd.f32 %v381, %v384
      %s386 = scalar_lea.vmem %s365, 1 [#allocation2]
      %v387 = vld [vmem:[%s386] ss:$2 sm:$0x1]
      %v388 = vld [vmem:[%s3 + $0x4] sm:$0x1]
      %v389 = vmul.f32 %v387, %v388
      %v390 = vadd.f32 %v385, %v389
      %s391 = scalar_lea.vmem %s365, 2 [#allocation2]
      %v392 = vld [vmem:[%s391] ss:$2 sm:$0x1]
      %v393 = vld [vmem:[%s3 + $0x5] sm:$0x1]
      %v394 = vmul.f32 %v392, %v393
      %v395 = vadd.f32 %v390, %v394
      %s396 = scalar_lea.vmem [#allocation2], 8
      %v397 = vld [vmem:[%s396] ss:$2 sm:$0x1]
      %v398 = vld [vmem:[%s3 + $0x6] sm:$0x1]
      %v399 = vmul.f32 %v397, %v398
      %v400 = vadd.f32 %v395, %v399
      %s401 = scalar_lea.vmem %s396, 1 [#allocation2]
      %v402 = vld [vmem:[%s401] ss:$2 sm:$0x1]
      %v403 = vld [vmem:[%s3 + $0x7] sm:$0x1]
      %v404 = vmul.f32 %v402, %v403
      %v405 = vadd.f32 %v400, %v404
      %s406 = scalar_lea.vmem %s396, 2 [#allocation2]
      %v407 = vld [vmem:[%s406] ss:$2 sm:$0x1]
      %v408 = vld [vmem:[%s3 + $0x8] sm:$0x1]
      %v409 = vmul.f32 %v407, %v408
      %v410 = vadd.f32 %v405, %v409
      %v411 = vld [vmem:[%s4] sm:$0x1]
      %v412 = vadd.f32 %v410, %v411
      %413 = vst [vmem:[#allocation3] sm:$0x1] %v412
      %v414 = vld [vmem:[#allocation3] sm:$0x1]
      %v415 = vpack.c.bf16 %v414, %v414
      %vm416 = vcmask 1040384
      %vm417 = vsmask.f32 256
      %vm418 = vmand %vm416, %vm417
      %v419 = vld [vmem:[%s217] sm:$0x1]
      %v420 = vsel %vm418, %v415, %v419
      %421 = vst [vmem:[%s217] sm:$0x1] %v420
      %p422 = scmp.lt.s32.totalorder %s16, 1
      %s423 = scalar_select %p422, %s16, 1
      %s424 = scalar_lea.vmem %s5, %s423
      // Predicated region
      $region41: #{_lambda_.11} parent=39 // pred_check
        %p425 = pneg %p144
      $region42: #{_lambda_.11} parent=39 // pred_check_branch
        %427 = sbr.rel (%p425) target = $region44
      $region43: #{_lambda_.11} parent=39 // pred_region
        _
      $region44: #{_lambda_.11} parent=39 // pred_fallthru
        _
    $region40: #{_lambda_.11} parent=5 // pred_fallthru
      _
    %p428 = scmp.le.s32.totalorder 2, %s11
    // Predicated region
    $region45: #{_lambda_.11} parent=5 // pred_check
      %p429 = pneg %p428
    $region46: #{_lambda_.11} parent=5 // pred_check_branch
      %431 = sbr.rel (%p429) target = $region48
    $region47: #{_lambda_.11} parent=5 // pred_region
      %s432 = ssub.s32 %s11, 2
      // Predicated region
      $region49: #{_lambda_.11} parent=47 // pred_check
        %p433 = pneg %p150
      $region50: #{_lambda_.11} parent=47 // pred_check_branch
        %435 = sbr.rel (%p433) target = $region52
      $region51: #{_lambda_.11} parent=47 // pred_region
        %p436 = scmp.lt.s32.totalorder %s17, 1
        %s437 = scalar_select %p436, %s17, 1
        %s438 = scalar_lea.vmem %s5, %s437
      $region52: #{_lambda_.11} parent=47 // pred_fallthru
        _
    $region48: #{_lambda_.11} parent=5 // pred_fallthru
      _
  $region6: #{_lambda_.11} parent=0 // loop_footer
    %s15 = sadd.s32 1, %s11
  $region7: #{_lambda_.11} parent=0 // loop_footer_branch
    %10 = sbr.rel target = $region3
  $region8: #{_lambda_.11} parent=0 // loop_exit
    _

// kernel: _lambda_.10
$region0: #{_lambda_.10}
  #allocation0 [shape = 'u32[]', space=smem, size = 0x4, offset = 0x4, fixed_abs, tag = 'smem constant byte address 0x4 - core index']
  #allocation1 [shape = 'u32[144,128]{1,0:T(1,128)}', space=vmem, size = 0x12000, scoped, tag = 'internal scratch']
  #allocation2 [shape = 'f32[4,4,64]{2,1,0:T(4,128)}', space=vmem, size = 0x2000, scoped, tag = 'scratch operand']
  #allocation3 [shape = 'f32[2,2,64]{2,1,0:T(2,128)}', space=vmem, size = 0x800, scoped, tag = 'scratch operand']
  %s0 = inlined_call_operand.vmem [shape: bf16[2,4,64], index: 0, kind: input, shape index: {}]
  %s1 = inlined_call_operand.vmem [shape: bf16[64,128], index: 1, kind: input, shape index: {}]
  %s2 = inlined_call_operand.vmem [shape: f32[1,128], index: 2, kind: input, shape index: {}]
  %s3 = inlined_call_operand.vmem [shape: f32[9,64], index: 3, kind: input, shape index: {}]
  %s4 = inlined_call_operand.vmem [shape: f32[1,64], index: 4, kind: input, shape index: {}]
  %s5 = inlined_call_operand.vmem [shape: bf16[2,2,128], index: 5, kind: output, shape index: {}]
  %s6 = sld [smem:[#allocation0]]
  $region53: #{_lambda_.10} parent=0
    _
  %s8 = ssub.s32 1, %s6
  %s9 = scalar_select 0, %s8, %s6
  loop: start=0, step=1, limit=4
  $region2: #{_lambda_.10} parent=0 // loop_pre_header
    _
  $region3: #{_lambda_.10} parent=0 // loop_header
    %s11 = sphi 0, %s15
    %p12 = scmp.ge.s32.totalorder %s11, 4
    %s21 = sphi 0, %s23
    %s24 = sphi 0, %s21
    %s25 = sphi 0, %s24
    %s41 = sphi 0, %s25
    %s45 = sphi 0, %s45
    %s47 = sphi 0, %s45
    %s48 = sphi 0, %s47
    %s62 = sphi 0, %s48
    %s66 = sphi 0, %s66
    %s68 = sphi 0, %s66
    %s69 = sphi 0, %s68
    %s83 = sphi 0, %s69
    %s87 = sphi 0, %s87
    %s89 = sphi 0, %s87
    %s90 = sphi 0, %s89
    %s104 = sphi 0, %s90
    %s108 = sphi 0, %s108
    %s110 = sphi 0, %s108
    %s111 = sphi 0, %s110
    %s125 = sphi 0, %s111
    %s131 = sphi 0, %s133
    %s134 = sphi 0, %s131
    %s135 = sphi 0, %s134
    %s151 = sphi 0, %s135
  $region4: #{_lambda_.10} parent=0 // loop_header_branch
    %14 = sbr.rel (%p12) target = $region8
  $region5: #{_lambda_.10} parent=0 // loop_body
    %s16 = ssub.s32 %s11, 1
    %s17 = ssub.s32 %s11, 2
    %s18 = sadd.s32 %s11, 1
    %s19 = ssub.s32 %s11, %s18
    %p20 = scmp.eq.s32.totalorder %s19, 0
    %s22 = sadd.s32 %s21, 1
    %s23 = scalar_select %p20, %s21, %s22
    %p26 = pneg %p20
    %p27 = scmp.eq.s32.totalorder %s11, 1
    %p28 = por %p26, %p27
    %p29 = scmp.ne.s32.totalorder %s21, %s24
    %p30 = scmp.eq.s32.totalorder %s11, 0
    %p31 = por %p29, %p30
    %p32 = scmp.ne.s32.totalorder %s21, %s24
    %p33 = scmp.eq.s32.totalorder %s16, 1
    %p34 = por %p32, %p33
    %p35 = scmp.ne.s32.totalorder %s24, %s25
    %p36 = scmp.eq.s32.totalorder %s16, 0
    %p37 = por %p35, %p36
    %p38 = scmp.ne.s32.totalorder %s24, %s25
    %p39 = scmp.eq.s32.totalorder %s17, 1
    %p40 = por %p38, %p39
    %p42 = scmp.ne.s32.totalorder %s25, %s41
    %p43 = scmp.eq.s32.totalorder %s17, 0
    %p44 = por %p42, %p43
    %s46 = sadd.s32 %s45, 1
    %p49 = scmp.eq.s32.totalorder %s11, 1
    %p50 = scmp.ne.s32.totalorder %s45, %s47
    %p51 = scmp.eq.s32.totalorder %s11, 0
    %p52 = por %p50, %p51
    %p53 = scmp.ne.s32.totalorder %s45, %s47
    %p54 = scmp.eq.s32.totalorder %s16, 1
    %p55 = por %p53, %p54
    %p56 = scmp.ne.s32.totalorder %s47, %s48
    %p57 = scmp.eq.s32.totalorder %s16, 0
    %p58 = por %p56, %p57
    %p59 = scmp.ne.s32.totalorder %s47, %s48
    %p60 = scmp.eq.s32.totalorder %s17, 1
    %p61 = por %p59, %p60
    %p63 = scmp.ne.s32.totalorder %s48, %s62
    %p64 = scmp.eq.s32.totalorder %s17, 0
    %p65 = por %p63, %p64
    %s67 = sadd.s32 %s66, 1
    %p70 = scmp.eq.s32.totalorder %s11, 1
    %p71 = scmp.ne.s32.totalorder %s66, %s68
    %p72 = scmp.eq.s32.totalorder %s11, 0
    %p73 = por %p71, %p72
    %p74 = scmp.ne.s32.totalorder %s66, %s68
    %p75 = scmp.eq.s32.totalorder %s16, 1
    %p76 = por %p74, %p75
    %p77 = scmp.ne.s32.totalorder %s68, %s69
    %p78 = scmp.eq.s32.totalorder %s16, 0
    %p79 = por %p77, %p78
    %p80 = scmp.ne.s32.totalorder %s68, %s69
    %p81 = scmp.eq.s32.totalorder %s17, 1
    %p82 = por %p80, %p81
    %p84 = scmp.ne.s32.totalorder %s69, %s83
    %p85 = scmp.eq.s32.totalorder %s17, 0
    %p86 = por %p84, %p85
    %s88 = sadd.s32 %s87, 1
    %p91 = scmp.eq.s32.totalorder %s11, 1
    %p92 = scmp.ne.s32.totalorder %s87, %s89
    %p93 = scmp.eq.s32.totalorder %s11, 0
    %p94 = por %p92, %p93
    %p95 = scmp.ne.s32.totalorder %s87, %s89
    %p96 = scmp.eq.s32.totalorder %s16, 1
    %p97 = por %p95, %p96
    %p98 = scmp.ne.s32.totalorder %s89, %s90
    %p99 = scmp.eq.s32.totalorder %s16, 0
    %p100 = por %p98, %p99
    %p101 = scmp.ne.s32.totalorder %s89, %s90
    %p102 = scmp.eq.s32.totalorder %s17, 1
    %p103 = por %p101, %p102
    %p105 = scmp.ne.s32.totalorder %s90, %s104
    %p106 = scmp.eq.s32.totalorder %s17, 0
    %p107 = por %p105, %p106
    %s109 = sadd.s32 %s108, 1
    %p112 = scmp.eq.s32.totalorder %s11, 1
    %p113 = scmp.ne.s32.totalorder %s108, %s110
    %p114 = scmp.eq.s32.totalorder %s11, 0
    %p115 = por %p113, %p114
    %p116 = scmp.ne.s32.totalorder %s108, %s110
    %p117 = scmp.eq.s32.totalorder %s16, 1
    %p118 = por %p116, %p117
    %p119 = scmp.ne.s32.totalorder %s110, %s111
    %p120 = scmp.eq.s32.totalorder %s16, 0
    %p121 = por %p119, %p120
    %p122 = scmp.ne.s32.totalorder %s110, %s111
    %p123 = scmp.eq.s32.totalorder %s17, 1
    %p124 = por %p122, %p123
    %p126 = scmp.ne.s32.totalorder %s111, %s125
    %p127 = scmp.eq.s32.totalorder %s17, 0
    %p128 = por %p126, %p127
    %s129 = ssub.s32 %s11, %s18
    %p130 = scmp.eq.s32.totalorder %s129, 0
    %s132 = sadd.s32 %s131, 1
    %s133 = scalar_select %p130, %s131, %s132
    %p136 = pneg %p130
    %p137 = scmp.eq.s32.totalorder %s11, 1
    %p138 = por %p136, %p137
    %p139 = scmp.ne.s32.totalorder %s131, %s134
    %p140 = scmp.eq.s32.totalorder %s11, 0
    %p141 = por %p139, %p140
    %p142 = scmp.ne.s32.totalorder %s131, %s134
    %p143 = scmp.eq.s32.totalorder %s16, 1
    %p144 = por %p142, %p143
    %p145 = scmp.ne.s32.totalorder %s134, %s135
    %p146 = scmp.eq.s32.totalorder %s16, 0
    %p147 = por %p145, %p146
    %p148 = scmp.ne.s32.totalorder %s134, %s135
    %p149 = scmp.eq.s32.totalorder %s17, 1
    %p150 = por %p148, %p149
    %p152 = scmp.ne.s32.totalorder %s135, %s151
    %p153 = scmp.eq.s32.totalorder %s17, 0
    %p154 = por %p152, %p153
    %p155 = scmp.le.s32.totalorder 1, %s11
    %p156 = scmp.lt.s32.totalorder %s11, 3
    %p157 = pnand %p155, %p156
    %p158 = pneg %p157
    // Predicated region
    $region9: #{_lambda_.10} parent=5 // pred_check
      _
    $region10: #{_lambda_.10} parent=5 // pred_check_branch
      %160 = sbr.rel (%p157) target = $region12
    $region11: #{_lambda_.10} parent=5 // pred_region
      %s161 = ssub.s32 %s11, 1
      // Predicated region
      $region13: #{_lambda_.10} parent=11 // pred_check
        %p162 = pneg %p58
      $region14: #{_lambda_.10} parent=11 // pred_check_branch
        %164 = sbr.rel (%p162) target = $region16
      $region15: #{_lambda_.10} parent=11 // pred_region
        _
      $region16: #{_lambda_.10} parent=11 // pred_fallthru
        _
      // Predicated region
      $region17: #{_lambda_.10} parent=11 // pred_check
        %p165 = pneg %p79
      $region18: #{_lambda_.10} parent=11 // pred_check_branch
        %167 = sbr.rel (%p165) target = $region20
      $region19: #{_lambda_.10} parent=11 // pred_region
        _
      $region20: #{_lambda_.10} parent=11 // pred_fallthru
        _
      // Predicated region
      $region21: #{_lambda_.10} parent=11 // pred_check
        %p168 = pneg %p100
      $region22: #{_lambda_.10} parent=11 // pred_check_branch
        %170 = sbr.rel (%p168) target = $region24
      $region23: #{_lambda_.10} parent=11 // pred_region
        _
      $region24: #{_lambda_.10} parent=11 // pred_fallthru
        _
      // Predicated region
      $region25: #{_lambda_.10} parent=11 // pred_check
        %p171 = pneg %p121
      $region26: #{_lambda_.10} parent=11 // pred_check_branch
        %173 = sbr.rel (%p171) target = $region28
      $region27: #{_lambda_.10} parent=11 // pred_region
        _
      $region28: #{_lambda_.10} parent=11 // pred_fallthru
        _
    $region12: #{_lambda_.10} parent=5 // pred_fallthru
      _
    %p174 = scmp.lt.s32.totalorder %s11, 2
    // Predicated region
    $region29: #{_lambda_.10} parent=5 // pred_check
      %p175 = pneg %p174
    $region30: #{_lambda_.10} parent=5 // pred_check_branch
      %177 = sbr.rel (%p175) target = $region32
    $region31: #{_lambda_.10} parent=5 // pred_region
      // Predicated region
      $region33: #{_lambda_.10} parent=31 // pred_check
        %p178 = pneg %p31
      $region34: #{_lambda_.10} parent=31 // pred_check_branch
        %180 = sbr.rel (%p178) target = $region36
      $region35: #{_lambda_.10} parent=31 // pred_region
        %p181 = scmp.lt.s32.totalorder %s11, 1
        %s182 = scalar_select %p181, %s11, 1
        %s183 = smul.addr %s182, 2
        %s184 = scalar_lea.vmem %s0, %s183
      $region36: #{_lambda_.10} parent=31 // pred_fallthru
        _
    $region32: #{_lambda_.10} parent=5 // pred_fallthru
      _
    %p185 = scmp.le.s32.totalorder 1, %s11
    %p186 = scmp.lt.s32.totalorder %s11, 3
    %p187 = pnand %p185, %p186
    %p188 = pneg %p187
    // Predicated region
    $region37: #{_lambda_.10} parent=5 // pred_check
      _
    $region38: #{_lambda_.10} parent=5 // pred_check_branch
      %190 = sbr.rel (%p187) target = $region40
    $region39: #{_lambda_.10} parent=5 // pred_region
      %s191 = ssub.s32 %s11, 1
      %p192 = scmp.lt.s32.totalorder %s16, 1
      %s193 = scalar_select %p192, %s16, 1
      %s194 = smul.addr %s193, 2
      %s195 = scalar_lea.vmem %s0, %s194
      %p196 = pneg %p37
      %p197 = pneg %p34
      %p198 = pneg %p58
      %p199 = pneg %p55
      %p200 = pneg %p79
      %p201 = pneg %p76
      %p202 = pneg %p100
      %p203 = pneg %p97
      %p204 = pneg %p121
      %p205 = pneg %p118
      %p206 = pneg %p147
      %p207 = pneg %p144
      %p208 = scmp.lt.s32.totalorder %s16, 1
      %s209 = scalar_select %p208, %s16, 1
      %s210 = scalar_lea.vmem %s5, %s209
      %p211 = scmp.lt.s32.totalorder %s16, 1
      %s212 = scalar_select %p211, %s16, 1
      %s213 = smul.addr %s212, 2
      %s214 = scalar_lea.vmem %s0, %s213
      %p215 = scmp.lt.s32.totalorder %s16, 1
      %s216 = scalar_select %p215, %s16, 1
      %s217 = scalar_lea.vmem %s5, %s216
      %v219 = vld [vmem:[%s214] sm:$0x3]
      %v220 = vld [vmem:[%s1] sm:$0xf]
      %v221 = vld [vmem:[%s1 + $0x4] sm:$0xf]
      %v222 = vld [vmem:[%s1 + $0x8] sm:$0xf]
      %v223 = vld [vmem:[%s1 + $0xc] sm:$0xf]
      %v224 = vld [vmem:[%s1 + $0x10] sm:$0xf]
      %v225 = vld [vmem:[%s1 + $0x14] sm:$0xf]
      %v226 = vld [vmem:[%s1 + $0x18] sm:$0xf]
      %v227 = vld [vmem:[%s1 + $0x1c] sm:$0xf]
      %v228 = vld [vmem:[%s2] sm:$0x1]
      %v230 = vlaneseq
      %v231 = vshrl.u32 %v230, 7
      %v232 = vsub.s32 0, %v231
      %v233 = vrot.slane %v228, %v232
      %v243 = vunpack.c.l.b16 %v220
      %v244 = vunpack.c.l.b16 %v221
      %v245 = vunpack.c.l.b16 %v222
      %v246 = vunpack.c.l.b16 %v223
      %v247 = vunpack.c.l.b16 %v224
      %v248 = vunpack.c.l.b16 %v225
      %v249 = vunpack.c.l.b16 %v226
      %v250 = vunpack.c.l.b16 %v227
      %v251 = vpack.c.b16 %v244, %v243
      %v252 = vpack.c.b16 %v246, %v245
      %v253 = vpack.c.b16 %v248, %v247
      %v254 = vpack.c.b16 %v250, %v249
      %vm259 = vcmask 523264
      %v261 = vsel %vm259, %v219, 0
      %263 = vmatprep.subr.bf16.mxu0 0
      %264 = vmatpush1.bf16.msra.mxu0 %v251
      %265 = vmatprep.subr.bf16.mxu0 0
      %266 = vmatpush1.bf16.msra.mxu0 %v252
      %267 = vmatprep.subr.bf16.mxu0 0
      %268 = vmatpush1.bf16.msra.mxu0 %v253
      %269 = vmatprep.subr.bf16.mxu0 0
      %270 = vmatpush1.bf16.msra.mxu0 %v254
      %271 = vmatprep.subr.bf16.mxu0 0
      %272 = vmatpush1.bf16.msra.mxu0 0
      %273 = vmatprep.subr.bf16.mxu0 0
      %274 = vmatpush1.bf16.msra.mxu0 0
      %275 = vmatprep.subr.bf16.mxu0 0
      %276 = vmatpush1.bf16.msra.mxu0 0
      %277 = vmatprep.subr.bf16.mxu0 0
      %278 = vmatpush1.bf16.msra.mxu0 0
      %279 = vmatprep.subr.bf16.mxu0 0
      %280 = vmatpush1.bf16.msra.mxu0 0
      %281 = vmatprep.subr.bf16.mxu0 0
      %282 = vmatpush1.bf16.msra.mxu0 0
      %283 = vmatprep.subr.bf16.mxu0 0
      %284 = vmatpush1.bf16.msra.mxu0 0
      %285 = vmatprep.subr.bf16.mxu0 0
      %286 = vmatpush1.bf16.msra.mxu0 0
      %287 = vmatprep.subr.bf16.mxu0 0
      %288 = vmatpush1.bf16.msra.mxu0 0
      %289 = vmatprep.subr.bf16.mxu0 0
      %290 = vmatpush1.bf16.msra.mxu0 0
      %291 = vmatprep.subr.bf16.mxu0 0
      %292 = vmatpush1.bf16.msra.mxu0 0
      %293 = vmatprep.subr.bf16.mxu0 0
      %294 = vmatpush1.bf16.msra.mxu0 0
      %295 = vmatprep.mubr.bf16.mxu0 0
      %296 = vmatmul.mubr.bf16.gmra.mrb[0].mxu0 %v261
      %v297 = vpop.f32.mrb[0].mxu0
      %v298 = vadd.f32 %v233, %v297
      %v299 = vpop.f32.mrb[0].mxu0
      %v300 = vpop.f32.mrb[0].mxu0
      %v301 = vpop.f32.mrb[0].mxu0
      %302 = vdwg.mxu0
      %vm303 = vcmask 1043968
      %v304 = vsel %vm303, %v298, 0.0
      %v305 = vrot.slane %v304, 4
      %v306 = vadd.f32 %v304, %v305
      %v307 = vrot.slane %v306, 2
      %v308 = vadd.f32 %v306, %v307
      %v309 = vrot.slane %v308, 1
      %v310 = vadd.f32 %v308, %v309
      %v311 = vrcp.pop 4.0
      %v312 = vmul.f32 %v310, %v311
      %314 = vrot.lane.b32.xlu0 %v312, 64
      %v315 = vpop.permute.xlu0 %314
      %v317 = vadd.f32 %v298, %v315
      %v318 = vxor.u32 %v317, 2147483648
      %v319 = vmul.f32 %v318, 1.442695
      %v320 = vpow.pop %v319
      %v321 = vadd.f32 %v320, 1.0
      %v322 = vrcp.pop %v321
      %v323 = vmul.f32 1.0, %v322
      %v324 = vmul.f32 %v298, %v323
      %vm325 = vcmask 519168
      %326 = vst.msk [vmem:[#allocation2] sm:$0xf] %vm325, 0.0
      %s327 = scalar_lea.vmem [#allocation2], 12
      %328 = vst.msk [vmem:[%s327] sm:$0xf] %vm325, 0.0
      %vm329 = vcmask 516096
      %330 = vst.msk [vmem:[#allocation2] sm:$0x1] %vm329, 0.0
      %331 = vst.msk [vmem:[#allocation2 + $0x4] sm:$0x1] %vm329, 0.0
      %332 = vst.msk [vmem:[#allocation2 + $0x8] sm:$0x1] %vm329, 0.0
      %333 = vst.msk [vmem:[#allocation2 + $0xc] sm:$0x1] %vm329, 0.0
      %334 = vst.msk [vmem:[#allocation2 + $0x3] sm:$0x1] %vm329, 0.0
      %335 = vst.msk [vmem:[#allocation2 + $0x7] sm:$0x1] %vm329, 0.0
      %336 = vst.msk [vmem:[#allocation2 + $0xb] sm:$0x1] %vm329, 0.0
      %337 = vst.msk [vmem:[#allocation2 + $0xf] sm:$0x1] %vm329, 0.0
      %v340 = vunpack.c.l.s4 1983009808
      %v341 = vunpack.c.0.s8 %v340
      %v342 = vlaneseq
      %v343 = vshrl.u32 %v342, 7
      %v344 = vsub.s32 %v341, %v343
      %v345 = vrot.slane %v324, %v344
      %v346 = vcombine.high %v345, %v345
      %s349 = scalar_lea.vmem [#allocation2], 4
      %vm350 = vcmask 517120
      %351 = vst.msk [vmem:[%s349 + $0x1] sm:$0x3] %vm350, %v345
      %352 = vst.msk [vmem:[%s349 + $0x5] sm:$0x3] %vm350, %v346
      %v353 = vld [vmem:[#allocation2] sm:$0x3]
      %v354 = vld [vmem:[#allocation2 + $0x4] sm:$0x3]
      %v355 = vld [vmem:[%s3] sm:$0x1]
      %v356 = vlaneseq
      %v357 = vshrl.u32 %v356, 7
      %v358 = vsub.s32 0, %v357
      %v359 = vrot.slane %v355, %v358
      %v360 = vmul.f32 %v353, %v359
      %v361 = vmul.f32 %v354, %v359
      %v362 = vadd.f32 %v360, 0.0
      %v363 = vadd.f32 %v361, 0.0
      %v364 = vld [vmem:[#allocation2 + $0x1] sm:$0x3]
      %v365 = vld [vmem:[#allocation2 + $0x5] sm:$0x3]
      %v366 = vld [vmem:[%s3 + $0x1] sm:$0x1]
      %v367 = vlaneseq
      %v368 = vshrl.u32 %v367, 7
      %v369 = vsub.s32 0, %v368
      %v370 = vrot.slane %v366, %v369
      %v371 = vmul.f32 %v364, %v370
      %v372 = vmul.f32 %v365, %v370
      %v373 = vadd.f32 %v362, %v371
      %v374 = vadd.f32 %v363, %v372
      %v375 = vld [vmem:[#allocation2 + $0x2] sm:$0x3]
      %v376 = vld [vmem:[#allocation2 + $0x6] sm:$0x3]
      %v377 = vld [vmem:[%s3 + $0x2] sm:$0x1]
      %v378 = vlaneseq
      %v379 = vshrl.u32 %v378, 7
      %v380 = vsub.s32 0, %v379
      %v381 = vrot.slane %v377, %v380
      %v382 = vmul.f32 %v375, %v381
      %v383 = vmul.f32 %v376, %v381
      %v384 = vadd.f32 %v373, %v382
      %v385 = vadd.f32 %v374, %v383
      %v386 = vld [vmem:[%s349] sm:$0x3]
      %v387 = vld [vmem:[%s349 + $0x4] sm:$0x3]
      %v388 = vld [vmem:[%s3 + $0x3] sm:$0x1]
      %v389 = vlaneseq
      %v390 = vshrl.u32 %v389, 7
      %v391 = vsub.s32 0, %v390
      %v392 = vrot.slane %v388, %v391
      %v393 = vmul.f32 %v386, %v392
      %v394 = vmul.f32 %v387, %v392
      %v395 = vadd.f32 %v384, %v393
      %v396 = vadd.f32 %v385, %v394
      %v397 = vld [vmem:[%s349 + $0x1] sm:$0x3]
      %v398 = vld [vmem:[%s349 + $0x5] sm:$0x3]
      %v399 = vld [vmem:[%s3 + $0x4] sm:$0x1]
      %v400 = vlaneseq
      %v401 = vshrl.u32 %v400, 7
      %v402 = vsub.s32 0, %v401
      %v403 = vrot.slane %v399, %v402
      %v404 = vmul.f32 %v397, %v403
      %v405 = vmul.f32 %v398, %v403
      %v406 = vadd.f32 %v395, %v404
      %v407 = vadd.f32 %v396, %v405
      %v408 = vld [vmem:[%s349 + $0x2] sm:$0x3]
      %v409 = vld [vmem:[%s349 + $0x6] sm:$0x3]
      %v410 = vld [vmem:[%s3 + $0x5] sm:$0x1]
      %v411 = vlaneseq
      %v412 = vshrl.u32 %v411, 7
      %v413 = vsub.s32 0, %v412
      %v414 = vrot.slane %v410, %v413
      %v415 = vmul.f32 %v408, %v414
      %v416 = vmul.f32 %v409, %v414
      %v417 = vadd.f32 %v406, %v415
      %v418 = vadd.f32 %v407, %v416
      %s419 = scalar_lea.vmem [#allocation2], 8
      %v420 = vld [vmem:[%s419] sm:$0x3]
      %v421 = vld [vmem:[%s419 + $0x4] sm:$0x3]
      %v422 = vld [vmem:[%s3 + $0x6] sm:$0x1]
      %v423 = vlaneseq
      %v424 = vshrl.u32 %v423, 7
      %v425 = vsub.s32 0, %v424
      %v426 = vrot.slane %v422, %v425
      %v427 = vmul.f32 %v420, %v426
      %v428 = vmul.f32 %v421, %v426
      %v429 = vadd.f32 %v417, %v427
      %v430 = vadd.f32 %v418, %v428
      %v431 = vld [vmem:[%s419 + $0x1] sm:$0x3]
      %v432 = vld [vmem:[%s419 + $0x5] sm:$0x3]
      %v433 = vld [vmem:[%s3 + $0x7] sm:$0x1]
      %v434 = vlaneseq
      %v435 = vshrl.u32 %v434, 7
      %v436 = vsub.s32 0, %v435
      %v437 = vrot.slane %v433, %v436
      %v438 = vmul.f32 %v431, %v437
      %v439 = vmul.f32 %v432, %v437
      %v440 = vadd.f32 %v429, %v438
      %v441 = vadd.f32 %v430, %v439
      %v442 = vld [vmem:[%s419 + $0x2] sm:$0x3]
      %v443 = vld [vmem:[%s419 + $0x6] sm:$0x3]
      %v444 = vld [vmem:[%s3 + $0x8] sm:$0x1]
      %v445 = vlaneseq
      %v446 = vshrl.u32 %v445, 7
      %v447 = vsub.s32 0, %v446
      %v448 = vrot.slane %v444, %v447
      %v449 = vmul.f32 %v442, %v448
      %v450 = vmul.f32 %v443, %v448
      %v451 = vadd.f32 %v440, %v449
      %v452 = vadd.f32 %v441, %v450
      %v453 = vld [vmem:[%s4] sm:$0x1]
      %v455 = vlaneseq
      %v456 = vshrl.u32 %v455, 7
      %v457 = vsub.s32 0, %v456
      %v458 = vrot.slane %v453, %v457
      %v460 = vadd.f32 %v451, %v458
      %v461 = vadd.f32 %v452, %v458
      %462 = vst.msk [vmem:[#allocation3] sm:$0x3] %vm350, %v460
      %463 = vst.msk [vmem:[#allocation3 + $0x2] sm:$0x3] %vm350, %v461
      %v464 = vld [vmem:[#allocation3] sm:$0x1]
      %v465 = vld [vmem:[#allocation3 + $0x2] sm:$0x1]
      %v466 = vpack.c.bf16 %v464, %v464
      %v467 = vpack.c.bf16 %v465, %v465
      %v471 = vunpack.c.l.s4 1966171168
      %v472 = vunpack.c.0.s8 %v471
      %v473 = vlaneseq
      %v474 = vshrl.u32 %v473, 7
      %v475 = vsub.s32 %v472, %v474
      %v476 = vrot.slane %v466, %v475
      %v478 = vunpack.c.l.s4 1966171168
      %v479 = vunpack.c.0.s8 %v478
      %v480 = vlaneseq
      %v481 = vshrl.u32 %v480, 7
      %v482 = vsub.s32 %v479, %v481
      %v483 = vrot.slane %v476, %v482
      %v485 = vunpack.c.l.s4 1966171168
      %v486 = vunpack.c.0.s8 %v485
      %v487 = vlaneseq
      %v488 = vshrl.u32 %v487, 7
      %v489 = vsub.s32 %v486, %v488
      %v490 = vrot.slane %v467, %v489
      %v492 = vunpack.c.l.s4 1966171168
      %v493 = vunpack.c.0.s8 %v492
      %v494 = vlaneseq
      %v495 = vshrl.u32 %v494, 7
      %v496 = vsub.s32 %v493, %v495
      %v497 = vrot.slane %v490, %v496
      %v499 = vunpack.c.l.s4 1935823168
      %v500 = vunpack.c.0.s8 %v499
      %v501 = vlaneseq
      %v502 = vshrl.u32 %v501, 7
      %v503 = vsub.s32 %v500, %v502
      %v504 = vrot.slane %v483, %v503
      %v506 = vunpack.c.l.s4 1935823168
      %v507 = vunpack.c.0.s8 %v506
      %v508 = vlaneseq
      %v509 = vshrl.u32 %v508, 7
      %v510 = vsub.s32 %v507, %v509
      %v511 = vrot.slane %v504, %v510
      %v513 = vunpack.c.l.s4 1935823168
      %v514 = vunpack.c.0.s8 %v513
      %v515 = vlaneseq
      %v516 = vshrl.u32 %v515, 7
      %v517 = vsub.s32 %v514, %v516
      %v518 = vrot.slane %v497, %v517
      %v520 = vunpack.c.l.s4 1935823168
      %v521 = vunpack.c.0.s8 %v520
      %v522 = vlaneseq
      %v523 = vshrl.u32 %v522, 7
      %v524 = vsub.s32 %v521, %v523
      %v525 = vrot.slane %v518, %v524
      %v526 = vunpack.c.l.b16 %v511
      %v527 = vunpack.c.l.b16 %v525
      %v528 = vrot.slane %v527, 7
      %vm529 = vcmask 1041409
      %v530 = vsel %vm529, %v528, %v526
      %v531 = vpack.c.b16 %v530, %v530
      %v533 = vunpack.c.l.s4 1966171168
      %v534 = vunpack.c.0.s8 %v533
      %v535 = vlaneseq
      %v536 = vshrl.u32 %v535, 7
      %v537 = vsub.s32 %v534, %v536
      %v538 = vrot.slane %v531, %v537
      %v540 = vunpack.c.l.s4 1966171168
      %v541 = vunpack.c.0.s8 %v540
      %v542 = vlaneseq
      %v543 = vshrl.u32 %v542, 7
      %v544 = vsub.s32 %v541, %v543
      %v545 = vrot.slane %v538, %v544
      %547 = vst.msk [vmem:[%s217] sm:$0x1] %vm329, %v545
      %v548 = vld [vmem:[#allocation3 + $0x1] sm:$0x1]
      %v549 = vld [vmem:[#allocation3 + $0x3] sm:$0x1]
      %v550 = vpack.c.bf16 %v548, %v548
      %v551 = vpack.c.bf16 %v549, %v549
      %v555 = vunpack.c.l.s4 1966171168
      %v556 = vunpack.c.0.s8 %v555
      %v557 = vlaneseq
      %v558 = vshrl.u32 %v557, 7
      %v559 = vsub.s32 %v556, %v558
      %v560 = vrot.slane %v550, %v559
      %v562 = vunpack.c.l.s4 1966171168
      %v563 = vunpack.c.0.s8 %v562
      %v564 = vlaneseq
      %v565 = vshrl.u32 %v564, 7
      %v566 = vsub.s32 %v563, %v565
      %v567 = vrot.slane %v560, %v566
      %v569 = vunpack.c.l.s4 1966171168
      %v570 = vunpack.c.0.s8 %v569
      %v571 = vlaneseq
      %v572 = vshrl.u32 %v571, 7
      %v573 = vsub.s32 %v570, %v572
      %v574 = vrot.slane %v551, %v573
      %v576 = vunpack.c.l.s4 1966171168
      %v577 = vunpack.c.0.s8 %v576
      %v578 = vlaneseq
      %v579 = vshrl.u32 %v578, 7
      %v580 = vsub.s32 %v577, %v579
      %v581 = vrot.slane %v574, %v580
      %v583 = vunpack.c.l.s4 1935823168
      %v584 = vunpack.c.0.s8 %v583
      %v585 = vlaneseq
      %v586 = vshrl.u32 %v585, 7
      %v587 = vsub.s32 %v584, %v586
      %v588 = vrot.slane %v567, %v587
      %v590 = vunpack.c.l.s4 1935823168
      %v591 = vunpack.c.0.s8 %v590
      %v592 = vlaneseq
      %v593 = vshrl.u32 %v592, 7
      %v594 = vsub.s32 %v591, %v593
      %v595 = vrot.slane %v588, %v594
      %v597 = vunpack.c.l.s4 1935823168
      %v598 = vunpack.c.0.s8 %v597
      %v599 = vlaneseq
      %v600 = vshrl.u32 %v599, 7
      %v601 = vsub.s32 %v598, %v600
      %v602 = vrot.slane %v581, %v601
      %v604 = vunpack.c.l.s4 1935823168
      %v605 = vunpack.c.0.s8 %v604
      %v606 = vlaneseq
      %v607 = vshrl.u32 %v606, 7
      %v608 = vsub.s32 %v605, %v607
      %v609 = vrot.slane %v602, %v608
      %v610 = vunpack.c.l.b16 %v595
      %v611 = vunpack.c.l.b16 %v609
      %v612 = vrot.slane %v611, 7
      %v613 = vsel %vm529, %v612, %v610
      %v614 = vpack.c.b16 %v613, %v613
      %v616 = vunpack.c.l.s4 1966171168
      %v617 = vunpack.c.0.s8 %v616
      %v618 = vlaneseq
      %v619 = vshrl.u32 %v618, 7
      %v620 = vsub.s32 %v617, %v619
      %v621 = vrot.slane %v614, %v620
      %v623 = vunpack.c.l.s4 1966171168
      %v624 = vunpack.c.0.s8 %v623
      %v625 = vlaneseq
      %v626 = vshrl.u32 %v625, 7
      %v627 = vsub.s32 %v624, %v626
      %v628 = vrot.slane %v621, %v627
      %629 = vrot.lane.b32.xlu0 %v628, 64
      %v630 = vpop.permute.xlu0 %629
      %vm632 = vcmask 1040896
      %633 = vst.msk [vmem:[%s217] sm:$0x1] %vm632, %v630
      %p634 = scmp.lt.s32.totalorder %s16, 1
      %s635 = scalar_select %p634, %s16, 1
      %s636 = scalar_lea.vmem %s5, %s635
      // Predicated region
      $region41: #{_lambda_.10} parent=39 // pred_check
        %p637 = pneg %p144
      $region42: #{_lambda_.10} parent=39 // pred_check_branch
        %639 = sbr.rel (%p637) target = $region44
      $region43: #{_lambda_.10} parent=39 // pred_region
        _
      $region44: #{_lambda_.10} parent=39 // pred_fallthru
        _
    $region40: #{_lambda_.10} parent=5 // pred_fallthru
      _
    %p640 = scmp.le.s32.totalorder 2, %s11
    // Predicated region
    $region45: #{_lambda_.10} parent=5 // pred_check
      %p641 = pneg %p640
    $region46: #{_lambda_.10} parent=5 // pred_check_branch
      %643 = sbr.rel (%p641) target = $region48
    $region47: #{_lambda_.10} parent=5 // pred_region
      %s644 = ssub.s32 %s11, 2
      // Predicated region
      $region49: #{_lambda_.10} parent=47 // pred_check
        %p645 = pneg %p150
      $region50: #{_lambda_.10} parent=47 // pred_check_branch
        %647 = sbr.rel (%p645) target = $region52
      $region51: #{_lambda_.10} parent=47 // pred_region
        %p648 = scmp.lt.s32.totalorder %s17, 1
        %s649 = scalar_select %p648, %s17, 1
        %s650 = scalar_lea.vmem %s5, %s649
      $region52: #{_lambda_.10} parent=47 // pred_fallthru
        _
    $region48: #{_lambda_.10} parent=5 // pred_fallthru
      _
  $region6: #{_lambda_.10} parent=0 // loop_footer
    %s15 = sadd.s32 1, %s11
  $region7: #{_lambda_.10} parent=0 // loop_footer_branch
    %10 = sbr.rel target = $region3
  $region8: #{_lambda_.10} parent=0 // loop_exit
    _

// kernel: _lambda_.6
$region0: #{_lambda_.6}
  #allocation0 [shape = 'u32[]', space=smem, size = 0x4, offset = 0x4, fixed_abs, tag = 'smem constant byte address 0x4 - core index']
  #allocation1 [shape = 'u32[144,128]{1,0:T(1,128)}', space=vmem, size = 0x12000, scoped, tag = 'internal scratch']
  #allocation2 [shape = 'bf16[256,27]{1,0:T(16,128)(2,1)}', space=vmem, size = 0x10000, scoped, tag = 'scratch operand']
  #allocation3 [shape = 'f32[16,16,8]{2,1,0:T(8,128)}', space=vmem, size = 0x20000, scoped, tag = 'scratch operand']
  %s0 = inlined_call_operand.vmem [shape: f32[2,34,34,3], index: 0, kind: input, shape index: {}]
  %s1 = inlined_call_operand.vmem [shape: bf16[27,8], index: 1, kind: input, shape index: {}]
  %s2 = inlined_call_operand.vmem [shape: f32[1,8], index: 2, kind: input, shape index: {}]
  %s3 = inlined_call_operand.vmem [shape: bf16[2,16,128], index: 3, kind: output, shape index: {}]
  %s4 = sld [smem:[#allocation0]]
  $region45: #{_lambda_.6} parent=0
    _
  %s6 = ssub.s32 1, %s4
  %s7 = scalar_select 0, %s6, %s4
  loop: start=0, step=1, limit=4
  $region2: #{_lambda_.6} parent=0 // loop_pre_header
    _
  $region3: #{_lambda_.6} parent=0 // loop_header
    %s9 = sphi 0, %s13
    %p10 = scmp.ge.s32.totalorder %s9, 4
    %s19 = sphi 0, %s21
    %s22 = sphi 0, %s19
    %s23 = sphi 0, %s22
    %s39 = sphi 0, %s23
    %s43 = sphi 0, %s43
    %s45 = sphi 0, %s43
    %s46 = sphi 0, %s45
    %s60 = sphi 0, %s46
    %s64 = sphi 0, %s64
    %s66 = sphi 0, %s64
    %s67 = sphi 0, %s66
    %s81 = sphi 0, %s67
    %s87 = sphi 0, %s89
    %s90 = sphi 0, %s87
    %s91 = sphi 0, %s90
    %s107 = sphi 0, %s91
  $region4: #{_lambda_.6} parent=0 // loop_header_branch
    %12 = sbr.rel (%p10) target = $region8
  $region5: #{_lambda_.6} parent=0 // loop_body
    %s14 = ssub.s32 %s9, 1
    %s15 = ssub.s32 %s9, 2
    %s16 = sadd.s32 %s9, 1
    %s17 = ssub.s32 %s9, %s16
    %p18 = scmp.eq.s32.totalorder %s17, 0
    %s20 = sadd.s32 %s19, 1
    %s21 = scalar_select %p18, %s19, %s20
    %p24 = pneg %p18
    %p25 = scmp.eq.s32.totalorder %s9, 1
    %p26 = por %p24, %p25
    %p27 = scmp.ne.s32.totalorder %s19, %s22
    %p28 = scmp.eq.s32.totalorder %s9, 0
    %p29 = por %p27, %p28
    %p30 = scmp.ne.s32.totalorder %s19, %s22
    %p31 = scmp.eq.s32.totalorder %s14, 1
    %p32 = por %p30, %p31
    %p33 = scmp.ne.s32.totalorder %s22, %s23
    %p34 = scmp.eq.s32.totalorder %s14, 0
    %p35 = por %p33, %p34
    %p36 = scmp.ne.s32.totalorder %s22, %s23
    %p37 = scmp.eq.s32.totalorder %s15, 1
    %p38 = por %p36, %p37
    %p40 = scmp.ne.s32.totalorder %s23, %s39
    %p41 = scmp.eq.s32.totalorder %s15, 0
    %p42 = por %p40, %p41
    %s44 = sadd.s32 %s43, 1
    %p47 = scmp.eq.s32.totalorder %s9, 1
    %p48 = scmp.ne.s32.totalorder %s43, %s45
    %p49 = scmp.eq.s32.totalorder %s9, 0
    %p50 = por %p48, %p49
    %p51 = scmp.ne.s32.totalorder %s43, %s45
    %p52 = scmp.eq.s32.totalorder %s14, 1
    %p53 = por %p51, %p52
    %p54 = scmp.ne.s32.totalorder %s45, %s46
    %p55 = scmp.eq.s32.totalorder %s14, 0
    %p56 = por %p54, %p55
    %p57 = scmp.ne.s32.totalorder %s45, %s46
    %p58 = scmp.eq.s32.totalorder %s15, 1
    %p59 = por %p57, %p58
    %p61 = scmp.ne.s32.totalorder %s46, %s60
    %p62 = scmp.eq.s32.totalorder %s15, 0
    %p63 = por %p61, %p62
    %s65 = sadd.s32 %s64, 1
    %p68 = scmp.eq.s32.totalorder %s9, 1
    %p69 = scmp.ne.s32.totalorder %s64, %s66
    %p70 = scmp.eq.s32.totalorder %s9, 0
    %p71 = por %p69, %p70
    %p72 = scmp.ne.s32.totalorder %s64, %s66
    %p73 = scmp.eq.s32.totalorder %s14, 1
    %p74 = por %p72, %p73
    %p75 = scmp.ne.s32.totalorder %s66, %s67
    %p76 = scmp.eq.s32.totalorder %s14, 0
    %p77 = por %p75, %p76
    %p78 = scmp.ne.s32.totalorder %s66, %s67
    %p79 = scmp.eq.s32.totalorder %s15, 1
    %p80 = por %p78, %p79
    %p82 = scmp.ne.s32.totalorder %s67, %s81
    %p83 = scmp.eq.s32.totalorder %s15, 0
    %p84 = por %p82, %p83
    %s85 = ssub.s32 %s9, %s16
    %p86 = scmp.eq.s32.totalorder %s85, 0
    %s88 = sadd.s32 %s87, 1
    %s89 = scalar_select %p86, %s87, %s88
    %p92 = pneg %p86
    %p93 = scmp.eq.s32.totalorder %s9, 1
    %p94 = por %p92, %p93
    %p95 = scmp.ne.s32.totalorder %s87, %s90
    %p96 = scmp.eq.s32.totalorder %s9, 0
    %p97 = por %p95, %p96
    %p98 = scmp.ne.s32.totalorder %s87, %s90
    %p99 = scmp.eq.s32.totalorder %s14, 1
    %p100 = por %p98, %p99
    %p101 = scmp.ne.s32.totalorder %s90, %s91
    %p102 = scmp.eq.s32.totalorder %s14, 0
    %p103 = por %p101, %p102
    %p104 = scmp.ne.s32.totalorder %s90, %s91
    %p105 = scmp.eq.s32.totalorder %s15, 1
    %p106 = por %p104, %p105
    %p108 = scmp.ne.s32.totalorder %s91, %s107
    %p109 = scmp.eq.s32.totalorder %s15, 0
    %p110 = por %p108, %p109
    %p111 = scmp.le.s32.totalorder 1, %s9
    %p112 = scmp.lt.s32.totalorder %s9, 3
    %p113 = pnand %p111, %p112
    %p114 = pneg %p113
    // Predicated region
    $region9: #{_lambda_.6} parent=5 // pred_check
      _
    $region10: #{_lambda_.6} parent=5 // pred_check_branch
      %116 = sbr.rel (%p113) target = $region12
    $region11: #{_lambda_.6} parent=5 // pred_region
      %s117 = ssub.s32 %s9, 1
      // Predicated region
      $region13: #{_lambda_.6} parent=11 // pred_check
        %p118 = pneg %p56
      $region14: #{_lambda_.6} parent=11 // pred_check_branch
        %120 = sbr.rel (%p118) target = $region16
      $region15: #{_lambda_.6} parent=11 // pred_region
        _
      $region16: #{_lambda_.6} parent=11 // pred_fallthru
        _
      // Predicated region
      $region17: #{_lambda_.6} parent=11 // pred_check
        %p121 = pneg %p77
      $region18: #{_lambda_.6} parent=11 // pred_check_branch
        %123 = sbr.rel (%p121) target = $region20
      $region19: #{_lambda_.6} parent=11 // pred_region
        _
      $region20: #{_lambda_.6} parent=11 // pred_fallthru
        _
    $region12: #{_lambda_.6} parent=5 // pred_fallthru
      _
    %p124 = scmp.lt.s32.totalorder %s9, 2
    // Predicated region
    $region21: #{_lambda_.6} parent=5 // pred_check
      %p125 = pneg %p124
    $region22: #{_lambda_.6} parent=5 // pred_check_branch
      %127 = sbr.rel (%p125) target = $region24
    $region23: #{_lambda_.6} parent=5 // pred_region
      // Predicated region
      $region25: #{_lambda_.6} parent=23 // pred_check
        %p128 = pneg %p29
      $region26: #{_lambda_.6} parent=23 // pred_check_branch
        %130 = sbr.rel (%p128) target = $region28
      $region27: #{_lambda_.6} parent=23 // pred_region
        %p131 = scmp.lt.s32.totalorder %s9, 1
        %s132 = scalar_select %p131, %s9, 1
        %s133 = smul.addr %s132, 170
        %s134 = smul.addr %s133, 8
        %s135 = scalar_lea.vmem %s0, %s134
      $region28: #{_lambda_.6} parent=23 // pred_fallthru
        _
    $region24: #{_lambda_.6} parent=5 // pred_fallthru
      _
    %p136 = scmp.le.s32.totalorder 1, %s9
    %p137 = scmp.lt.s32.totalorder %s9, 3
    %p138 = pnand %p136, %p137
    %p139 = pneg %p138
    // Predicated region
    $region29: #{_lambda_.6} parent=5 // pred_check
      _
    $region30: #{_lambda_.6} parent=5 // pred_check_branch
      %141 = sbr.rel (%p138) target = $region32
    $region31: #{_lambda_.6} parent=5 // pred_region
      %s142 = ssub.s32 %s9, 1
      %p143 = scmp.lt.s32.totalorder %s14, 1
      %s144 = scalar_select %p143, %s14, 1
      %s145 = smul.addr %s144, 170
      %s146 = smul.addr %s145, 8
      %s147 = scalar_lea.vmem %s0, %s146
      %p148 = pneg %p35
      %p149 = pneg %p32
      %p150 = pneg %p56
      %p151 = pneg %p53
      %p152 = pneg %p77
      %p153 = pneg %p74
      %p154 = pneg %p103
      %p155 = pneg %p100
      %p156 = scmp.lt.s32.totalorder %s14, 1
      %s157 = scalar_select %p156, %s14, 1
      %s158 = smul.addr %s157, 2
      %s159 = smul.addr %s158, 4
      %s160 = scalar_lea.vmem %s3, %s159
      %p161 = scmp.lt.s32.totalorder %s14, 1
      %s162 = scalar_select %p161, %s14, 1
      %s163 = smul.addr %s162, 170
      %s164 = smul.addr %s163, 8
      %s165 = scalar_lea.vmem %s0, %s164
      %p166 = scmp.lt.s32.totalorder %s14, 1
      %s167 = scalar_select %p166, %s14, 1
      %s168 = smul.addr %s167, 2
      %s169 = smul.addr %s168, 4
      %s170 = scalar_lea.vmem %s3, %s169
      %v172 = vld [vmem:[%s165] ss:$2 sm:$0xff]
      %s173 = scalar_lea.vmem %s165, 16
      %v174 = vld [vmem:[%s173] ss:$2 sm:$0xff]
      %s175 = scalar_lea.vmem %s165, 80
      %v176 = vld [vmem:[%s175] ss:$2 sm:$0xff]
      %s177 = scalar_lea.vmem %s165, 96
      %v178 = vld [vmem:[%s177] ss:$2 sm:$0xff]
      %s179 = scalar_lea.vmem %s165, 160
      %v180 = vld [vmem:[%s179] ss:$2 sm:$0xff]
      %s181 = scalar_lea.vmem %s165, 176
      %v182 = vld [vmem:[%s181] ss:$2 sm:$0xff]
      %s183 = scalar_lea.vmem %s165, 240
      %v184 = vld [vmem:[%s183] ss:$2 sm:$0xff]
      %s185 = scalar_lea.vmem %s165, 256
      %v186 = vld [vmem:[%s185] ss:$2 sm:$0xff]
      %s187 = scalar_lea.vmem %s165, 320
      %v188 = vld [vmem:[%s187] ss:$2 sm:$0xff]
      %s189 = scalar_lea.vmem %s165, 336
      %v190 = vld [vmem:[%s189] ss:$2 sm:$0xff]
      %s191 = scalar_lea.vmem %s165, 400
      %v192 = vld [vmem:[%s191] ss:$2 sm:$0xff]
      %s193 = scalar_lea.vmem %s165, 416
      %v194 = vld [vmem:[%s193] ss:$2 sm:$0xff]
      %s195 = scalar_lea.vmem %s165, 480
      %v196 = vld [vmem:[%s195] ss:$2 sm:$0xff]
      %s197 = scalar_lea.vmem %s165, 496
      %v198 = vld [vmem:[%s197] ss:$2 sm:$0xff]
      %s199 = scalar_lea.vmem %s165, 560
      %v200 = vld [vmem:[%s199] ss:$2 sm:$0xff]
      %s201 = scalar_lea.vmem %s165, 576
      %v202 = vld [vmem:[%s201] ss:$2 sm:$0xff]
      %s203 = scalar_lea.vmem %s165, 640
      %v204 = vld [vmem:[%s203] ss:$2 sm:$0xff]
      %s205 = scalar_lea.vmem %s165, 656
      %v206 = vld [vmem:[%s205] ss:$2 sm:$0xff]
      %s207 = scalar_lea.vmem %s165, 720
      %v208 = vld [vmem:[%s207] ss:$2 sm:$0xff]
      %s209 = scalar_lea.vmem %s165, 736
      %v210 = vld [vmem:[%s209] ss:$2 sm:$0xff]
      %s211 = scalar_lea.vmem %s165, 800
      %v212 = vld [vmem:[%s211] ss:$2 sm:$0xff]
      %s213 = scalar_lea.vmem %s165, 816
      %v214 = vld [vmem:[%s213] ss:$2 sm:$0xff]
      %s215 = scalar_lea.vmem %s165, 880
      %v216 = vld [vmem:[%s215] ss:$2 sm:$0xff]
      %s217 = scalar_lea.vmem %s165, 896
      %v218 = vld [vmem:[%s217] ss:$2 sm:$0xff]
      %s219 = scalar_lea.vmem %s165, 960
      %v220 = vld [vmem:[%s219] ss:$2 sm:$0xff]
      %s221 = scalar_lea.vmem %s165, 976
      %v222 = vld [vmem:[%s221] ss:$2 sm:$0xff]
      %s223 = scalar_lea.vmem %s165, 1040
      %v224 = vld [vmem:[%s223] ss:$2 sm:$0xff]
      %s225 = scalar_lea.vmem %s165, 1056
      %v226 = vld [vmem:[%s225] ss:$2 sm:$0xff]
      %s227 = scalar_lea.vmem %s165, 1120
      %v228 = vld [vmem:[%s227] ss:$2 sm:$0xff]
      %s229 = scalar_lea.vmem %s165, 1136
      %v230 = vld [vmem:[%s229] ss:$2 sm:$0xff]
      %s231 = scalar_lea.vmem %s165, 1200
      %v232 = vld [vmem:[%s231] ss:$2 sm:$0xff]
      %s233 = scalar_lea.vmem %s165, 1216
      %v234 = vld [vmem:[%s233] ss:$2 sm:$0xff]
      %v235 = vpack.c.bf16 %v174, %v172
      %v236 = vpack.c.bf16 %v178, %v176
      %v237 = vpack.c.bf16 %v182, %v180
      %v238 = vpack.c.bf16 %v186, %v184
      %v239 = vpack.c.bf16 %v190, %v188
      %v240 = vpack.c.bf16 %v194, %v192
      %v241 = vpack.c.bf16 %v198, %v196
      %v242 = vpack.c.bf16 %v202, %v200
      %v243 = vpack.c.bf16 %v206, %v204
      %v244 = vpack.c.bf16 %v210, %v208
      %v245 = vpack.c.bf16 %v214, %v212
      %v246 = vpack.c.bf16 %v218, %v216
      %v247 = vpack.c.bf16 %v222, %v220
      %v248 = vpack.c.bf16 %v226, %v224
      %v249 = vpack.c.bf16 %v230, %v228
      %v250 = vpack.c.bf16 %v234, %v232
      %vm251 = vcmask 23552
      %252 = vst.msk [vmem:[#allocation2] sm:$0xff] %vm251, %v235
      %253 = vst.msk [vmem:[#allocation2 + $0x8] sm:$0xff] %vm251, %v236
      %254 = vst.msk [vmem:[#allocation2 + $0x10] sm:$0xff] %vm251, %v237
      %255 = vst.msk [vmem:[#allocation2 + $0x18] sm:$0xff] %vm251, %v238
      %256 = vst.msk [vmem:[#allocation2 + $0x20] sm:$0xff] %vm251, %v239
      %257 = vst.msk [vmem:[#allocation2 + $0x28] sm:$0xff] %vm251, %v240
      %258 = vst.msk [vmem:[#allocation2 + $0x30] sm:$0xff] %vm251, %v241
      %259 = vst.msk [vmem:[#allocation2 + $0x38] sm:$0xff] %vm251, %v242
      %260 = vst.msk [vmem:[#allocation2 + $0x40] sm:$0xff] %vm251, %v243
      %261 = vst.msk [vmem:[#allocation2 + $0x48] sm:$0xff] %vm251, %v244
      %262 = vst.msk [vmem:[#allocation2 + $0x50] sm:$0xff] %vm251, %v245
      %263 = vst.msk [vmem:[#allocation2 + $0x58] sm:$0xff] %vm251, %v246
      %264 = vst.msk [vmem:[#allocation2 + $0x60] sm:$0xff] %vm251, %v247
      %265 = vst.msk [vmem:[#allocation2 + $0x68] sm:$0xff] %vm251, %v248
      %266 = vst.msk [vmem:[#allocation2 + $0x70] sm:$0xff] %vm251, %v249
      %267 = vst.msk [vmem:[#allocation2 + $0x78] sm:$0xff] %vm251, %v250
      %s268 = scalar_lea.vmem %s165, 1
      %v269 = vld [vmem:[%s268] ss:$2 sm:$0xff]
      %s270 = scalar_lea.vmem %s165, 17
      %v271 = vld [vmem:[%s270] ss:$2 sm:$0xff]
      %s272 = scalar_lea.vmem %s165, 81
      %v273 = vld [vmem:[%s272] ss:$2 sm:$0xff]
      %s274 = scalar_lea.vmem %s165, 97
      %v275 = vld [vmem:[%s274] ss:$2 sm:$0xff]
      %s276 = scalar_lea.vmem %s165, 161
      %v277 = vld [vmem:[%s276] ss:$2 sm:$0xff]
      %s278 = scalar_lea.vmem %s165, 177
      %v279 = vld [vmem:[%s278] ss:$2 sm:$0xff]
      %s280 = scalar_lea.vmem %s165, 241
      %v281 = vld [vmem:[%s280] ss:$2 sm:$0xff]
      %s282 = scalar_lea.vmem %s165, 257
      %v283 = vld [vmem:[%s282] ss:$2 sm:$0xff]
      %s284 = scalar_lea.vmem %s165, 321
      %v285 = vld [vmem:[%s284] ss:$2 sm:$0xff]
      %s286 = scalar_lea.vmem %s165, 337
      %v287 = vld [vmem:[%s286] ss:$2 sm:$0xff]
      %s288 = scalar_lea.vmem %s165, 401
      %v289 = vld [vmem:[%s288] ss:$2 sm:$0xff]
      %s290 = scalar_lea.vmem %s165, 417
      %v291 = vld [vmem:[%s290] ss:$2 sm:$0xff]
      %s292 = scalar_lea.vmem %s165, 481
      %v293 = vld [vmem:[%s292] ss:$2 sm:$0xff]
      %s294 = scalar_lea.vmem %s165, 497
      %v295 = vld [vmem:[%s294] ss:$2 sm:$0xff]
      %s296 = scalar_lea.vmem %s165, 561
      %v297 = vld [vmem:[%s296] ss:$2 sm:$0xff]
      %s298 = scalar_lea.vmem %s165, 577
      %v299 = vld [vmem:[%s298] ss:$2 sm:$0xff]
      %s300 = scalar_lea.vmem %s165, 641
      %v301 = vld [vmem:[%s300] ss:$2 sm:$0xff]
      %s302 = scalar_lea.vmem %s165, 657
      %v303 = vld [vmem:[%s302] ss:$2 sm:$0xff]
      %s304 = scalar_lea.vmem %s165, 721
      %v305 = vld [vmem:[%s304] ss:$2 sm:$0xff]
      %s306 = scalar_lea.vmem %s165, 737
      %v307 = vld [vmem:[%s306] ss:$2 sm:$0xff]
      %s308 = scalar_lea.vmem %s165, 801
      %v309 = vld [vmem:[%s308] ss:$2 sm:$0xff]
      %s310 = scalar_lea.vmem %s165, 817
      %v311 = vld [vmem:[%s310] ss:$2 sm:$0xff]
      %s312 = scalar_lea.vmem %s165, 881
      %v313 = vld [vmem:[%s312] ss:$2 sm:$0xff]
      %s314 = scalar_lea.vmem %s165, 897
      %v315 = vld [vmem:[%s314] ss:$2 sm:$0xff]
      %s316 = scalar_lea.vmem %s165, 961
      %v317 = vld [vmem:[%s316] ss:$2 sm:$0xff]
      %s318 = scalar_lea.vmem %s165, 977
      %v319 = vld [vmem:[%s318] ss:$2 sm:$0xff]
      %s320 = scalar_lea.vmem %s165, 1041
      %v321 = vld [vmem:[%s320] ss:$2 sm:$0xff]
      %s322 = scalar_lea.vmem %s165, 1057
      %v323 = vld [vmem:[%s322] ss:$2 sm:$0xff]
      %s324 = scalar_lea.vmem %s165, 1121
      %v325 = vld [vmem:[%s324] ss:$2 sm:$0xff]
      %s326 = scalar_lea.vmem %s165, 1137
      %v327 = vld [vmem:[%s326] ss:$2 sm:$0xff]
      %s328 = scalar_lea.vmem %s165, 1201
      %v329 = vld [vmem:[%s328] ss:$2 sm:$0xff]
      %s330 = scalar_lea.vmem %s165, 1217
      %v331 = vld [vmem:[%s330] ss:$2 sm:$0xff]
      %v332 = vpack.c.bf16 %v271, %v269
      %v333 = vpack.c.bf16 %v275, %v273
      %v334 = vpack.c.bf16 %v279, %v277
      %v335 = vpack.c.bf16 %v283, %v281
      %v336 = vpack.c.bf16 %v287, %v285
      %v337 = vpack.c.bf16 %v291, %v289
      %v338 = vpack.c.bf16 %v295, %v293
      %v339 = vpack.c.bf16 %v299, %v297
      %v340 = vpack.c.bf16 %v303, %v301
      %v341 = vpack.c.bf16 %v307, %v305
      %v342 = vpack.c.bf16 %v311, %v309
      %v343 = vpack.c.bf16 %v315, %v313
      %v344 = vpack.c.bf16 %v319, %v317
      %v345 = vpack.c.bf16 %v323, %v321
      %v346 = vpack.c.bf16 %v327, %v325
      %v347 = vpack.c.bf16 %v331, %v329
      %364 = vrot.lane.b32.xlu0 %v332, 3
      %v365 = vpop.permute.xlu0 %364
      %366 = vrot.lane.b32.xlu0 %v333, 3
      %v367 = vpop.permute.xlu0 %366
      %368 = vrot.lane.b32.xlu0 %v334, 3
      %v369 = vpop.permute.xlu0 %368
      %370 = vrot.lane.b32.xlu0 %v335, 3
      %v371 = vpop.permute.xlu0 %370
      %372 = vrot.lane.b32.xlu0 %v336, 3
      %v373 = vpop.permute.xlu0 %372
      %374 = vrot.lane.b32.xlu0 %v337, 3
      %v375 = vpop.permute.xlu0 %374
      %376 = vrot.lane.b32.xlu0 %v338, 3
      %v377 = vpop.permute.xlu0 %376
      %378 = vrot.lane.b32.xlu0 %v339, 3
      %v379 = vpop.permute.xlu0 %378
      %380 = vrot.lane.b32.xlu0 %v340, 3
      %v381 = vpop.permute.xlu0 %380
      %382 = vrot.lane.b32.xlu0 %v341, 3
      %v383 = vpop.permute.xlu0 %382
      %384 = vrot.lane.b32.xlu0 %v342, 3
      %v385 = vpop.permute.xlu0 %384
      %386 = vrot.lane.b32.xlu0 %v343, 3
      %v387 = vpop.permute.xlu0 %386
      %388 = vrot.lane.b32.xlu0 %v344, 3
      %v389 = vpop.permute.xlu0 %388
      %390 = vrot.lane.b32.xlu0 %v345, 3
      %v391 = vpop.permute.xlu0 %390
      %392 = vrot.lane.b32.xlu0 %v346, 3
      %v393 = vpop.permute.xlu0 %392
      %394 = vrot.lane.b32.xlu0 %v347, 3
      %v395 = vpop.permute.xlu0 %394
      %vm412 = vcmask 48152
      %413 = vst.msk [vmem:[#allocation2] sm:$0xff] %vm412, %v365
      %414 = vst.msk [vmem:[#allocation2 + $0x8] sm:$0xff] %vm412, %v367
      %415 = vst.msk [vmem:[#allocation2 + $0x10] sm:$0xff] %vm412, %v369
      %416 = vst.msk [vmem:[#allocation2 + $0x18] sm:$0xff] %vm412, %v371
      %417 = vst.msk [vmem:[#allocation2 + $0x20] sm:$0xff] %vm412, %v373
      %418 = vst.msk [vmem:[#allocation2 + $0x28] sm:$0xff] %vm412, %v375
      %419 = vst.msk [vmem:[#allocation2 + $0x30] sm:$0xff] %vm412, %v377
      %420 = vst.msk [vmem:[#allocation2 + $0x38] sm:$0xff] %vm412, %v379
      %421 = vst.msk [vmem:[#allocation2 + $0x40] sm:$0xff] %vm412, %v381
      %422 = vst.msk [vmem:[#allocation2 + $0x48] sm:$0xff] %vm412, %v383
      %423 = vst.msk [vmem:[#allocation2 + $0x50] sm:$0xff] %vm412, %v385
      %424 = vst.msk [vmem:[#allocation2 + $0x58] sm:$0xff] %vm412, %v387
      %425 = vst.msk [vmem:[#allocation2 + $0x60] sm:$0xff] %vm412, %v389
      %426 = vst.msk [vmem:[#allocation2 + $0x68] sm:$0xff] %vm412, %v391
      %427 = vst.msk [vmem:[#allocation2 + $0x70] sm:$0xff] %vm412, %v393
      %428 = vst.msk [vmem:[#allocation2 + $0x78] sm:$0xff] %vm412, %v395
      %s429 = scalar_lea.vmem %s165, 2
      %v430 = vld [vmem:[%s429] ss:$2 sm:$0xff]
      %s431 = scalar_lea.vmem %s165, 18
      %v432 = vld [vmem:[%s431] ss:$2 sm:$0xff]
      %s433 = scalar_lea.vmem %s165, 82
      %v434 = vld [vmem:[%s433] ss:$2 sm:$0xff]
      %s435 = scalar_lea.vmem %s165, 98
      %v436 = vld [vmem:[%s435] ss:$2 sm:$0xff]
      %s437 = scalar_lea.vmem %s165, 162
      %v438 = vld [vmem:[%s437] ss:$2 sm:$0xff]
      %s439 = scalar_lea.vmem %s165, 178
      %v440 = vld [vmem:[%s439] ss:$2 sm:$0xff]
      %s441 = scalar_lea.vmem %s165, 242
      %v442 = vld [vmem:[%s441] ss:$2 sm:$0xff]
      %s443 = scalar_lea.vmem %s165, 258
      %v444 = vld [vmem:[%s443] ss:$2 sm:$0xff]
      %s445 = scalar_lea.vmem %s165, 322
      %v446 = vld [vmem:[%s445] ss:$2 sm:$0xff]
      %s447 = scalar_lea.vmem %s165, 338
      %v448 = vld [vmem:[%s447] ss:$2 sm:$0xff]
      %s449 = scalar_lea.vmem %s165, 402
      %v450 = vld [vmem:[%s449] ss:$2 sm:$0xff]
      %s451 = scalar_lea.vmem %s165, 418
      %v452 = vld [vmem:[%s451] ss:$2 sm:$0xff]
      %s453 = scalar_lea.vmem %s165, 482
      %v454 = vld [vmem:[%s453] ss:$2 sm:$0xff]
      %s455 = scalar_lea.vmem %s165, 498
      %v456 = vld [vmem:[%s455] ss:$2 sm:$0xff]
      %s457 = scalar_lea.vmem %s165, 562
      %v458 = vld [vmem:[%s457] ss:$2 sm:$0xff]
      %s459 = scalar_lea.vmem %s165, 578
      %v460 = vld [vmem:[%s459] ss:$2 sm:$0xff]
      %s461 = scalar_lea.vmem %s165, 642
      %v462 = vld [vmem:[%s461] ss:$2 sm:$0xff]
      %s463 = scalar_lea.vmem %s165, 658
      %v464 = vld [vmem:[%s463] ss:$2 sm:$0xff]
      %s465 = scalar_lea.vmem %s165, 722
      %v466 = vld [vmem:[%s465] ss:$2 sm:$0xff]
      %s467 = scalar_lea.vmem %s165, 738
      %v468 = vld [vmem:[%s467] ss:$2 sm:$0xff]
      %s469 = scalar_lea.vmem %s165, 802
      %v470 = vld [vmem:[%s469] ss:$2 sm:$0xff]
      %s471 = scalar_lea.vmem %s165, 818
      %v472 = vld [vmem:[%s471] ss:$2 sm:$0xff]
      %s473 = scalar_lea.vmem %s165, 882
      %v474 = vld [vmem:[%s473] ss:$2 sm:$0xff]
      %s475 = scalar_lea.vmem %s165, 898
      %v476 = vld [vmem:[%s475] ss:$2 sm:$0xff]
      %s477 = scalar_lea.vmem %s165, 962
      %v478 = vld [vmem:[%s477] ss:$2 sm:$0xff]
      %s479 = scalar_lea.vmem %s165, 978
      %v480 = vld [vmem:[%s479] ss:$2 sm:$0xff]
      %s481 = scalar_lea.vmem %s165, 1042
      %v482 = vld [vmem:[%s481] ss:$2 sm:$0xff]
      %s483 = scalar_lea.vmem %s165, 1058
      %v484 = vld [vmem:[%s483] ss:$2 sm:$0xff]
      %s485 = scalar_lea.vmem %s165, 1122
      %v486 = vld [vmem:[%s485] ss:$2 sm:$0xff]
      %s487 = scalar_lea.vmem %s165, 1138
      %v488 = vld [vmem:[%s487] ss:$2 sm:$0xff]
      %s489 = scalar_lea.vmem %s165, 1202
      %v490 = vld [vmem:[%s489] ss:$2 sm:$0xff]
      %s491 = scalar_lea.vmem %s165, 1218
      %v492 = vld [vmem:[%s491] ss:$2 sm:$0xff]
      %v493 = vpack.c.bf16 %v432, %v430
      %v494 = vpack.c.bf16 %v436, %v434
      %v495 = vpack.c.bf16 %v440, %v438
      %v496 = vpack.c.bf16 %v444, %v442
      %v497 = vpack.c.bf16 %v448, %v446
      %v498 = vpack.c.bf16 %v452, %v450
      %v499 = vpack.c.bf16 %v456, %v454
      %v500 = vpack.c.bf16 %v460, %v458
      %v501 = vpack.c.bf16 %v464, %v462
      %v502 = vpack.c.bf16 %v468, %v466
      %v503 = vpack.c.bf16 %v472, %v470
      %v504 = vpack.c.bf16 %v476, %v474
      %v505 = vpack.c.bf16 %v480, %v478
      %v506 = vpack.c.bf16 %v484, %v482
      %v507 = vpack.c.bf16 %v488, %v486
      %v508 = vpack.c.bf16 %v492, %v490
      %525 = vrot.lane.b32.xlu0 %v493, 6
      %v526 = vpop.permute.xlu0 %525
      %527 = vrot.lane.b32.xlu0 %v494, 6
      %v528 = vpop.permute.xlu0 %527
      %529 = vrot.lane.b32.xlu0 %v495, 6
      %v530 = vpop.permute.xlu0 %529
      %531 = vrot.lane.b32.xlu0 %v496, 6
      %v532 = vpop.permute.xlu0 %531
      %533 = vrot.lane.b32.xlu0 %v497, 6
      %v534 = vpop.permute.xlu0 %533
      %535 = vrot.lane.b32.xlu0 %v498, 6
      %v536 = vpop.permute.xlu0 %535
      %537 = vrot.lane.b32.xlu0 %v499, 6
      %v538 = vpop.permute.xlu0 %537
      %539 = vrot.lane.b32.xlu0 %v500, 6
      %v540 = vpop.permute.xlu0 %539
      %541 = vrot.lane.b32.xlu0 %v501, 6
      %v542 = vpop.permute.xlu0 %541
      %543 = vrot.lane.b32.xlu0 %v502, 6
      %v544 = vpop.permute.xlu0 %543
      %545 = vrot.lane.b32.xlu0 %v503, 6
      %v546 = vpop.permute.xlu0 %545
      %547 = vrot.lane.b32.xlu0 %v504, 6
      %v548 = vpop.permute.xlu0 %547
      %549 = vrot.lane.b32.xlu0 %v505, 6
      %v550 = vpop.permute.xlu0 %549
      %551 = vrot.lane.b32.xlu0 %v506, 6
      %v552 = vpop.permute.xlu0 %551
      %553 = vrot.lane.b32.xlu0 %v507, 6
      %v554 = vpop.permute.xlu0 %553
      %555 = vrot.lane.b32.xlu0 %v508, 6
      %v556 = vpop.permute.xlu0 %555
      %vm573 = vcmask 72752
      %574 = vst.msk [vmem:[#allocation2] sm:$0xff] %vm573, %v526
      %575 = vst.msk [vmem:[#allocation2 + $0x8] sm:$0xff] %vm573, %v528
      %576 = vst.msk [vmem:[#allocation2 + $0x10] sm:$0xff] %vm573, %v530
      %577 = vst.msk [vmem:[#allocation2 + $0x18] sm:$0xff] %vm573, %v532
      %578 = vst.msk [vmem:[#allocation2 + $0x20] sm:$0xff] %vm573, %v534
      %579 = vst.msk [vmem:[#allocation2 + $0x28] sm:$0xff] %vm573, %v536
      %580 = vst.msk [vmem:[#allocation2 + $0x30] sm:$0xff] %vm573, %v538
      %581 = vst.msk [vmem:[#allocation2 + $0x38] sm:$0xff] %vm573, %v540
      %582 = vst.msk [vmem:[#allocation2 + $0x40] sm:$0xff] %vm573, %v542
      %583 = vst.msk [vmem:[#allocation2 + $0x48] sm:$0xff] %vm573, %v544
      %584 = vst.msk [vmem:[#allocation2 + $0x50] sm:$0xff] %vm573, %v546
      %585 = vst.msk [vmem:[#allocation2 + $0x58] sm:$0xff] %vm573, %v548
      %586 = vst.msk [vmem:[#allocation2 + $0x60] sm:$0xff] %vm573, %v550
      %587 = vst.msk [vmem:[#allocation2 + $0x68] sm:$0xff] %vm573, %v552
      %588 = vst.msk [vmem:[#allocation2 + $0x70] sm:$0xff] %vm573, %v554
      %589 = vst.msk [vmem:[#allocation2 + $0x78] sm:$0xff] %vm573, %v556
      %s590 = scalar_lea.vmem %s165, 40
      %v591 = vld [vmem:[%s590] ss:$2 sm:$0xff]
      %s592 = scalar_lea.vmem %s590, 16
      %v593 = vld [vmem:[%s592] ss:$2 sm:$0xff]
      %s594 = scalar_lea.vmem %s590, 80
      %v595 = vld [vmem:[%s594] ss:$2 sm:$0xff]
      %s596 = scalar_lea.vmem %s590, 96
      %v597 = vld [vmem:[%s596] ss:$2 sm:$0xff]
      %s598 = scalar_lea.vmem %s590, 160
      %v599 = vld [vmem:[%s598] ss:$2 sm:$0xff]
      %s600 = scalar_lea.vmem %s590, 176
      %v601 = vld [vmem:[%s600] ss:$2 sm:$0xff]
      %s602 = scalar_lea.vmem %s590, 240
      %v603 = vld [vmem:[%s602] ss:$2 sm:$0xff]
      %s604 = scalar_lea.vmem %s590, 256
      %v605 = vld [vmem:[%s604] ss:$2 sm:$0xff]
      %s606 = scalar_lea.vmem %s590, 320
      %v607 = vld [vmem:[%s606] ss:$2 sm:$0xff]
      %s608 = scalar_lea.vmem %s590, 336
      %v609 = vld [vmem:[%s608] ss:$2 sm:$0xff]
      %s610 = scalar_lea.vmem %s590, 400
      %v611 = vld [vmem:[%s610] ss:$2 sm:$0xff]
      %s612 = scalar_lea.vmem %s590, 416
      %v613 = vld [vmem:[%s612] ss:$2 sm:$0xff]
      %s614 = scalar_lea.vmem %s590, 480
      %v615 = vld [vmem:[%s614] ss:$2 sm:$0xff]
      %s616 = scalar_lea.vmem %s590, 496
      %v617 = vld [vmem:[%s616] ss:$2 sm:$0xff]
      %s618 = scalar_lea.vmem %s590, 560
      %v619 = vld [vmem:[%s618] ss:$2 sm:$0xff]
      %s620 = scalar_lea.vmem %s590, 576
      %v621 = vld [vmem:[%s620] ss:$2 sm:$0xff]
      %s622 = scalar_lea.vmem %s590, 640
      %v623 = vld [vmem:[%s622] ss:$2 sm:$0xff]
      %s624 = scalar_lea.vmem %s590, 656
      %v625 = vld [vmem:[%s624] ss:$2 sm:$0xff]
      %s626 = scalar_lea.vmem %s590, 720
      %v627 = vld [vmem:[%s626] ss:$2 sm:$0xff]
      %s628 = scalar_lea.vmem %s590, 736
      %v629 = vld [vmem:[%s628] ss:$2 sm:$0xff]
      %s630 = scalar_lea.vmem %s590, 800
      %v631 = vld [vmem:[%s630] ss:$2 sm:$0xff]
      %s632 = scalar_lea.vmem %s590, 816
      %v633 = vld [vmem:[%s632] ss:$2 sm:$0xff]
      %s634 = scalar_lea.vmem %s590, 880
      %v635 = vld [vmem:[%s634] ss:$2 sm:$0xff]
      %s636 = scalar_lea.vmem %s590, 896
      %v637 = vld [vmem:[%s636] ss:$2 sm:$0xff]
      %s638 = scalar_lea.vmem %s590, 960
      %v639 = vld [vmem:[%s638] ss:$2 sm:$0xff]
      %s640 = scalar_lea.vmem %s590, 976
      %v641 = vld [vmem:[%s640] ss:$2 sm:$0xff]
      %s642 = scalar_lea.vmem %s590, 1040
      %v643 = vld [vmem:[%s642] ss:$2 sm:$0xff]
      %s644 = scalar_lea.vmem %s590, 1056
      %v645 = vld [vmem:[%s644] ss:$2 sm:$0xff]
      %s646 = scalar_lea.vmem %s590, 1120
      %v647 = vld [vmem:[%s646] ss:$2 sm:$0xff]
      %s648 = scalar_lea.vmem %s590, 1136
      %v649 = vld [vmem:[%s648] ss:$2 sm:$0xff]
      %s650 = scalar_lea.vmem %s590, 1200
      %v651 = vld [vmem:[%s650] ss:$2 sm:$0xff]
      %s652 = scalar_lea.vmem %s590, 1216
      %v653 = vld [vmem:[%s652] ss:$2 sm:$0xff]
      %v654 = vpack.c.bf16 %v593, %v591
      %v655 = vpack.c.bf16 %v597, %v595
      %v656 = vpack.c.bf16 %v601, %v599
      %v657 = vpack.c.bf16 %v605, %v603
      %v658 = vpack.c.bf16 %v609, %v607
      %v659 = vpack.c.bf16 %v613, %v611
      %v660 = vpack.c.bf16 %v617, %v615
      %v661 = vpack.c.bf16 %v621, %v619
      %v662 = vpack.c.bf16 %v625, %v623
      %v663 = vpack.c.bf16 %v629, %v627
      %v664 = vpack.c.bf16 %v633, %v631
      %v665 = vpack.c.bf16 %v637, %v635
      %v666 = vpack.c.bf16 %v641, %v639
      %v667 = vpack.c.bf16 %v645, %v643
      %v668 = vpack.c.bf16 %v649, %v647
      %v669 = vpack.c.bf16 %v653, %v651
      %686 = vrot.lane.b32.xlu0 %v654, 9
      %v687 = vpop.permute.xlu0 %686
      %688 = vrot.lane.b32.xlu0 %v655, 9
      %v689 = vpop.permute.xlu0 %688
      %690 = vrot.lane.b32.xlu0 %v656, 9
      %v691 = vpop.permute.xlu0 %690
      %692 = vrot.lane.b32.xlu0 %v657, 9
      %v693 = vpop.permute.xlu0 %692
      %694 = vrot.lane.b32.xlu0 %v658, 9
      %v695 = vpop.permute.xlu0 %694
      %696 = vrot.lane.b32.xlu0 %v659, 9
      %v697 = vpop.permute.xlu0 %696
      %698 = vrot.lane.b32.xlu0 %v660, 9
      %v699 = vpop.permute.xlu0 %698
      %700 = vrot.lane.b32.xlu0 %v661, 9
      %v701 = vpop.permute.xlu0 %700
      %702 = vrot.lane.b32.xlu0 %v662, 9
      %v703 = vpop.permute.xlu0 %702
      %704 = vrot.lane.b32.xlu0 %v663, 9
      %v705 = vpop.permute.xlu0 %704
      %706 = vrot.lane.b32.xlu0 %v664, 9
      %v707 = vpop.permute.xlu0 %706
      %708 = vrot.lane.b32.xlu0 %v665, 9
      %v709 = vpop.permute.xlu0 %708
      %710 = vrot.lane.b32.xlu0 %v666, 9
      %v711 = vpop.permute.xlu0 %710
      %712 = vrot.lane.b32.xlu0 %v667, 9
      %v713 = vpop.permute.xlu0 %712
      %714 = vrot.lane.b32.xlu0 %v668, 9
      %v715 = vpop.permute.xlu0 %714
      %716 = vrot.lane.b32.xlu0 %v669, 9
      %v717 = vpop.permute.xlu0 %716
      %vm734 = vcmask 97352
      %735 = vst.msk [vmem:[#allocation2] sm:$0xff] %vm734, %v687
      %736 = vst.msk [vmem:[#allocation2 + $0x8] sm:$0xff] %vm734, %v689
      %737 = vst.msk [vmem:[#allocation2 + $0x10] sm:$0xff] %vm734, %v691
      %738 = vst.msk [vmem:[#allocation2 + $0x18] sm:$0xff] %vm734, %v693
      %739 = vst.msk [vmem:[#allocation2 + $0x20] sm:$0xff] %vm734, %v695
      %740 = vst.msk [vmem:[#allocation2 + $0x28] sm:$0xff] %vm734, %v697
      %741 = vst.msk [vmem:[#allocation2 + $0x30] sm:$0xff] %vm734, %v699
      %742 = vst.msk [vmem:[#allocation2 + $0x38] sm:$0xff] %vm734, %v701
      %743 = vst.msk [vmem:[#allocation2 + $0x40] sm:$0xff] %vm734, %v703
      %744 = vst.msk [vmem:[#allocation2 + $0x48] sm:$0xff] %vm734, %v705
      %745 = vst.msk [vmem:[#allocation2 + $0x50] sm:$0xff] %vm734, %v707
      %746 = vst.msk [vmem:[#allocation2 + $0x58] sm:$0xff] %vm734, %v709
      %747 = vst.msk [vmem:[#allocation2 + $0x60] sm:$0xff] %vm734, %v711
      %748 = vst.msk [vmem:[#allocation2 + $0x68] sm:$0xff] %vm734, %v713
      %749 = vst.msk [vmem:[#allocation2 + $0x70] sm:$0xff] %vm734, %v715
      %750 = vst.msk [vmem:[#allocation2 + $0x78] sm:$0xff] %vm734, %v717
      %s751 = scalar_lea.vmem %s590, 1
      %v752 = vld [vmem:[%s751] ss:$2 sm:$0xff]
      %s753 = scalar_lea.vmem %s590, 17
      %v754 = vld [vmem:[%s753] ss:$2 sm:$0xff]
      %s755 = scalar_lea.vmem %s590, 81
      %v756 = vld [vmem:[%s755] ss:$2 sm:$0xff]
      %s757 = scalar_lea.vmem %s590, 97
      %v758 = vld [vmem:[%s757] ss:$2 sm:$0xff]
      %s759 = scalar_lea.vmem %s590, 161
      %v760 = vld [vmem:[%s759] ss:$2 sm:$0xff]
      %s761 = scalar_lea.vmem %s590, 177
      %v762 = vld [vmem:[%s761] ss:$2 sm:$0xff]
      %s763 = scalar_lea.vmem %s590, 241
      %v764 = vld [vmem:[%s763] ss:$2 sm:$0xff]
      %s765 = scalar_lea.vmem %s590, 257
      %v766 = vld [vmem:[%s765] ss:$2 sm:$0xff]
      %s767 = scalar_lea.vmem %s590, 321
      %v768 = vld [vmem:[%s767] ss:$2 sm:$0xff]
      %s769 = scalar_lea.vmem %s590, 337
      %v770 = vld [vmem:[%s769] ss:$2 sm:$0xff]
      %s771 = scalar_lea.vmem %s590, 401
      %v772 = vld [vmem:[%s771] ss:$2 sm:$0xff]
      %s773 = scalar_lea.vmem %s590, 417
      %v774 = vld [vmem:[%s773] ss:$2 sm:$0xff]
      %s775 = scalar_lea.vmem %s590, 481
      %v776 = vld [vmem:[%s775] ss:$2 sm:$0xff]
      %s777 = scalar_lea.vmem %s590, 497
      %v778 = vld [vmem:[%s777] ss:$2 sm:$0xff]
      %s779 = scalar_lea.vmem %s590, 561
      %v780 = vld [vmem:[%s779] ss:$2 sm:$0xff]
      %s781 = scalar_lea.vmem %s590, 577
      %v782 = vld [vmem:[%s781] ss:$2 sm:$0xff]
      %s783 = scalar_lea.vmem %s590, 641
      %v784 = vld [vmem:[%s783] ss:$2 sm:$0xff]
      %s785 = scalar_lea.vmem %s590, 657
      %v786 = vld [vmem:[%s785] ss:$2 sm:$0xff]
      %s787 = scalar_lea.vmem %s590, 721
      %v788 = vld [vmem:[%s787] ss:$2 sm:$0xff]
      %s789 = scalar_lea.vmem %s590, 737
      %v790 = vld [vmem:[%s789] ss:$2 sm:$0xff]
      %s791 = scalar_lea.vmem %s590, 801
      %v792 = vld [vmem:[%s791] ss:$2 sm:$0xff]
      %s793 = scalar_lea.vmem %s590, 817
      %v794 = vld [vmem:[%s793] ss:$2 sm:$0xff]
      %s795 = scalar_lea.vmem %s590, 881
      %v796 = vld [vmem:[%s795] ss:$2 sm:$0xff]
      %s797 = scalar_lea.vmem %s590, 897
      %v798 = vld [vmem:[%s797] ss:$2 sm:$0xff]
      %s799 = scalar_lea.vmem %s590, 961
      %v800 = vld [vmem:[%s799] ss:$2 sm:$0xff]
      %s801 = scalar_lea.vmem %s590, 977
      %v802 = vld [vmem:[%s801] ss:$2 sm:$0xff]
      %s803 = scalar_lea.vmem %s590, 1041
      %v804 = vld [vmem:[%s803] ss:$2 sm:$0xff]
      %s805 = scalar_lea.vmem %s590, 1057
      %v806 = vld [vmem:[%s805] ss:$2 sm:$0xff]
      %s807 = scalar_lea.vmem %s590, 1121
      %v808 = vld [vmem:[%s807] ss:$2 sm:$0xff]
      %s809 = scalar_lea.vmem %s590, 1137
      %v810 = vld [vmem:[%s809] ss:$2 sm:$0xff]
      %s811 = scalar_lea.vmem %s590, 1201
      %v812 = vld [vmem:[%s811] ss:$2 sm:$0xff]
      %s813 = scalar_lea.vmem %s590, 1217
      %v814 = vld [vmem:[%s813] ss:$2 sm:$0xff]
      %v815 = vpack.c.bf16 %v754, %v752
      %v816 = vpack.c.bf16 %v758, %v756
      %v817 = vpack.c.bf16 %v762, %v760
      %v818 = vpack.c.bf16 %v766, %v764
      %v819 = vpack.c.bf16 %v770, %v768
      %v820 = vpack.c.bf16 %v774, %v772
      %v821 = vpack.c.bf16 %v778, %v776
      %v822 = vpack.c.bf16 %v782, %v780
      %v823 = vpack.c.bf16 %v786, %v784
      %v824 = vpack.c.bf16 %v790, %v788
      %v825 = vpack.c.bf16 %v794, %v792
      %v826 = vpack.c.bf16 %v798, %v796
      %v827 = vpack.c.bf16 %v802, %v800
      %v828 = vpack.c.bf16 %v806, %v804
      %v829 = vpack.c.bf16 %v810, %v808
      %v830 = vpack.c.bf16 %v814, %v812
      %847 = vrot.lane.b32.xlu0 %v815, 12
      %v848 = vpop.permute.xlu0 %847
      %849 = vrot.lane.b32.xlu0 %v816, 12
      %v850 = vpop.permute.xlu0 %849
      %851 = vrot.lane.b32.xlu0 %v817, 12
      %v852 = vpop.permute.xlu0 %851
      %853 = vrot.lane.b32.xlu0 %v818, 12
      %v854 = vpop.permute.xlu0 %853
      %855 = vrot.lane.b32.xlu0 %v819, 12
      %v856 = vpop.permute.xlu0 %855
      %857 = vrot.lane.b32.xlu0 %v820, 12
      %v858 = vpop.permute.xlu0 %857
      %859 = vrot.lane.b32.xlu0 %v821, 12
      %v860 = vpop.permute.xlu0 %859
      %861 = vrot.lane.b32.xlu0 %v822, 12
      %v862 = vpop.permute.xlu0 %861
      %863 = vrot.lane.b32.xlu0 %v823, 12
      %v864 = vpop.permute.xlu0 %863
      %865 = vrot.lane.b32.xlu0 %v824, 12
      %v866 = vpop.permute.xlu0 %865
      %867 = vrot.lane.b32.xlu0 %v825, 12
      %v868 = vpop.permute.xlu0 %867
      %869 = vrot.lane.b32.xlu0 %v826, 12
      %v870 = vpop.permute.xlu0 %869
      %871 = vrot.lane.b32.xlu0 %v827, 12
      %v872 = vpop.permute.xlu0 %871
      %873 = vrot.lane.b32.xlu0 %v828, 12
      %v874 = vpop.permute.xlu0 %873
      %875 = vrot.lane.b32.xlu0 %v829, 12
      %v876 = vpop.permute.xlu0 %875
      %877 = vrot.lane.b32.xlu0 %v830, 12
      %v878 = vpop.permute.xlu0 %877
      %vm895 = vcmask 121952
      %896 = vst.msk [vmem:[#allocation2] sm:$0xff] %vm895, %v848
      %897 = vst.msk [vmem:[#allocation2 + $0x8] sm:$0xff] %vm895, %v850
      %898 = vst.msk [vmem:[#allocation2 + $0x10] sm:$0xff] %vm895, %v852
      %899 = vst.msk [vmem:[#allocation2 + $0x18] sm:$0xff] %vm895, %v854
      %900 = vst.msk [vmem:[#allocation2 + $0x20] sm:$0xff] %vm895, %v856
      %901 = vst.msk [vmem:[#allocation2 + $0x28] sm:$0xff] %vm895, %v858
      %902 = vst.msk [vmem:[#allocation2 + $0x30] sm:$0xff] %vm895, %v860
      %903 = vst.msk [vmem:[#allocation2 + $0x38] sm:$0xff] %vm895, %v862
      %904 = vst.msk [vmem:[#allocation2 + $0x40] sm:$0xff] %vm895, %v864
      %905 = vst.msk [vmem:[#allocation2 + $0x48] sm:$0xff] %vm895, %v866
      %906 = vst.msk [vmem:[#allocation2 + $0x50] sm:$0xff] %vm895, %v868
      %907 = vst.msk [vmem:[#allocation2 + $0x58] sm:$0xff] %vm895, %v870
      %908 = vst.msk [vmem:[#allocation2 + $0x60] sm:$0xff] %vm895, %v872
      %909 = vst.msk [vmem:[#allocation2 + $0x68] sm:$0xff] %vm895, %v874
      %910 = vst.msk [vmem:[#allocation2 + $0x70] sm:$0xff] %vm895, %v876
      %911 = vst.msk [vmem:[#allocation2 + $0x78] sm:$0xff] %vm895, %v878
      %s912 = scalar_lea.vmem %s590, 2
      %v913 = vld [vmem:[%s912] ss:$2 sm:$0xff]
      %s914 = scalar_lea.vmem %s590, 18
      %v915 = vld [vmem:[%s914] ss:$2 sm:$0xff]
      %s916 = scalar_lea.vmem %s590, 82
      %v917 = vld [vmem:[%s916] ss:$2 sm:$0xff]
      %s918 = scalar_lea.vmem %s590, 98
      %v919 = vld [vmem:[%s918] ss:$2 sm:$0xff]
      %s920 = scalar_lea.vmem %s590, 162
      %v921 = vld [vmem:[%s920] ss:$2 sm:$0xff]
      %s922 = scalar_lea.vmem %s590, 178
      %v923 = vld [vmem:[%s922] ss:$2 sm:$0xff]
      %s924 = scalar_lea.vmem %s590, 242
      %v925 = vld [vmem:[%s924] ss:$2 sm:$0xff]
      %s926 = scalar_lea.vmem %s590, 258
      %v927 = vld [vmem:[%s926] ss:$2 sm:$0xff]
      %s928 = scalar_lea.vmem %s590, 322
      %v929 = vld [vmem:[%s928] ss:$2 sm:$0xff]
      %s930 = scalar_lea.vmem %s590, 338
      %v931 = vld [vmem:[%s930] ss:$2 sm:$0xff]
      %s932 = scalar_lea.vmem %s590, 402
      %v933 = vld [vmem:[%s932] ss:$2 sm:$0xff]
      %s934 = scalar_lea.vmem %s590, 418
      %v935 = vld [vmem:[%s934] ss:$2 sm:$0xff]
      %s936 = scalar_lea.vmem %s590, 482
      %v937 = vld [vmem:[%s936] ss:$2 sm:$0xff]
      %s938 = scalar_lea.vmem %s590, 498
      %v939 = vld [vmem:[%s938] ss:$2 sm:$0xff]
      %s940 = scalar_lea.vmem %s590, 562
      %v941 = vld [vmem:[%s940] ss:$2 sm:$0xff]
      %s942 = scalar_lea.vmem %s590, 578
      %v943 = vld [vmem:[%s942] ss:$2 sm:$0xff]
      %s944 = scalar_lea.vmem %s590, 642
      %v945 = vld [vmem:[%s944] ss:$2 sm:$0xff]
      %s946 = scalar_lea.vmem %s590, 658
      %v947 = vld [vmem:[%s946] ss:$2 sm:$0xff]
      %s948 = scalar_lea.vmem %s590, 722
      %v949 = vld [vmem:[%s948] ss:$2 sm:$0xff]
      %s950 = scalar_lea.vmem %s590, 738
      %v951 = vld [vmem:[%s950] ss:$2 sm:$0xff]
      %s952 = scalar_lea.vmem %s590, 802
      %v953 = vld [vmem:[%s952] ss:$2 sm:$0xff]
      %s954 = scalar_lea.vmem %s590, 818
      %v955 = vld [vmem:[%s954] ss:$2 sm:$0xff]
      %s956 = scalar_lea.vmem %s590, 882
      %v957 = vld [vmem:[%s956] ss:$2 sm:$0xff]
      %s958 = scalar_lea.vmem %s590, 898
      %v959 = vld [vmem:[%s958] ss:$2 sm:$0xff]
      %s960 = scalar_lea.vmem %s590, 962
      %v961 = vld [vmem:[%s960] ss:$2 sm:$0xff]
      %s962 = scalar_lea.vmem %s590, 978
      %v963 = vld [vmem:[%s962] ss:$2 sm:$0xff]
      %s964 = scalar_lea.vmem %s590, 1042
      %v965 = vld [vmem:[%s964] ss:$2 sm:$0xff]
      %s966 = scalar_lea.vmem %s590, 1058
      %v967 = vld [vmem:[%s966] ss:$2 sm:$0xff]
      %s968 = scalar_lea.vmem %s590, 1122
      %v969 = vld [vmem:[%s968] ss:$2 sm:$0xff]
      %s970 = scalar_lea.vmem %s590, 1138
      %v971 = vld [vmem:[%s970] ss:$2 sm:$0xff]
      %s972 = scalar_lea.vmem %s590, 1202
      %v973 = vld [vmem:[%s972] ss:$2 sm:$0xff]
      %s974 = scalar_lea.vmem %s590, 1218
      %v975 = vld [vmem:[%s974] ss:$2 sm:$0xff]
      %v976 = vpack.c.bf16 %v915, %v913
      %v977 = vpack.c.bf16 %v919, %v917
      %v978 = vpack.c.bf16 %v923, %v921
      %v979 = vpack.c.bf16 %v927, %v925
      %v980 = vpack.c.bf16 %v931, %v929
      %v981 = vpack.c.bf16 %v935, %v933
      %v982 = vpack.c.bf16 %v939, %v937
      %v983 = vpack.c.bf16 %v943, %v941
      %v984 = vpack.c.bf16 %v947, %v945
      %v985 = vpack.c.bf16 %v951, %v949
      %v986 = vpack.c.bf16 %v955, %v953
      %v987 = vpack.c.bf16 %v959, %v957
      %v988 = vpack.c.bf16 %v963, %v961
      %v989 = vpack.c.bf16 %v967, %v965
      %v990 = vpack.c.bf16 %v971, %v969
      %v991 = vpack.c.bf16 %v975, %v973
      %1008 = vrot.lane.b32.xlu0 %v976, 15
      %v1009 = vpop.permute.xlu0 %1008
      %1010 = vrot.lane.b32.xlu0 %v977, 15
      %v1011 = vpop.permute.xlu0 %1010
      %1012 = vrot.lane.b32.xlu0 %v978, 15
      %v1013 = vpop.permute.xlu0 %1012
      %1014 = vrot.lane.b32.xlu0 %v979, 15
      %v1015 = vpop.permute.xlu0 %1014
      %1016 = vrot.lane.b32.xlu0 %v980, 15
      %v1017 = vpop.permute.xlu0 %1016
      %1018 = vrot.lane.b32.xlu0 %v981, 15
      %v1019 = vpop.permute.xlu0 %1018
      %1020 = vrot.lane.b32.xlu0 %v982, 15
      %v1021 = vpop.permute.xlu0 %1020
      %1022 = vrot.lane.b32.xlu0 %v983, 15
      %v1023 = vpop.permute.xlu0 %1022
      %1024 = vrot.lane.b32.xlu0 %v984, 15
      %v1025 = vpop.permute.xlu0 %1024
      %1026 = vrot.lane.b32.xlu0 %v985, 15
      %v1027 = vpop.permute.xlu0 %1026
      %1028 = vrot.lane.b32.xlu0 %v986, 15
      %v1029 = vpop.permute.xlu0 %1028
      %1030 = vrot.lane.b32.xlu0 %v987, 15
      %v1031 = vpop.permute.xlu0 %1030
      %1032 = vrot.lane.b32.xlu0 %v988, 15
      %v1033 = vpop.permute.xlu0 %1032
      %1034 = vrot.lane.b32.xlu0 %v989, 15
      %v1035 = vpop.permute.xlu0 %1034
      %1036 = vrot.lane.b32.xlu0 %v990, 15
      %v1037 = vpop.permute.xlu0 %1036
      %1038 = vrot.lane.b32.xlu0 %v991, 15
      %v1039 = vpop.permute.xlu0 %1038
      %vm1056 = vcmask 146552
      %1057 = vst.msk [vmem:[#allocation2] sm:$0xff] %vm1056, %v1009
      %1058 = vst.msk [vmem:[#allocation2 + $0x8] sm:$0xff] %vm1056, %v1011
      %1059 = vst.msk [vmem:[#allocation2 + $0x10] sm:$0xff] %vm1056, %v1013
      %1060 = vst.msk [vmem:[#allocation2 + $0x18] sm:$0xff] %vm1056, %v1015
      %1061 = vst.msk [vmem:[#allocation2 + $0x20] sm:$0xff] %vm1056, %v1017
      %1062 = vst.msk [vmem:[#allocation2 + $0x28] sm:$0xff] %vm1056, %v1019
      %1063 = vst.msk [vmem:[#allocation2 + $0x30] sm:$0xff] %vm1056, %v1021
      %1064 = vst.msk [vmem:[#allocation2 + $0x38] sm:$0xff] %vm1056, %v1023
      %1065 = vst.msk [vmem:[#allocation2 + $0x40] sm:$0xff] %vm1056, %v1025
      %1066 = vst.msk [vmem:[#allocation2 + $0x48] sm:$0xff] %vm1056, %v1027
      %1067 = vst.msk [vmem:[#allocation2 + $0x50] sm:$0xff] %vm1056, %v1029
      %1068 = vst.msk [vmem:[#allocation2 + $0x58] sm:$0xff] %vm1056, %v1031
      %1069 = vst.msk [vmem:[#allocation2 + $0x60] sm:$0xff] %vm1056, %v1033
      %1070 = vst.msk [vmem:[#allocation2 + $0x68] sm:$0xff] %vm1056, %v1035
      %1071 = vst.msk [vmem:[#allocation2 + $0x70] sm:$0xff] %vm1056, %v1037
      %1072 = vst.msk [vmem:[#allocation2 + $0x78] sm:$0xff] %vm1056, %v1039
      %s1073 = scalar_lea.vmem %s165, 80
      %v1074 = vld [vmem:[%s1073] ss:$2 sm:$0xff]
      %s1075 = scalar_lea.vmem %s1073, 16
      %v1076 = vld [vmem:[%s1075] ss:$2 sm:$0xff]
      %s1077 = scalar_lea.vmem %s1073, 80
      %v1078 = vld [vmem:[%s1077] ss:$2 sm:$0xff]
      %s1079 = scalar_lea.vmem %s1073, 96
      %v1080 = vld [vmem:[%s1079] ss:$2 sm:$0xff]
      %s1081 = scalar_lea.vmem %s1073, 160
      %v1082 = vld [vmem:[%s1081] ss:$2 sm:$0xff]
      %s1083 = scalar_lea.vmem %s1073, 176
      %v1084 = vld [vmem:[%s1083] ss:$2 sm:$0xff]
      %s1085 = scalar_lea.vmem %s1073, 240
      %v1086 = vld [vmem:[%s1085] ss:$2 sm:$0xff]
      %s1087 = scalar_lea.vmem %s1073, 256
      %v1088 = vld [vmem:[%s1087] ss:$2 sm:$0xff]
      %s1089 = scalar_lea.vmem %s1073, 320
      %v1090 = vld [vmem:[%s1089] ss:$2 sm:$0xff]
      %s1091 = scalar_lea.vmem %s1073, 336
      %v1092 = vld [vmem:[%s1091] ss:$2 sm:$0xff]
      %s1093 = scalar_lea.vmem %s1073, 400
      %v1094 = vld [vmem:[%s1093] ss:$2 sm:$0xff]
      %s1095 = scalar_lea.vmem %s1073, 416
      %v1096 = vld [vmem:[%s1095] ss:$2 sm:$0xff]
      %s1097 = scalar_lea.vmem %s1073, 480
      %v1098 = vld [vmem:[%s1097] ss:$2 sm:$0xff]
      %s1099 = scalar_lea.vmem %s1073, 496
      %v1100 = vld [vmem:[%s1099] ss:$2 sm:$0xff]
      %s1101 = scalar_lea.vmem %s1073, 560
      %v1102 = vld [vmem:[%s1101] ss:$2 sm:$0xff]
      %s1103 = scalar_lea.vmem %s1073, 576
      %v1104 = vld [vmem:[%s1103] ss:$2 sm:$0xff]
      %s1105 = scalar_lea.vmem %s1073, 640
      %v1106 = vld [vmem:[%s1105] ss:$2 sm:$0xff]
      %s1107 = scalar_lea.vmem %s1073, 656
      %v1108 = vld [vmem:[%s1107] ss:$2 sm:$0xff]
      %s1109 = scalar_lea.vmem %s1073, 720
      %v1110 = vld [vmem:[%s1109] ss:$2 sm:$0xff]
      %s1111 = scalar_lea.vmem %s1073, 736
      %v1112 = vld [vmem:[%s1111] ss:$2 sm:$0xff]
      %s1113 = scalar_lea.vmem %s1073, 800
      %v1114 = vld [vmem:[%s1113] ss:$2 sm:$0xff]
      %s1115 = scalar_lea.vmem %s1073, 816
      %v1116 = vld [vmem:[%s1115] ss:$2 sm:$0xff]
      %s1117 = scalar_lea.vmem %s1073, 880
      %v1118 = vld [vmem:[%s1117] ss:$2 sm:$0xff]
      %s1119 = scalar_lea.vmem %s1073, 896
      %v1120 = vld [vmem:[%s1119] ss:$2 sm:$0xff]
      %s1121 = scalar_lea.vmem %s1073, 960
      %v1122 = vld [vmem:[%s1121] ss:$2 sm:$0xff]
      %s1123 = scalar_lea.vmem %s1073, 976
      %v1124 = vld [vmem:[%s1123] ss:$2 sm:$0xff]
      %s1125 = scalar_lea.vmem %s1073, 1040
      %v1126 = vld [vmem:[%s1125] ss:$2 sm:$0xff]
      %s1127 = scalar_lea.vmem %s1073, 1056
      %v1128 = vld [vmem:[%s1127] ss:$2 sm:$0xff]
      %s1129 = scalar_lea.vmem %s1073, 1120
      %v1130 = vld [vmem:[%s1129] ss:$2 sm:$0xff]
      %s1131 = scalar_lea.vmem %s1073, 1136
      %v1132 = vld [vmem:[%s1131] ss:$2 sm:$0xff]
      %s1133 = scalar_lea.vmem %s1073, 1200
      %v1134 = vld [vmem:[%s1133] ss:$2 sm:$0xff]
      %s1135 = scalar_lea.vmem %s1073, 1216
      %v1136 = vld [vmem:[%s1135] ss:$2 sm:$0xff]
      %v1137 = vpack.c.bf16 %v1076, %v1074
      %v1138 = vpack.c.bf16 %v1080, %v1078
      %v1139 = vpack.c.bf16 %v1084, %v1082
      %v1140 = vpack.c.bf16 %v1088, %v1086
      %v1141 = vpack.c.bf16 %v1092, %v1090
      %v1142 = vpack.c.bf16 %v1096, %v1094
      %v1143 = vpack.c.bf16 %v1100, %v1098
      %v1144 = vpack.c.bf16 %v1104, %v1102
      %v1145 = vpack.c.bf16 %v1108, %v1106
      %v1146 = vpack.c.bf16 %v1112, %v1110
      %v1147 = vpack.c.bf16 %v1116, %v1114
      %v1148 = vpack.c.bf16 %v1120, %v1118
      %v1149 = vpack.c.bf16 %v1124, %v1122
      %v1150 = vpack.c.bf16 %v1128, %v1126
      %v1151 = vpack.c.bf16 %v1132, %v1130
      %v1152 = vpack.c.bf16 %v1136, %v1134
      %1169 = vrot.lane.b32.xlu0 %v1137, 18
      %v1170 = vpop.permute.xlu0 %1169
      %1171 = vrot.lane.b32.xlu0 %v1138, 18
      %v1172 = vpop.permute.xlu0 %1171
      %1173 = vrot.lane.b32.xlu0 %v1139, 18
      %v1174 = vpop.permute.xlu0 %1173
      %1175 = vrot.lane.b32.xlu0 %v1140, 18
      %v1176 = vpop.permute.xlu0 %1175
      %1177 = vrot.lane.b32.xlu0 %v1141, 18
      %v1178 = vpop.permute.xlu0 %1177
      %1179 = vrot.lane.b32.xlu0 %v1142, 18
      %v1180 = vpop.permute.xlu0 %1179
      %1181 = vrot.lane.b32.xlu0 %v1143, 18
      %v1182 = vpop.permute.xlu0 %1181
      %1183 = vrot.lane.b32.xlu0 %v1144, 18
      %v1184 = vpop.permute.xlu0 %1183
      %1185 = vrot.lane.b32.xlu0 %v1145, 18
      %v1186 = vpop.permute.xlu0 %1185
      %1187 = vrot.lane.b32.xlu0 %v1146, 18
      %v1188 = vpop.permute.xlu0 %1187
      %1189 = vrot.lane.b32.xlu0 %v1147, 18
      %v1190 = vpop.permute.xlu0 %1189
      %1191 = vrot.lane.b32.xlu0 %v1148, 18
      %v1192 = vpop.permute.xlu0 %1191
      %1193 = vrot.lane.b32.xlu0 %v1149, 18
      %v1194 = vpop.permute.xlu0 %1193
      %1195 = vrot.lane.b32.xlu0 %v1150, 18
      %v1196 = vpop.permute.xlu0 %1195
      %1197 = vrot.lane.b32.xlu0 %v1151, 18
      %v1198 = vpop.permute.xlu0 %1197
      %1199 = vrot.lane.b32.xlu0 %v1152, 18
      %v1200 = vpop.permute.xlu0 %1199
      %vm1217 = vcmask 171152
      %1218 = vst.msk [vmem:[#allocation2] sm:$0xff] %vm1217, %v1170
      %1219 = vst.msk [vmem:[#allocation2 + $0x8] sm:$0xff] %vm1217, %v1172
      %1220 = vst.msk [vmem:[#allocation2 + $0x10] sm:$0xff] %vm1217, %v1174
      %1221 = vst.msk [vmem:[#allocation2 + $0x18] sm:$0xff] %vm1217, %v1176
      %1222 = vst.msk [vmem:[#allocation2 + $0x20] sm:$0xff] %vm1217, %v1178
      %1223 = vst.msk [vmem:[#allocation2 + $0x28] sm:$0xff] %vm1217, %v1180
      %1224 = vst.msk [vmem:[#allocation2 + $0x30] sm:$0xff] %vm1217, %v1182
      %1225 = vst.msk [vmem:[#allocation2 + $0x38] sm:$0xff] %vm1217, %v1184
      %1226 = vst.msk [vmem:[#allocation2 + $0x40] sm:$0xff] %vm1217, %v1186
      %1227 = vst.msk [vmem:[#allocation2 + $0x48] sm:$0xff] %vm1217, %v1188
      %1228 = vst.msk [vmem:[#allocation2 + $0x50] sm:$0xff] %vm1217, %v1190
      %1229 = vst.msk [vmem:[#allocation2 + $0x58] sm:$0xff] %vm1217, %v1192
      %1230 = vst.msk [vmem:[#allocation2 + $0x60] sm:$0xff] %vm1217, %v1194
      %1231 = vst.msk [vmem:[#allocation2 + $0x68] sm:$0xff] %vm1217, %v1196
      %1232 = vst.msk [vmem:[#allocation2 + $0x70] sm:$0xff] %vm1217, %v1198
      %1233 = vst.msk [vmem:[#allocation2 + $0x78] sm:$0xff] %vm1217, %v1200
      %s1234 = scalar_lea.vmem %s1073, 1
      %v1235 = vld [vmem:[%s1234] ss:$2 sm:$0xff]
      %s1236 = scalar_lea.vmem %s1073, 17
      %v1237 = vld [vmem:[%s1236] ss:$2 sm:$0xff]
      %s1238 = scalar_lea.vmem %s1073, 81
      %v1239 = vld [vmem:[%s1238] ss:$2 sm:$0xff]
      %s1240 = scalar_lea.vmem %s1073, 97
      %v1241 = vld [vmem:[%s1240] ss:$2 sm:$0xff]
      %s1242 = scalar_lea.vmem %s1073, 161
      %v1243 = vld [vmem:[%s1242] ss:$2 sm:$0xff]
      %s1244 = scalar_lea.vmem %s1073, 177
      %v1245 = vld [vmem:[%s1244] ss:$2 sm:$0xff]
      %s1246 = scalar_lea.vmem %s1073, 241
      %v1247 = vld [vmem:[%s1246] ss:$2 sm:$0xff]
      %s1248 = scalar_lea.vmem %s1073, 257
      %v1249 = vld [vmem:[%s1248] ss:$2 sm:$0xff]
      %s1250 = scalar_lea.vmem %s1073, 321
      %v1251 = vld [vmem:[%s1250] ss:$2 sm:$0xff]
      %s1252 = scalar_lea.vmem %s1073, 337
      %v1253 = vld [vmem:[%s1252] ss:$2 sm:$0xff]
      %s1254 = scalar_lea.vmem %s1073, 401
      %v1255 = vld [vmem:[%s1254] ss:$2 sm:$0xff]
      %s1256 = scalar_lea.vmem %s1073, 417
      %v1257 = vld [vmem:[%s1256] ss:$2 sm:$0xff]
      %s1258 = scalar_lea.vmem %s1073, 481
      %v1259 = vld [vmem:[%s1258] ss:$2 sm:$0xff]
      %s1260 = scalar_lea.vmem %s1073, 497
      %v1261 = vld [vmem:[%s1260] ss:$2 sm:$0xff]
      %s1262 = scalar_lea.vmem %s1073, 561
      %v1263 = vld [vmem:[%s1262] ss:$2 sm:$0xff]
      %s1264 = scalar_lea.vmem %s1073, 577
      %v1265 = vld [vmem:[%s1264] ss:$2 sm:$0xff]
      %s1266 = scalar_lea.vmem %s1073, 641
      %v1267 = vld [vmem:[%s1266] ss:$2 sm:$0xff]
      %s1268 = scalar_lea.vmem %s1073, 657
      %v1269 = vld [vmem:[%s1268] ss:$2 sm:$0xff]
      %s1270 = scalar_lea.vmem %s1073, 721
      %v1271 = vld [vmem:[%s1270] ss:$2 sm:$0xff]
      %s1272 = scalar_lea.vmem %s1073, 737
      %v1273 = vld [vmem:[%s1272] ss:$2 sm:$0xff]
      %s1274 = scalar_lea.vmem %s1073, 801
      %v1275 = vld [vmem:[%s1274] ss:$2 sm:$0xff]
      %s1276 = scalar_lea.vmem %s1073, 817
      %v1277 = vld [vmem:[%s1276] ss:$2 sm:$0xff]
      %s1278 = scalar_lea.vmem %s1073, 881
      %v1279 = vld [vmem:[%s1278] ss:$2 sm:$0xff]
      %s1280 = scalar_lea.vmem %s1073, 897
      %v1281 = vld [vmem:[%s1280] ss:$2 sm:$0xff]
      %s1282 = scalar_lea.vmem %s1073, 961
      %v1283 = vld [vmem:[%s1282] ss:$2 sm:$0xff]
      %s1284 = scalar_lea.vmem %s1073, 977
      %v1285 = vld [vmem:[%s1284] ss:$2 sm:$0xff]
      %s1286 = scalar_lea.vmem %s1073, 1041
      %v1287 = vld [vmem:[%s1286] ss:$2 sm:$0xff]
      %s1288 = scalar_lea.vmem %s1073, 1057
      %v1289 = vld [vmem:[%s1288] ss:$2 sm:$0xff]
      %s1290 = scalar_lea.vmem %s1073, 1121
      %v1291 = vld [vmem:[%s1290] ss:$2 sm:$0xff]
      %s1292 = scalar_lea.vmem %s1073, 1137
      %v1293 = vld [vmem:[%s1292] ss:$2 sm:$0xff]
      %s1294 = scalar_lea.vmem %s1073, 1201
      %v1295 = vld [vmem:[%s1294] ss:$2 sm:$0xff]
      %s1296 = scalar_lea.vmem %s1073, 1217
      %v1297 = vld [vmem:[%s1296] ss:$2 sm:$0xff]
      %v1298 = vpack.c.bf16 %v1237, %v1235
      %v1299 = vpack.c.bf16 %v1241, %v1239
      %v1300 = vpack.c.bf16 %v1245, %v1243
      %v1301 = vpack.c.bf16 %v1249, %v1247
      %v1302 = vpack.c.bf16 %v1253, %v1251
      %v1303 = vpack.c.bf16 %v1257, %v1255
      %v1304 = vpack.c.bf16 %v1261, %v1259
      %v1305 = vpack.c.bf16 %v1265, %v1263
      %v1306 = vpack.c.bf16 %v1269, %v1267
      %v1307 = vpack.c.bf16 %v1273, %v1271
      %v1308 = vpack.c.bf16 %v1277, %v1275
      %v1309 = vpack.c.bf16 %v1281, %v1279
      %v1310 = vpack.c.bf16 %v1285, %v1283
      %v1311 = vpack.c.bf16 %v1289, %v1287
      %v1312 = vpack.c.bf16 %v1293, %v1291
      %v1313 = vpack.c.bf16 %v1297, %v1295
      %1330 = vrot.lane.b32.xlu0 %v1298, 21
      %v1331 = vpop.permute.xlu0 %1330
      %1332 = vrot.lane.b32.xlu0 %v1299, 21
      %v1333 = vpop.permute.xlu0 %1332
      %1334 = vrot.lane.b32.xlu0 %v1300, 21
      %v1335 = vpop.permute.xlu0 %1334
      %1336 = vrot.lane.b32.xlu0 %v1301, 21
      %v1337 = vpop.permute.xlu0 %1336
      %1338 = vrot.lane.b32.xlu0 %v1302, 21
      %v1339 = vpop.permute.xlu0 %1338
      %1340 = vrot.lane.b32.xlu0 %v1303, 21
      %v1341 = vpop.permute.xlu0 %1340
      %1342 = vrot.lane.b32.xlu0 %v1304, 21
      %v1343 = vpop.permute.xlu0 %1342
      %1344 = vrot.lane.b32.xlu0 %v1305, 21
      %v1345 = vpop.permute.xlu0 %1344
      %1346 = vrot.lane.b32.xlu0 %v1306, 21
      %v1347 = vpop.permute.xlu0 %1346
      %1348 = vrot.lane.b32.xlu0 %v1307, 21
      %v1349 = vpop.permute.xlu0 %1348
      %1350 = vrot.lane.b32.xlu0 %v1308, 21
      %v1351 = vpop.permute.xlu0 %1350
      %1352 = vrot.lane.b32.xlu0 %v1309, 21
      %v1353 = vpop.permute.xlu0 %1352
      %1354 = vrot.lane.b32.xlu0 %v1310, 21
      %v1355 = vpop.permute.xlu0 %1354
      %1356 = vrot.lane.b32.xlu0 %v1311, 21
      %v1357 = vpop.permute.xlu0 %1356
      %1358 = vrot.lane.b32.xlu0 %v1312, 21
      %v1359 = vpop.permute.xlu0 %1358
      %1360 = vrot.lane.b32.xlu0 %v1313, 21
      %v1361 = vpop.permute.xlu0 %1360
      %vm1378 = vcmask 195752
      %1379 = vst.msk [vmem:[#allocation2] sm:$0xff] %vm1378, %v1331
      %1380 = vst.msk [vmem:[#allocation2 + $0x8] sm:$0xff] %vm1378, %v1333
      %1381 = vst.msk [vmem:[#allocation2 + $0x10] sm:$0xff] %vm1378, %v1335
      %1382 = vst.msk [vmem:[#allocation2 + $0x18] sm:$0xff] %vm1378, %v1337
      %1383 = vst.msk [vmem:[#allocation2 + $0x20] sm:$0xff] %vm1378, %v1339
      %1384 = vst.msk [vmem:[#allocation2 + $0x28] sm:$0xff] %vm1378, %v1341
      %1385 = vst.msk [vmem:[#allocation2 + $0x30] sm:$0xff] %vm1378, %v1343
      %1386 = vst.msk [vmem:[#allocation2 + $0x38] sm:$0xff] %vm1378, %v1345
      %1387 = vst.msk [vmem:[#allocation2 + $0x40] sm:$0xff] %vm1378, %v1347
      %1388 = vst.msk [vmem:[#allocation2 + $0x48] sm:$0xff] %vm1378, %v1349
      %1389 = vst.msk [vmem:[#allocation2 + $0x50] sm:$0xff] %vm1378, %v1351
      %1390 = vst.msk [vmem:[#allocation2 + $0x58] sm:$0xff] %vm1378, %v1353
      %1391 = vst.msk [vmem:[#allocation2 + $0x60] sm:$0xff] %vm1378, %v1355
      %1392 = vst.msk [vmem:[#allocation2 + $0x68] sm:$0xff] %vm1378, %v1357
      %1393 = vst.msk [vmem:[#allocation2 + $0x70] sm:$0xff] %vm1378, %v1359
      %1394 = vst.msk [vmem:[#allocation2 + $0x78] sm:$0xff] %vm1378, %v1361
      %s1395 = scalar_lea.vmem %s1073, 2
      %v1396 = vld [vmem:[%s1395] ss:$2 sm:$0xff]
      %s1397 = scalar_lea.vmem %s1073, 18
      %v1398 = vld [vmem:[%s1397] ss:$2 sm:$0xff]
      %s1399 = scalar_lea.vmem %s1073, 82
      %v1400 = vld [vmem:[%s1399] ss:$2 sm:$0xff]
      %s1401 = scalar_lea.vmem %s1073, 98
      %v1402 = vld [vmem:[%s1401] ss:$2 sm:$0xff]
      %s1403 = scalar_lea.vmem %s1073, 162
      %v1404 = vld [vmem:[%s1403] ss:$2 sm:$0xff]
      %s1405 = scalar_lea.vmem %s1073, 178
      %v1406 = vld [vmem:[%s1405] ss:$2 sm:$0xff]
      %s1407 = scalar_lea.vmem %s1073, 242
      %v1408 = vld [vmem:[%s1407] ss:$2 sm:$0xff]
      %s1409 = scalar_lea.vmem %s1073, 258
      %v1410 = vld [vmem:[%s1409] ss:$2 sm:$0xff]
      %s1411 = scalar_lea.vmem %s1073, 322
      %v1412 = vld [vmem:[%s1411] ss:$2 sm:$0xff]
      %s1413 = scalar_lea.vmem %s1073, 338
      %v1414 = vld [vmem:[%s1413] ss:$2 sm:$0xff]
      %s1415 = scalar_lea.vmem %s1073, 402
      %v1416 = vld [vmem:[%s1415] ss:$2 sm:$0xff]
      %s1417 = scalar_lea.vmem %s1073, 418
      %v1418 = vld [vmem:[%s1417] ss:$2 sm:$0xff]
      %s1419 = scalar_lea.vmem %s1073, 482
      %v1420 = vld [vmem:[%s1419] ss:$2 sm:$0xff]
      %s1421 = scalar_lea.vmem %s1073, 498
      %v1422 = vld [vmem:[%s1421] ss:$2 sm:$0xff]
      %s1423 = scalar_lea.vmem %s1073, 562
      %v1424 = vld [vmem:[%s1423] ss:$2 sm:$0xff]
      %s1425 = scalar_lea.vmem %s1073, 578
      %v1426 = vld [vmem:[%s1425] ss:$2 sm:$0xff]
      %s1427 = scalar_lea.vmem %s1073, 642
      %v1428 = vld [vmem:[%s1427] ss:$2 sm:$0xff]
      %s1429 = scalar_lea.vmem %s1073, 658
      %v1430 = vld [vmem:[%s1429] ss:$2 sm:$0xff]
      %s1431 = scalar_lea.vmem %s1073, 722
      %v1432 = vld [vmem:[%s1431] ss:$2 sm:$0xff]
      %s1433 = scalar_lea.vmem %s1073, 738
      %v1434 = vld [vmem:[%s1433] ss:$2 sm:$0xff]
      %s1435 = scalar_lea.vmem %s1073, 802
      %v1436 = vld [vmem:[%s1435] ss:$2 sm:$0xff]
      %s1437 = scalar_lea.vmem %s1073, 818
      %v1438 = vld [vmem:[%s1437] ss:$2 sm:$0xff]
      %s1439 = scalar_lea.vmem %s1073, 882
      %v1440 = vld [vmem:[%s1439] ss:$2 sm:$0xff]
      %s1441 = scalar_lea.vmem %s1073, 898
      %v1442 = vld [vmem:[%s1441] ss:$2 sm:$0xff]
      %s1443 = scalar_lea.vmem %s1073, 962
      %v1444 = vld [vmem:[%s1443] ss:$2 sm:$0xff]
      %s1445 = scalar_lea.vmem %s1073, 978
      %v1446 = vld [vmem:[%s1445] ss:$2 sm:$0xff]
      %s1447 = scalar_lea.vmem %s1073, 1042
      %v1448 = vld [vmem:[%s1447] ss:$2 sm:$0xff]
      %s1449 = scalar_lea.vmem %s1073, 1058
      %v1450 = vld [vmem:[%s1449] ss:$2 sm:$0xff]
      %s1451 = scalar_lea.vmem %s1073, 1122
      %v1452 = vld [vmem:[%s1451] ss:$2 sm:$0xff]
      %s1453 = scalar_lea.vmem %s1073, 1138
      %v1454 = vld [vmem:[%s1453] ss:$2 sm:$0xff]
      %s1455 = scalar_lea.vmem %s1073, 1202
      %v1456 = vld [vmem:[%s1455] ss:$2 sm:$0xff]
      %s1457 = scalar_lea.vmem %s1073, 1218
      %v1458 = vld [vmem:[%s1457] ss:$2 sm:$0xff]
      %v1459 = vpack.c.bf16 %v1398, %v1396
      %v1460 = vpack.c.bf16 %v1402, %v1400
      %v1461 = vpack.c.bf16 %v1406, %v1404
      %v1462 = vpack.c.bf16 %v1410, %v1408
      %v1463 = vpack.c.bf16 %v1414, %v1412
      %v1464 = vpack.c.bf16 %v1418, %v1416
      %v1465 = vpack.c.bf16 %v1422, %v1420
      %v1466 = vpack.c.bf16 %v1426, %v1424
      %v1467 = vpack.c.bf16 %v1430, %v1428
      %v1468 = vpack.c.bf16 %v1434, %v1432
      %v1469 = vpack.c.bf16 %v1438, %v1436
      %v1470 = vpack.c.bf16 %v1442, %v1440
      %v1471 = vpack.c.bf16 %v1446, %v1444
      %v1472 = vpack.c.bf16 %v1450, %v1448
      %v1473 = vpack.c.bf16 %v1454, %v1452
      %v1474 = vpack.c.bf16 %v1458, %v1456
      %1491 = vrot.lane.b32.xlu0 %v1459, 24
      %v1492 = vpop.permute.xlu0 %1491
      %1493 = vrot.lane.b32.xlu0 %v1460, 24
      %v1494 = vpop.permute.xlu0 %1493
      %1495 = vrot.lane.b32.xlu0 %v1461, 24
      %v1496 = vpop.permute.xlu0 %1495
      %1497 = vrot.lane.b32.xlu0 %v1462, 24
      %v1498 = vpop.permute.xlu0 %1497
      %1499 = vrot.lane.b32.xlu0 %v1463, 24
      %v1500 = vpop.permute.xlu0 %1499
      %1501 = vrot.lane.b32.xlu0 %v1464, 24
      %v1502 = vpop.permute.xlu0 %1501
      %1503 = vrot.lane.b32.xlu0 %v1465, 24
      %v1504 = vpop.permute.xlu0 %1503
      %1505 = vrot.lane.b32.xlu0 %v1466, 24
      %v1506 = vpop.permute.xlu0 %1505
      %1507 = vrot.lane.b32.xlu0 %v1467, 24
      %v1508 = vpop.permute.xlu0 %1507
      %1509 = vrot.lane.b32.xlu0 %v1468, 24
      %v1510 = vpop.permute.xlu0 %1509
      %1511 = vrot.lane.b32.xlu0 %v1469, 24
      %v1512 = vpop.permute.xlu0 %1511
      %1513 = vrot.lane.b32.xlu0 %v1470, 24
      %v1514 = vpop.permute.xlu0 %1513
      %1515 = vrot.lane.b32.xlu0 %v1471, 24
      %v1516 = vpop.permute.xlu0 %1515
      %1517 = vrot.lane.b32.xlu0 %v1472, 24
      %v1518 = vpop.permute.xlu0 %1517
      %1519 = vrot.lane.b32.xlu0 %v1473, 24
      %v1520 = vpop.permute.xlu0 %1519
      %1521 = vrot.lane.b32.xlu0 %v1474, 24
      %v1522 = vpop.permute.xlu0 %1521
      %vm1539 = vcmask 220352
      %1540 = vst.msk [vmem:[#allocation2] sm:$0xff] %vm1539, %v1492
      %1541 = vst.msk [vmem:[#allocation2 + $0x8] sm:$0xff] %vm1539, %v1494
      %1542 = vst.msk [vmem:[#allocation2 + $0x10] sm:$0xff] %vm1539, %v1496
      %1543 = vst.msk [vmem:[#allocation2 + $0x18] sm:$0xff] %vm1539, %v1498
      %1544 = vst.msk [vmem:[#allocation2 + $0x20] sm:$0xff] %vm1539, %v1500
      %1545 = vst.msk [vmem:[#allocation2 + $0x28] sm:$0xff] %vm1539, %v1502
      %1546 = vst.msk [vmem:[#allocation2 + $0x30] sm:$0xff] %vm1539, %v1504
      %1547 = vst.msk [vmem:[#allocation2 + $0x38] sm:$0xff] %vm1539, %v1506
      %1548 = vst.msk [vmem:[#allocation2 + $0x40] sm:$0xff] %vm1539, %v1508
      %1549 = vst.msk [vmem:[#allocation2 + $0x48] sm:$0xff] %vm1539, %v1510
      %1550 = vst.msk [vmem:[#allocation2 + $0x50] sm:$0xff] %vm1539, %v1512
      %1551 = vst.msk [vmem:[#allocation2 + $0x58] sm:$0xff] %vm1539, %v1514
      %1552 = vst.msk [vmem:[#allocation2 + $0x60] sm:$0xff] %vm1539, %v1516
      %1553 = vst.msk [vmem:[#allocation2 + $0x68] sm:$0xff] %vm1539, %v1518
      %1554 = vst.msk [vmem:[#allocation2 + $0x70] sm:$0xff] %vm1539, %v1520
      %1555 = vst.msk [vmem:[#allocation2 + $0x78] sm:$0xff] %vm1539, %v1522
      %v1556 = vld [vmem:[#allocation2] sm:$0xff]
      %v1557 = vld [vmem:[#allocation2 + $0x8] sm:$0xff]
      %v1558 = vld [vmem:[#allocation2 + $0x10] sm:$0xff]
      %v1559 = vld [vmem:[#allocation2 + $0x18] sm:$0xff]
      %v1560 = vld [vmem:[#allocation2 + $0x20] sm:$0xff]
      %v1561 = vld [vmem:[#allocation2 + $0x28] sm:$0xff]
      %v1562 = vld [vmem:[#allocation2 + $0x30] sm:$0xff]
      %v1563 = vld [vmem:[#allocation2 + $0x38] sm:$0xff]
      %v1564 = vld [vmem:[#allocation2 + $0x40] sm:$0xff]
      %v1565 = vld [vmem:[#allocation2 + $0x48] sm:$0xff]
      %v1566 = vld [vmem:[#allocation2 + $0x50] sm:$0xff]
      %v1567 = vld [vmem:[#allocation2 + $0x58] sm:$0xff]
      %v1568 = vld [vmem:[#allocation2 + $0x60] sm:$0xff]
      %v1569 = vld [vmem:[#allocation2 + $0x68] sm:$0xff]
      %v1570 = vld [vmem:[#allocation2 + $0x70] sm:$0xff]
      %v1571 = vld [vmem:[#allocation2 + $0x78] sm:$0xff]
      %v1572 = vld [vmem:[%s1] sm:$0xf]
      %v1573 = vld [vmem:[%s1 + $0x4] sm:$0xf]
      %v1574 = vld [vmem:[%s1 + $0x8] sm:$0xf]
      %v1575 = vld [vmem:[%s1 + $0xc] sm:$0x3]
      %v1576 = vld [vmem:[%s2] sm:$0x1]
      %v1578 = vlaneseq
      %v1579 = vshrl.u32 %v1578, 7
      %v1580 = vsub.s32 0, %v1579
      %v1581 = vrot.slane %v1576, %v1580
      %v1587 = vunpack.c.l.b16 %v1572
      %v1588 = vunpack.c.l.b16 %v1573
      %v1589 = vunpack.c.l.b16 %v1574
      %v1590 = vunpack.c.l.b16 %v1575
      %v1591 = vpack.c.b16 %v1588, %v1587
      %v1592 = vpack.c.b16 %v1590, %v1589
      %vm1594 = vcmask 220160
      %v1596 = vsel %vm1594, %v1556, 0
      %v1599 = vsel %vm1594, %v1557, 0
      %v1602 = vsel %vm1594, %v1558, 0
      %v1605 = vsel %vm1594, %v1559, 0
      %v1608 = vsel %vm1594, %v1560, 0
      %v1611 = vsel %vm1594, %v1561, 0
      %v1614 = vsel %vm1594, %v1562, 0
      %v1617 = vsel %vm1594, %v1563, 0
      %v1620 = vsel %vm1594, %v1564, 0
      %v1623 = vsel %vm1594, %v1565, 0
      %v1626 = vsel %vm1594, %v1566, 0
      %v1629 = vsel %vm1594, %v1567, 0
      %v1632 = vsel %vm1594, %v1568, 0
      %v1635 = vsel %vm1594, %v1569, 0
      %v1638 = vsel %vm1594, %v1570, 0
      %v1641 = vsel %vm1594, %v1571, 0
      %vm1643 = vcmask 1044480
      %vm1644 = vcmask 1045504
      %v1645 = vsel %vm1643, 4294967295, 65535
      %v1646 = vsel %vm1644, %v1645, 0
      %v1648 = vand.u32 %v1592, %v1646
      %1650 = vmatprep.subr.bf16.mxu0 0
      %1651 = vmatpush1.bf16.msra.mxu0 %v1591
      %1652 = vmatprep.subr.bf16.mxu0 0
      %1653 = vmatpush1.bf16.msra.mxu0 %v1648
      %1654 = vmatprep.subr.bf16.mxu0 0
      %1655 = vmatpush1.bf16.msra.mxu0 0
      %1656 = vmatprep.subr.bf16.mxu0 0
      %1657 = vmatpush1.bf16.msra.mxu0 0
      %1658 = vmatprep.subr.bf16.mxu0 0
      %1659 = vmatpush1.bf16.msra.mxu0 0
      %1660 = vmatprep.subr.bf16.mxu0 0
      %1661 = vmatpush1.bf16.msra.mxu0 0
      %1662 = vmatprep.subr.bf16.mxu0 0
      %1663 = vmatpush1.bf16.msra.mxu0 0
      %1664 = vmatprep.subr.bf16.mxu0 0
      %1665 = vmatpush1.bf16.msra.mxu0 0
      %1666 = vmatprep.subr.bf16.mxu0 0
      %1667 = vmatpush1.bf16.msra.mxu0 0
      %1668 = vmatprep.subr.bf16.mxu0 0
      %1669 = vmatpush1.bf16.msra.mxu0 0
      %1670 = vmatprep.subr.bf16.mxu0 0
      %1671 = vmatpush1.bf16.msra.mxu0 0
      %1672 = vmatprep.subr.bf16.mxu0 0
      %1673 = vmatpush1.bf16.msra.mxu0 0
      %1674 = vmatprep.subr.bf16.mxu0 0
      %1675 = vmatpush1.bf16.msra.mxu0 0
      %1676 = vmatprep.subr.bf16.mxu0 0
      %1677 = vmatpush1.bf16.msra.mxu0 0
      %1678 = vmatprep.subr.bf16.mxu0 0
      %1679 = vmatpush1.bf16.msra.mxu0 0
      %1680 = vmatprep.subr.bf16.mxu0 0
      %1681 = vmatpush1.bf16.msra.mxu0 0
      %1682 = vmatprep.mubr.bf16.mxu0 0
      %1683 = vmatmul.mubr.bf16.gmra.mrb[0].mxu0 %v1596
      %v1684 = vpop.f32.mrb[0].mxu0
      %v1685 = vadd.f32 %v1581, %v1684
      %v1686 = vpop.f32.mrb[0].mxu0
      %v1687 = vpop.f32.mrb[0].mxu0
      %v1688 = vadd.f32 %v1581, %v1687
      %v1689 = vpop.f32.mrb[0].mxu0
      %1690 = vmatprep.mubr.bf16.mxu0 0
      %1691 = vmatmul.mubr.bf16.gmra.mrb[0].mxu0 %v1599
      %v1692 = vpop.f32.mrb[0].mxu0
      %v1693 = vadd.f32 %v1581, %v1692
      %v1694 = vpop.f32.mrb[0].mxu0
      %v1695 = vpop.f32.mrb[0].mxu0
      %v1696 = vadd.f32 %v1581, %v1695
      %v1697 = vpop.f32.mrb[0].mxu0
      %1698 = vmatprep.mubr.bf16.mxu0 0
      %1699 = vmatmul.mubr.bf16.gmra.mrb[0].mxu0 %v1602
      %v1700 = vpop.f32.mrb[0].mxu0
      %v1701 = vadd.f32 %v1581, %v1700
      %v1702 = vpop.f32.mrb[0].mxu0
      %v1703 = vpop.f32.mrb[0].mxu0
      %v1704 = vadd.f32 %v1581, %v1703
      %v1705 = vpop.f32.mrb[0].mxu0
      %1706 = vmatprep.mubr.bf16.mxu0 0
      %1707 = vmatmul.mubr.bf16.gmra.mrb[0].mxu0 %v1605
      %v1708 = vpop.f32.mrb[0].mxu0
      %v1709 = vadd.f32 %v1581, %v1708
      %v1710 = vpop.f32.mrb[0].mxu0
      %v1711 = vpop.f32.mrb[0].mxu0
      %v1712 = vadd.f32 %v1581, %v1711
      %v1713 = vpop.f32.mrb[0].mxu0
      %1714 = vmatprep.mubr.bf16.mxu0 0
      %1715 = vmatmul.mubr.bf16.gmra.mrb[0].mxu0 %v1608
      %v1716 = vpop.f32.mrb[0].mxu0
      %v1717 = vadd.f32 %v1581, %v1716
      %v1718 = vpop.f32.mrb[0].mxu0
      %v1719 = vpop.f32.mrb[0].mxu0
      %v1720 = vadd.f32 %v1581, %v1719
      %v1721 = vpop.f32.mrb[0].mxu0
      %1722 = vmatprep.mubr.bf16.mxu0 0
      %1723 = vmatmul.mubr.bf16.gmra.mrb[0].mxu0 %v1611
      %v1724 = vpop.f32.mrb[0].mxu0
      %v1725 = vadd.f32 %v1581, %v1724
      %v1726 = vpop.f32.mrb[0].mxu0
      %v1727 = vpop.f32.mrb[0].mxu0
      %v1728 = vadd.f32 %v1581, %v1727
      %v1729 = vpop.f32.mrb[0].mxu0
      %1730 = vmatprep.mubr.bf16.mxu0 0
      %1731 = vmatmul.mubr.bf16.gmra.mrb[0].mxu0 %v1614
      %v1732 = vpop.f32.mrb[0].mxu0
      %v1733 = vadd.f32 %v1581, %v1732
      %v1734 = vpop.f32.mrb[0].mxu0
      %v1735 = vpop.f32.mrb[0].mxu0
      %v1736 = vadd.f32 %v1581, %v1735
      %v1737 = vpop.f32.mrb[0].mxu0
      %1738 = vmatprep.mubr.bf16.mxu0 0
      %1739 = vmatmul.mubr.bf16.gmra.mrb[0].mxu0 %v1617
      %v1740 = vpop.f32.mrb[0].mxu0
      %v1741 = vadd.f32 %v1581, %v1740
      %v1742 = vpop.f32.mrb[0].mxu0
      %v1743 = vpop.f32.mrb[0].mxu0
      %v1744 = vadd.f32 %v1581, %v1743
      %v1745 = vpop.f32.mrb[0].mxu0
      %1746 = vmatprep.mubr.bf16.mxu0 0
      %1747 = vmatmul.mubr.bf16.gmra.mrb[0].mxu0 %v1620
      %v1748 = vpop.f32.mrb[0].mxu0
      %v1749 = vadd.f32 %v1581, %v1748
      %v1750 = vpop.f32.mrb[0].mxu0
      %v1751 = vpop.f32.mrb[0].mxu0
      %v1752 = vadd.f32 %v1581, %v1751
      %v1753 = vpop.f32.mrb[0].mxu0
      %1754 = vmatprep.mubr.bf16.mxu0 0
      %1755 = vmatmul.mubr.bf16.gmra.mrb[0].mxu0 %v1623
      %v1756 = vpop.f32.mrb[0].mxu0
      %v1757 = vadd.f32 %v1581, %v1756
      %v1758 = vpop.f32.mrb[0].mxu0
      %v1759 = vpop.f32.mrb[0].mxu0
      %v1760 = vadd.f32 %v1581, %v1759
      %v1761 = vpop.f32.mrb[0].mxu0
      %1762 = vmatprep.mubr.bf16.mxu0 0
      %1763 = vmatmul.mubr.bf16.gmra.mrb[0].mxu0 %v1626
      %v1764 = vpop.f32.mrb[0].mxu0
      %v1765 = vadd.f32 %v1581, %v1764
      %v1766 = vpop.f32.mrb[0].mxu0
      %v1767 = vpop.f32.mrb[0].mxu0
      %v1768 = vadd.f32 %v1581, %v1767
      %v1769 = vpop.f32.mrb[0].mxu0
      %1770 = vmatprep.mubr.bf16.mxu0 0
      %1771 = vmatmul.mubr.bf16.gmra.mrb[0].mxu0 %v1629
      %v1772 = vpop.f32.mrb[0].mxu0
      %v1773 = vadd.f32 %v1581, %v1772
      %v1774 = vpop.f32.mrb[0].mxu0
      %v1775 = vpop.f32.mrb[0].mxu0
      %v1776 = vadd.f32 %v1581, %v1775
      %v1777 = vpop.f32.mrb[0].mxu0
      %1778 = vmatprep.mubr.bf16.mxu0 0
      %1779 = vmatmul.mubr.bf16.gmra.mrb[0].mxu0 %v1632
      %v1780 = vpop.f32.mrb[0].mxu0
      %v1781 = vadd.f32 %v1581, %v1780
      %v1782 = vpop.f32.mrb[0].mxu0
      %v1783 = vpop.f32.mrb[0].mxu0
      %v1784 = vadd.f32 %v1581, %v1783
      %v1785 = vpop.f32.mrb[0].mxu0
      %1786 = vmatprep.mubr.bf16.mxu0 0
      %1787 = vmatmul.mubr.bf16.gmra.mrb[0].mxu0 %v1635
      %v1788 = vpop.f32.mrb[0].mxu0
      %v1789 = vadd.f32 %v1581, %v1788
      %v1790 = vpop.f32.mrb[0].mxu0
      %v1791 = vpop.f32.mrb[0].mxu0
      %v1792 = vadd.f32 %v1581, %v1791
      %v1793 = vpop.f32.mrb[0].mxu0
      %1794 = vmatprep.mubr.bf16.mxu0 0
      %1795 = vmatmul.mubr.bf16.gmra.mrb[0].mxu0 %v1638
      %v1796 = vpop.f32.mrb[0].mxu0
      %v1797 = vadd.f32 %v1581, %v1796
      %v1798 = vpop.f32.mrb[0].mxu0
      %v1799 = vpop.f32.mrb[0].mxu0
      %v1800 = vadd.f32 %v1581, %v1799
      %v1801 = vpop.f32.mrb[0].mxu0
      %1802 = vmatprep.mubr.bf16.mxu0 0
      %1803 = vmatmul.mubr.bf16.gmra.mrb[0].mxu0 %v1641
      %v1804 = vpop.f32.mrb[0].mxu0
      %v1805 = vadd.f32 %v1581, %v1804
      %v1806 = vpop.f32.mrb[0].mxu0
      %v1807 = vpop.f32.mrb[0].mxu0
      %v1808 = vadd.f32 %v1581, %v1807
      %v1809 = vpop.f32.mrb[0].mxu0
      %1810 = vdwg.mxu0
      %v1811 = vmax.f32 %v1685, 0.0
      %v1812 = vmax.f32 %v1688, 0.0
      %v1813 = vmax.f32 %v1693, 0.0
      %v1814 = vmax.f32 %v1696, 0.0
      %v1815 = vmax.f32 %v1701, 0.0
      %v1816 = vmax.f32 %v1704, 0.0
      %v1817 = vmax.f32 %v1709, 0.0
      %v1818 = vmax.f32 %v1712, 0.0
      %v1819 = vmax.f32 %v1717, 0.0
      %v1820 = vmax.f32 %v1720, 0.0
      %v1821 = vmax.f32 %v1725, 0.0
      %v1822 = vmax.f32 %v1728, 0.0
      %v1823 = vmax.f32 %v1733, 0.0
      %v1824 = vmax.f32 %v1736, 0.0
      %v1825 = vmax.f32 %v1741, 0.0
      %v1826 = vmax.f32 %v1744, 0.0
      %v1827 = vmax.f32 %v1749, 0.0
      %v1828 = vmax.f32 %v1752, 0.0
      %v1829 = vmax.f32 %v1757, 0.0
      %v1830 = vmax.f32 %v1760, 0.0
      %v1831 = vmax.f32 %v1765, 0.0
      %v1832 = vmax.f32 %v1768, 0.0
      %v1833 = vmax.f32 %v1773, 0.0
      %v1834 = vmax.f32 %v1776, 0.0
      %v1835 = vmax.f32 %v1781, 0.0
      %v1836 = vmax.f32 %v1784, 0.0
      %v1837 = vmax.f32 %v1789, 0.0
      %v1838 = vmax.f32 %v1792, 0.0
      %v1839 = vmax.f32 %v1797, 0.0
      %v1840 = vmax.f32 %v1800, 0.0
      %v1841 = vmax.f32 %v1805, 0.0
      %v1842 = vmax.f32 %v1808, 0.0
      %vm1843 = vcmask 64512
      %1844 = vst.msk [vmem:[#allocation3] sm:$0xff] %vm1843, %v1811
      %1845 = vst.msk [vmem:[#allocation3 + $0x8] sm:$0xff] %vm1843, %v1812
      %1846 = vst.msk [vmem:[#allocation3 + $0x10] sm:$0xff] %vm1843, %v1813
      %1847 = vst.msk [vmem:[#allocation3 + $0x18] sm:$0xff] %vm1843, %v1814
      %1848 = vst.msk [vmem:[#allocation3 + $0x20] sm:$0xff] %vm1843, %v1815
      %1849 = vst.msk [vmem:[#allocation3 + $0x28] sm:$0xff] %vm1843, %v1816
      %1850 = vst.msk [vmem:[#allocation3 + $0x30] sm:$0xff] %vm1843, %v1817
      %1851 = vst.msk [vmem:[#allocation3 + $0x38] sm:$0xff] %vm1843, %v1818
      %1852 = vst.msk [vmem:[#allocation3 + $0x40] sm:$0xff] %vm1843, %v1819
      %1853 = vst.msk [vmem:[#allocation3 + $0x48] sm:$0xff] %vm1843, %v1820
      %1854 = vst.msk [vmem:[#allocation3 + $0x50] sm:$0xff] %vm1843, %v1821
      %1855 = vst.msk [vmem:[#allocation3 + $0x58] sm:$0xff] %vm1843, %v1822
      %1856 = vst.msk [vmem:[#allocation3 + $0x60] sm:$0xff] %vm1843, %v1823
      %1857 = vst.msk [vmem:[#allocation3 + $0x68] sm:$0xff] %vm1843, %v1824
      %1858 = vst.msk [vmem:[#allocation3 + $0x70] sm:$0xff] %vm1843, %v1825
      %1859 = vst.msk [vmem:[#allocation3 + $0x78] sm:$0xff] %vm1843, %v1826
      %1860 = vst.msk [vmem:[#allocation3 + $0x80] sm:$0xff] %vm1843, %v1827
      %1861 = vst.msk [vmem:[#allocation3 + $0x88] sm:$0xff] %vm1843, %v1828
      %1862 = vst.msk [vmem:[#allocation3 + $0x90] sm:$0xff] %vm1843, %v1829
      %1863 = vst.msk [vmem:[#allocation3 + $0x98] sm:$0xff] %vm1843, %v1830
      %1864 = vst.msk [vmem:[#allocation3 + $0xa0] sm:$0xff] %vm1843, %v1831
      %1865 = vst.msk [vmem:[#allocation3 + $0xa8] sm:$0xff] %vm1843, %v1832
      %1866 = vst.msk [vmem:[#allocation3 + $0xb0] sm:$0xff] %vm1843, %v1833
      %1867 = vst.msk [vmem:[#allocation3 + $0xb8] sm:$0xff] %vm1843, %v1834
      %1868 = vst.msk [vmem:[#allocation3 + $0xc0] sm:$0xff] %vm1843, %v1835
      %1869 = vst.msk [vmem:[#allocation3 + $0xc8] sm:$0xff] %vm1843, %v1836
      %1870 = vst.msk [vmem:[#allocation3 + $0xd0] sm:$0xff] %vm1843, %v1837
      %1871 = vst.msk [vmem:[#allocation3 + $0xd8] sm:$0xff] %vm1843, %v1838
      %1872 = vst.msk [vmem:[#allocation3 + $0xe0] sm:$0xff] %vm1843, %v1839
      %1873 = vst.msk [vmem:[#allocation3 + $0xe8] sm:$0xff] %vm1843, %v1840
      %1874 = vst.msk [vmem:[#allocation3 + $0xf0] sm:$0xff] %vm1843, %v1841
      %1875 = vst.msk [vmem:[#allocation3 + $0xf8] sm:$0xff] %vm1843, %v1842
      %v1876 = vld [vmem:[#allocation3] sm:$0x1]
      %v1877 = vld [vmem:[#allocation3 + $0x10] sm:$0x1]
      %v1878 = vld [vmem:[#allocation3 + $0x20] sm:$0x1]
      %v1879 = vld [vmem:[#allocation3 + $0x30] sm:$0x1]
      %v1880 = vld [vmem:[#allocation3 + $0x40] sm:$0x1]
      %v1881 = vld [vmem:[#allocation3 + $0x50] sm:$0x1]
      %v1882 = vld [vmem:[#allocation3 + $0x60] sm:$0x1]
      %v1883 = vld [vmem:[#allocation3 + $0x70] sm:$0x1]
      %v1884 = vld [vmem:[#allocation3 + $0x80] sm:$0x1]
      %v1885 = vld [vmem:[#allocation3 + $0x90] sm:$0x1]
      %v1886 = vld [vmem:[#allocation3 + $0xa0] sm:$0x1]
      %v1887 = vld [vmem:[#allocation3 + $0xb0] sm:$0x1]
      %v1888 = vld [vmem:[#allocation3 + $0xc0] sm:$0x1]
      %v1889 = vld [vmem:[#allocation3 + $0xd0] sm:$0x1]
      %v1890 = vld [vmem:[#allocation3 + $0xe0] sm:$0x1]
      %v1891 = vld [vmem:[#allocation3 + $0xf0] sm:$0x1]
      %v1892 = vpack.c.bf16 %v1876, %v1876
      %v1893 = vpack.c.bf16 %v1877, %v1877
      %v1894 = vpack.c.bf16 %v1878, %v1878
      %v1895 = vpack.c.bf16 %v1879, %v1879
      %v1896 = vpack.c.bf16 %v1880, %v1880
      %v1897 = vpack.c.bf16 %v1881, %v1881
      %v1898 = vpack.c.bf16 %v1882, %v1882
      %v1899 = vpack.c.bf16 %v1883, %v1883
      %v1900 = vpack.c.bf16 %v1884, %v1884
      %v1901 = vpack.c.bf16 %v1885, %v1885
      %v1902 = vpack.c.bf16 %v1886, %v1886
      %v1903 = vpack.c.bf16 %v1887, %v1887
      %v1904 = vpack.c.bf16 %v1888, %v1888
      %v1905 = vpack.c.bf16 %v1889, %v1889
      %v1906 = vpack.c.bf16 %v1890, %v1890
      %v1907 = vpack.c.bf16 %v1891, %v1891
      %v1924 = vunpack.c.l.b16 %v1892
      %v1925 = vunpack.c.l.b16 %v1893
      %v1926 = vunpack.c.l.b16 %v1894
      %v1927 = vunpack.c.l.b16 %v1895
      %v1928 = vunpack.c.l.b16 %v1896
      %v1929 = vunpack.c.l.b16 %v1897
      %v1930 = vunpack.c.l.b16 %v1898
      %v1931 = vunpack.c.l.b16 %v1899
      %v1932 = vunpack.c.l.b16 %v1900
      %v1933 = vunpack.c.l.b16 %v1901
      %v1934 = vunpack.c.l.b16 %v1902
      %v1935 = vunpack.c.l.b16 %v1903
      %v1936 = vunpack.c.l.b16 %v1904
      %v1937 = vunpack.c.l.b16 %v1905
      %v1938 = vunpack.c.l.b16 %v1906
      %v1939 = vunpack.c.l.b16 %v1907
      %v1940 = vpack.c.b16 %v1924, %v1924
      %v1941 = vpack.c.b16 %v1925, %v1925
      %v1942 = vpack.c.b16 %v1926, %v1926
      %v1943 = vpack.c.b16 %v1927, %v1927
      %v1944 = vpack.c.b16 %v1928, %v1928
      %v1945 = vpack.c.b16 %v1929, %v1929
      %v1946 = vpack.c.b16 %v1930, %v1930
      %v1947 = vpack.c.b16 %v1931, %v1931
      %v1948 = vpack.c.b16 %v1932, %v1932
      %v1949 = vpack.c.b16 %v1933, %v1933
      %v1950 = vpack.c.b16 %v1934, %v1934
      %v1951 = vpack.c.b16 %v1935, %v1935
      %v1952 = vpack.c.b16 %v1936, %v1936
      %v1953 = vpack.c.b16 %v1937, %v1937
      %v1954 = vpack.c.b16 %v1938, %v1938
      %v1955 = vpack.c.b16 %v1939, %v1939
      %v1956 = vunpack.c.l.b16 %v1940
      %v1957 = vunpack.c.l.b16 %v1941
      %v1958 = vunpack.c.l.b16 %v1942
      %v1959 = vunpack.c.l.b16 %v1943
      %v1960 = vunpack.c.l.b16 %v1944
      %v1961 = vunpack.c.l.b16 %v1945
      %v1962 = vunpack.c.l.b16 %v1946
      %v1963 = vunpack.c.l.b16 %v1947
      %v1964 = vunpack.c.l.b16 %v1948
      %v1965 = vunpack.c.l.b16 %v1949
      %v1966 = vunpack.c.l.b16 %v1950
      %v1967 = vunpack.c.l.b16 %v1951
      %v1968 = vunpack.c.l.b16 %v1952
      %v1969 = vunpack.c.l.b16 %v1953
      %v1970 = vunpack.c.l.b16 %v1954
      %v1971 = vunpack.c.l.b16 %v1955
      %v1972 = vrot.slane %v1957, 7
      %vm1973 = vcmask 1041409
      %v1974 = vsel %vm1973, %v1972, %v1956
      %v1975 = vrot.slane %v1958, 6
      %vm1976 = vcmask 1042434
      %v1977 = vsel %vm1976, %v1975, %v1974
      %v1978 = vrot.slane %v1959, 5
      %vm1979 = vcmask 1043459
      %v1980 = vsel %vm1979, %v1978, %v1977
      %v1981 = vrot.slane %v1960, 4
      %vm1982 = vcmask 1044484
      %v1983 = vsel %vm1982, %v1981, %v1980
      %v1984 = vrot.slane %v1961, 3
      %vm1985 = vcmask 1045509
      %v1986 = vsel %vm1985, %v1984, %v1983
      %v1987 = vrot.slane %v1962, 2
      %vm1988 = vcmask 1046534
      %v1989 = vsel %vm1988, %v1987, %v1986
      %v1990 = vrot.slane %v1963, 1
      %vm1991 = vcmask 1047559
      %v1992 = vsel %vm1991, %v1990, %v1989
      %v1993 = vrot.slane %v1965, 7
      %v1994 = vsel %vm1973, %v1993, %v1964
      %v1995 = vrot.slane %v1966, 6
      %v1996 = vsel %vm1976, %v1995, %v1994
      %v1997 = vrot.slane %v1967, 5
      %v1998 = vsel %vm1979, %v1997, %v1996
      %v1999 = vrot.slane %v1968, 4
      %v2000 = vsel %vm1982, %v1999, %v1998
      %v2001 = vrot.slane %v1969, 3
      %v2002 = vsel %vm1985, %v2001, %v2000
      %v2003 = vrot.slane %v1970, 2
      %v2004 = vsel %vm1988, %v2003, %v2002
      %v2005 = vrot.slane %v1971, 1
      %v2006 = vsel %vm1991, %v2005, %v2004
      %v2007 = vpack.c.b16 %v1992, %v1992
      %v2008 = vpack.c.b16 %v2006, %v2006
      %vm2011 = vcmask 60416
      %2012 = vst.msk [vmem:[%s170] sm:$0xf] %vm2011, %v2007
      %2013 = vst.msk [vmem:[%s170 + $0x4] sm:$0xf] %vm2011, %v2008
      %v2014 = vld [vmem:[#allocation3 + $0x1] sm:$0x1]
      %v2015 = vld [vmem:[#allocation3 + $0x11] sm:$0x1]
      %v2016 = vld [vmem:[#allocation3 + $0x21] sm:$0x1]
      %v2017 = vld [vmem:[#allocation3 + $0x31] sm:$0x1]
      %v2018 = vld [vmem:[#allocation3 + $0x41] sm:$0x1]
      %v2019 = vld [vmem:[#allocation3 + $0x51] sm:$0x1]
      %v2020 = vld [vmem:[#allocation3 + $0x61] sm:$0x1]
      %v2021 = vld [vmem:[#allocation3 + $0x71] sm:$0x1]
      %v2022 = vld [vmem:[#allocation3 + $0x81] sm:$0x1]
      %v2023 = vld [vmem:[#allocation3 + $0x91] sm:$0x1]
      %v2024 = vld [vmem:[#allocation3 + $0xa1] sm:$0x1]
      %v2025 = vld [vmem:[#allocation3 + $0xb1] sm:$0x1]
      %v2026 = vld [vmem:[#allocation3 + $0xc1] sm:$0x1]
      %v2027 = vld [vmem:[#allocation3 + $0xd1] sm:$0x1]
      %v2028 = vld [vmem:[#allocation3 + $0xe1] sm:$0x1]
      %v2029 = vld [vmem:[#allocation3 + $0xf1] sm:$0x1]
      %v2030 = vpack.c.bf16 %v2014, %v2014
      %v2031 = vpack.c.bf16 %v2015, %v2015
      %v2032 = vpack.c.bf16 %v2016, %v2016
      %v2033 = vpack.c.bf16 %v2017, %v2017
      %v2034 = vpack.c.bf16 %v2018, %v2018
      %v2035 = vpack.c.bf16 %v2019, %v2019
      %v2036 = vpack.c.bf16 %v2020, %v2020
      %v2037 = vpack.c.bf16 %v2021, %v2021
      %v2038 = vpack.c.bf16 %v2022, %v2022
      %v2039 = vpack.c.bf16 %v2023, %v2023
      %v2040 = vpack.c.bf16 %v2024, %v2024
      %v2041 = vpack.c.bf16 %v2025, %v2025
      %v2042 = vpack.c.bf16 %v2026, %v2026
      %v2043 = vpack.c.bf16 %v2027, %v2027
      %v2044 = vpack.c.bf16 %v2028, %v2028
      %v2045 = vpack.c.bf16 %v2029, %v2029
      %v2062 = vunpack.c.l.b16 %v2030
      %v2063 = vunpack.c.l.b16 %v2031
      %v2064 = vunpack.c.l.b16 %v2032
      %v2065 = vunpack.c.l.b16 %v2033
      %v2066 = vunpack.c.l.b16 %v2034
      %v2067 = vunpack.c.l.b16 %v2035
      %v2068 = vunpack.c.l.b16 %v2036
      %v2069 = vunpack.c.l.b16 %v2037
      %v2070 = vunpack.c.l.b16 %v2038
      %v2071 = vunpack.c.l.b16 %v2039
      %v2072 = vunpack.c.l.b16 %v2040
      %v2073 = vunpack.c.l.b16 %v2041
      %v2074 = vunpack.c.l.b16 %v2042
      %v2075 = vunpack.c.l.b16 %v2043
      %v2076 = vunpack.c.l.b16 %v2044
      %v2077 = vunpack.c.l.b16 %v2045
      %v2078 = vpack.c.b16 %v2062, %v2062
      %v2079 = vpack.c.b16 %v2063, %v2063
      %v2080 = vpack.c.b16 %v2064, %v2064
      %v2081 = vpack.c.b16 %v2065, %v2065
      %v2082 = vpack.c.b16 %v2066, %v2066
      %v2083 = vpack.c.b16 %v2067, %v2067
      %v2084 = vpack.c.b16 %v2068, %v2068
      %v2085 = vpack.c.b16 %v2069, %v2069
      %v2086 = vpack.c.b16 %v2070, %v2070
      %v2087 = vpack.c.b16 %v2071, %v2071
      %v2088 = vpack.c.b16 %v2072, %v2072
      %v2089 = vpack.c.b16 %v2073, %v2073
      %v2090 = vpack.c.b16 %v2074, %v2074
      %v2091 = vpack.c.b16 %v2075, %v2075
      %v2092 = vpack.c.b16 %v2076, %v2076
      %v2093 = vpack.c.b16 %v2077, %v2077
      %v2094 = vunpack.c.l.b16 %v2078
      %v2095 = vunpack.c.l.b16 %v2079
      %v2096 = vunpack.c.l.b16 %v2080
      %v2097 = vunpack.c.l.b16 %v2081
      %v2098 = vunpack.c.l.b16 %v2082
      %v2099 = vunpack.c.l.b16 %v2083
      %v2100 = vunpack.c.l.b16 %v2084
      %v2101 = vunpack.c.l.b16 %v2085
      %v2102 = vunpack.c.l.b16 %v2086
      %v2103 = vunpack.c.l.b16 %v2087
      %v2104 = vunpack.c.l.b16 %v2088
      %v2105 = vunpack.c.l.b16 %v2089
      %v2106 = vunpack.c.l.b16 %v2090
      %v2107 = vunpack.c.l.b16 %v2091
      %v2108 = vunpack.c.l.b16 %v2092
      %v2109 = vunpack.c.l.b16 %v2093
      %v2110 = vrot.slane %v2095, 7
      %v2111 = vsel %vm1973, %v2110, %v2094
      %v2112 = vrot.slane %v2096, 6
      %v2113 = vsel %vm1976, %v2112, %v2111
      %v2114 = vrot.slane %v2097, 5
      %v2115 = vsel %vm1979, %v2114, %v2113
      %v2116 = vrot.slane %v2098, 4
      %v2117 = vsel %vm1982, %v2116, %v2115
      %v2118 = vrot.slane %v2099, 3
      %v2119 = vsel %vm1985, %v2118, %v2117
      %v2120 = vrot.slane %v2100, 2
      %v2121 = vsel %vm1988, %v2120, %v2119
      %v2122 = vrot.slane %v2101, 1
      %v2123 = vsel %vm1991, %v2122, %v2121
      %v2124 = vrot.slane %v2103, 7
      %v2125 = vsel %vm1973, %v2124, %v2102
      %v2126 = vrot.slane %v2104, 6
      %v2127 = vsel %vm1976, %v2126, %v2125
      %v2128 = vrot.slane %v2105, 5
      %v2129 = vsel %vm1979, %v2128, %v2127
      %v2130 = vrot.slane %v2106, 4
      %v2131 = vsel %vm1982, %v2130, %v2129
      %v2132 = vrot.slane %v2107, 3
      %v2133 = vsel %vm1985, %v2132, %v2131
      %v2134 = vrot.slane %v2108, 2
      %v2135 = vsel %vm1988, %v2134, %v2133
      %v2136 = vrot.slane %v2109, 1
      %v2137 = vsel %vm1991, %v2136, %v2135
      %v2138 = vpack.c.b16 %v2123, %v2123
      %v2139 = vpack.c.b16 %v2137, %v2137
      %2140 = vrot.lane.b32.xlu0 %v2138, 8
      %v2141 = vpop.permute.xlu0 %2140
      %2142 = vrot.lane.b32.xlu0 %v2139, 8
      %v2143 = vpop.permute.xlu0 %2142
      %vm2146 = vcmask 126016
      %2147 = vst.msk [vmem:[%s170] sm:$0xf] %vm2146, %v2141
      %2148 = vst.msk [vmem:[%s170 + $0x4] sm:$0xf] %vm2146, %v2143
      %v2149 = vld [vmem:[#allocation3 + $0x2] sm:$0x1]
      %v2150 = vld [vmem:[#allocation3 + $0x12] sm:$0x1]
      %v2151 = vld [vmem:[#allocation3 + $0x22] sm:$0x1]
      %v2152 = vld [vmem:[#allocation3 + $0x32] sm:$0x1]
      %v2153 = vld [vmem:[#allocation3 + $0x42] sm:$0x1]
      %v2154 = vld [vmem:[#allocation3 + $0x52] sm:$0x1]
      %v2155 = vld [vmem:[#allocation3 + $0x62] sm:$0x1]
      %v2156 = vld [vmem:[#allocation3 + $0x72] sm:$0x1]
      %v2157 = vld [vmem:[#allocation3 + $0x82] sm:$0x1]
      %v2158 = vld [vmem:[#allocation3 + $0x92] sm:$0x1]
      %v2159 = vld [vmem:[#allocation3 + $0xa2] sm:$0x1]
      %v2160 = vld [vmem:[#allocation3 + $0xb2] sm:$0x1]
      %v2161 = vld [vmem:[#allocation3 + $0xc2] sm:$0x1]
      %v2162 = vld [vmem:[#allocation3 + $0xd2] sm:$0x1]
      %v2163 = vld [vmem:[#allocation3 + $0xe2] sm:$0x1]
      %v2164 = vld [vmem:[#allocation3 + $0xf2] sm:$0x1]
      %v2165 = vpack.c.bf16 %v2149, %v2149
      %v2166 = vpack.c.bf16 %v2150, %v2150
      %v2167 = vpack.c.bf16 %v2151, %v2151
      %v2168 = vpack.c.bf16 %v2152, %v2152
      %v2169 = vpack.c.bf16 %v2153, %v2153
      %v2170 = vpack.c.bf16 %v2154, %v2154
      %v2171 = vpack.c.bf16 %v2155, %v2155
      %v2172 = vpack.c.bf16 %v2156, %v2156
      %v2173 = vpack.c.bf16 %v2157, %v2157
      %v2174 = vpack.c.bf16 %v2158, %v2158
      %v2175 = vpack.c.bf16 %v2159, %v2159
      %v2176 = vpack.c.bf16 %v2160, %v2160
      %v2177 = vpack.c.bf16 %v2161, %v2161
      %v2178 = vpack.c.bf16 %v2162, %v2162
      %v2179 = vpack.c.bf16 %v2163, %v2163
      %v2180 = vpack.c.bf16 %v2164, %v2164
      %v2197 = vunpack.c.l.b16 %v2165
      %v2198 = vunpack.c.l.b16 %v2166
      %v2199 = vunpack.c.l.b16 %v2167
      %v2200 = vunpack.c.l.b16 %v2168
      %v2201 = vunpack.c.l.b16 %v2169
      %v2202 = vunpack.c.l.b16 %v2170
      %v2203 = vunpack.c.l.b16 %v2171
      %v2204 = vunpack.c.l.b16 %v2172
      %v2205 = vunpack.c.l.b16 %v2173
      %v2206 = vunpack.c.l.b16 %v2174
      %v2207 = vunpack.c.l.b16 %v2175
      %v2208 = vunpack.c.l.b16 %v2176
      %v2209 = vunpack.c.l.b16 %v2177
      %v2210 = vunpack.c.l.b16 %v2178
      %v2211 = vunpack.c.l.b16 %v2179
      %v2212 = vunpack.c.l.b16 %v2180
      %v2213 = vpack.c.b16 %v2197, %v2197
      %v2214 = vpack.c.b16 %v2198, %v2198
      %v2215 = vpack.c.b16 %v2199, %v2199
      %v2216 = vpack.c.b16 %v2200, %v2200
      %v2217 = vpack.c.b16 %v2201, %v2201
      %v2218 = vpack.c.b16 %v2202, %v2202
      %v2219 = vpack.c.b16 %v2203, %v2203
      %v2220 = vpack.c.b16 %v2204, %v2204
      %v2221 = vpack.c.b16 %v2205, %v2205
      %v2222 = vpack.c.b16 %v2206, %v2206
      %v2223 = vpack.c.b16 %v2207, %v2207
      %v2224 = vpack.c.b16 %v2208, %v2208
      %v2225 = vpack.c.b16 %v2209, %v2209
      %v2226 = vpack.c.b16 %v2210, %v2210
      %v2227 = vpack.c.b16 %v2211, %v2211
      %v2228 = vpack.c.b16 %v2212, %v2212
      %v2229 = vunpack.c.l.b16 %v2213
      %v2230 = vunpack.c.l.b16 %v2214
      %v2231 = vunpack.c.l.b16 %v2215
      %v2232 = vunpack.c.l.b16 %v2216
      %v2233 = vunpack.c.l.b16 %v2217
      %v2234 = vunpack.c.l.b16 %v2218
      %v2235 = vunpack.c.l.b16 %v2219
      %v2236 = vunpack.c.l.b16 %v2220
      %v2237 = vunpack.c.l.b16 %v2221
      %v2238 = vunpack.c.l.b16 %v2222
      %v2239 = vunpack.c.l.b16 %v2223
      %v2240 = vunpack.c.l.b16 %v2224
      %v2241 = vunpack.c.l.b16 %v2225
      %v2242 = vunpack.c.l.b16 %v2226
      %v2243 = vunpack.c.l.b16 %v2227
      %v2244 = vunpack.c.l.b16 %v2228
      %v2245 = vrot.slane %v2230, 7
      %v2246 = vsel %vm1973, %v2245, %v2229
      %v2247 = vrot.slane %v2231, 6
      %v2248 = vsel %vm1976, %v2247, %v2246
      %v2249 = vrot.slane %v2232, 5
      %v2250 = vsel %vm1979, %v2249, %v2248
      %v2251 = vrot.slane %v2233, 4
      %v2252 = vsel %vm1982, %v2251, %v2250
      %v2253 = vrot.slane %v2234, 3
      %v2254 = vsel %vm1985, %v2253, %v2252
      %v2255 = vrot.slane %v2235, 2
      %v2256 = vsel %vm1988, %v2255, %v2254
      %v2257 = vrot.slane %v2236, 1
      %v2258 = vsel %vm1991, %v2257, %v2256
      %v2259 = vrot.slane %v2238, 7
      %v2260 = vsel %vm1973, %v2259, %v2237
      %v2261 = vrot.slane %v2239, 6
      %v2262 = vsel %vm1976, %v2261, %v2260
      %v2263 = vrot.slane %v2240, 5
      %v2264 = vsel %vm1979, %v2263, %v2262
      %v2265 = vrot.slane %v2241, 4
      %v2266 = vsel %vm1982, %v2265, %v2264
      %v2267 = vrot.slane %v2242, 3
      %v2268 = vsel %vm1985, %v2267, %v2266
      %v2269 = vrot.slane %v2243, 2
      %v2270 = vsel %vm1988, %v2269, %v2268
      %v2271 = vrot.slane %v2244, 1
      %v2272 = vsel %vm1991, %v2271, %v2270
      %v2273 = vpack.c.b16 %v2258, %v2258
      %v2274 = vpack.c.b16 %v2272, %v2272
      %2275 = vrot.lane.b32.xlu0 %v2273, 16
      %v2276 = vpop.permute.xlu0 %2275
      %2277 = vrot.lane.b32.xlu0 %v2274, 16
      %v2278 = vpop.permute.xlu0 %2277
      %vm2281 = vcmask 191616
      %2282 = vst.msk [vmem:[%s170] sm:$0xf] %vm2281, %v2276
      %2283 = vst.msk [vmem:[%s170 + $0x4] sm:$0xf] %vm2281, %v2278
      %v2284 = vld [vmem:[#allocation3 + $0x3] sm:$0x1]
      %v2285 = vld [vmem:[#allocation3 + $0x13] sm:$0x1]
      %v2286 = vld [vmem:[#allocation3 + $0x23] sm:$0x1]
      %v2287 = vld [vmem:[#allocation3 + $0x33] sm:$0x1]
      %v2288 = vld [vmem:[#allocation3 + $0x43] sm:$0x1]
      %v2289 = vld [vmem:[#allocation3 + $0x53] sm:$0x1]
      %v2290 = vld [vmem:[#allocation3 + $0x63] sm:$0x1]
      %v2291 = vld [vmem:[#allocation3 + $0x73] sm:$0x1]
      %v2292 = vld [vmem:[#allocation3 + $0x83] sm:$0x1]
      %v2293 = vld [vmem:[#allocation3 + $0x93] sm:$0x1]
      %v2294 = vld [vmem:[#allocation3 + $0xa3] sm:$0x1]
      %v2295 = vld [vmem:[#allocation3 + $0xb3] sm:$0x1]
      %v2296 = vld [vmem:[#allocation3 + $0xc3] sm:$0x1]
      %v2297 = vld [vmem:[#allocation3 + $0xd3] sm:$0x1]
      %v2298 = vld [vmem:[#allocation3 + $0xe3] sm:$0x1]
      %v2299 = vld [vmem:[#allocation3 + $0xf3] sm:$0x1]
      %v2300 = vpack.c.bf16 %v2284, %v2284
      %v2301 = vpack.c.bf16 %v2285, %v2285
      %v2302 = vpack.c.bf16 %v2286, %v2286
      %v2303 = vpack.c.bf16 %v2287, %v2287
      %v2304 = vpack.c.bf16 %v2288, %v2288
      %v2305 = vpack.c.bf16 %v2289, %v2289
      %v2306 = vpack.c.bf16 %v2290, %v2290
      %v2307 = vpack.c.bf16 %v2291, %v2291
      %v2308 = vpack.c.bf16 %v2292, %v2292
      %v2309 = vpack.c.bf16 %v2293, %v2293
      %v2310 = vpack.c.bf16 %v2294, %v2294
      %v2311 = vpack.c.bf16 %v2295, %v2295
      %v2312 = vpack.c.bf16 %v2296, %v2296
      %v2313 = vpack.c.bf16 %v2297, %v2297
      %v2314 = vpack.c.bf16 %v2298, %v2298
      %v2315 = vpack.c.bf16 %v2299, %v2299
      %v2332 = vunpack.c.l.b16 %v2300
      %v2333 = vunpack.c.l.b16 %v2301
      %v2334 = vunpack.c.l.b16 %v2302
      %v2335 = vunpack.c.l.b16 %v2303
      %v2336 = vunpack.c.l.b16 %v2304
      %v2337 = vunpack.c.l.b16 %v2305
      %v2338 = vunpack.c.l.b16 %v2306
      %v2339 = vunpack.c.l.b16 %v2307
      %v2340 = vunpack.c.l.b16 %v2308
      %v2341 = vunpack.c.l.b16 %v2309
      %v2342 = vunpack.c.l.b16 %v2310
      %v2343 = vunpack.c.l.b16 %v2311
      %v2344 = vunpack.c.l.b16 %v2312
      %v2345 = vunpack.c.l.b16 %v2313
      %v2346 = vunpack.c.l.b16 %v2314
      %v2347 = vunpack.c.l.b16 %v2315
      %v2348 = vpack.c.b16 %v2332, %v2332
      %v2349 = vpack.c.b16 %v2333, %v2333
      %v2350 = vpack.c.b16 %v2334, %v2334
      %v2351 = vpack.c.b16 %v2335, %v2335
      %v2352 = vpack.c.b16 %v2336, %v2336
      %v2353 = vpack.c.b16 %v2337, %v2337
      %v2354 = vpack.c.b16 %v2338, %v2338
      %v2355 = vpack.c.b16 %v2339, %v2339
      %v2356 = vpack.c.b16 %v2340, %v2340
      %v2357 = vpack.c.b16 %v2341, %v2341
      %v2358 = vpack.c.b16 %v2342, %v2342
      %v2359 = vpack.c.b16 %v2343, %v2343
      %v2360 = vpack.c.b16 %v2344, %v2344
      %v2361 = vpack.c.b16 %v2345, %v2345
      %v2362 = vpack.c.b16 %v2346, %v2346
      %v2363 = vpack.c.b16 %v2347, %v2347
      %v2364 = vunpack.c.l.b16 %v2348
      %v2365 = vunpack.c.l.b16 %v2349
      %v2366 = vunpack.c.l.b16 %v2350
      %v2367 = vunpack.c.l.b16 %v2351
      %v2368 = vunpack.c.l.b16 %v2352
      %v2369 = vunpack.c.l.b16 %v2353
      %v2370 = vunpack.c.l.b16 %v2354
      %v2371 = vunpack.c.l.b16 %v2355
      %v2372 = vunpack.c.l.b16 %v2356
      %v2373 = vunpack.c.l.b16 %v2357
      %v2374 = vunpack.c.l.b16 %v2358
      %v2375 = vunpack.c.l.b16 %v2359
      %v2376 = vunpack.c.l.b16 %v2360
      %v2377 = vunpack.c.l.b16 %v2361
      %v2378 = vunpack.c.l.b16 %v2362
      %v2379 = vunpack.c.l.b16 %v2363
      %v2380 = vrot.slane %v2365, 7
      %v2381 = vsel %vm1973, %v2380, %v2364
      %v2382 = vrot.slane %v2366, 6
      %v2383 = vsel %vm1976, %v2382, %v2381
      %v2384 = vrot.slane %v2367, 5
      %v2385 = vsel %vm1979, %v2384, %v2383
      %v2386 = vrot.slane %v2368, 4
      %v2387 = vsel %vm1982, %v2386, %v2385
      %v2388 = vrot.slane %v2369, 3
      %v2389 = vsel %vm1985, %v2388, %v2387
      %v2390 = vrot.slane %v2370, 2
      %v2391 = vsel %vm1988, %v2390, %v2389
      %v2392 = vrot.slane %v2371, 1
      %v2393 = vsel %vm1991, %v2392, %v2391
      %v2394 = vrot.slane %v2373, 7
      %v2395 = vsel %vm1973, %v2394, %v2372
      %v2396 = vrot.slane %v2374, 6
      %v2397 = vsel %vm1976, %v2396, %v2395
      %v2398 = vrot.slane %v2375, 5
      %v2399 = vsel %vm1979, %v2398, %v2397
      %v2400 = vrot.slane %v2376, 4
      %v2401 = vsel %vm1982, %v2400, %v2399
      %v2402 = vrot.slane %v2377, 3
      %v2403 = vsel %vm1985, %v2402, %v2401
      %v2404 = vrot.slane %v2378, 2
      %v2405 = vsel %vm1988, %v2404, %v2403
      %v2406 = vrot.slane %v2379, 1
      %v2407 = vsel %vm1991, %v2406, %v2405
      %v2408 = vpack.c.b16 %v2393, %v2393
      %v2409 = vpack.c.b16 %v2407, %v2407
      %2410 = vrot.lane.b32.xlu0 %v2408, 24
      %v2411 = vpop.permute.xlu0 %2410
      %2412 = vrot.lane.b32.xlu0 %v2409, 24
      %v2413 = vpop.permute.xlu0 %2412
      %vm2416 = vcmask 257216
      %2417 = vst.msk [vmem:[%s170] sm:$0xf] %vm2416, %v2411
      %2418 = vst.msk [vmem:[%s170 + $0x4] sm:$0xf] %vm2416, %v2413
      %v2419 = vld [vmem:[#allocation3 + $0x4] sm:$0x1]
      %v2420 = vld [vmem:[#allocation3 + $0x14] sm:$0x1]
      %v2421 = vld [vmem:[#allocation3 + $0x24] sm:$0x1]
      %v2422 = vld [vmem:[#allocation3 + $0x34] sm:$0x1]
      %v2423 = vld [vmem:[#allocation3 + $0x44] sm:$0x1]
      %v2424 = vld [vmem:[#allocation3 + $0x54] sm:$0x1]
      %v2425 = vld [vmem:[#allocation3 + $0x64] sm:$0x1]
      %v2426 = vld [vmem:[#allocation3 + $0x74] sm:$0x1]
      %v2427 = vld [vmem:[#allocation3 + $0x84] sm:$0x1]
      %v2428 = vld [vmem:[#allocation3 + $0x94] sm:$0x1]
      %v2429 = vld [vmem:[#allocation3 + $0xa4] sm:$0x1]
      %v2430 = vld [vmem:[#allocation3 + $0xb4] sm:$0x1]
      %v2431 = vld [vmem:[#allocation3 + $0xc4] sm:$0x1]
      %v2432 = vld [vmem:[#allocation3 + $0xd4] sm:$0x1]
      %v2433 = vld [vmem:[#allocation3 + $0xe4] sm:$0x1]
      %v2434 = vld [vmem:[#allocation3 + $0xf4] sm:$0x1]
      %v2435 = vpack.c.bf16 %v2419, %v2419
      %v2436 = vpack.c.bf16 %v2420, %v2420
      %v2437 = vpack.c.bf16 %v2421, %v2421
      %v2438 = vpack.c.bf16 %v2422, %v2422
      %v2439 = vpack.c.bf16 %v2423, %v2423
      %v2440 = vpack.c.bf16 %v2424, %v2424
      %v2441 = vpack.c.bf16 %v2425, %v2425
      %v2442 = vpack.c.bf16 %v2426, %v2426
      %v2443 = vpack.c.bf16 %v2427, %v2427
      %v2444 = vpack.c.bf16 %v2428, %v2428
      %v2445 = vpack.c.bf16 %v2429, %v2429
      %v2446 = vpack.c.bf16 %v2430, %v2430
      %v2447 = vpack.c.bf16 %v2431, %v2431
      %v2448 = vpack.c.bf16 %v2432, %v2432
      %v2449 = vpack.c.bf16 %v2433, %v2433
      %v2450 = vpack.c.bf16 %v2434, %v2434
      %v2467 = vunpack.c.l.b16 %v2435
      %v2468 = vunpack.c.l.b16 %v2436
      %v2469 = vunpack.c.l.b16 %v2437
      %v2470 = vunpack.c.l.b16 %v2438
      %v2471 = vunpack.c.l.b16 %v2439
      %v2472 = vunpack.c.l.b16 %v2440
      %v2473 = vunpack.c.l.b16 %v2441
      %v2474 = vunpack.c.l.b16 %v2442
      %v2475 = vunpack.c.l.b16 %v2443
      %v2476 = vunpack.c.l.b16 %v2444
      %v2477 = vunpack.c.l.b16 %v2445
      %v2478 = vunpack.c.l.b16 %v2446
      %v2479 = vunpack.c.l.b16 %v2447
      %v2480 = vunpack.c.l.b16 %v2448
      %v2481 = vunpack.c.l.b16 %v2449
      %v2482 = vunpack.c.l.b16 %v2450
      %v2483 = vpack.c.b16 %v2467, %v2467
      %v2484 = vpack.c.b16 %v2468, %v2468
      %v2485 = vpack.c.b16 %v2469, %v2469
      %v2486 = vpack.c.b16 %v2470, %v2470
      %v2487 = vpack.c.b16 %v2471, %v2471
      %v2488 = vpack.c.b16 %v2472, %v2472
      %v2489 = vpack.c.b16 %v2473, %v2473
      %v2490 = vpack.c.b16 %v2474, %v2474
      %v2491 = vpack.c.b16 %v2475, %v2475
      %v2492 = vpack.c.b16 %v2476, %v2476
      %v2493 = vpack.c.b16 %v2477, %v2477
      %v2494 = vpack.c.b16 %v2478, %v2478
      %v2495 = vpack.c.b16 %v2479, %v2479
      %v2496 = vpack.c.b16 %v2480, %v2480
      %v2497 = vpack.c.b16 %v2481, %v2481
      %v2498 = vpack.c.b16 %v2482, %v2482
      %v2499 = vunpack.c.l.b16 %v2483
      %v2500 = vunpack.c.l.b16 %v2484
      %v2501 = vunpack.c.l.b16 %v2485
      %v2502 = vunpack.c.l.b16 %v2486
      %v2503 = vunpack.c.l.b16 %v2487
      %v2504 = vunpack.c.l.b16 %v2488
      %v2505 = vunpack.c.l.b16 %v2489
      %v2506 = vunpack.c.l.b16 %v2490
      %v2507 = vunpack.c.l.b16 %v2491
      %v2508 = vunpack.c.l.b16 %v2492
      %v2509 = vunpack.c.l.b16 %v2493
      %v2510 = vunpack.c.l.b16 %v2494
      %v2511 = vunpack.c.l.b16 %v2495
      %v2512 = vunpack.c.l.b16 %v2496
      %v2513 = vunpack.c.l.b16 %v2497
      %v2514 = vunpack.c.l.b16 %v2498
      %v2515 = vrot.slane %v2500, 7
      %v2516 = vsel %vm1973, %v2515, %v2499
      %v2517 = vrot.slane %v2501, 6
      %v2518 = vsel %vm1976, %v2517, %v2516
      %v2519 = vrot.slane %v2502, 5
      %v2520 = vsel %vm1979, %v2519, %v2518
      %v2521 = vrot.slane %v2503, 4
      %v2522 = vsel %vm1982, %v2521, %v2520
      %v2523 = vrot.slane %v2504, 3
      %v2524 = vsel %vm1985, %v2523, %v2522
      %v2525 = vrot.slane %v2505, 2
      %v2526 = vsel %vm1988, %v2525, %v2524
      %v2527 = vrot.slane %v2506, 1
      %v2528 = vsel %vm1991, %v2527, %v2526
      %v2529 = vrot.slane %v2508, 7
      %v2530 = vsel %vm1973, %v2529, %v2507
      %v2531 = vrot.slane %v2509, 6
      %v2532 = vsel %vm1976, %v2531, %v2530
      %v2533 = vrot.slane %v2510, 5
      %v2534 = vsel %vm1979, %v2533, %v2532
      %v2535 = vrot.slane %v2511, 4
      %v2536 = vsel %vm1982, %v2535, %v2534
      %v2537 = vrot.slane %v2512, 3
      %v2538 = vsel %vm1985, %v2537, %v2536
      %v2539 = vrot.slane %v2513, 2
      %v2540 = vsel %vm1988, %v2539, %v2538
      %v2541 = vrot.slane %v2514, 1
      %v2542 = vsel %vm1991, %v2541, %v2540
      %v2543 = vpack.c.b16 %v2528, %v2528
      %v2544 = vpack.c.b16 %v2542, %v2542
      %2545 = vrot.lane.b32.xlu0 %v2543, 32
      %v2546 = vpop.permute.xlu0 %2545
      %2547 = vrot.lane.b32.xlu0 %v2544, 32
      %v2548 = vpop.permute.xlu0 %2547
      %vm2551 = vcmask 322816
      %2552 = vst.msk [vmem:[%s170] sm:$0xf] %vm2551, %v2546
      %2553 = vst.msk [vmem:[%s170 + $0x4] sm:$0xf] %vm2551, %v2548
      %v2554 = vld [vmem:[#allocation3 + $0x5] sm:$0x1]
      %v2555 = vld [vmem:[#allocation3 + $0x15] sm:$0x1]
      %v2556 = vld [vmem:[#allocation3 + $0x25] sm:$0x1]
      %v2557 = vld [vmem:[#allocation3 + $0x35] sm:$0x1]
      %v2558 = vld [vmem:[#allocation3 + $0x45] sm:$0x1]
      %v2559 = vld [vmem:[#allocation3 + $0x55] sm:$0x1]
      %v2560 = vld [vmem:[#allocation3 + $0x65] sm:$0x1]
      %v2561 = vld [vmem:[#allocation3 + $0x75] sm:$0x1]
      %v2562 = vld [vmem:[#allocation3 + $0x85] sm:$0x1]
      %v2563 = vld [vmem:[#allocation3 + $0x95] sm:$0x1]
      %v2564 = vld [vmem:[#allocation3 + $0xa5] sm:$0x1]
      %v2565 = vld [vmem:[#allocation3 + $0xb5] sm:$0x1]
      %v2566 = vld [vmem:[#allocation3 + $0xc5] sm:$0x1]
      %v2567 = vld [vmem:[#allocation3 + $0xd5] sm:$0x1]
      %v2568 = vld [vmem:[#allocation3 + $0xe5] sm:$0x1]
      %v2569 = vld [vmem:[#allocation3 + $0xf5] sm:$0x1]
      %v2570 = vpack.c.bf16 %v2554, %v2554
      %v2571 = vpack.c.bf16 %v2555, %v2555
      %v2572 = vpack.c.bf16 %v2556, %v2556
      %v2573 = vpack.c.bf16 %v2557, %v2557
      %v2574 = vpack.c.bf16 %v2558, %v2558
      %v2575 = vpack.c.bf16 %v2559, %v2559
      %v2576 = vpack.c.bf16 %v2560, %v2560
      %v2577 = vpack.c.bf16 %v2561, %v2561
      %v2578 = vpack.c.bf16 %v2562, %v2562
      %v2579 = vpack.c.bf16 %v2563, %v2563
      %v2580 = vpack.c.bf16 %v2564, %v2564
      %v2581 = vpack.c.bf16 %v2565, %v2565
      %v2582 = vpack.c.bf16 %v2566, %v2566
      %v2583 = vpack.c.bf16 %v2567, %v2567
      %v2584 = vpack.c.bf16 %v2568, %v2568
      %v2585 = vpack.c.bf16 %v2569, %v2569
      %v2602 = vunpack.c.l.b16 %v2570
      %v2603 = vunpack.c.l.b16 %v2571
      %v2604 = vunpack.c.l.b16 %v2572
      %v2605 = vunpack.c.l.b16 %v2573
      %v2606 = vunpack.c.l.b16 %v2574
      %v2607 = vunpack.c.l.b16 %v2575
      %v2608 = vunpack.c.l.b16 %v2576
      %v2609 = vunpack.c.l.b16 %v2577
      %v2610 = vunpack.c.l.b16 %v2578
      %v2611 = vunpack.c.l.b16 %v2579
      %v2612 = vunpack.c.l.b16 %v2580
      %v2613 = vunpack.c.l.b16 %v2581
      %v2614 = vunpack.c.l.b16 %v2582
      %v2615 = vunpack.c.l.b16 %v2583
      %v2616 = vunpack.c.l.b16 %v2584
      %v2617 = vunpack.c.l.b16 %v2585
      %v2618 = vpack.c.b16 %v2602, %v2602
      %v2619 = vpack.c.b16 %v2603, %v2603
      %v2620 = vpack.c.b16 %v2604, %v2604
      %v2621 = vpack.c.b16 %v2605, %v2605
      %v2622 = vpack.c.b16 %v2606, %v2606
      %v2623 = vpack.c.b16 %v2607, %v2607
      %v2624 = vpack.c.b16 %v2608, %v2608
      %v2625 = vpack.c.b16 %v2609, %v2609
      %v2626 = vpack.c.b16 %v2610, %v2610
      %v2627 = vpack.c.b16 %v2611, %v2611
      %v2628 = vpack.c.b16 %v2612, %v2612
      %v2629 = vpack.c.b16 %v2613, %v2613
      %v2630 = vpack.c.b16 %v2614, %v2614
      %v2631 = vpack.c.b16 %v2615, %v2615
      %v2632 = vpack.c.b16 %v2616, %v2616
      %v2633 = vpack.c.b16 %v2617, %v2617
      %v2634 = vunpack.c.l.b16 %v2618
      %v2635 = vunpack.c.l.b16 %v2619
      %v2636 = vunpack.c.l.b16 %v2620
      %v2637 = vunpack.c.l.b16 %v2621
      %v2638 = vunpack.c.l.b16 %v2622
      %v2639 = vunpack.c.l.b16 %v2623
      %v2640 = vunpack.c.l.b16 %v2624
      %v2641 = vunpack.c.l.b16 %v2625
      %v2642 = vunpack.c.l.b16 %v2626
      %v2643 = vunpack.c.l.b16 %v2627
      %v2644 = vunpack.c.l.b16 %v2628
      %v2645 = vunpack.c.l.b16 %v2629
      %v2646 = vunpack.c.l.b16 %v2630
      %v2647 = vunpack.c.l.b16 %v2631
      %v2648 = vunpack.c.l.b16 %v2632
      %v2649 = vunpack.c.l.b16 %v2633
      %v2650 = vrot.slane %v2635, 7
      %v2651 = vsel %vm1973, %v2650, %v2634
      %v2652 = vrot.slane %v2636, 6
      %v2653 = vsel %vm1976, %v2652, %v2651
      %v2654 = vrot.slane %v2637, 5
      %v2655 = vsel %vm1979, %v2654, %v2653
      %v2656 = vrot.slane %v2638, 4
      %v2657 = vsel %vm1982, %v2656, %v2655
      %v2658 = vrot.slane %v2639, 3
      %v2659 = vsel %vm1985, %v2658, %v2657
      %v2660 = vrot.slane %v2640, 2
      %v2661 = vsel %vm1988, %v2660, %v2659
      %v2662 = vrot.slane %v2641, 1
      %v2663 = vsel %vm1991, %v2662, %v2661
      %v2664 = vrot.slane %v2643, 7
      %v2665 = vsel %vm1973, %v2664, %v2642
      %v2666 = vrot.slane %v2644, 6
      %v2667 = vsel %vm1976, %v2666, %v2665
      %v2668 = vrot.slane %v2645, 5
      %v2669 = vsel %vm1979, %v2668, %v2667
      %v2670 = vrot.slane %v2646, 4
      %v2671 = vsel %vm1982, %v2670, %v2669
      %v2672 = vrot.slane %v2647, 3
      %v2673 = vsel %vm1985, %v2672, %v2671
      %v2674 = vrot.slane %v2648, 2
      %v2675 = vsel %vm1988, %v2674, %v2673
      %v2676 = vrot.slane %v2649, 1
      %v2677 = vsel %vm1991, %v2676, %v2675
      %v2678 = vpack.c.b16 %v2663, %v2663
      %v2679 = vpack.c.b16 %v2677, %v2677
      %2680 = vrot.lane.b32.xlu0 %v2678, 40
      %v2681 = vpop.permute.xlu0 %2680
      %2682 = vrot.lane.b32.xlu0 %v2679, 40
      %v2683 = vpop.permute.xlu0 %2682
      %vm2686 = vcmask 388416
      %2687 = vst.msk [vmem:[%s170] sm:$0xf] %vm2686, %v2681
      %2688 = vst.msk [vmem:[%s170 + $0x4] sm:$0xf] %vm2686, %v2683
      %v2689 = vld [vmem:[#allocation3 + $0x6] sm:$0x1]
      %v2690 = vld [vmem:[#allocation3 + $0x16] sm:$0x1]
      %v2691 = vld [vmem:[#allocation3 + $0x26] sm:$0x1]
      %v2692 = vld [vmem:[#allocation3 + $0x36] sm:$0x1]
      %v2693 = vld [vmem:[#allocation3 + $0x46] sm:$0x1]
      %v2694 = vld [vmem:[#allocation3 + $0x56] sm:$0x1]
      %v2695 = vld [vmem:[#allocation3 + $0x66] sm:$0x1]
      %v2696 = vld [vmem:[#allocation3 + $0x76] sm:$0x1]
      %v2697 = vld [vmem:[#allocation3 + $0x86] sm:$0x1]
      %v2698 = vld [vmem:[#allocation3 + $0x96] sm:$0x1]
      %v2699 = vld [vmem:[#allocation3 + $0xa6] sm:$0x1]
      %v2700 = vld [vmem:[#allocation3 + $0xb6] sm:$0x1]
      %v2701 = vld [vmem:[#allocation3 + $0xc6] sm:$0x1]
      %v2702 = vld [vmem:[#allocation3 + $0xd6] sm:$0x1]
      %v2703 = vld [vmem:[#allocation3 + $0xe6] sm:$0x1]
      %v2704 = vld [vmem:[#allocation3 + $0xf6] sm:$0x1]
      %v2705 = vpack.c.bf16 %v2689, %v2689
      %v2706 = vpack.c.bf16 %v2690, %v2690
      %v2707 = vpack.c.bf16 %v2691, %v2691
      %v2708 = vpack.c.bf16 %v2692, %v2692
      %v2709 = vpack.c.bf16 %v2693, %v2693
      %v2710 = vpack.c.bf16 %v2694, %v2694
      %v2711 = vpack.c.bf16 %v2695, %v2695
      %v2712 = vpack.c.bf16 %v2696, %v2696
      %v2713 = vpack.c.bf16 %v2697, %v2697
      %v2714 = vpack.c.bf16 %v2698, %v2698
      %v2715 = vpack.c.bf16 %v2699, %v2699
      %v2716 = vpack.c.bf16 %v2700, %v2700
      %v2717 = vpack.c.bf16 %v2701, %v2701
      %v2718 = vpack.c.bf16 %v2702, %v2702
      %v2719 = vpack.c.bf16 %v2703, %v2703
      %v2720 = vpack.c.bf16 %v2704, %v2704
      %v2737 = vunpack.c.l.b16 %v2705
      %v2738 = vunpack.c.l.b16 %v2706
      %v2739 = vunpack.c.l.b16 %v2707
      %v2740 = vunpack.c.l.b16 %v2708
      %v2741 = vunpack.c.l.b16 %v2709
      %v2742 = vunpack.c.l.b16 %v2710
      %v2743 = vunpack.c.l.b16 %v2711
      %v2744 = vunpack.c.l.b16 %v2712
      %v2745 = vunpack.c.l.b16 %v2713
      %v2746 = vunpack.c.l.b16 %v2714
      %v2747 = vunpack.c.l.b16 %v2715
      %v2748 = vunpack.c.l.b16 %v2716
      %v2749 = vunpack.c.l.b16 %v2717
      %v2750 = vunpack.c.l.b16 %v2718
      %v2751 = vunpack.c.l.b16 %v2719
      %v2752 = vunpack.c.l.b16 %v2720
      %v2753 = vpack.c.b16 %v2737, %v2737
      %v2754 = vpack.c.b16 %v2738, %v2738
      %v2755 = vpack.c.b16 %v2739, %v2739
      %v2756 = vpack.c.b16 %v2740, %v2740
      %v2757 = vpack.c.b16 %v2741, %v2741
      %v2758 = vpack.c.b16 %v2742, %v2742
      %v2759 = vpack.c.b16 %v2743, %v2743
      %v2760 = vpack.c.b16 %v2744, %v2744
      %v2761 = vpack.c.b16 %v2745, %v2745
      %v2762 = vpack.c.b16 %v2746, %v2746
      %v2763 = vpack.c.b16 %v2747, %v2747
      %v2764 = vpack.c.b16 %v2748, %v2748
      %v2765 = vpack.c.b16 %v2749, %v2749
      %v2766 = vpack.c.b16 %v2750, %v2750
      %v2767 = vpack.c.b16 %v2751, %v2751
      %v2768 = vpack.c.b16 %v2752, %v2752
      %v2769 = vunpack.c.l.b16 %v2753
      %v2770 = vunpack.c.l.b16 %v2754
      %v2771 = vunpack.c.l.b16 %v2755
      %v2772 = vunpack.c.l.b16 %v2756
      %v2773 = vunpack.c.l.b16 %v2757
      %v2774 = vunpack.c.l.b16 %v2758
      %v2775 = vunpack.c.l.b16 %v2759
      %v2776 = vunpack.c.l.b16 %v2760
      %v2777 = vunpack.c.l.b16 %v2761
      %v2778 = vunpack.c.l.b16 %v2762
      %v2779 = vunpack.c.l.b16 %v2763
      %v2780 = vunpack.c.l.b16 %v2764
      %v2781 = vunpack.c.l.b16 %v2765
      %v2782 = vunpack.c.l.b16 %v2766
      %v2783 = vunpack.c.l.b16 %v2767
      %v2784 = vunpack.c.l.b16 %v2768
      %v2785 = vrot.slane %v2770, 7
      %v2786 = vsel %vm1973, %v2785, %v2769
      %v2787 = vrot.slane %v2771, 6
      %v2788 = vsel %vm1976, %v2787, %v2786
      %v2789 = vrot.slane %v2772, 5
      %v2790 = vsel %vm1979, %v2789, %v2788
      %v2791 = vrot.slane %v2773, 4
      %v2792 = vsel %vm1982, %v2791, %v2790
      %v2793 = vrot.slane %v2774, 3
      %v2794 = vsel %vm1985, %v2793, %v2792
      %v2795 = vrot.slane %v2775, 2
      %v2796 = vsel %vm1988, %v2795, %v2794
      %v2797 = vrot.slane %v2776, 1
      %v2798 = vsel %vm1991, %v2797, %v2796
      %v2799 = vrot.slane %v2778, 7
      %v2800 = vsel %vm1973, %v2799, %v2777
      %v2801 = vrot.slane %v2779, 6
      %v2802 = vsel %vm1976, %v2801, %v2800
      %v2803 = vrot.slane %v2780, 5
      %v2804 = vsel %vm1979, %v2803, %v2802
      %v2805 = vrot.slane %v2781, 4
      %v2806 = vsel %vm1982, %v2805, %v2804
      %v2807 = vrot.slane %v2782, 3
      %v2808 = vsel %vm1985, %v2807, %v2806
      %v2809 = vrot.slane %v2783, 2
      %v2810 = vsel %vm1988, %v2809, %v2808
      %v2811 = vrot.slane %v2784, 1
      %v2812 = vsel %vm1991, %v2811, %v2810
      %v2813 = vpack.c.b16 %v2798, %v2798
      %v2814 = vpack.c.b16 %v2812, %v2812
      %2815 = vrot.lane.b32.xlu0 %v2813, 48
      %v2816 = vpop.permute.xlu0 %2815
      %2817 = vrot.lane.b32.xlu0 %v2814, 48
      %v2818 = vpop.permute.xlu0 %2817
      %vm2821 = vcmask 454016
      %2822 = vst.msk [vmem:[%s170] sm:$0xf] %vm2821, %v2816
      %2823 = vst.msk [vmem:[%s170 + $0x4] sm:$0xf] %vm2821, %v2818
      %v2824 = vld [vmem:[#allocation3 + $0x7] sm:$0x1]
      %v2825 = vld [vmem:[#allocation3 + $0x17] sm:$0x1]
      %v2826 = vld [vmem:[#allocation3 + $0x27] sm:$0x1]
      %v2827 = vld [vmem:[#allocation3 + $0x37] sm:$0x1]
      %v2828 = vld [vmem:[#allocation3 + $0x47] sm:$0x1]
      %v2829 = vld [vmem:[#allocation3 + $0x57] sm:$0x1]
      %v2830 = vld [vmem:[#allocation3 + $0x67] sm:$0x1]
      %v2831 = vld [vmem:[#allocation3 + $0x77] sm:$0x1]
      %v2832 = vld [vmem:[#allocation3 + $0x87] sm:$0x1]
      %v2833 = vld [vmem:[#allocation3 + $0x97] sm:$0x1]
      %v2834 = vld [vmem:[#allocation3 + $0xa7] sm:$0x1]
      %v2835 = vld [vmem:[#allocation3 + $0xb7] sm:$0x1]
      %v2836 = vld [vmem:[#allocation3 + $0xc7] sm:$0x1]
      %v2837 = vld [vmem:[#allocation3 + $0xd7] sm:$0x1]
      %v2838 = vld [vmem:[#allocation3 + $0xe7] sm:$0x1]
      %v2839 = vld [vmem:[#allocation3 + $0xf7] sm:$0x1]
      %v2840 = vpack.c.bf16 %v2824, %v2824
      %v2841 = vpack.c.bf16 %v2825, %v2825
      %v2842 = vpack.c.bf16 %v2826, %v2826
      %v2843 = vpack.c.bf16 %v2827, %v2827
      %v2844 = vpack.c.bf16 %v2828, %v2828
      %v2845 = vpack.c.bf16 %v2829, %v2829
      %v2846 = vpack.c.bf16 %v2830, %v2830
      %v2847 = vpack.c.bf16 %v2831, %v2831
      %v2848 = vpack.c.bf16 %v2832, %v2832
      %v2849 = vpack.c.bf16 %v2833, %v2833
      %v2850 = vpack.c.bf16 %v2834, %v2834
      %v2851 = vpack.c.bf16 %v2835, %v2835
      %v2852 = vpack.c.bf16 %v2836, %v2836
      %v2853 = vpack.c.bf16 %v2837, %v2837
      %v2854 = vpack.c.bf16 %v2838, %v2838
      %v2855 = vpack.c.bf16 %v2839, %v2839
      %v2872 = vunpack.c.l.b16 %v2840
      %v2873 = vunpack.c.l.b16 %v2841
      %v2874 = vunpack.c.l.b16 %v2842
      %v2875 = vunpack.c.l.b16 %v2843
      %v2876 = vunpack.c.l.b16 %v2844
      %v2877 = vunpack.c.l.b16 %v2845
      %v2878 = vunpack.c.l.b16 %v2846
      %v2879 = vunpack.c.l.b16 %v2847
      %v2880 = vunpack.c.l.b16 %v2848
      %v2881 = vunpack.c.l.b16 %v2849
      %v2882 = vunpack.c.l.b16 %v2850
      %v2883 = vunpack.c.l.b16 %v2851
      %v2884 = vunpack.c.l.b16 %v2852
      %v2885 = vunpack.c.l.b16 %v2853
      %v2886 = vunpack.c.l.b16 %v2854
      %v2887 = vunpack.c.l.b16 %v2855
      %v2888 = vpack.c.b16 %v2872, %v2872
      %v2889 = vpack.c.b16 %v2873, %v2873
      %v2890 = vpack.c.b16 %v2874, %v2874
      %v2891 = vpack.c.b16 %v2875, %v2875
      %v2892 = vpack.c.b16 %v2876, %v2876
      %v2893 = vpack.c.b16 %v2877, %v2877
      %v2894 = vpack.c.b16 %v2878, %v2878
      %v2895 = vpack.c.b16 %v2879, %v2879
      %v2896 = vpack.c.b16 %v2880, %v2880
      %v2897 = vpack.c.b16 %v2881, %v2881
      %v2898 = vpack.c.b16 %v2882, %v2882
      %v2899 = vpack.c.b16 %v2883, %v2883
      %v2900 = vpack.c.b16 %v2884, %v2884
      %v2901 = vpack.c.b16 %v2885, %v2885
      %v2902 = vpack.c.b16 %v2886, %v2886
      %v2903 = vpack.c.b16 %v2887, %v2887
      %v2904 = vunpack.c.l.b16 %v2888
      %v2905 = vunpack.c.l.b16 %v2889
      %v2906 = vunpack.c.l.b16 %v2890
      %v2907 = vunpack.c.l.b16 %v2891
      %v2908 = vunpack.c.l.b16 %v2892
      %v2909 = vunpack.c.l.b16 %v2893
      %v2910 = vunpack.c.l.b16 %v2894
      %v2911 = vunpack.c.l.b16 %v2895
      %v2912 = vunpack.c.l.b16 %v2896
      %v2913 = vunpack.c.l.b16 %v2897
      %v2914 = vunpack.c.l.b16 %v2898
      %v2915 = vunpack.c.l.b16 %v2899
      %v2916 = vunpack.c.l.b16 %v2900
      %v2917 = vunpack.c.l.b16 %v2901
      %v2918 = vunpack.c.l.b16 %v2902
      %v2919 = vunpack.c.l.b16 %v2903
      %v2920 = vrot.slane %v2905, 7
      %v2921 = vsel %vm1973, %v2920, %v2904
      %v2922 = vrot.slane %v2906, 6
      %v2923 = vsel %vm1976, %v2922, %v2921
      %v2924 = vrot.slane %v2907, 5
      %v2925 = vsel %vm1979, %v2924, %v2923
      %v2926 = vrot.slane %v2908, 4
      %v2927 = vsel %vm1982, %v2926, %v2925
      %v2928 = vrot.slane %v2909, 3
      %v2929 = vsel %vm1985, %v2928, %v2927
      %v2930 = vrot.slane %v2910, 2
      %v2931 = vsel %vm1988, %v2930, %v2929
      %v2932 = vrot.slane %v2911, 1
      %v2933 = vsel %vm1991, %v2932, %v2931
      %v2934 = vrot.slane %v2913, 7
      %v2935 = vsel %vm1973, %v2934, %v2912
      %v2936 = vrot.slane %v2914, 6
      %v2937 = vsel %vm1976, %v2936, %v2935
      %v2938 = vrot.slane %v2915, 5
      %v2939 = vsel %vm1979, %v2938, %v2937
      %v2940 = vrot.slane %v2916, 4
      %v2941 = vsel %vm1982, %v2940, %v2939
      %v2942 = vrot.slane %v2917, 3
      %v2943 = vsel %vm1985, %v2942, %v2941
      %v2944 = vrot.slane %v2918, 2
      %v2945 = vsel %vm1988, %v2944, %v2943
      %v2946 = vrot.slane %v2919, 1
      %v2947 = vsel %vm1991, %v2946, %v2945
      %v2948 = vpack.c.b16 %v2933, %v2933
      %v2949 = vpack.c.b16 %v2947, %v2947
      %2950 = vrot.lane.b32.xlu0 %v2948, 56
      %v2951 = vpop.permute.xlu0 %2950
      %2952 = vrot.lane.b32.xlu0 %v2949, 56
      %v2953 = vpop.permute.xlu0 %2952
      %vm2956 = vcmask 519616
      %2957 = vst.msk [vmem:[%s170] sm:$0xf] %vm2956, %v2951
      %2958 = vst.msk [vmem:[%s170 + $0x4] sm:$0xf] %vm2956, %v2953
      %v2959 = vld [vmem:[#allocation3 + $0x8] sm:$0x1]
      %v2960 = vld [vmem:[#allocation3 + $0x18] sm:$0x1]
      %v2961 = vld [vmem:[#allocation3 + $0x28] sm:$0x1]
      %v2962 = vld [vmem:[#allocation3 + $0x38] sm:$0x1]
      %v2963 = vld [vmem:[#allocation3 + $0x48] sm:$0x1]
      %v2964 = vld [vmem:[#allocation3 + $0x58] sm:$0x1]
      %v2965 = vld [vmem:[#allocation3 + $0x68] sm:$0x1]
      %v2966 = vld [vmem:[#allocation3 + $0x78] sm:$0x1]
      %v2967 = vld [vmem:[#allocation3 + $0x88] sm:$0x1]
      %v2968 = vld [vmem:[#allocation3 + $0x98] sm:$0x1]
      %v2969 = vld [vmem:[#allocation3 + $0xa8] sm:$0x1]
      %v2970 = vld [vmem:[#allocation3 + $0xb8] sm:$0x1]
      %v2971 = vld [vmem:[#allocation3 + $0xc8] sm:$0x1]
      %v2972 = vld [vmem:[#allocation3 + $0xd8] sm:$0x1]
      %v2973 = vld [vmem:[#allocation3 + $0xe8] sm:$0x1]
      %v2974 = vld [vmem:[#allocation3 + $0xf8] sm:$0x1]
      %v2975 = vpack.c.bf16 %v2959, %v2959
      %v2976 = vpack.c.bf16 %v2960, %v2960
      %v2977 = vpack.c.bf16 %v2961, %v2961
      %v2978 = vpack.c.bf16 %v2962, %v2962
      %v2979 = vpack.c.bf16 %v2963, %v2963
      %v2980 = vpack.c.bf16 %v2964, %v2964
      %v2981 = vpack.c.bf16 %v2965, %v2965
      %v2982 = vpack.c.bf16 %v2966, %v2966
      %v2983 = vpack.c.bf16 %v2967, %v2967
      %v2984 = vpack.c.bf16 %v2968, %v2968
      %v2985 = vpack.c.bf16 %v2969, %v2969
      %v2986 = vpack.c.bf16 %v2970, %v2970
      %v2987 = vpack.c.bf16 %v2971, %v2971
      %v2988 = vpack.c.bf16 %v2972, %v2972
      %v2989 = vpack.c.bf16 %v2973, %v2973
      %v2990 = vpack.c.bf16 %v2974, %v2974
      %v3007 = vunpack.c.l.b16 %v2975
      %v3008 = vunpack.c.l.b16 %v2976
      %v3009 = vunpack.c.l.b16 %v2977
      %v3010 = vunpack.c.l.b16 %v2978
      %v3011 = vunpack.c.l.b16 %v2979
      %v3012 = vunpack.c.l.b16 %v2980
      %v3013 = vunpack.c.l.b16 %v2981
      %v3014 = vunpack.c.l.b16 %v2982
      %v3015 = vunpack.c.l.b16 %v2983
      %v3016 = vunpack.c.l.b16 %v2984
      %v3017 = vunpack.c.l.b16 %v2985
      %v3018 = vunpack.c.l.b16 %v2986
      %v3019 = vunpack.c.l.b16 %v2987
      %v3020 = vunpack.c.l.b16 %v2988
      %v3021 = vunpack.c.l.b16 %v2989
      %v3022 = vunpack.c.l.b16 %v2990
      %v3023 = vpack.c.b16 %v3007, %v3007
      %v3024 = vpack.c.b16 %v3008, %v3008
      %v3025 = vpack.c.b16 %v3009, %v3009
      %v3026 = vpack.c.b16 %v3010, %v3010
      %v3027 = vpack.c.b16 %v3011, %v3011
      %v3028 = vpack.c.b16 %v3012, %v3012
      %v3029 = vpack.c.b16 %v3013, %v3013
      %v3030 = vpack.c.b16 %v3014, %v3014
      %v3031 = vpack.c.b16 %v3015, %v3015
      %v3032 = vpack.c.b16 %v3016, %v3016
      %v3033 = vpack.c.b16 %v3017, %v3017
      %v3034 = vpack.c.b16 %v3018, %v3018
      %v3035 = vpack.c.b16 %v3019, %v3019
      %v3036 = vpack.c.b16 %v3020, %v3020
      %v3037 = vpack.c.b16 %v3021, %v3021
      %v3038 = vpack.c.b16 %v3022, %v3022
      %v3039 = vunpack.c.l.b16 %v3023
      %v3040 = vunpack.c.l.b16 %v3024
      %v3041 = vunpack.c.l.b16 %v3025
      %v3042 = vunpack.c.l.b16 %v3026
      %v3043 = vunpack.c.l.b16 %v3027
      %v3044 = vunpack.c.l.b16 %v3028
      %v3045 = vunpack.c.l.b16 %v3029
      %v3046 = vunpack.c.l.b16 %v3030
      %v3047 = vunpack.c.l.b16 %v3031
      %v3048 = vunpack.c.l.b16 %v3032
      %v3049 = vunpack.c.l.b16 %v3033
      %v3050 = vunpack.c.l.b16 %v3034
      %v3051 = vunpack.c.l.b16 %v3035
      %v3052 = vunpack.c.l.b16 %v3036
      %v3053 = vunpack.c.l.b16 %v3037
      %v3054 = vunpack.c.l.b16 %v3038
      %v3055 = vrot.slane %v3040, 7
      %v3056 = vsel %vm1973, %v3055, %v3039
      %v3057 = vrot.slane %v3041, 6
      %v3058 = vsel %vm1976, %v3057, %v3056
      %v3059 = vrot.slane %v3042, 5
      %v3060 = vsel %vm1979, %v3059, %v3058
      %v3061 = vrot.slane %v3043, 4
      %v3062 = vsel %vm1982, %v3061, %v3060
      %v3063 = vrot.slane %v3044, 3
      %v3064 = vsel %vm1985, %v3063, %v3062
      %v3065 = vrot.slane %v3045, 2
      %v3066 = vsel %vm1988, %v3065, %v3064
      %v3067 = vrot.slane %v3046, 1
      %v3068 = vsel %vm1991, %v3067, %v3066
      %v3069 = vrot.slane %v3048, 7
      %v3070 = vsel %vm1973, %v3069, %v3047
      %v3071 = vrot.slane %v3049, 6
      %v3072 = vsel %vm1976, %v3071, %v3070
      %v3073 = vrot.slane %v3050, 5
      %v3074 = vsel %vm1979, %v3073, %v3072
      %v3075 = vrot.slane %v3051, 4
      %v3076 = vsel %vm1982, %v3075, %v3074
      %v3077 = vrot.slane %v3052, 3
      %v3078 = vsel %vm1985, %v3077, %v3076
      %v3079 = vrot.slane %v3053, 2
      %v3080 = vsel %vm1988, %v3079, %v3078
      %v3081 = vrot.slane %v3054, 1
      %v3082 = vsel %vm1991, %v3081, %v3080
      %v3083 = vpack.c.b16 %v3068, %v3068
      %v3084 = vpack.c.b16 %v3082, %v3082
      %3085 = vrot.lane.b32.xlu0 %v3083, 64
      %v3086 = vpop.permute.xlu0 %3085
      %3087 = vrot.lane.b32.xlu0 %v3084, 64
      %v3088 = vpop.permute.xlu0 %3087
      %vm3091 = vcmask 585216
      %3092 = vst.msk [vmem:[%s170] sm:$0xf] %vm3091, %v3086
      %3093 = vst.msk [vmem:[%s170 + $0x4] sm:$0xf] %vm3091, %v3088
      %v3094 = vld [vmem:[#allocation3 + $0x9] sm:$0x1]
      %v3095 = vld [vmem:[#allocation3 + $0x19] sm:$0x1]
      %v3096 = vld [vmem:[#allocation3 + $0x29] sm:$0x1]
      %v3097 = vld [vmem:[#allocation3 + $0x39] sm:$0x1]
      %v3098 = vld [vmem:[#allocation3 + $0x49] sm:$0x1]
      %v3099 = vld [vmem:[#allocation3 + $0x59] sm:$0x1]
      %v3100 = vld [vmem:[#allocation3 + $0x69] sm:$0x1]
      %v3101 = vld [vmem:[#allocation3 + $0x79] sm:$0x1]
      %v3102 = vld [vmem:[#allocation3 + $0x89] sm:$0x1]
      %v3103 = vld [vmem:[#allocation3 + $0x99] sm:$0x1]
      %v3104 = vld [vmem:[#allocation3 + $0xa9] sm:$0x1]
      %v3105 = vld [vmem:[#allocation3 + $0xb9] sm:$0x1]
      %v3106 = vld [vmem:[#allocation3 + $0xc9] sm:$0x1]
      %v3107 = vld [vmem:[#allocation3 + $0xd9] sm:$0x1]
      %v3108 = vld [vmem:[#allocation3 + $0xe9] sm:$0x1]
      %v3109 = vld [vmem:[#allocation3 + $0xf9] sm:$0x1]
      %v3110 = vpack.c.bf16 %v3094, %v3094
      %v3111 = vpack.c.bf16 %v3095, %v3095
      %v3112 = vpack.c.bf16 %v3096, %v3096
      %v3113 = vpack.c.bf16 %v3097, %v3097
      %v3114 = vpack.c.bf16 %v3098, %v3098
      %v3115 = vpack.c.bf16 %v3099, %v3099
      %v3116 = vpack.c.bf16 %v3100, %v3100
      %v3117 = vpack.c.bf16 %v3101, %v3101
      %v3118 = vpack.c.bf16 %v3102, %v3102
      %v3119 = vpack.c.bf16 %v3103, %v3103
      %v3120 = vpack.c.bf16 %v3104, %v3104
      %v3121 = vpack.c.bf16 %v3105, %v3105
      %v3122 = vpack.c.bf16 %v3106, %v3106
      %v3123 = vpack.c.bf16 %v3107, %v3107
      %v3124 = vpack.c.bf16 %v3108, %v3108
      %v3125 = vpack.c.bf16 %v3109, %v3109
      %v3142 = vunpack.c.l.b16 %v3110
      %v3143 = vunpack.c.l.b16 %v3111
      %v3144 = vunpack.c.l.b16 %v3112
      %v3145 = vunpack.c.l.b16 %v3113
      %v3146 = vunpack.c.l.b16 %v3114
      %v3147 = vunpack.c.l.b16 %v3115
      %v3148 = vunpack.c.l.b16 %v3116
      %v3149 = vunpack.c.l.b16 %v3117
      %v3150 = vunpack.c.l.b16 %v3118
      %v3151 = vunpack.c.l.b16 %v3119
      %v3152 = vunpack.c.l.b16 %v3120
      %v3153 = vunpack.c.l.b16 %v3121
      %v3154 = vunpack.c.l.b16 %v3122
      %v3155 = vunpack.c.l.b16 %v3123
      %v3156 = vunpack.c.l.b16 %v3124
      %v3157 = vunpack.c.l.b16 %v3125
      %v3158 = vpack.c.b16 %v3142, %v3142
      %v3159 = vpack.c.b16 %v3143, %v3143
      %v3160 = vpack.c.b16 %v3144, %v3144
      %v3161 = vpack.c.b16 %v3145, %v3145
      %v3162 = vpack.c.b16 %v3146, %v3146
      %v3163 = vpack.c.b16 %v3147, %v3147
      %v3164 = vpack.c.b16 %v3148, %v3148
      %v3165 = vpack.c.b16 %v3149, %v3149
      %v3166 = vpack.c.b16 %v3150, %v3150
      %v3167 = vpack.c.b16 %v3151, %v3151
      %v3168 = vpack.c.b16 %v3152, %v3152
      %v3169 = vpack.c.b16 %v3153, %v3153
      %v3170 = vpack.c.b16 %v3154, %v3154
      %v3171 = vpack.c.b16 %v3155, %v3155
      %v3172 = vpack.c.b16 %v3156, %v3156
      %v3173 = vpack.c.b16 %v3157, %v3157
      %v3174 = vunpack.c.l.b16 %v3158
      %v3175 = vunpack.c.l.b16 %v3159
      %v3176 = vunpack.c.l.b16 %v3160
      %v3177 = vunpack.c.l.b16 %v3161
      %v3178 = vunpack.c.l.b16 %v3162
      %v3179 = vunpack.c.l.b16 %v3163
      %v3180 = vunpack.c.l.b16 %v3164
      %v3181 = vunpack.c.l.b16 %v3165
      %v3182 = vunpack.c.l.b16 %v3166
      %v3183 = vunpack.c.l.b16 %v3167
      %v3184 = vunpack.c.l.b16 %v3168
      %v3185 = vunpack.c.l.b16 %v3169
      %v3186 = vunpack.c.l.b16 %v3170
      %v3187 = vunpack.c.l.b16 %v3171
      %v3188 = vunpack.c.l.b16 %v3172
      %v3189 = vunpack.c.l.b16 %v3173
      %v3190 = vrot.slane %v3175, 7
      %v3191 = vsel %vm1973, %v3190, %v3174
      %v3192 = vrot.slane %v3176, 6
      %v3193 = vsel %vm1976, %v3192, %v3191
      %v3194 = vrot.slane %v3177, 5
      %v3195 = vsel %vm1979, %v3194, %v3193
      %v3196 = vrot.slane %v3178, 4
      %v3197 = vsel %vm1982, %v3196, %v3195
      %v3198 = vrot.slane %v3179, 3
      %v3199 = vsel %vm1985, %v3198, %v3197
      %v3200 = vrot.slane %v3180, 2
      %v3201 = vsel %vm1988, %v3200, %v3199
      %v3202 = vrot.slane %v3181, 1
      %v3203 = vsel %vm1991, %v3202, %v3201
      %v3204 = vrot.slane %v3183, 7
      %v3205 = vsel %vm1973, %v3204, %v3182
      %v3206 = vrot.slane %v3184, 6
      %v3207 = vsel %vm1976, %v3206, %v3205
      %v3208 = vrot.slane %v3185, 5
      %v3209 = vsel %vm1979, %v3208, %v3207
      %v3210 = vrot.slane %v3186, 4
      %v3211 = vsel %vm1982, %v3210, %v3209
      %v3212 = vrot.slane %v3187, 3
      %v3213 = vsel %vm1985, %v3212, %v3211
      %v3214 = vrot.slane %v3188, 2
      %v3215 = vsel %vm1988, %v3214, %v3213
      %v3216 = vrot.slane %v3189, 1
      %v3217 = vsel %vm1991, %v3216, %v3215
      %v3218 = vpack.c.b16 %v3203, %v3203
      %v3219 = vpack.c.b16 %v3217, %v3217
      %3220 = vrot.lane.b32.xlu0 %v3218, 72
      %v3221 = vpop.permute.xlu0 %3220
      %3222 = vrot.lane.b32.xlu0 %v3219, 72
      %v3223 = vpop.permute.xlu0 %3222
      %vm3226 = vcmask 650816
      %3227 = vst.msk [vmem:[%s170] sm:$0xf] %vm3226, %v3221
      %3228 = vst.msk [vmem:[%s170 + $0x4] sm:$0xf] %vm3226, %v3223
      %v3229 = vld [vmem:[#allocation3 + $0xa] sm:$0x1]
      %v3230 = vld [vmem:[#allocation3 + $0x1a] sm:$0x1]
      %v3231 = vld [vmem:[#allocation3 + $0x2a] sm:$0x1]
      %v3232 = vld [vmem:[#allocation3 + $0x3a] sm:$0x1]
      %v3233 = vld [vmem:[#allocation3 + $0x4a] sm:$0x1]
      %v3234 = vld [vmem:[#allocation3 + $0x5a] sm:$0x1]
      %v3235 = vld [vmem:[#allocation3 + $0x6a] sm:$0x1]
      %v3236 = vld [vmem:[#allocation3 + $0x7a] sm:$0x1]
      %v3237 = vld [vmem:[#allocation3 + $0x8a] sm:$0x1]
      %v3238 = vld [vmem:[#allocation3 + $0x9a] sm:$0x1]
      %v3239 = vld [vmem:[#allocation3 + $0xaa] sm:$0x1]
      %v3240 = vld [vmem:[#allocation3 + $0xba] sm:$0x1]
      %v3241 = vld [vmem:[#allocation3 + $0xca] sm:$0x1]
      %v3242 = vld [vmem:[#allocation3 + $0xda] sm:$0x1]
      %v3243 = vld [vmem:[#allocation3 + $0xea] sm:$0x1]
      %v3244 = vld [vmem:[#allocation3 + $0xfa] sm:$0x1]
      %v3245 = vpack.c.bf16 %v3229, %v3229
      %v3246 = vpack.c.bf16 %v3230, %v3230
      %v3247 = vpack.c.bf16 %v3231, %v3231
      %v3248 = vpack.c.bf16 %v3232, %v3232
      %v3249 = vpack.c.bf16 %v3233, %v3233
      %v3250 = vpack.c.bf16 %v3234, %v3234
      %v3251 = vpack.c.bf16 %v3235, %v3235
      %v3252 = vpack.c.bf16 %v3236, %v3236
      %v3253 = vpack.c.bf16 %v3237, %v3237
      %v3254 = vpack.c.bf16 %v3238, %v3238
      %v3255 = vpack.c.bf16 %v3239, %v3239
      %v3256 = vpack.c.bf16 %v3240, %v3240
      %v3257 = vpack.c.bf16 %v3241, %v3241
      %v3258 = vpack.c.bf16 %v3242, %v3242
      %v3259 = vpack.c.bf16 %v3243, %v3243
      %v3260 = vpack.c.bf16 %v3244, %v3244
      %v3277 = vunpack.c.l.b16 %v3245
      %v3278 = vunpack.c.l.b16 %v3246
      %v3279 = vunpack.c.l.b16 %v3247
      %v3280 = vunpack.c.l.b16 %v3248
      %v3281 = vunpack.c.l.b16 %v3249
      %v3282 = vunpack.c.l.b16 %v3250
      %v3283 = vunpack.c.l.b16 %v3251
      %v3284 = vunpack.c.l.b16 %v3252
      %v3285 = vunpack.c.l.b16 %v3253
      %v3286 = vunpack.c.l.b16 %v3254
      %v3287 = vunpack.c.l.b16 %v3255
      %v3288 = vunpack.c.l.b16 %v3256
      %v3289 = vunpack.c.l.b16 %v3257
      %v3290 = vunpack.c.l.b16 %v3258
      %v3291 = vunpack.c.l.b16 %v3259
      %v3292 = vunpack.c.l.b16 %v3260
      %v3293 = vpack.c.b16 %v3277, %v3277
      %v3294 = vpack.c.b16 %v3278, %v3278
      %v3295 = vpack.c.b16 %v3279, %v3279
      %v3296 = vpack.c.b16 %v3280, %v3280
      %v3297 = vpack.c.b16 %v3281, %v3281
      %v3298 = vpack.c.b16 %v3282, %v3282
      %v3299 = vpack.c.b16 %v3283, %v3283
      %v3300 = vpack.c.b16 %v3284, %v3284
      %v3301 = vpack.c.b16 %v3285, %v3285
      %v3302 = vpack.c.b16 %v3286, %v3286
      %v3303 = vpack.c.b16 %v3287, %v3287
      %v3304 = vpack.c.b16 %v3288, %v3288
      %v3305 = vpack.c.b16 %v3289, %v3289
      %v3306 = vpack.c.b16 %v3290, %v3290
      %v3307 = vpack.c.b16 %v3291, %v3291
      %v3308 = vpack.c.b16 %v3292, %v3292
      %v3309 = vunpack.c.l.b16 %v3293
      %v3310 = vunpack.c.l.b16 %v3294
      %v3311 = vunpack.c.l.b16 %v3295
      %v3312 = vunpack.c.l.b16 %v3296
      %v3313 = vunpack.c.l.b16 %v3297
      %v3314 = vunpack.c.l.b16 %v3298
      %v3315 = vunpack.c.l.b16 %v3299
      %v3316 = vunpack.c.l.b16 %v3300
      %v3317 = vunpack.c.l.b16 %v3301
      %v3318 = vunpack.c.l.b16 %v3302
      %v3319 = vunpack.c.l.b16 %v3303
      %v3320 = vunpack.c.l.b16 %v3304
      %v3321 = vunpack.c.l.b16 %v3305
      %v3322 = vunpack.c.l.b16 %v3306
      %v3323 = vunpack.c.l.b16 %v3307
      %v3324 = vunpack.c.l.b16 %v3308
      %v3325 = vrot.slane %v3310, 7
      %v3326 = vsel %vm1973, %v3325, %v3309
      %v3327 = vrot.slane %v3311, 6
      %v3328 = vsel %vm1976, %v3327, %v3326
      %v3329 = vrot.slane %v3312, 5
      %v3330 = vsel %vm1979, %v3329, %v3328
      %v3331 = vrot.slane %v3313, 4
      %v3332 = vsel %vm1982, %v3331, %v3330
      %v3333 = vrot.slane %v3314, 3
      %v3334 = vsel %vm1985, %v3333, %v3332
      %v3335 = vrot.slane %v3315, 2
      %v3336 = vsel %vm1988, %v3335, %v3334
      %v3337 = vrot.slane %v3316, 1
      %v3338 = vsel %vm1991, %v3337, %v3336
      %v3339 = vrot.slane %v3318, 7
      %v3340 = vsel %vm1973, %v3339, %v3317
      %v3341 = vrot.slane %v3319, 6
      %v3342 = vsel %vm1976, %v3341, %v3340
      %v3343 = vrot.slane %v3320, 5
      %v3344 = vsel %vm1979, %v3343, %v3342
      %v3345 = vrot.slane %v3321, 4
      %v3346 = vsel %vm1982, %v3345, %v3344
      %v3347 = vrot.slane %v3322, 3
      %v3348 = vsel %vm1985, %v3347, %v3346
      %v3349 = vrot.slane %v3323, 2
      %v3350 = vsel %vm1988, %v3349, %v3348
      %v3351 = vrot.slane %v3324, 1
      %v3352 = vsel %vm1991, %v3351, %v3350
      %v3353 = vpack.c.b16 %v3338, %v3338
      %v3354 = vpack.c.b16 %v3352, %v3352
      %3355 = vrot.lane.b32.xlu0 %v3353, 80
      %v3356 = vpop.permute.xlu0 %3355
      %3357 = vrot.lane.b32.xlu0 %v3354, 80
      %v3358 = vpop.permute.xlu0 %3357
      %vm3361 = vcmask 716416
      %3362 = vst.msk [vmem:[%s170] sm:$0xf] %vm3361, %v3356
      %3363 = vst.msk [vmem:[%s170 + $0x4] sm:$0xf] %vm3361, %v3358
      %v3364 = vld [vmem:[#allocation3 + $0xb] sm:$0x1]
      %v3365 = vld [vmem:[#allocation3 + $0x1b] sm:$0x1]
      %v3366 = vld [vmem:[#allocation3 + $0x2b] sm:$0x1]
      %v3367 = vld [vmem:[#allocation3 + $0x3b] sm:$0x1]
      %v3368 = vld [vmem:[#allocation3 + $0x4b] sm:$0x1]
      %v3369 = vld [vmem:[#allocation3 + $0x5b] sm:$0x1]
      %v3370 = vld [vmem:[#allocation3 + $0x6b] sm:$0x1]
      %v3371 = vld [vmem:[#allocation3 + $0x7b] sm:$0x1]
      %v3372 = vld [vmem:[#allocation3 + $0x8b] sm:$0x1]
      %v3373 = vld [vmem:[#allocation3 + $0x9b] sm:$0x1]
      %v3374 = vld [vmem:[#allocation3 + $0xab] sm:$0x1]
      %v3375 = vld [vmem:[#allocation3 + $0xbb] sm:$0x1]
      %v3376 = vld [vmem:[#allocation3 + $0xcb] sm:$0x1]
      %v3377 = vld [vmem:[#allocation3 + $0xdb] sm:$0x1]
      %v3378 = vld [vmem:[#allocation3 + $0xeb] sm:$0x1]
      %v3379 = vld [vmem:[#allocation3 + $0xfb] sm:$0x1]
      %v3380 = vpack.c.bf16 %v3364, %v3364
      %v3381 = vpack.c.bf16 %v3365, %v3365
      %v3382 = vpack.c.bf16 %v3366, %v3366
      %v3383 = vpack.c.bf16 %v3367, %v3367
      %v3384 = vpack.c.bf16 %v3368, %v3368
      %v3385 = vpack.c.bf16 %v3369, %v3369
      %v3386 = vpack.c.bf16 %v3370, %v3370
      %v3387 = vpack.c.bf16 %v3371, %v3371
      %v3388 = vpack.c.bf16 %v3372, %v3372
      %v3389 = vpack.c.bf16 %v3373, %v3373
      %v3390 = vpack.c.bf16 %v3374, %v3374
      %v3391 = vpack.c.bf16 %v3375, %v3375
      %v3392 = vpack.c.bf16 %v3376, %v3376
      %v3393 = vpack.c.bf16 %v3377, %v3377
      %v3394 = vpack.c.bf16 %v3378, %v3378
      %v3395 = vpack.c.bf16 %v3379, %v3379
      %v3412 = vunpack.c.l.b16 %v3380
      %v3413 = vunpack.c.l.b16 %v3381
      %v3414 = vunpack.c.l.b16 %v3382
      %v3415 = vunpack.c.l.b16 %v3383
      %v3416 = vunpack.c.l.b16 %v3384
      %v3417 = vunpack.c.l.b16 %v3385
      %v3418 = vunpack.c.l.b16 %v3386
      %v3419 = vunpack.c.l.b16 %v3387
      %v3420 = vunpack.c.l.b16 %v3388
      %v3421 = vunpack.c.l.b16 %v3389
      %v3422 = vunpack.c.l.b16 %v3390
      %v3423 = vunpack.c.l.b16 %v3391
      %v3424 = vunpack.c.l.b16 %v3392
      %v3425 = vunpack.c.l.b16 %v3393
      %v3426 = vunpack.c.l.b16 %v3394
      %v3427 = vunpack.c.l.b16 %v3395
      %v3428 = vpack.c.b16 %v3412, %v3412
      %v3429 = vpack.c.b16 %v3413, %v3413
      %v3430 = vpack.c.b16 %v3414, %v3414
      %v3431 = vpack.c.b16 %v3415, %v3415
      %v3432 = vpack.c.b16 %v3416, %v3416
      %v3433 = vpack.c.b16 %v3417, %v3417
      %v3434 = vpack.c.b16 %v3418, %v3418
      %v3435 = vpack.c.b16 %v3419, %v3419
      %v3436 = vpack.c.b16 %v3420, %v3420
      %v3437 = vpack.c.b16 %v3421, %v3421
      %v3438 = vpack.c.b16 %v3422, %v3422
      %v3439 = vpack.c.b16 %v3423, %v3423
      %v3440 = vpack.c.b16 %v3424, %v3424
      %v3441 = vpack.c.b16 %v3425, %v3425
      %v3442 = vpack.c.b16 %v3426, %v3426
      %v3443 = vpack.c.b16 %v3427, %v3427
      %v3444 = vunpack.c.l.b16 %v3428
      %v3445 = vunpack.c.l.b16 %v3429
      %v3446 = vunpack.c.l.b16 %v3430
      %v3447 = vunpack.c.l.b16 %v3431
      %v3448 = vunpack.c.l.b16 %v3432
      %v3449 = vunpack.c.l.b16 %v3433
      %v3450 = vunpack.c.l.b16 %v3434
      %v3451 = vunpack.c.l.b16 %v3435
      %v3452 = vunpack.c.l.b16 %v3436
      %v3453 = vunpack.c.l.b16 %v3437
      %v3454 = vunpack.c.l.b16 %v3438
      %v3455 = vunpack.c.l.b16 %v3439
      %v3456 = vunpack.c.l.b16 %v3440
      %v3457 = vunpack.c.l.b16 %v3441
      %v3458 = vunpack.c.l.b16 %v3442
      %v3459 = vunpack.c.l.b16 %v3443
      %v3460 = vrot.slane %v3445, 7
      %v3461 = vsel %vm1973, %v3460, %v3444
      %v3462 = vrot.slane %v3446, 6
      %v3463 = vsel %vm1976, %v3462, %v3461
      %v3464 = vrot.slane %v3447, 5
      %v3465 = vsel %vm1979, %v3464, %v3463
      %v3466 = vrot.slane %v3448, 4
      %v3467 = vsel %vm1982, %v3466, %v3465
      %v3468 = vrot.slane %v3449, 3
      %v3469 = vsel %vm1985, %v3468, %v3467
      %v3470 = vrot.slane %v3450, 2
      %v3471 = vsel %vm1988, %v3470, %v3469
      %v3472 = vrot.slane %v3451, 1
      %v3473 = vsel %vm1991, %v3472, %v3471
      %v3474 = vrot.slane %v3453, 7
      %v3475 = vsel %vm1973, %v3474, %v3452
      %v3476 = vrot.slane %v3454, 6
      %v3477 = vsel %vm1976, %v3476, %v3475
      %v3478 = vrot.slane %v3455, 5
      %v3479 = vsel %vm1979, %v3478, %v3477
      %v3480 = vrot.slane %v3456, 4
      %v3481 = vsel %vm1982, %v3480, %v3479
      %v3482 = vrot.slane %v3457, 3
      %v3483 = vsel %vm1985, %v3482, %v3481
      %v3484 = vrot.slane %v3458, 2
      %v3485 = vsel %vm1988, %v3484, %v3483
      %v3486 = vrot.slane %v3459, 1
      %v3487 = vsel %vm1991, %v3486, %v3485
      %v3488 = vpack.c.b16 %v3473, %v3473
      %v3489 = vpack.c.b16 %v3487, %v3487
      %3490 = vrot.lane.b32.xlu0 %v3488, 88
      %v3491 = vpop.permute.xlu0 %3490
      %3492 = vrot.lane.b32.xlu0 %v3489, 88
      %v3493 = vpop.permute.xlu0 %3492
      %vm3496 = vcmask 782016
      %3497 = vst.msk [vmem:[%s170] sm:$0xf] %vm3496, %v3491
      %3498 = vst.msk [vmem:[%s170 + $0x4] sm:$0xf] %vm3496, %v3493
      %v3499 = vld [vmem:[#allocation3 + $0xc] sm:$0x1]
      %v3500 = vld [vmem:[#allocation3 + $0x1c] sm:$0x1]
      %v3501 = vld [vmem:[#allocation3 + $0x2c] sm:$0x1]
      %v3502 = vld [vmem:[#allocation3 + $0x3c] sm:$0x1]
      %v3503 = vld [vmem:[#allocation3 + $0x4c] sm:$0x1]
      %v3504 = vld [vmem:[#allocation3 + $0x5c] sm:$0x1]
      %v3505 = vld [vmem:[#allocation3 + $0x6c] sm:$0x1]
      %v3506 = vld [vmem:[#allocation3 + $0x7c] sm:$0x1]
      %v3507 = vld [vmem:[#allocation3 + $0x8c] sm:$0x1]
      %v3508 = vld [vmem:[#allocation3 + $0x9c] sm:$0x1]
      %v3509 = vld [vmem:[#allocation3 + $0xac] sm:$0x1]
      %v3510 = vld [vmem:[#allocation3 + $0xbc] sm:$0x1]
      %v3511 = vld [vmem:[#allocation3 + $0xcc] sm:$0x1]
      %v3512 = vld [vmem:[#allocation3 + $0xdc] sm:$0x1]
      %v3513 = vld [vmem:[#allocation3 + $0xec] sm:$0x1]
      %v3514 = vld [vmem:[#allocation3 + $0xfc] sm:$0x1]
      %v3515 = vpack.c.bf16 %v3499, %v3499
      %v3516 = vpack.c.bf16 %v3500, %v3500
      %v3517 = vpack.c.bf16 %v3501, %v3501
      %v3518 = vpack.c.bf16 %v3502, %v3502
      %v3519 = vpack.c.bf16 %v3503, %v3503
      %v3520 = vpack.c.bf16 %v3504, %v3504
      %v3521 = vpack.c.bf16 %v3505, %v3505
      %v3522 = vpack.c.bf16 %v3506, %v3506
      %v3523 = vpack.c.bf16 %v3507, %v3507
      %v3524 = vpack.c.bf16 %v3508, %v3508
      %v3525 = vpack.c.bf16 %v3509, %v3509
      %v3526 = vpack.c.bf16 %v3510, %v3510
      %v3527 = vpack.c.bf16 %v3511, %v3511
      %v3528 = vpack.c.bf16 %v3512, %v3512
      %v3529 = vpack.c.bf16 %v3513, %v3513
      %v3530 = vpack.c.bf16 %v3514, %v3514
      %v3547 = vunpack.c.l.b16 %v3515
      %v3548 = vunpack.c.l.b16 %v3516
      %v3549 = vunpack.c.l.b16 %v3517
      %v3550 = vunpack.c.l.b16 %v3518
      %v3551 = vunpack.c.l.b16 %v3519
      %v3552 = vunpack.c.l.b16 %v3520
      %v3553 = vunpack.c.l.b16 %v3521
      %v3554 = vunpack.c.l.b16 %v3522
      %v3555 = vunpack.c.l.b16 %v3523
      %v3556 = vunpack.c.l.b16 %v3524
      %v3557 = vunpack.c.l.b16 %v3525
      %v3558 = vunpack.c.l.b16 %v3526
      %v3559 = vunpack.c.l.b16 %v3527
      %v3560 = vunpack.c.l.b16 %v3528
      %v3561 = vunpack.c.l.b16 %v3529
      %v3562 = vunpack.c.l.b16 %v3530
      %v3563 = vpack.c.b16 %v3547, %v3547
      %v3564 = vpack.c.b16 %v3548, %v3548
      %v3565 = vpack.c.b16 %v3549, %v3549
      %v3566 = vpack.c.b16 %v3550, %v3550
      %v3567 = vpack.c.b16 %v3551, %v3551
      %v3568 = vpack.c.b16 %v3552, %v3552
      %v3569 = vpack.c.b16 %v3553, %v3553
      %v3570 = vpack.c.b16 %v3554, %v3554
      %v3571 = vpack.c.b16 %v3555, %v3555
      %v3572 = vpack.c.b16 %v3556, %v3556
      %v3573 = vpack.c.b16 %v3557, %v3557
      %v3574 = vpack.c.b16 %v3558, %v3558
      %v3575 = vpack.c.b16 %v3559, %v3559
      %v3576 = vpack.c.b16 %v3560, %v3560
      %v3577 = vpack.c.b16 %v3561, %v3561
      %v3578 = vpack.c.b16 %v3562, %v3562
      %v3579 = vunpack.c.l.b16 %v3563
      %v3580 = vunpack.c.l.b16 %v3564
      %v3581 = vunpack.c.l.b16 %v3565
      %v3582 = vunpack.c.l.b16 %v3566
      %v3583 = vunpack.c.l.b16 %v3567
      %v3584 = vunpack.c.l.b16 %v3568
      %v3585 = vunpack.c.l.b16 %v3569
      %v3586 = vunpack.c.l.b16 %v3570
      %v3587 = vunpack.c.l.b16 %v3571
      %v3588 = vunpack.c.l.b16 %v3572
      %v3589 = vunpack.c.l.b16 %v3573
      %v3590 = vunpack.c.l.b16 %v3574
      %v3591 = vunpack.c.l.b16 %v3575
      %v3592 = vunpack.c.l.b16 %v3576
      %v3593 = vunpack.c.l.b16 %v3577
      %v3594 = vunpack.c.l.b16 %v3578
      %v3595 = vrot.slane %v3580, 7
      %v3596 = vsel %vm1973, %v3595, %v3579
      %v3597 = vrot.slane %v3581, 6
      %v3598 = vsel %vm1976, %v3597, %v3596
      %v3599 = vrot.slane %v3582, 5
      %v3600 = vsel %vm1979, %v3599, %v3598
      %v3601 = vrot.slane %v3583, 4
      %v3602 = vsel %vm1982, %v3601, %v3600
      %v3603 = vrot.slane %v3584, 3
      %v3604 = vsel %vm1985, %v3603, %v3602
      %v3605 = vrot.slane %v3585, 2
      %v3606 = vsel %vm1988, %v3605, %v3604
      %v3607 = vrot.slane %v3586, 1
      %v3608 = vsel %vm1991, %v3607, %v3606
      %v3609 = vrot.slane %v3588, 7
      %v3610 = vsel %vm1973, %v3609, %v3587
      %v3611 = vrot.slane %v3589, 6
      %v3612 = vsel %vm1976, %v3611, %v3610
      %v3613 = vrot.slane %v3590, 5
      %v3614 = vsel %vm1979, %v3613, %v3612
      %v3615 = vrot.slane %v3591, 4
      %v3616 = vsel %vm1982, %v3615, %v3614
      %v3617 = vrot.slane %v3592, 3
      %v3618 = vsel %vm1985, %v3617, %v3616
      %v3619 = vrot.slane %v3593, 2
      %v3620 = vsel %vm1988, %v3619, %v3618
      %v3621 = vrot.slane %v3594, 1
      %v3622 = vsel %vm1991, %v3621, %v3620
      %v3623 = vpack.c.b16 %v3608, %v3608
      %v3624 = vpack.c.b16 %v3622, %v3622
      %3625 = vrot.lane.b32.xlu0 %v3623, 96
      %v3626 = vpop.permute.xlu0 %3625
      %3627 = vrot.lane.b32.xlu0 %v3624, 96
      %v3628 = vpop.permute.xlu0 %3627
      %vm3631 = vcmask 847616
      %3632 = vst.msk [vmem:[%s170] sm:$0xf] %vm3631, %v3626
      %3633 = vst.msk [vmem:[%s170 + $0x4] sm:$0xf] %vm3631, %v3628
      %v3634 = vld [vmem:[#allocation3 + $0xd] sm:$0x1]
      %v3635 = vld [vmem:[#allocation3 + $0x1d] sm:$0x1]
      %v3636 = vld [vmem:[#allocation3 + $0x2d] sm:$0x1]
      %v3637 = vld [vmem:[#allocation3 + $0x3d] sm:$0x1]
      %v3638 = vld [vmem:[#allocation3 + $0x4d] sm:$0x1]
      %v3639 = vld [vmem:[#allocation3 + $0x5d] sm:$0x1]
      %v3640 = vld [vmem:[#allocation3 + $0x6d] sm:$0x1]
      %v3641 = vld [vmem:[#allocation3 + $0x7d] sm:$0x1]
      %v3642 = vld [vmem:[#allocation3 + $0x8d] sm:$0x1]
      %v3643 = vld [vmem:[#allocation3 + $0x9d] sm:$0x1]
      %v3644 = vld [vmem:[#allocation3 + $0xad] sm:$0x1]
      %v3645 = vld [vmem:[#allocation3 + $0xbd] sm:$0x1]
      %v3646 = vld [vmem:[#allocation3 + $0xcd] sm:$0x1]
      %v3647 = vld [vmem:[#allocation3 + $0xdd] sm:$0x1]
      %v3648 = vld [vmem:[#allocation3 + $0xed] sm:$0x1]
      %v3649 = vld [vmem:[#allocation3 + $0xfd] sm:$0x1]
      %v3650 = vpack.c.bf16 %v3634, %v3634
      %v3651 = vpack.c.bf16 %v3635, %v3635
      %v3652 = vpack.c.bf16 %v3636, %v3636
      %v3653 = vpack.c.bf16 %v3637, %v3637
      %v3654 = vpack.c.bf16 %v3638, %v3638
      %v3655 = vpack.c.bf16 %v3639, %v3639
      %v3656 = vpack.c.bf16 %v3640, %v3640
      %v3657 = vpack.c.bf16 %v3641, %v3641
      %v3658 = vpack.c.bf16 %v3642, %v3642
      %v3659 = vpack.c.bf16 %v3643, %v3643
      %v3660 = vpack.c.bf16 %v3644, %v3644
      %v3661 = vpack.c.bf16 %v3645, %v3645
      %v3662 = vpack.c.bf16 %v3646, %v3646
      %v3663 = vpack.c.bf16 %v3647, %v3647
      %v3664 = vpack.c.bf16 %v3648, %v3648
      %v3665 = vpack.c.bf16 %v3649, %v3649
      %v3682 = vunpack.c.l.b16 %v3650
      %v3683 = vunpack.c.l.b16 %v3651
      %v3684 = vunpack.c.l.b16 %v3652
      %v3685 = vunpack.c.l.b16 %v3653
      %v3686 = vunpack.c.l.b16 %v3654
      %v3687 = vunpack.c.l.b16 %v3655
      %v3688 = vunpack.c.l.b16 %v3656
      %v3689 = vunpack.c.l.b16 %v3657
      %v3690 = vunpack.c.l.b16 %v3658
      %v3691 = vunpack.c.l.b16 %v3659
      %v3692 = vunpack.c.l.b16 %v3660
      %v3693 = vunpack.c.l.b16 %v3661
      %v3694 = vunpack.c.l.b16 %v3662
      %v3695 = vunpack.c.l.b16 %v3663
      %v3696 = vunpack.c.l.b16 %v3664
      %v3697 = vunpack.c.l.b16 %v3665
      %v3698 = vpack.c.b16 %v3682, %v3682
      %v3699 = vpack.c.b16 %v3683, %v3683
      %v3700 = vpack.c.b16 %v3684, %v3684
      %v3701 = vpack.c.b16 %v3685, %v3685
      %v3702 = vpack.c.b16 %v3686, %v3686
      %v3703 = vpack.c.b16 %v3687, %v3687
      %v3704 = vpack.c.b16 %v3688, %v3688
      %v3705 = vpack.c.b16 %v3689, %v3689
      %v3706 = vpack.c.b16 %v3690, %v3690
      %v3707 = vpack.c.b16 %v3691, %v3691
      %v3708 = vpack.c.b16 %v3692, %v3692
      %v3709 = vpack.c.b16 %v3693, %v3693
      %v3710 = vpack.c.b16 %v3694, %v3694
      %v3711 = vpack.c.b16 %v3695, %v3695
      %v3712 = vpack.c.b16 %v3696, %v3696
      %v3713 = vpack.c.b16 %v3697, %v3697
      %v3714 = vunpack.c.l.b16 %v3698
      %v3715 = vunpack.c.l.b16 %v3699
      %v3716 = vunpack.c.l.b16 %v3700
      %v3717 = vunpack.c.l.b16 %v3701
      %v3718 = vunpack.c.l.b16 %v3702
      %v3719 = vunpack.c.l.b16 %v3703
      %v3720 = vunpack.c.l.b16 %v3704
      %v3721 = vunpack.c.l.b16 %v3705
      %v3722 = vunpack.c.l.b16 %v3706
      %v3723 = vunpack.c.l.b16 %v3707
      %v3724 = vunpack.c.l.b16 %v3708
      %v3725 = vunpack.c.l.b16 %v3709
      %v3726 = vunpack.c.l.b16 %v3710
      %v3727 = vunpack.c.l.b16 %v3711
      %v3728 = vunpack.c.l.b16 %v3712
      %v3729 = vunpack.c.l.b16 %v3713
      %v3730 = vrot.slane %v3715, 7
      %v3731 = vsel %vm1973, %v3730, %v3714
      %v3732 = vrot.slane %v3716, 6
      %v3733 = vsel %vm1976, %v3732, %v3731
      %v3734 = vrot.slane %v3717, 5
      %v3735 = vsel %vm1979, %v3734, %v3733
      %v3736 = vrot.slane %v3718, 4
      %v3737 = vsel %vm1982, %v3736, %v3735
      %v3738 = vrot.slane %v3719, 3
      %v3739 = vsel %vm1985, %v3738, %v3737
      %v3740 = vrot.slane %v3720, 2
      %v3741 = vsel %vm1988, %v3740, %v3739
      %v3742 = vrot.slane %v3721, 1
      %v3743 = vsel %vm1991, %v3742, %v3741
      %v3744 = vrot.slane %v3723, 7
      %v3745 = vsel %vm1973, %v3744, %v3722
      %v3746 = vrot.slane %v3724, 6
      %v3747 = vsel %vm1976, %v3746, %v3745
      %v3748 = vrot.slane %v3725, 5
      %v3749 = vsel %vm1979, %v3748, %v3747
      %v3750 = vrot.slane %v3726, 4
      %v3751 = vsel %vm1982, %v3750, %v3749
      %v3752 = vrot.slane %v3727, 3
      %v3753 = vsel %vm1985, %v3752, %v3751
      %v3754 = vrot.slane %v3728, 2
      %v3755 = vsel %vm1988, %v3754, %v3753
      %v3756 = vrot.slane %v3729, 1
      %v3757 = vsel %vm1991, %v3756, %v3755
      %v3758 = vpack.c.b16 %v3743, %v3743
      %v3759 = vpack.c.b16 %v3757, %v3757
      %3760 = vrot.lane.b32.xlu0 %v3758, 104
      %v3761 = vpop.permute.xlu0 %3760
      %3762 = vrot.lane.b32.xlu0 %v3759, 104
      %v3763 = vpop.permute.xlu0 %3762
      %vm3766 = vcmask 913216
      %3767 = vst.msk [vmem:[%s170] sm:$0xf] %vm3766, %v3761
      %3768 = vst.msk [vmem:[%s170 + $0x4] sm:$0xf] %vm3766, %v3763
      %v3769 = vld [vmem:[#allocation3 + $0xe] sm:$0x1]
      %v3770 = vld [vmem:[#allocation3 + $0x1e] sm:$0x1]
      %v3771 = vld [vmem:[#allocation3 + $0x2e] sm:$0x1]
      %v3772 = vld [vmem:[#allocation3 + $0x3e] sm:$0x1]
      %v3773 = vld [vmem:[#allocation3 + $0x4e] sm:$0x1]
      %v3774 = vld [vmem:[#allocation3 + $0x5e] sm:$0x1]
      %v3775 = vld [vmem:[#allocation3 + $0x6e] sm:$0x1]
      %v3776 = vld [vmem:[#allocation3 + $0x7e] sm:$0x1]
      %v3777 = vld [vmem:[#allocation3 + $0x8e] sm:$0x1]
      %v3778 = vld [vmem:[#allocation3 + $0x9e] sm:$0x1]
      %v3779 = vld [vmem:[#allocation3 + $0xae] sm:$0x1]
      %v3780 = vld [vmem:[#allocation3 + $0xbe] sm:$0x1]
      %v3781 = vld [vmem:[#allocation3 + $0xce] sm:$0x1]
      %v3782 = vld [vmem:[#allocation3 + $0xde] sm:$0x1]
      %v3783 = vld [vmem:[#allocation3 + $0xee] sm:$0x1]
      %v3784 = vld [vmem:[#allocation3 + $0xfe] sm:$0x1]
      %v3785 = vpack.c.bf16 %v3769, %v3769
      %v3786 = vpack.c.bf16 %v3770, %v3770
      %v3787 = vpack.c.bf16 %v3771, %v3771
      %v3788 = vpack.c.bf16 %v3772, %v3772
      %v3789 = vpack.c.bf16 %v3773, %v3773
      %v3790 = vpack.c.bf16 %v3774, %v3774
      %v3791 = vpack.c.bf16 %v3775, %v3775
      %v3792 = vpack.c.bf16 %v3776, %v3776
      %v3793 = vpack.c.bf16 %v3777, %v3777
      %v3794 = vpack.c.bf16 %v3778, %v3778
      %v3795 = vpack.c.bf16 %v3779, %v3779
      %v3796 = vpack.c.bf16 %v3780, %v3780
      %v3797 = vpack.c.bf16 %v3781, %v3781
      %v3798 = vpack.c.bf16 %v3782, %v3782
      %v3799 = vpack.c.bf16 %v3783, %v3783
      %v3800 = vpack.c.bf16 %v3784, %v3784
      %v3817 = vunpack.c.l.b16 %v3785
      %v3818 = vunpack.c.l.b16 %v3786
      %v3819 = vunpack.c.l.b16 %v3787
      %v3820 = vunpack.c.l.b16 %v3788
      %v3821 = vunpack.c.l.b16 %v3789
      %v3822 = vunpack.c.l.b16 %v3790
      %v3823 = vunpack.c.l.b16 %v3791
      %v3824 = vunpack.c.l.b16 %v3792
      %v3825 = vunpack.c.l.b16 %v3793
      %v3826 = vunpack.c.l.b16 %v3794
      %v3827 = vunpack.c.l.b16 %v3795
      %v3828 = vunpack.c.l.b16 %v3796
      %v3829 = vunpack.c.l.b16 %v3797
      %v3830 = vunpack.c.l.b16 %v3798
      %v3831 = vunpack.c.l.b16 %v3799
      %v3832 = vunpack.c.l.b16 %v3800
      %v3833 = vpack.c.b16 %v3817, %v3817
      %v3834 = vpack.c.b16 %v3818, %v3818
      %v3835 = vpack.c.b16 %v3819, %v3819
      %v3836 = vpack.c.b16 %v3820, %v3820
      %v3837 = vpack.c.b16 %v3821, %v3821
      %v3838 = vpack.c.b16 %v3822, %v3822
      %v3839 = vpack.c.b16 %v3823, %v3823
      %v3840 = vpack.c.b16 %v3824, %v3824
      %v3841 = vpack.c.b16 %v3825, %v3825
      %v3842 = vpack.c.b16 %v3826, %v3826
      %v3843 = vpack.c.b16 %v3827, %v3827
      %v3844 = vpack.c.b16 %v3828, %v3828
      %v3845 = vpack.c.b16 %v3829, %v3829
      %v3846 = vpack.c.b16 %v3830, %v3830
      %v3847 = vpack.c.b16 %v3831, %v3831
      %v3848 = vpack.c.b16 %v3832, %v3832
      %v3849 = vunpack.c.l.b16 %v3833
      %v3850 = vunpack.c.l.b16 %v3834
      %v3851 = vunpack.c.l.b16 %v3835
      %v3852 = vunpack.c.l.b16 %v3836
      %v3853 = vunpack.c.l.b16 %v3837
      %v3854 = vunpack.c.l.b16 %v3838
      %v3855 = vunpack.c.l.b16 %v3839
      %v3856 = vunpack.c.l.b16 %v3840
      %v3857 = vunpack.c.l.b16 %v3841
      %v3858 = vunpack.c.l.b16 %v3842
      %v3859 = vunpack.c.l.b16 %v3843
      %v3860 = vunpack.c.l.b16 %v3844
      %v3861 = vunpack.c.l.b16 %v3845
      %v3862 = vunpack.c.l.b16 %v3846
      %v3863 = vunpack.c.l.b16 %v3847
      %v3864 = vunpack.c.l.b16 %v3848
      %v3865 = vrot.slane %v3850, 7
      %v3866 = vsel %vm1973, %v3865, %v3849
      %v3867 = vrot.slane %v3851, 6
      %v3868 = vsel %vm1976, %v3867, %v3866
      %v3869 = vrot.slane %v3852, 5
      %v3870 = vsel %vm1979, %v3869, %v3868
      %v3871 = vrot.slane %v3853, 4
      %v3872 = vsel %vm1982, %v3871, %v3870
      %v3873 = vrot.slane %v3854, 3
      %v3874 = vsel %vm1985, %v3873, %v3872
      %v3875 = vrot.slane %v3855, 2
      %v3876 = vsel %vm1988, %v3875, %v3874
      %v3877 = vrot.slane %v3856, 1
      %v3878 = vsel %vm1991, %v3877, %v3876
      %v3879 = vrot.slane %v3858, 7
      %v3880 = vsel %vm1973, %v3879, %v3857
      %v3881 = vrot.slane %v3859, 6
      %v3882 = vsel %vm1976, %v3881, %v3880
      %v3883 = vrot.slane %v3860, 5
      %v3884 = vsel %vm1979, %v3883, %v3882
      %v3885 = vrot.slane %v3861, 4
      %v3886 = vsel %vm1982, %v3885, %v3884
      %v3887 = vrot.slane %v3862, 3
      %v3888 = vsel %vm1985, %v3887, %v3886
      %v3889 = vrot.slane %v3863, 2
      %v3890 = vsel %vm1988, %v3889, %v3888
      %v3891 = vrot.slane %v3864, 1
      %v3892 = vsel %vm1991, %v3891, %v3890
      %v3893 = vpack.c.b16 %v3878, %v3878
      %v3894 = vpack.c.b16 %v3892, %v3892
      %3895 = vrot.lane.b32.xlu0 %v3893, 112
      %v3896 = vpop.permute.xlu0 %3895
      %3897 = vrot.lane.b32.xlu0 %v3894, 112
      %v3898 = vpop.permute.xlu0 %3897
      %vm3901 = vcmask 978816
      %3902 = vst.msk [vmem:[%s170] sm:$0xf] %vm3901, %v3896
      %3903 = vst.msk [vmem:[%s170 + $0x4] sm:$0xf] %vm3901, %v3898
      %v3904 = vld [vmem:[#allocation3 + $0xf] sm:$0x1]
      %v3905 = vld [vmem:[#allocation3 + $0x1f] sm:$0x1]
      %v3906 = vld [vmem:[#allocation3 + $0x2f] sm:$0x1]
      %v3907 = vld [vmem:[#allocation3 + $0x3f] sm:$0x1]
      %v3908 = vld [vmem:[#allocation3 + $0x4f] sm:$0x1]
      %v3909 = vld [vmem:[#allocation3 + $0x5f] sm:$0x1]
      %v3910 = vld [vmem:[#allocation3 + $0x6f] sm:$0x1]
      %v3911 = vld [vmem:[#allocation3 + $0x7f] sm:$0x1]
      %v3912 = vld [vmem:[#allocation3 + $0x8f] sm:$0x1]
      %v3913 = vld [vmem:[#allocation3 + $0x9f] sm:$0x1]
      %v3914 = vld [vmem:[#allocation3 + $0xaf] sm:$0x1]
      %v3915 = vld [vmem:[#allocation3 + $0xbf] sm:$0x1]
      %v3916 = vld [vmem:[#allocation3 + $0xcf] sm:$0x1]
      %v3917 = vld [vmem:[#allocation3 + $0xdf] sm:$0x1]
      %v3918 = vld [vmem:[#allocation3 + $0xef] sm:$0x1]
      %v3919 = vld [vmem:[#allocation3 + $0xff] sm:$0x1]
      %v3920 = vpack.c.bf16 %v3904, %v3904
      %v3921 = vpack.c.bf16 %v3905, %v3905
      %v3922 = vpack.c.bf16 %v3906, %v3906
      %v3923 = vpack.c.bf16 %v3907, %v3907
      %v3924 = vpack.c.bf16 %v3908, %v3908
      %v3925 = vpack.c.bf16 %v3909, %v3909
      %v3926 = vpack.c.bf16 %v3910, %v3910
      %v3927 = vpack.c.bf16 %v3911, %v3911
      %v3928 = vpack.c.bf16 %v3912, %v3912
      %v3929 = vpack.c.bf16 %v3913, %v3913
      %v3930 = vpack.c.bf16 %v3914, %v3914
      %v3931 = vpack.c.bf16 %v3915, %v3915
      %v3932 = vpack.c.bf16 %v3916, %v3916
      %v3933 = vpack.c.bf16 %v3917, %v3917
      %v3934 = vpack.c.bf16 %v3918, %v3918
      %v3935 = vpack.c.bf16 %v3919, %v3919
      %v3952 = vunpack.c.l.b16 %v3920
      %v3953 = vunpack.c.l.b16 %v3921
      %v3954 = vunpack.c.l.b16 %v3922
      %v3955 = vunpack.c.l.b16 %v3923
      %v3956 = vunpack.c.l.b16 %v3924
      %v3957 = vunpack.c.l.b16 %v3925
      %v3958 = vunpack.c.l.b16 %v3926
      %v3959 = vunpack.c.l.b16 %v3927
      %v3960 = vunpack.c.l.b16 %v3928
      %v3961 = vunpack.c.l.b16 %v3929
      %v3962 = vunpack.c.l.b16 %v3930
      %v3963 = vunpack.c.l.b16 %v3931
      %v3964 = vunpack.c.l.b16 %v3932
      %v3965 = vunpack.c.l.b16 %v3933
      %v3966 = vunpack.c.l.b16 %v3934
      %v3967 = vunpack.c.l.b16 %v3935
      %v3968 = vpack.c.b16 %v3952, %v3952
      %v3969 = vpack.c.b16 %v3953, %v3953
      %v3970 = vpack.c.b16 %v3954, %v3954
      %v3971 = vpack.c.b16 %v3955, %v3955
      %v3972 = vpack.c.b16 %v3956, %v3956
      %v3973 = vpack.c.b16 %v3957, %v3957
      %v3974 = vpack.c.b16 %v3958, %v3958
      %v3975 = vpack.c.b16 %v3959, %v3959
      %v3976 = vpack.c.b16 %v3960, %v3960
      %v3977 = vpack.c.b16 %v3961, %v3961
      %v3978 = vpack.c.b16 %v3962, %v3962
      %v3979 = vpack.c.b16 %v3963, %v3963
      %v3980 = vpack.c.b16 %v3964, %v3964
      %v3981 = vpack.c.b16 %v3965, %v3965
      %v3982 = vpack.c.b16 %v3966, %v3966
      %v3983 = vpack.c.b16 %v3967, %v3967
      %v3984 = vunpack.c.l.b16 %v3968
      %v3985 = vunpack.c.l.b16 %v3969
      %v3986 = vunpack.c.l.b16 %v3970
      %v3987 = vunpack.c.l.b16 %v3971
      %v3988 = vunpack.c.l.b16 %v3972
      %v3989 = vunpack.c.l.b16 %v3973
      %v3990 = vunpack.c.l.b16 %v3974
      %v3991 = vunpack.c.l.b16 %v3975
      %v3992 = vunpack.c.l.b16 %v3976
      %v3993 = vunpack.c.l.b16 %v3977
      %v3994 = vunpack.c.l.b16 %v3978
      %v3995 = vunpack.c.l.b16 %v3979
      %v3996 = vunpack.c.l.b16 %v3980
      %v3997 = vunpack.c.l.b16 %v3981
      %v3998 = vunpack.c.l.b16 %v3982
      %v3999 = vunpack.c.l.b16 %v3983
      %v4000 = vrot.slane %v3985, 7
      %v4001 = vsel %vm1973, %v4000, %v3984
      %v4002 = vrot.slane %v3986, 6
      %v4003 = vsel %vm1976, %v4002, %v4001
      %v4004 = vrot.slane %v3987, 5
      %v4005 = vsel %vm1979, %v4004, %v4003
      %v4006 = vrot.slane %v3988, 4
      %v4007 = vsel %vm1982, %v4006, %v4005
      %v4008 = vrot.slane %v3989, 3
      %v4009 = vsel %vm1985, %v4008, %v4007
      %v4010 = vrot.slane %v3990, 2
      %v4011 = vsel %vm1988, %v4010, %v4009
      %v4012 = vrot.slane %v3991, 1
      %v4013 = vsel %vm1991, %v4012, %v4011
      %v4014 = vrot.slane %v3993, 7
      %v4015 = vsel %vm1973, %v4014, %v3992
      %v4016 = vrot.slane %v3994, 6
      %v4017 = vsel %vm1976, %v4016, %v4015
      %v4018 = vrot.slane %v3995, 5
      %v4019 = vsel %vm1979, %v4018, %v4017
      %v4020 = vrot.slane %v3996, 4
      %v4021 = vsel %vm1982, %v4020, %v4019
      %v4022 = vrot.slane %v3997, 3
      %v4023 = vsel %vm1985, %v4022, %v4021
      %v4024 = vrot.slane %v3998, 2
      %v4025 = vsel %vm1988, %v4024, %v4023
      %v4026 = vrot.slane %v3999, 1
      %v4027 = vsel %vm1991, %v4026, %v4025
      %v4028 = vpack.c.b16 %v4013, %v4013
      %v4029 = vpack.c.b16 %v4027, %v4027
      %4030 = vrot.lane.b32.xlu0 %v4028, 120
      %v4031 = vpop.permute.xlu0 %4030
      %4032 = vrot.lane.b32.xlu0 %v4029, 120
      %v4033 = vpop.permute.xlu0 %4032
      %vm4036 = vcmask 1044416
      %4037 = vst.msk [vmem:[%s170] sm:$0xf] %vm4036, %v4031
      %4038 = vst.msk [vmem:[%s170 + $0x4] sm:$0xf] %vm4036, %v4033
      %p4039 = scmp.lt.s32.totalorder %s14, 1
      %s4040 = scalar_select %p4039, %s14, 1
      %s4041 = smul.addr %s4040, 2
      %s4042 = smul.addr %s4041, 4
      %s4043 = scalar_lea.vmem %s3, %s4042
      // Predicated region
      $region33: #{_lambda_.6} parent=31 // pred_check
        %p4044 = pneg %p100
      $region34: #{_lambda_.6} parent=31 // pred_check_branch
        %4046 = sbr.rel (%p4044) target = $region36
      $region35: #{_lambda_.6} parent=31 // pred_region
        _
      $region36: #{_lambda_.6} parent=31 // pred_fallthru
        _
    $region32: #{_lambda_.6} parent=5 // pred_fallthru
      _
    %p4047 = scmp.le.s32.totalorder 2, %s9
    // Predicated region
    $region37: #{_lambda_.6} parent=5 // pred_check
      %p4048 = pneg %p4047
    $region38: #{_lambda_.6} parent=5 // pred_check_branch
      %4050 = sbr.rel (%p4048) target = $region40
    $region39: #{_lambda_.6} parent=5 // pred_region
      %s4051 = ssub.s32 %s9, 2
      // Predicated region
      $region41: #{_lambda_.6} parent=39 // pred_check
        %p4052 = pneg %p106
      $region42: #{_lambda_.6} parent=39 // pred_check_branch
        %4054 = sbr.rel (%p4052) target = $region44
      $region43: #{_lambda_.6} parent=39 // pred_region
        %p4055 = scmp.lt.s32.totalorder %s15, 1
        %s4056 = scalar_select %p4055, %s15, 1
        %s4057 = smul.addr %s4056, 2
        %s4058 = smul.addr %s4057, 4
        %s4059 = scalar_lea.vmem %s3, %s4058
      $region44: #{_lambda_.6} parent=39 // pred_fallthru
        _
    $region40: #{_lambda_.6} parent=5 // pred_fallthru
      _
  $region6: #{_lambda_.6} parent=0 // loop_footer
    %s13 = sadd.s32 1, %s9
  $region7: #{_lambda_.6} parent=0 // loop_footer_branch
    %8 = sbr.rel target = $region3
  $region8: #{_lambda_.6} parent=0 // loop_exit
    _

</llo_original>
